<compile_context>
chip_gen: v6e
topology: v6e:2x2x1
jax: 0.10.0
libtpu: 0.0.40
codegen_flags: <defaults>
</compile_context>

<pallas_src>
import functools

import jax
import jax.numpy as jnp
from jax.experimental import pallas as pl
from jax.experimental.pallas import tpu as pltpu


_LANE = 128
_TILE_VMEM_BUDGET = 20 * 1024 * 1024   # budget used for tile-size selection
_VMEM_LIMIT_BYTES = 32 * 1024 * 1024   # scoped VMEM limit (raises v5e default)


def _round_up(v, m):
    return ((v + m - 1) // m) * m


# ----------------------------------------------------------------------------
# Pallas kernel: fused 4-layer pointwise MLP, channels-on-sublanes layout
# ----------------------------------------------------------------------------
def _pointgencon_kernel(x_ref,
                        w1_ref, b1_ref,
                        w2_ref, b2_ref,
                        w3_ref, b3_ref,
                        w4_ref, b4_ref,
                        o_ref, *, bf16_epilogue):
    # x_ref: (C0, tn) tile of the NCW input (batch dim squeezed away); dtype is
    # whatever the caller supplied (f32 or bf16) -- cast only if needed.
    x = x_ref[...]
    if x.dtype != jnp.bfloat16:
        x = x.astype(jnp.bfloat16)

    def hidden(w_ref, b_ref, h):
        acc = jnp.dot(w_ref[...], h, preferred_element_type=jnp.float32)
        if bf16_epilogue:
            # v6e/v7x: bf16 bias-add + ReLU (halves intermediate footprint).
            b = b_ref[...].astype(jnp.bfloat16)
            return jnp.maximum(acc.astype(jnp.bfloat16) + b, 0.0)
        # v5e-safe path: bias / ReLU in f32, then cast for the next MXU op.
        return jnp.maximum(acc + b_ref[...], 0.0).astype(jnp.bfloat16)

    h = hidden(w1_ref, b1_ref, x)
    h = hidden(w2_ref, b2_ref, h)
    h = hidden(w3_ref, b3_ref, h)
    y = jnp.dot(w4_ref[...], h, preferred_element_type=jnp.float32) + b4_ref[...]
    o_ref[...] = jnp.tanh(y)   # tanh kept in f32 on all chips


# ----------------------------------------------------------------------------
# Tile selection (N-aware, VMEM-budgeted, padding-waste <= 127 columns)
# ----------------------------------------------------------------------------
def _vmem_bytes(tn, dims, x_itemsize, inter_bytes, n_xbuf):
    C0, C1, C2, C3, C4p = dims
    x_buf = n_xbuf * C0 * tn * x_itemsize            # pipelined x tiles
    out_buf = 2 * C4p * tn * 4                        # double-buffered output
    inter = 2 * (C1 + C2 + C3) * tn * inter_bytes     # intermediates (slack 2x)
    weights = (2 * (C1 * C0 + C2 * C1 + C3 * C2 + C4p * C3)
               + 4 * (C1 + C2 + C3 + C4p))            # resident bf16 W + f32 b
    return x_buf + out_buf + inter + weights


def _choose_tiling(N, B, dims, x_itemsize, inter_bytes):
    n_pad = _round_up(N, _LANE)
    n_units = n_pad // _LANE
    # tn must be a multiple of 128 that divides n_pad -> no extra padding waste.
    cands = sorted((u for u in range(1, n_units + 1) if n_units % u == 0),
                   reverse=True)
    feasible = []
    for u in cands:
        tn = u * _LANE
        if _vmem_bytes(tn, dims, x_itemsize, inter_bytes, 2) <= _TILE_VMEM_BUDGET:
            feasible.append((tn, n_units // u))
    if not feasible:
        feasible = [(_LANE, n_units)]
    # Prefer >=2 total grid steps so both v7x TensorCores get work (matters
    # when B == 1); otherwise take the largest feasible tile.
    pref = [(tn, t) for (tn, t) in feasible if B * t >= 2]
    tn, tiles = (pref or feasible)[0]
    total_steps = B * tiles
    buffered3 = (total_steps >= 3 and
                 _vmem_bytes(tn, dims, x_itemsize, inter_bytes, 3)
                 <= _TILE_VMEM_BUDGET)
    return n_pad, tn, tiles, buffered3


# ----------------------------------------------------------------------------
# pallas_call wrapper
# ----------------------------------------------------------------------------
def _run_fused_mlp(x, params_folded, *, tn, bf16_epilogue, buffered3):
    """x: (B, C0, N) with N % tn == 0; returns (B, C4_pad, N) float32."""
    (w1, b1), (w2, b2), (w3, b3), (w4, b4) = params_folded
    B, C0, N = x.shape
    C1, C2, C3, C4p = w1.shape[0], w2.shape[0], w3.shape[0], w4.shape[0]
    assert N % tn == 0
    n_tiles = N // tn

    x_spec_kwargs = {}
    if buffered3:
        x_spec_kwargs["pipeline_mode"] = pl.Buffered(3)
    # x tile: (C0, tn) -- channels on sublanes, points on lanes.
    x_spec = pl.BlockSpec((None, C0, tn), lambda b, j: (b, 0, j), **x_spec_kwargs)

    # Constant blocks (weights / biases): full-array blocks with constant
    # index_map, so Pallas keeps them resident in VMEM across the whole grid.
    full = lambda shape: pl.BlockSpec(shape, lambda b, j: (0, 0))

    flops = 2 * B * N * (C0 * C1 + C1 * C2 + C2 * C3 + C3 * C4p)
    transcendentals = B * C4p * N
    bytes_accessed = (x.size * x.dtype.itemsize + B * C4p * N * 4
                      + 2 * (C1 * C0 + C2 * C1 + C3 * C2 + C4p * C3)
                      + 4 * (C1 + C2 + C3 + C4p))

    kernel = functools.partial(_pointgencon_kernel, bf16_epilogue=bf16_epilogue)

    return pl.pallas_call(
        kernel,
        out_shape=jax.ShapeDtypeStruct((B, C4p, N), jnp.float32),
        grid_spec=pltpu.PrefetchScalarGridSpec(
            num_scalar_prefetch=0,
            grid=(B, n_tiles),
            in_specs=[
                x_spec,
                full((C1, C0)), full((C1, 1)),    # layer 1 (BN folded)
                full((C2, C1)), full((C2, 1)),    # layer 2 (BN folded)
                full((C3, C2)), full((C3, 1)),    # layer 3 (BN folded)
                full((C4p, C3)), full((C4p, 1)),  # layer 4 (odim padded to 8)
            ],
            out_specs=pl.BlockSpec((None, C4p, tn), lambda b, j: (b, 0, j)),
        ),
        compiler_params=pltpu.CompilerParams(
            dimension_semantics=("parallel", "parallel"),
            vmem_limit_bytes=_VMEM_LIMIT_BYTES),
        cost_estimate=pl.CostEstimate(
            flops=int(flops),
            transcendentals=int(transcendentals),
            bytes_accessed=int(bytes_accessed)),
    )(x, w1, b1, w2, b2, w3, b3, w4, b4)


# ----------------------------------------------------------------------------
# Parameter construction + BN folding (plain-JAX glue)
# ----------------------------------------------------------------------------
def init_params(key, bottleneck_size, odim):
    dims = [bottleneck_size, bottleneck_size, bottleneck_size // 2,
            bottleneck_size // 4, odim]
    params = []
    for li in range(4):
        cin, cout = dims[li], dims[li + 1]
        key, kw, kb, km, kv, kg, kbeta = jax.random.split(key, 7)
        # Conv1d weight stored PyTorch-style as (C_out, C_in); kernel does W @ x.
        w = jax.random.normal(kw, (cout, cin), jnp.float32) * (1.0 / jnp.sqrt(cin))
        b = jax.random.normal(kb, (cout,), jnp.float32) * 0.01
        if li < 3:  # BatchNorm1d params (eval mode / running stats)
            mean = jax.random.normal(km, (cout,), jnp.float32) * 0.1
            var = jax.random.uniform(kv, (cout,), jnp.float32, 0.5, 1.5)
            gamma = jax.random.uniform(kg, (cout,), jnp.float32, 0.5, 1.5)
            beta = jax.random.normal(kbeta, (cout,), jnp.float32) * 0.1
            bn = (mean, var, gamma, beta)
        else:
            bn = None
        params.append((w, b, bn))
    return params


def fold_params(params, *, eps=1e-5, sublane_pad=8):
    """Fold conv bias + eval-mode BatchNorm into (W_bf16, b_f32[:,None]) pairs.

    The last layer's output channels are zero-padded to `sublane_pad` (=8)
    rows so the kernel's output store is 8-sublane aligned; tanh(0)=0 rows are
    sliced away in the wrapper.
    """
    folded = []
    for li, (w, b, bn) in enumerate(params):
        if bn is not None:
            mean, var, gamma, beta = bn
            scale = gamma / jnp.sqrt(var + eps)
            w_eff = w * scale[:, None]
            b_eff = (b - mean) * scale + beta
        else:
            w_eff, b_eff = w, b
        if li == 3:
            cout = w_eff.shape[0]
            pad = sublane_pad - cout
            w_eff = jnp.pad(w_eff, ((0, pad), (0, 0)))
            b_eff = jnp.pad(b_eff, (0, pad))
        folded.append((w_eff.astype(jnp.bfloat16),
                       b_eff.reshape(-1, 1).astype(jnp.float32)))
    return folded


@functools.partial(jax.jit, static_argnames=("odim", "bf16_epilogue"))
def pointgencon_forward(x, params_folded, *, odim, bf16_epilogue=False):
    """x: (B, C, N) in PyTorch NCW layout (f32 or bf16). Returns (B, odim, N) f32."""
    B, C0, N = x.shape
    (w1, _), (w2, _), (w3, _), (w4, _) = params_folded
    dims = (C0, w1.shape[0], w2.shape[0], w3.shape[0], w4.shape[0])
    inter_bytes = 2 if bf16_epilogue else 6
    n_pad, tn, _n_tiles, buffered3 = _choose_tiling(
        N, B, dims, x.dtype.itemsize, inter_bytes)
    if n_pad != N:
        x = jnp.pad(x, ((0, 0), (0, 0), (0, n_pad - N)))
    y = _run_fused_mlp(x, params_folded, tn=tn,
                       bf16_epilogue=bf16_epilogue, buffered3=buffered3)
    return y[:, :odim, :N]


# ----------------------------------------------------------------------------
# Pure-JAX reference (mirrors the kernel's mixed-precision math) for checking
# ----------------------------------------------------------------------------
def reference_forward(x, params_folded, *, odim, bf16_epilogue=False):
    (w1, b1), (w2, b2), (w3, b3), (w4, b4) = params_folded

    def hidden(w, b, h):
        acc = jnp.einsum("oc,bcn->bon", w, h.astype(jnp.bfloat16),
                         preferred_element_type=jnp.float32)
        if bf16_epilogue:
            return jnp.maximum(acc.astype(jnp.bfloat16)
                               + b[None].astype(jnp.bfloat16), 0.0)
        return jnp.maximum(acc + b[None], 0.0).astype(jnp.bfloat16)

    h = hidden(w1, b1, x)
    h = hidden(w2, b2, h)
    h = hidden(w3, b3, h)
    y = jnp.einsum("oc,bcn->bon", w4, h.astype(jnp.bfloat16),
                   preferred_element_type=jnp.float32) + b4[None]
    return jnp.tanh(y)[:, :odim, :]


if __name__ == "__main__":
    # bottleneck=256 (divisible by 4), odim=3, N=2500 (canonical AtlasNet point
    # count; not a multiple of 128, so the padding policy is exercised).
    B, bottleneck, N, odim = 2, 256, 2500, 3

    # bf16 epilogue on chips with a bf16 VPU path (v6e/v7x); f32 path on v5e
    # and older.  Falls back to the everywhere-safe f32 epilogue on failure.
    try:
        kind = jax.devices()[0].device_kind.lower()
        bf16_epilogue = not any(t in kind for t in ("v2", "v3", "v4", "v5"))
    except Exception:  # pragma: no cover
        bf16_epilogue = False

    key = jax.random.PRNGKey(0)
    kx, kp = jax.random.split(key)
    x = jax.random.normal(kx, (B, bottleneck, N), jnp.float32)   # NCW, like PyTorch

    params = init_params(kp, bottleneck, odim)
    params_folded = fold_params(params)

    # f32 input (PyTorch-equivalent path).
    y = pointgencon_forward(x, params_folded, odim=odim, bf16_epilogue=bf16_epilogue)
    y = jax.block_until_ready(y)
    y_ref = reference_forward(x, params_folded, odim=odim, bf16_epilogue=bf16_epilogue)
    assert y.shape == (B, odim, N)
    assert jnp.allclose(y, y_ref, atol=2e-3, rtol=2e-3), "mismatch vs reference (f32 x)"

    # bf16 input at the kernel boundary (upstream producer emits bf16 directly;
    # no extra wrapper-side cast pass is added in the forward itself).
    xb = x.astype(jnp.bfloat16)
    yb = pointgencon_forward(xb, params_folded, odim=odim, bf16_epilogue=bf16_epilogue)
    yb = jax.block_until_ready(yb)
    yb_ref = reference_forward(xb, params_folded, odim=odim, bf16_epilogue=bf16_epilogue)
    assert jnp.allclose(yb, yb_ref, atol=5e-3, rtol=5e-3), "mismatch vs reference (bf16 x)"

    print("KERNEL_OK")
</pallas_src>

<mosaic_0001>
module attributes {stable_mosaic.version = 11 : i64} {
  func.func @_pointgencon_kernel(%arg0: i32, %arg1: i32, %arg2: memref<1x256x2560xf32, #tpu.memory_space<vmem>>, %arg3: memref<256x256xbf16, #tpu.memory_space<vmem>>, %arg4: memref<256x1xf32, #tpu.memory_space<vmem>>, %arg5: memref<128x256xbf16, #tpu.memory_space<vmem>>, %arg6: memref<128x1xf32, #tpu.memory_space<vmem>>, %arg7: memref<64x128xbf16, #tpu.memory_space<vmem>>, %arg8: memref<64x1xf32, #tpu.memory_space<vmem>>, %arg9: memref<8x64xbf16, #tpu.memory_space<vmem>>, %arg10: memref<8x1xf32, #tpu.memory_space<vmem>>, %arg11: memref<1x8x2560xf32, #tpu.memory_space<vmem>>) attributes {dimension_semantics = [#tpu.dimension_semantics<parallel>, #tpu.dimension_semantics<parallel>], iteration_bounds = array<i64: 2, 1>, scalar_prefetch = 0 : i64, scratch_operands = 0 : i64, tpu.core_type = #tpu.core_type<tc>, window_params = [{transform_indices = @transform_0, window_bounds = array<i64: 1, 256, 2560>}, {pipeline_mode = #tpu.pipeline_mode<synchronous>, transform_indices = @transform_1, window_bounds = array<i64: 256, 256>}, {pipeline_mode = #tpu.pipeline_mode<synchronous>, transform_indices = @transform_2, window_bounds = array<i64: 256, 1>}, {pipeline_mode = #tpu.pipeline_mode<synchronous>, transform_indices = @transform_3, window_bounds = array<i64: 128, 256>}, {pipeline_mode = #tpu.pipeline_mode<synchronous>, transform_indices = @transform_4, window_bounds = array<i64: 128, 1>}, {pipeline_mode = #tpu.pipeline_mode<synchronous>, transform_indices = @transform_5, window_bounds = array<i64: 64, 128>}, {pipeline_mode = #tpu.pipeline_mode<synchronous>, transform_indices = @transform_6, window_bounds = array<i64: 64, 1>}, {pipeline_mode = #tpu.pipeline_mode<synchronous>, transform_indices = @transform_7, window_bounds = array<i64: 8, 64>}, {pipeline_mode = #tpu.pipeline_mode<synchronous>, transform_indices = @transform_8, window_bounds = array<i64: 8, 1>}, {transform_indices = @transform_9, window_bounds = array<i64: 1, 8, 2560>}]} {
    %c0 = arith.constant 0 : index
    %c0_0 = arith.constant 0 : index
    %c0_1 = arith.constant 0 : index
    %0 = vector.load %arg2[%c0, %c0_0, %c0_1] : memref<1x256x2560xf32, #tpu.memory_space<vmem>>, vector<1x256x2560xf32>
    %1 = vector.shape_cast %0 : vector<1x256x2560xf32> to vector<256x2560xf32>
    %2 = arith.truncf %1 : vector<256x2560xf32> to vector<256x2560xbf16>
    %c0_2 = arith.constant 0 : index
    %c0_3 = arith.constant 0 : index
    %3 = vector.load %arg3[%c0_2, %c0_3] : memref<256x256xbf16, #tpu.memory_space<vmem>>, vector<256x256xbf16>
    %cst = arith.constant dense<0.000000e+00> : vector<256x2560xf32>
    %4 = tpu.matmul %3, %2, %cst {dimension_numbers = #tpu.dot_dimension_numbers<[1], [0], [0], [1], [0, 0, 1, 1], [], []>} : vector<256x256xbf16>, vector<256x2560xbf16>, vector<256x2560xf32> -> vector<256x2560xf32>
    %c0_4 = arith.constant 0 : index
    %c0_5 = arith.constant 0 : index
    %5 = vector.load %arg4[%c0_4, %c0_5] : memref<256x1xf32, #tpu.memory_space<vmem>>, vector<256x1xf32>
    %6 = arith.truncf %5 : vector<256x1xf32> to vector<256x1xbf16>
    %7 = arith.truncf %4 : vector<256x2560xf32> to vector<256x2560xbf16>
    %8 = vector.broadcast %6 : vector<256x1xbf16> to vector<256x2560xbf16>
    %9 = arith.addf %7, %8 : vector<256x2560xbf16>
    %cst_6 = arith.constant 0.000000e+00 : bf16
    %10 = vector.broadcast %cst_6 : bf16 to vector<256x2560xbf16>
    %11 = arith.maximumf %9, %10 : vector<256x2560xbf16>
    %c0_7 = arith.constant 0 : index
    %c0_8 = arith.constant 0 : index
    %12 = vector.load %arg5[%c0_7, %c0_8] : memref<128x256xbf16, #tpu.memory_space<vmem>>, vector<128x256xbf16>
    %cst_9 = arith.constant dense<0.000000e+00> : vector<128x2560xf32>
    %13 = tpu.matmul %12, %11, %cst_9 {dimension_numbers = #tpu.dot_dimension_numbers<[1], [0], [0], [1], [0, 0, 1, 1], [], []>} : vector<128x256xbf16>, vector<256x2560xbf16>, vector<128x2560xf32> -> vector<128x2560xf32>
    %c0_10 = arith.constant 0 : index
    %c0_11 = arith.constant 0 : index
    %14 = vector.load %arg6[%c0_10, %c0_11] : memref<128x1xf32, #tpu.memory_space<vmem>>, vector<128x1xf32>
    %15 = arith.truncf %14 : vector<128x1xf32> to vector<128x1xbf16>
    %16 = arith.truncf %13 : vector<128x2560xf32> to vector<128x2560xbf16>
    %17 = vector.broadcast %15 : vector<128x1xbf16> to vector<128x2560xbf16>
    %18 = arith.addf %16, %17 : vector<128x2560xbf16>
    %cst_12 = arith.constant 0.000000e+00 : bf16
    %19 = vector.broadcast %cst_12 : bf16 to vector<128x2560xbf16>
    %20 = arith.maximumf %18, %19 : vector<128x2560xbf16>
    %c0_13 = arith.constant 0 : index
    %c0_14 = arith.constant 0 : index
    %21 = vector.load %arg7[%c0_13, %c0_14] : memref<64x128xbf16, #tpu.memory_space<vmem>>, vector<64x128xbf16>
    %cst_15 = arith.constant dense<0.000000e+00> : vector<64x2560xf32>
    %22 = tpu.matmul %21, %20, %cst_15 {dimension_numbers = #tpu.dot_dimension_numbers<[1], [0], [0], [1], [0, 0, 1, 1], [], []>} : vector<64x128xbf16>, vector<128x2560xbf16>, vector<64x2560xf32> -> vector<64x2560xf32>
    %c0_16 = arith.constant 0 : index
    %c0_17 = arith.constant 0 : index
    %23 = vector.load %arg8[%c0_16, %c0_17] : memref<64x1xf32, #tpu.memory_space<vmem>>, vector<64x1xf32>
    %24 = arith.truncf %23 : vector<64x1xf32> to vector<64x1xbf16>
    %25 = arith.truncf %22 : vector<64x2560xf32> to vector<64x2560xbf16>
    %26 = vector.broadcast %24 : vector<64x1xbf16> to vector<64x2560xbf16>
    %27 = arith.addf %25, %26 : vector<64x2560xbf16>
    %cst_18 = arith.constant 0.000000e+00 : bf16
    %28 = vector.broadcast %cst_18 : bf16 to vector<64x2560xbf16>
    %29 = arith.maximumf %27, %28 : vector<64x2560xbf16>
    %c0_19 = arith.constant 0 : index
    %c0_20 = arith.constant 0 : index
    %30 = vector.load %arg9[%c0_19, %c0_20] : memref<8x64xbf16, #tpu.memory_space<vmem>>, vector<8x64xbf16>
    %cst_21 = arith.constant dense<0.000000e+00> : vector<8x2560xf32>
    %31 = tpu.matmul %30, %29, %cst_21 {dimension_numbers = #tpu.dot_dimension_numbers<[1], [0], [0], [1], [0, 0, 1, 1], [], []>} : vector<8x64xbf16>, vector<64x2560xbf16>, vector<8x2560xf32> -> vector<8x2560xf32>
    %c0_22 = arith.constant 0 : index
    %c0_23 = arith.constant 0 : index
    %32 = vector.load %arg10[%c0_22, %c0_23] : memref<8x1xf32, #tpu.memory_space<vmem>>, vector<8x1xf32>
    %33 = vector.broadcast %32 : vector<8x1xf32> to vector<8x2560xf32>
    %34 = arith.addf %31, %33 : vector<8x2560xf32>
    %35 = math.tanh %34 : vector<8x2560xf32>
    %c0_24 = arith.constant 0 : index
    %c0_25 = arith.constant 0 : index
    %c0_26 = arith.constant 0 : index
    %36 = vector.load %arg11[%c0_24, %c0_25, %c0_26] : memref<1x8x2560xf32, #tpu.memory_space<vmem>>, vector<1x8x2560xf32>
    %37 = vector.shape_cast %36 : vector<1x8x2560xf32> to vector<8x2560xf32>
    %38 = vector.shape_cast %35 : vector<8x2560xf32> to vector<1x8x2560xf32>
    tpu.vector_store %arg11[%c0_24, %c0_25, %c0_26], %38 {strides = array<i32>} : memref<1x8x2560xf32, #tpu.memory_space<vmem>>, vector<1x8x2560xf32>,
    return
  }
  func.func @transform_0(%arg0: i32, %arg1: i32) -> (i32, i32, i32) {
    %c0_i32 = arith.constant 0 : i32
    %c0_i32_0 = arith.constant 0 : i32
    return %arg0, %c0_i32, %arg1 : i32, i32, i32
  }
  func.func @transform_1(%arg0: i32, %arg1: i32) -> (i32, i32) {
    %c0_i32 = arith.constant 0 : i32
    %c0_i32_0 = arith.constant 0 : i32
    %c0_i32_1 = arith.constant 0 : i32
    return %c0_i32, %c0_i32_0 : i32, i32
  }
  func.func @transform_2(%arg0: i32, %arg1: i32) -> (i32, i32) {
    %c0_i32 = arith.constant 0 : i32
    %c0_i32_0 = arith.constant 0 : i32
    %c0_i32_1 = arith.constant 0 : i32
    return %c0_i32, %c0_i32_0 : i32, i32
  }
  func.func @transform_3(%arg0: i32, %arg1: i32) -> (i32, i32) {
    %c0_i32 = arith.constant 0 : i32
    %c0_i32_0 = arith.constant 0 : i32
    %c0_i32_1 = arith.constant 0 : i32
    return %c0_i32, %c0_i32_0 : i32, i32
  }
  func.func @transform_4(%arg0: i32, %arg1: i32) -> (i32, i32) {
    %c0_i32 = arith.constant 0 : i32
    %c0_i32_0 = arith.constant 0 : i32
    %c0_i32_1 = arith.constant 0 : i32
    return %c0_i32, %c0_i32_0 : i32, i32
  }
  func.func @transform_5(%arg0: i32, %arg1: i32) -> (i32, i32) {
    %c0_i32 = arith.constant 0 : i32
    %c0_i32_0 = arith.constant 0 : i32
    %c0_i32_1 = arith.constant 0 : i32
    return %c0_i32, %c0_i32_0 : i32, i32
  }
  func.func @transform_6(%arg0: i32, %arg1: i32) -> (i32, i32) {
    %c0_i32 = arith.constant 0 : i32
    %c0_i32_0 = arith.constant 0 : i32
    %c0_i32_1 = arith.constant 0 : i32
    return %c0_i32, %c0_i32_0 : i32, i32
  }
  func.func @transform_7(%arg0: i32, %arg1: i32) -> (i32, i32) {
    %c0_i32 = arith.constant 0 : i32
    %c0_i32_0 = arith.constant 0 : i32
    %c0_i32_1 = arith.constant 0 : i32
    return %c0_i32, %c0_i32_0 : i32, i32
  }
  func.func @transform_8(%arg0: i32, %arg1: i32) -> (i32, i32) {
    %c0_i32 = arith.constant 0 : i32
    %c0_i32_0 = arith.constant 0 : i32
    %c0_i32_1 = arith.constant 0 : i32
    return %c0_i32, %c0_i32_0 : i32, i32
  }
  func.func @transform_9(%arg0: i32, %arg1: i32) -> (i32, i32, i32) {
    %c0_i32 = arith.constant 0 : i32
    %c0_i32_0 = arith.constant 0 : i32
    return %arg0, %c0_i32, %arg1 : i32, i32, i32
  }
}

</mosaic_0001>

<llo_original>
// kernel: pointgencon_forward.1
$region0: #{pointgencon_forward.1}
  #allocation0 [shape = 'u32[]', space=smem, size = 0x4, offset = 0x4, fixed_abs, tag = 'smem constant byte address 0x4 - core index']
  #allocation1 [shape = 'u32[144,128]{1,0:T(1,128)}', space=vmem, size = 0x12000, scoped, tag = 'internal scratch']
  %s0 = inlined_call_operand.vmem [shape: f32[2,256,2560], index: 0, kind: input, shape index: {}]
  %s1 = inlined_call_operand.vmem [shape: bf16[256,256], index: 1, kind: input, shape index: {}]
  %s2 = inlined_call_operand.vmem [shape: f32[256,1], index: 2, kind: input, shape index: {}]
  %s3 = inlined_call_operand.vmem [shape: bf16[128,256], index: 3, kind: input, shape index: {}]
  %s4 = inlined_call_operand.vmem [shape: f32[128,1], index: 4, kind: input, shape index: {}]
  %s5 = inlined_call_operand.vmem [shape: bf16[64,128], index: 5, kind: input, shape index: {}]
  %s6 = inlined_call_operand.vmem [shape: f32[64,1], index: 6, kind: input, shape index: {}]
  %s7 = inlined_call_operand.vmem [shape: bf16[8,64], index: 7, kind: input, shape index: {}]
  %s8 = inlined_call_operand.vmem [shape: f32[8,1], index: 8, kind: input, shape index: {}]
  %s9 = inlined_call_operand.vmem [shape: f32[2,8,2560], index: 9, kind: output, shape index: {}]
  %s10 = sld [smem:[#allocation0]]
  $region69: #{pointgencon_forward.1} parent=0
    _
  %s12 = ssub.s32 1, %s10
  %s13 = scalar_select 0, %s12, %s10
  loop: start=0, step=1, limit=4
  $region2: #{pointgencon_forward.1} parent=0 // loop_pre_header
    _
  $region3: #{pointgencon_forward.1} parent=0 // loop_header
    %s15 = sphi 0, %s19
    %p16 = scmp.ge.s32.totalorder %s15, 4
    %s22 = sphi 0, %s34
    %s23 = sphi 0, %s30
    %s24 = sphi 0, %s22
    %s25 = sphi 0, %s23
    %s26 = sphi 0, %s24
    %s27 = sphi 0, %s25
    %s39 = sphi 0, %s41
    %s42 = sphi 0, %s39
    %s43 = sphi 0, %s42
    %s59 = sphi 0, %s43
    %s63 = sphi 0, %s63
    %s65 = sphi 0, %s63
    %s66 = sphi 0, %s65
    %s80 = sphi 0, %s66
    %s84 = sphi 0, %s84
    %s86 = sphi 0, %s84
    %s87 = sphi 0, %s86
    %s101 = sphi 0, %s87
    %s105 = sphi 0, %s105
    %s107 = sphi 0, %s105
    %s108 = sphi 0, %s107
    %s122 = sphi 0, %s108
    %s126 = sphi 0, %s126
    %s128 = sphi 0, %s126
    %s129 = sphi 0, %s128
    %s143 = sphi 0, %s129
    %s147 = sphi 0, %s147
    %s149 = sphi 0, %s147
    %s150 = sphi 0, %s149
    %s164 = sphi 0, %s150
    %s168 = sphi 0, %s168
    %s170 = sphi 0, %s168
    %s171 = sphi 0, %s170
    %s185 = sphi 0, %s171
    %s189 = sphi 0, %s189
    %s191 = sphi 0, %s189
    %s192 = sphi 0, %s191
    %s206 = sphi 0, %s192
    %s210 = sphi 0, %s210
    %s212 = sphi 0, %s210
    %s213 = sphi 0, %s212
    %s227 = sphi 0, %s213
    %s235 = sphi 0, %s237
    %s238 = sphi 0, %s235
    %s239 = sphi 0, %s238
    %s255 = sphi 0, %s239
  $region4: #{pointgencon_forward.1} parent=0 // loop_header_branch
    %18 = sbr.rel (%p16) target = $region8
  $region5: #{pointgencon_forward.1} parent=0 // loop_body
    %s20 = ssub.s32 %s15, 1
    %s21 = ssub.s32 %s15, 2
    %s28 = sadd.s32 1, %s23
    %p29 = scmp.ge.s32.totalorder %s28, 1
    %s30 = scalar_select %p29, 0, %s28
    %s31 = sadd.s32 1, %s22
    %s32 = scalar_select %p29, %s31, %s22
    %p33 = scmp.ge.s32.totalorder %s32, 2
    %s34 = scalar_select %p33, 0, %s32
    %s35 = ssub.s32 %s22, %s34
    %s36 = ssub.s32 %s23, %s30
    %s37 = sor.u32 %s35, %s36
    %p38 = scmp.eq.s32.totalorder %s37, 0
    %s40 = sadd.s32 %s39, 1
    %s41 = scalar_select %p38, %s39, %s40
    %p44 = pneg %p38
    %p45 = scmp.eq.s32.totalorder %s15, 1
    %p46 = por %p44, %p45
    %p47 = scmp.ne.s32.totalorder %s39, %s42
    %p48 = scmp.eq.s32.totalorder %s15, 0
    %p49 = por %p47, %p48
    %p50 = scmp.ne.s32.totalorder %s39, %s42
    %p51 = scmp.eq.s32.totalorder %s20, 1
    %p52 = por %p50, %p51
    %p53 = scmp.ne.s32.totalorder %s42, %s43
    %p54 = scmp.eq.s32.totalorder %s20, 0
    %p55 = por %p53, %p54
    %p56 = scmp.ne.s32.totalorder %s42, %s43
    %p57 = scmp.eq.s32.totalorder %s21, 1
    %p58 = por %p56, %p57
    %p60 = scmp.ne.s32.totalorder %s43, %s59
    %p61 = scmp.eq.s32.totalorder %s21, 0
    %p62 = por %p60, %p61
    %s64 = sadd.s32 %s63, 1
    %p67 = scmp.eq.s32.totalorder %s15, 1
    %p68 = scmp.ne.s32.totalorder %s63, %s65
    %p69 = scmp.eq.s32.totalorder %s15, 0
    %p70 = por %p68, %p69
    %p71 = scmp.ne.s32.totalorder %s63, %s65
    %p72 = scmp.eq.s32.totalorder %s20, 1
    %p73 = por %p71, %p72
    %p74 = scmp.ne.s32.totalorder %s65, %s66
    %p75 = scmp.eq.s32.totalorder %s20, 0
    %p76 = por %p74, %p75
    %p77 = scmp.ne.s32.totalorder %s65, %s66
    %p78 = scmp.eq.s32.totalorder %s21, 1
    %p79 = por %p77, %p78
    %p81 = scmp.ne.s32.totalorder %s66, %s80
    %p82 = scmp.eq.s32.totalorder %s21, 0
    %p83 = por %p81, %p82
    %s85 = sadd.s32 %s84, 1
    %p88 = scmp.eq.s32.totalorder %s15, 1
    %p89 = scmp.ne.s32.totalorder %s84, %s86
    %p90 = scmp.eq.s32.totalorder %s15, 0
    %p91 = por %p89, %p90
    %p92 = scmp.ne.s32.totalorder %s84, %s86
    %p93 = scmp.eq.s32.totalorder %s20, 1
    %p94 = por %p92, %p93
    %p95 = scmp.ne.s32.totalorder %s86, %s87
    %p96 = scmp.eq.s32.totalorder %s20, 0
    %p97 = por %p95, %p96
    %p98 = scmp.ne.s32.totalorder %s86, %s87
    %p99 = scmp.eq.s32.totalorder %s21, 1
    %p100 = por %p98, %p99
    %p102 = scmp.ne.s32.totalorder %s87, %s101
    %p103 = scmp.eq.s32.totalorder %s21, 0
    %p104 = por %p102, %p103
    %s106 = sadd.s32 %s105, 1
    %p109 = scmp.eq.s32.totalorder %s15, 1
    %p110 = scmp.ne.s32.totalorder %s105, %s107
    %p111 = scmp.eq.s32.totalorder %s15, 0
    %p112 = por %p110, %p111
    %p113 = scmp.ne.s32.totalorder %s105, %s107
    %p114 = scmp.eq.s32.totalorder %s20, 1
    %p115 = por %p113, %p114
    %p116 = scmp.ne.s32.totalorder %s107, %s108
    %p117 = scmp.eq.s32.totalorder %s20, 0
    %p118 = por %p116, %p117
    %p119 = scmp.ne.s32.totalorder %s107, %s108
    %p120 = scmp.eq.s32.totalorder %s21, 1
    %p121 = por %p119, %p120
    %p123 = scmp.ne.s32.totalorder %s108, %s122
    %p124 = scmp.eq.s32.totalorder %s21, 0
    %p125 = por %p123, %p124
    %s127 = sadd.s32 %s126, 1
    %p130 = scmp.eq.s32.totalorder %s15, 1
    %p131 = scmp.ne.s32.totalorder %s126, %s128
    %p132 = scmp.eq.s32.totalorder %s15, 0
    %p133 = por %p131, %p132
    %p134 = scmp.ne.s32.totalorder %s126, %s128
    %p135 = scmp.eq.s32.totalorder %s20, 1
    %p136 = por %p134, %p135
    %p137 = scmp.ne.s32.totalorder %s128, %s129
    %p138 = scmp.eq.s32.totalorder %s20, 0
    %p139 = por %p137, %p138
    %p140 = scmp.ne.s32.totalorder %s128, %s129
    %p141 = scmp.eq.s32.totalorder %s21, 1
    %p142 = por %p140, %p141
    %p144 = scmp.ne.s32.totalorder %s129, %s143
    %p145 = scmp.eq.s32.totalorder %s21, 0
    %p146 = por %p144, %p145
    %s148 = sadd.s32 %s147, 1
    %p151 = scmp.eq.s32.totalorder %s15, 1
    %p152 = scmp.ne.s32.totalorder %s147, %s149
    %p153 = scmp.eq.s32.totalorder %s15, 0
    %p154 = por %p152, %p153
    %p155 = scmp.ne.s32.totalorder %s147, %s149
    %p156 = scmp.eq.s32.totalorder %s20, 1
    %p157 = por %p155, %p156
    %p158 = scmp.ne.s32.totalorder %s149, %s150
    %p159 = scmp.eq.s32.totalorder %s20, 0
    %p160 = por %p158, %p159
    %p161 = scmp.ne.s32.totalorder %s149, %s150
    %p162 = scmp.eq.s32.totalorder %s21, 1
    %p163 = por %p161, %p162
    %p165 = scmp.ne.s32.totalorder %s150, %s164
    %p166 = scmp.eq.s32.totalorder %s21, 0
    %p167 = por %p165, %p166
    %s169 = sadd.s32 %s168, 1
    %p172 = scmp.eq.s32.totalorder %s15, 1
    %p173 = scmp.ne.s32.totalorder %s168, %s170
    %p174 = scmp.eq.s32.totalorder %s15, 0
    %p175 = por %p173, %p174
    %p176 = scmp.ne.s32.totalorder %s168, %s170
    %p177 = scmp.eq.s32.totalorder %s20, 1
    %p178 = por %p176, %p177
    %p179 = scmp.ne.s32.totalorder %s170, %s171
    %p180 = scmp.eq.s32.totalorder %s20, 0
    %p181 = por %p179, %p180
    %p182 = scmp.ne.s32.totalorder %s170, %s171
    %p183 = scmp.eq.s32.totalorder %s21, 1
    %p184 = por %p182, %p183
    %p186 = scmp.ne.s32.totalorder %s171, %s185
    %p187 = scmp.eq.s32.totalorder %s21, 0
    %p188 = por %p186, %p187
    %s190 = sadd.s32 %s189, 1
    %p193 = scmp.eq.s32.totalorder %s15, 1
    %p194 = scmp.ne.s32.totalorder %s189, %s191
    %p195 = scmp.eq.s32.totalorder %s15, 0
    %p196 = por %p194, %p195
    %p197 = scmp.ne.s32.totalorder %s189, %s191
    %p198 = scmp.eq.s32.totalorder %s20, 1
    %p199 = por %p197, %p198
    %p200 = scmp.ne.s32.totalorder %s191, %s192
    %p201 = scmp.eq.s32.totalorder %s20, 0
    %p202 = por %p200, %p201
    %p203 = scmp.ne.s32.totalorder %s191, %s192
    %p204 = scmp.eq.s32.totalorder %s21, 1
    %p205 = por %p203, %p204
    %p207 = scmp.ne.s32.totalorder %s192, %s206
    %p208 = scmp.eq.s32.totalorder %s21, 0
    %p209 = por %p207, %p208
    %s211 = sadd.s32 %s210, 1
    %p214 = scmp.eq.s32.totalorder %s15, 1
    %p215 = scmp.ne.s32.totalorder %s210, %s212
    %p216 = scmp.eq.s32.totalorder %s15, 0
    %p217 = por %p215, %p216
    %p218 = scmp.ne.s32.totalorder %s210, %s212
    %p219 = scmp.eq.s32.totalorder %s20, 1
    %p220 = por %p218, %p219
    %p221 = scmp.ne.s32.totalorder %s212, %s213
    %p222 = scmp.eq.s32.totalorder %s20, 0
    %p223 = por %p221, %p222
    %p224 = scmp.ne.s32.totalorder %s212, %s213
    %p225 = scmp.eq.s32.totalorder %s21, 1
    %p226 = por %p224, %p225
    %p228 = scmp.ne.s32.totalorder %s213, %s227
    %p229 = scmp.eq.s32.totalorder %s21, 0
    %p230 = por %p228, %p229
    %s231 = ssub.s32 %s22, %s34
    %s232 = ssub.s32 %s23, %s30
    %s233 = sor.u32 %s231, %s232
    %p234 = scmp.eq.s32.totalorder %s233, 0
    %s236 = sadd.s32 %s235, 1
    %s237 = scalar_select %p234, %s235, %s236
    %p240 = pneg %p234
    %p241 = scmp.eq.s32.totalorder %s15, 1
    %p242 = por %p240, %p241
    %p243 = scmp.ne.s32.totalorder %s235, %s238
    %p244 = scmp.eq.s32.totalorder %s15, 0
    %p245 = por %p243, %p244
    %p246 = scmp.ne.s32.totalorder %s235, %s238
    %p247 = scmp.eq.s32.totalorder %s20, 1
    %p248 = por %p246, %p247
    %p249 = scmp.ne.s32.totalorder %s238, %s239
    %p250 = scmp.eq.s32.totalorder %s20, 0
    %p251 = por %p249, %p250
    %p252 = scmp.ne.s32.totalorder %s238, %s239
    %p253 = scmp.eq.s32.totalorder %s21, 1
    %p254 = por %p252, %p253
    %p256 = scmp.ne.s32.totalorder %s239, %s255
    %p257 = scmp.eq.s32.totalorder %s21, 0
    %p258 = por %p256, %p257
    %p259 = scmp.le.s32.totalorder 1, %s15
    %p260 = scmp.lt.s32.totalorder %s15, 3
    %p261 = pnand %p259, %p260
    %p262 = pneg %p261
    // Predicated region
    $region9: #{pointgencon_forward.1} parent=5 // pred_check
      _
    $region10: #{pointgencon_forward.1} parent=5 // pred_check_branch
      %264 = sbr.rel (%p261) target = $region12
    $region11: #{pointgencon_forward.1} parent=5 // pred_region
      %s265 = ssub.s32 %s15, 1
      // Predicated region
      $region13: #{pointgencon_forward.1} parent=11 // pred_check
        %p266 = pneg %p76
      $region14: #{pointgencon_forward.1} parent=11 // pred_check_branch
        %268 = sbr.rel (%p266) target = $region16
      $region15: #{pointgencon_forward.1} parent=11 // pred_region
        _
      $region16: #{pointgencon_forward.1} parent=11 // pred_fallthru
        _
      // Predicated region
      $region17: #{pointgencon_forward.1} parent=11 // pred_check
        %p269 = pneg %p97
      $region18: #{pointgencon_forward.1} parent=11 // pred_check_branch
        %271 = sbr.rel (%p269) target = $region20
      $region19: #{pointgencon_forward.1} parent=11 // pred_region
        _
      $region20: #{pointgencon_forward.1} parent=11 // pred_fallthru
        _
      // Predicated region
      $region21: #{pointgencon_forward.1} parent=11 // pred_check
        %p272 = pneg %p118
      $region22: #{pointgencon_forward.1} parent=11 // pred_check_branch
        %274 = sbr.rel (%p272) target = $region24
      $region23: #{pointgencon_forward.1} parent=11 // pred_region
        _
      $region24: #{pointgencon_forward.1} parent=11 // pred_fallthru
        _
      // Predicated region
      $region25: #{pointgencon_forward.1} parent=11 // pred_check
        %p275 = pneg %p139
      $region26: #{pointgencon_forward.1} parent=11 // pred_check_branch
        %277 = sbr.rel (%p275) target = $region28
      $region27: #{pointgencon_forward.1} parent=11 // pred_region
        _
      $region28: #{pointgencon_forward.1} parent=11 // pred_fallthru
        _
      // Predicated region
      $region29: #{pointgencon_forward.1} parent=11 // pred_check
        %p278 = pneg %p160
      $region30: #{pointgencon_forward.1} parent=11 // pred_check_branch
        %280 = sbr.rel (%p278) target = $region32
      $region31: #{pointgencon_forward.1} parent=11 // pred_region
        _
      $region32: #{pointgencon_forward.1} parent=11 // pred_fallthru
        _
      // Predicated region
      $region33: #{pointgencon_forward.1} parent=11 // pred_check
        %p281 = pneg %p181
      $region34: #{pointgencon_forward.1} parent=11 // pred_check_branch
        %283 = sbr.rel (%p281) target = $region36
      $region35: #{pointgencon_forward.1} parent=11 // pred_region
        _
      $region36: #{pointgencon_forward.1} parent=11 // pred_fallthru
        _
      // Predicated region
      $region37: #{pointgencon_forward.1} parent=11 // pred_check
        %p284 = pneg %p202
      $region38: #{pointgencon_forward.1} parent=11 // pred_check_branch
        %286 = sbr.rel (%p284) target = $region40
      $region39: #{pointgencon_forward.1} parent=11 // pred_region
        _
      $region40: #{pointgencon_forward.1} parent=11 // pred_fallthru
        _
      // Predicated region
      $region41: #{pointgencon_forward.1} parent=11 // pred_check
        %p287 = pneg %p223
      $region42: #{pointgencon_forward.1} parent=11 // pred_check_branch
        %289 = sbr.rel (%p287) target = $region44
      $region43: #{pointgencon_forward.1} parent=11 // pred_region
        _
      $region44: #{pointgencon_forward.1} parent=11 // pred_fallthru
        _
    $region12: #{pointgencon_forward.1} parent=5 // pred_fallthru
      _
    %p290 = scmp.lt.s32.totalorder %s15, 2
    // Predicated region
    $region45: #{pointgencon_forward.1} parent=5 // pred_check
      %p291 = pneg %p290
    $region46: #{pointgencon_forward.1} parent=5 // pred_check_branch
      %293 = sbr.rel (%p291) target = $region48
    $region47: #{pointgencon_forward.1} parent=5 // pred_region
      // Predicated region
      $region49: #{pointgencon_forward.1} parent=47 // pred_check
        %p294 = pneg %p49
      $region50: #{pointgencon_forward.1} parent=47 // pred_check_branch
        %296 = sbr.rel (%p294) target = $region52
      $region51: #{pointgencon_forward.1} parent=47 // pred_region
        %s297 = smul.u32 20, %s23
        %p298 = scmp.lt.s32.totalorder %s22, 1
        %s299 = scalar_select %p298, %s22, 1
        %p300 = scmp.lt.s32.totalorder %s297, 19
        %s301 = scalar_select %p300, %s297, 19
        %s302 = smul.addr %s299, 640
        %s303 = sadd.s32 %s301, %s302
        %s304 = smul.addr %s303, 8
        %s305 = scalar_lea.vmem %s0, %s304
        %s306 = smul.u32 20, %s23
      $region52: #{pointgencon_forward.1} parent=47 // pred_fallthru
        _
    $region48: #{pointgencon_forward.1} parent=5 // pred_fallthru
      _
    %p307 = scmp.le.s32.totalorder 1, %s15
    %p308 = scmp.lt.s32.totalorder %s15, 3
    %p309 = pnand %p307, %p308
    %p310 = pneg %p309
    // Predicated region
    $region53: #{pointgencon_forward.1} parent=5 // pred_check
      _
    $region54: #{pointgencon_forward.1} parent=5 // pred_check_branch
      %312 = sbr.rel (%p309) target = $region56
    $region55: #{pointgencon_forward.1} parent=5 // pred_region
      %s313 = ssub.s32 %s15, 1
      %s314 = smul.u32 20, %s25
      %p315 = scmp.lt.s32.totalorder %s24, 1
      %s316 = scalar_select %p315, %s24, 1
      %p317 = scmp.lt.s32.totalorder %s314, 19
      %s318 = scalar_select %p317, %s314, 19
      %s319 = smul.addr %s316, 640
      %s320 = sadd.s32 %s318, %s319
      %s321 = smul.addr %s320, 8
      %s322 = scalar_lea.vmem %s0, %s321
      %p323 = pneg %p55
      %p324 = pneg %p52
      %p325 = pneg %p76
      %p326 = pneg %p73
      %p327 = pneg %p97
      %p328 = pneg %p94
      %p329 = pneg %p118
      %p330 = pneg %p115
      %p331 = pneg %p139
      %p332 = pneg %p136
      %p333 = pneg %p160
      %p334 = pneg %p157
      %p335 = pneg %p181
      %p336 = pneg %p178
      %p337 = pneg %p202
      %p338 = pneg %p199
      %p339 = pneg %p223
      %p340 = pneg %p220
      %p341 = pneg %p251
      %p342 = pneg %p248
      %s343 = smul.u32 20, %s25
      %p344 = scmp.lt.s32.totalorder %s24, 1
      %s345 = scalar_select %p344, %s24, 1
      %p346 = scmp.lt.s32.totalorder %s343, 19
      %s347 = scalar_select %p346, %s343, 19
      %s348 = smul.addr %s345, 20
      %s349 = sadd.s32 %s347, %s348
      %s350 = smul.addr %s349, 8
      %s351 = scalar_lea.vmem %s9, %s350
      %s352 = smul.u32 20, %s25
      %p353 = scmp.lt.s32.totalorder %s24, 1
      %s354 = scalar_select %p353, %s24, 1
      %p355 = scmp.lt.s32.totalorder %s352, 19
      %s356 = scalar_select %p355, %s352, 19
      %s357 = smul.addr %s354, 640
      %s358 = sadd.s32 %s356, %s357
      %s359 = smul.addr %s358, 8
      %s360 = scalar_lea.vmem %s0, %s359
      %s361 = smul.u32 20, %s25
      %s362 = smul.u32 20, %s25
      %p363 = scmp.lt.s32.totalorder %s24, 1
      %s364 = scalar_select %p363, %s24, 1
      %p365 = scmp.lt.s32.totalorder %s362, 19
      %s366 = scalar_select %p365, %s362, 19
      %s367 = smul.addr %s364, 20
      %s368 = sadd.s32 %s366, %s367
      %s369 = smul.addr %s368, 8
      %s370 = scalar_lea.vmem %s9, %s369
      %s371 = smul.u32 20, %s25
      %v373 = vld [vmem:[%s360] sm:$0xff]
      %v374 = vld [vmem:[%s360 + $0x8] sm:$0xff]
      %v375 = vld [vmem:[%s360 + $0x10] sm:$0xff]
      %v376 = vld [vmem:[%s360 + $0x18] sm:$0xff]
      %v377 = vld [vmem:[%s360 + $0x20] sm:$0xff]
      %v378 = vld [vmem:[%s360 + $0x28] sm:$0xff]
      %v379 = vld [vmem:[%s360 + $0x30] sm:$0xff]
      %v380 = vld [vmem:[%s360 + $0x38] sm:$0xff]
      %v381 = vld [vmem:[%s360 + $0x40] sm:$0xff]
      %v382 = vld [vmem:[%s360 + $0x48] sm:$0xff]
      %v383 = vld [vmem:[%s360 + $0x50] sm:$0xff]
      %v384 = vld [vmem:[%s360 + $0x58] sm:$0xff]
      %v385 = vld [vmem:[%s360 + $0x60] sm:$0xff]
      %v386 = vld [vmem:[%s360 + $0x68] sm:$0xff]
      %v387 = vld [vmem:[%s360 + $0x70] sm:$0xff]
      %v388 = vld [vmem:[%s360 + $0x78] sm:$0xff]
      %v389 = vld [vmem:[%s360 + $0x80] sm:$0xff]
      %v390 = vld [vmem:[%s360 + $0x88] sm:$0xff]
      %v391 = vld [vmem:[%s360 + $0x90] sm:$0xff]
      %v392 = vld [vmem:[%s360 + $0x98] sm:$0xff]
      %v393 = vld [vmem:[%s360 + $0xa0] sm:$0xff]
      %v394 = vld [vmem:[%s360 + $0xa8] sm:$0xff]
      %v395 = vld [vmem:[%s360 + $0xb0] sm:$0xff]
      %v396 = vld [vmem:[%s360 + $0xb8] sm:$0xff]
      %v397 = vld [vmem:[%s360 + $0xc0] sm:$0xff]
      %v398 = vld [vmem:[%s360 + $0xc8] sm:$0xff]
      %v399 = vld [vmem:[%s360 + $0xd0] sm:$0xff]
      %v400 = vld [vmem:[%s360 + $0xd8] sm:$0xff]
      %v401 = vld [vmem:[%s360 + $0xe0] sm:$0xff]
      %v402 = vld [vmem:[%s360 + $0xe8] sm:$0xff]
      %v403 = vld [vmem:[%s360 + $0xf0] sm:$0xff]
      %v404 = vld [vmem:[%s360 + $0xf8] sm:$0xff]
      %v405 = vld [vmem:[%s360 + $0x100] sm:$0xff]
      %v406 = vld [vmem:[%s360 + $0x108] sm:$0xff]
      %v407 = vld [vmem:[%s360 + $0x110] sm:$0xff]
      %v408 = vld [vmem:[%s360 + $0x118] sm:$0xff]
      %v409 = vld [vmem:[%s360 + $0x120] sm:$0xff]
      %v410 = vld [vmem:[%s360 + $0x128] sm:$0xff]
      %v411 = vld [vmem:[%s360 + $0x130] sm:$0xff]
      %v412 = vld [vmem:[%s360 + $0x138] sm:$0xff]
      %v413 = vld [vmem:[%s360 + $0x140] sm:$0xff]
      %v414 = vld [vmem:[%s360 + $0x148] sm:$0xff]
      %v415 = vld [vmem:[%s360 + $0x150] sm:$0xff]
      %v416 = vld [vmem:[%s360 + $0x158] sm:$0xff]
      %v417 = vld [vmem:[%s360 + $0x160] sm:$0xff]
      %v418 = vld [vmem:[%s360 + $0x168] sm:$0xff]
      %v419 = vld [vmem:[%s360 + $0x170] sm:$0xff]
      %v420 = vld [vmem:[%s360 + $0x178] sm:$0xff]
      %v421 = vld [vmem:[%s360 + $0x180] sm:$0xff]
      %v422 = vld [vmem:[%s360 + $0x188] sm:$0xff]
      %v423 = vld [vmem:[%s360 + $0x190] sm:$0xff]
      %v424 = vld [vmem:[%s360 + $0x198] sm:$0xff]
      %v425 = vld [vmem:[%s360 + $0x1a0] sm:$0xff]
      %v426 = vld [vmem:[%s360 + $0x1a8] sm:$0xff]
      %v427 = vld [vmem:[%s360 + $0x1b0] sm:$0xff]
      %v428 = vld [vmem:[%s360 + $0x1b8] sm:$0xff]
      %v429 = vld [vmem:[%s360 + $0x1c0] sm:$0xff]
      %v430 = vld [vmem:[%s360 + $0x1c8] sm:$0xff]
      %v431 = vld [vmem:[%s360 + $0x1d0] sm:$0xff]
      %v432 = vld [vmem:[%s360 + $0x1d8] sm:$0xff]
      %v433 = vld [vmem:[%s360 + $0x1e0] sm:$0xff]
      %v434 = vld [vmem:[%s360 + $0x1e8] sm:$0xff]
      %v435 = vld [vmem:[%s360 + $0x1f0] sm:$0xff]
      %v436 = vld [vmem:[%s360 + $0x1f8] sm:$0xff]
      %v437 = vld [vmem:[%s360 + $0x200] sm:$0xff]
      %v438 = vld [vmem:[%s360 + $0x208] sm:$0xff]
      %v439 = vld [vmem:[%s360 + $0x210] sm:$0xff]
      %v440 = vld [vmem:[%s360 + $0x218] sm:$0xff]
      %v441 = vld [vmem:[%s360 + $0x220] sm:$0xff]
      %v442 = vld [vmem:[%s360 + $0x228] sm:$0xff]
      %v443 = vld [vmem:[%s360 + $0x230] sm:$0xff]
      %v444 = vld [vmem:[%s360 + $0x238] sm:$0xff]
      %v445 = vld [vmem:[%s360 + $0x240] sm:$0xff]
      %v446 = vld [vmem:[%s360 + $0x248] sm:$0xff]
      %v447 = vld [vmem:[%s360 + $0x250] sm:$0xff]
      %v448 = vld [vmem:[%s360 + $0x258] sm:$0xff]
      %v449 = vld [vmem:[%s360 + $0x260] sm:$0xff]
      %v450 = vld [vmem:[%s360 + $0x268] sm:$0xff]
      %v451 = vld [vmem:[%s360 + $0x270] sm:$0xff]
      %v452 = vld [vmem:[%s360 + $0x278] sm:$0xff]
      %v453 = vld [vmem:[%s360 + $0x280] sm:$0xff]
      %v454 = vld [vmem:[%s360 + $0x288] sm:$0xff]
      %v455 = vld [vmem:[%s360 + $0x290] sm:$0xff]
      %v456 = vld [vmem:[%s360 + $0x298] sm:$0xff]
      %v457 = vld [vmem:[%s360 + $0x2a0] sm:$0xff]
      %v458 = vld [vmem:[%s360 + $0x2a8] sm:$0xff]
      %v459 = vld [vmem:[%s360 + $0x2b0] sm:$0xff]
      %v460 = vld [vmem:[%s360 + $0x2b8] sm:$0xff]
      %v461 = vld [vmem:[%s360 + $0x2c0] sm:$0xff]
      %v462 = vld [vmem:[%s360 + $0x2c8] sm:$0xff]
      %v463 = vld [vmem:[%s360 + $0x2d0] sm:$0xff]
      %v464 = vld [vmem:[%s360 + $0x2d8] sm:$0xff]
      %v465 = vld [vmem:[%s360 + $0x2e0] sm:$0xff]
      %v466 = vld [vmem:[%s360 + $0x2e8] sm:$0xff]
      %v467 = vld [vmem:[%s360 + $0x2f0] sm:$0xff]
      %v468 = vld [vmem:[%s360 + $0x2f8] sm:$0xff]
      %v469 = vld [vmem:[%s360 + $0x300] sm:$0xff]
      %v470 = vld [vmem:[%s360 + $0x308] sm:$0xff]
      %v471 = vld [vmem:[%s360 + $0x310] sm:$0xff]
      %v472 = vld [vmem:[%s360 + $0x318] sm:$0xff]
      %v473 = vld [vmem:[%s360 + $0x320] sm:$0xff]
      %v474 = vld [vmem:[%s360 + $0x328] sm:$0xff]
      %v475 = vld [vmem:[%s360 + $0x330] sm:$0xff]
      %v476 = vld [vmem:[%s360 + $0x338] sm:$0xff]
      %v477 = vld [vmem:[%s360 + $0x340] sm:$0xff]
      %v478 = vld [vmem:[%s360 + $0x348] sm:$0xff]
      %v479 = vld [vmem:[%s360 + $0x350] sm:$0xff]
      %v480 = vld [vmem:[%s360 + $0x358] sm:$0xff]
      %v481 = vld [vmem:[%s360 + $0x360] sm:$0xff]
      %v482 = vld [vmem:[%s360 + $0x368] sm:$0xff]
      %v483 = vld [vmem:[%s360 + $0x370] sm:$0xff]
      %v484 = vld [vmem:[%s360 + $0x378] sm:$0xff]
      %v485 = vld [vmem:[%s360 + $0x380] sm:$0xff]
      %v486 = vld [vmem:[%s360 + $0x388] sm:$0xff]
      %v487 = vld [vmem:[%s360 + $0x390] sm:$0xff]
      %v488 = vld [vmem:[%s360 + $0x398] sm:$0xff]
      %v489 = vld [vmem:[%s360 + $0x3a0] sm:$0xff]
      %v490 = vld [vmem:[%s360 + $0x3a8] sm:$0xff]
      %v491 = vld [vmem:[%s360 + $0x3b0] sm:$0xff]
      %v492 = vld [vmem:[%s360 + $0x3b8] sm:$0xff]
      %v493 = vld [vmem:[%s360 + $0x3c0] sm:$0xff]
      %v494 = vld [vmem:[%s360 + $0x3c8] sm:$0xff]
      %v495 = vld [vmem:[%s360 + $0x3d0] sm:$0xff]
      %v496 = vld [vmem:[%s360 + $0x3d8] sm:$0xff]
      %v497 = vld [vmem:[%s360 + $0x3e0] sm:$0xff]
      %v498 = vld [vmem:[%s360 + $0x3e8] sm:$0xff]
      %v499 = vld [vmem:[%s360 + $0x3f0] sm:$0xff]
      %v500 = vld [vmem:[%s360 + $0x3f8] sm:$0xff]
      %v501 = vld [vmem:[%s360 + $0x400] sm:$0xff]
      %v502 = vld [vmem:[%s360 + $0x408] sm:$0xff]
      %v503 = vld [vmem:[%s360 + $0x410] sm:$0xff]
      %v504 = vld [vmem:[%s360 + $0x418] sm:$0xff]
      %v505 = vld [vmem:[%s360 + $0x420] sm:$0xff]
      %v506 = vld [vmem:[%s360 + $0x428] sm:$0xff]
      %v507 = vld [vmem:[%s360 + $0x430] sm:$0xff]
      %v508 = vld [vmem:[%s360 + $0x438] sm:$0xff]
      %v509 = vld [vmem:[%s360 + $0x440] sm:$0xff]
      %v510 = vld [vmem:[%s360 + $0x448] sm:$0xff]
      %v511 = vld [vmem:[%s360 + $0x450] sm:$0xff]
      %v512 = vld [vmem:[%s360 + $0x458] sm:$0xff]
      %v513 = vld [vmem:[%s360 + $0x460] sm:$0xff]
      %v514 = vld [vmem:[%s360 + $0x468] sm:$0xff]
      %v515 = vld [vmem:[%s360 + $0x470] sm:$0xff]
      %v516 = vld [vmem:[%s360 + $0x478] sm:$0xff]
      %v517 = vld [vmem:[%s360 + $0x480] sm:$0xff]
      %v518 = vld [vmem:[%s360 + $0x488] sm:$0xff]
      %v519 = vld [vmem:[%s360 + $0x490] sm:$0xff]
      %v520 = vld [vmem:[%s360 + $0x498] sm:$0xff]
      %v521 = vld [vmem:[%s360 + $0x4a0] sm:$0xff]
      %v522 = vld [vmem:[%s360 + $0x4a8] sm:$0xff]
      %v523 = vld [vmem:[%s360 + $0x4b0] sm:$0xff]
      %v524 = vld [vmem:[%s360 + $0x4b8] sm:$0xff]
      %v525 = vld [vmem:[%s360 + $0x4c0] sm:$0xff]
      %v526 = vld [vmem:[%s360 + $0x4c8] sm:$0xff]
      %v527 = vld [vmem:[%s360 + $0x4d0] sm:$0xff]
      %v528 = vld [vmem:[%s360 + $0x4d8] sm:$0xff]
      %v529 = vld [vmem:[%s360 + $0x4e0] sm:$0xff]
      %v530 = vld [vmem:[%s360 + $0x4e8] sm:$0xff]
      %v531 = vld [vmem:[%s360 + $0x4f0] sm:$0xff]
      %v532 = vld [vmem:[%s360 + $0x4f8] sm:$0xff]
      %v533 = vld [vmem:[%s360 + $0x500] sm:$0xff]
      %v534 = vld [vmem:[%s360 + $0x508] sm:$0xff]
      %v535 = vld [vmem:[%s360 + $0x510] sm:$0xff]
      %v536 = vld [vmem:[%s360 + $0x518] sm:$0xff]
      %v537 = vld [vmem:[%s360 + $0x520] sm:$0xff]
      %v538 = vld [vmem:[%s360 + $0x528] sm:$0xff]
      %v539 = vld [vmem:[%s360 + $0x530] sm:$0xff]
      %v540 = vld [vmem:[%s360 + $0x538] sm:$0xff]
      %v541 = vld [vmem:[%s360 + $0x540] sm:$0xff]
      %v542 = vld [vmem:[%s360 + $0x548] sm:$0xff]
      %v543 = vld [vmem:[%s360 + $0x550] sm:$0xff]
      %v544 = vld [vmem:[%s360 + $0x558] sm:$0xff]
      %v545 = vld [vmem:[%s360 + $0x560] sm:$0xff]
      %v546 = vld [vmem:[%s360 + $0x568] sm:$0xff]
      %v547 = vld [vmem:[%s360 + $0x570] sm:$0xff]
      %v548 = vld [vmem:[%s360 + $0x578] sm:$0xff]
      %v549 = vld [vmem:[%s360 + $0x580] sm:$0xff]
      %v550 = vld [vmem:[%s360 + $0x588] sm:$0xff]
      %v551 = vld [vmem:[%s360 + $0x590] sm:$0xff]
      %v552 = vld [vmem:[%s360 + $0x598] sm:$0xff]
      %v553 = vld [vmem:[%s360 + $0x5a0] sm:$0xff]
      %v554 = vld [vmem:[%s360 + $0x5a8] sm:$0xff]
      %v555 = vld [vmem:[%s360 + $0x5b0] sm:$0xff]
      %v556 = vld [vmem:[%s360 + $0x5b8] sm:$0xff]
      %v557 = vld [vmem:[%s360 + $0x5c0] sm:$0xff]
      %v558 = vld [vmem:[%s360 + $0x5c8] sm:$0xff]
      %v559 = vld [vmem:[%s360 + $0x5d0] sm:$0xff]
      %v560 = vld [vmem:[%s360 + $0x5d8] sm:$0xff]
      %v561 = vld [vmem:[%s360 + $0x5e0] sm:$0xff]
      %v562 = vld [vmem:[%s360 + $0x5e8] sm:$0xff]
      %v563 = vld [vmem:[%s360 + $0x5f0] sm:$0xff]
      %v564 = vld [vmem:[%s360 + $0x5f8] sm:$0xff]
      %v565 = vld [vmem:[%s360 + $0x600] sm:$0xff]
      %v566 = vld [vmem:[%s360 + $0x608] sm:$0xff]
      %v567 = vld [vmem:[%s360 + $0x610] sm:$0xff]
      %v568 = vld [vmem:[%s360 + $0x618] sm:$0xff]
      %v569 = vld [vmem:[%s360 + $0x620] sm:$0xff]
      %v570 = vld [vmem:[%s360 + $0x628] sm:$0xff]
      %v571 = vld [vmem:[%s360 + $0x630] sm:$0xff]
      %v572 = vld [vmem:[%s360 + $0x638] sm:$0xff]
      %v573 = vld [vmem:[%s360 + $0x640] sm:$0xff]
      %v574 = vld [vmem:[%s360 + $0x648] sm:$0xff]
      %v575 = vld [vmem:[%s360 + $0x650] sm:$0xff]
      %v576 = vld [vmem:[%s360 + $0x658] sm:$0xff]
      %v577 = vld [vmem:[%s360 + $0x660] sm:$0xff]
      %v578 = vld [vmem:[%s360 + $0x668] sm:$0xff]
      %v579 = vld [vmem:[%s360 + $0x670] sm:$0xff]
      %v580 = vld [vmem:[%s360 + $0x678] sm:$0xff]
      %v581 = vld [vmem:[%s360 + $0x680] sm:$0xff]
      %v582 = vld [vmem:[%s360 + $0x688] sm:$0xff]
      %v583 = vld [vmem:[%s360 + $0x690] sm:$0xff]
      %v584 = vld [vmem:[%s360 + $0x698] sm:$0xff]
      %v585 = vld [vmem:[%s360 + $0x6a0] sm:$0xff]
      %v586 = vld [vmem:[%s360 + $0x6a8] sm:$0xff]
      %v587 = vld [vmem:[%s360 + $0x6b0] sm:$0xff]
      %v588 = vld [vmem:[%s360 + $0x6b8] sm:$0xff]
      %v589 = vld [vmem:[%s360 + $0x6c0] sm:$0xff]
      %v590 = vld [vmem:[%s360 + $0x6c8] sm:$0xff]
      %v591 = vld [vmem:[%s360 + $0x6d0] sm:$0xff]
      %v592 = vld [vmem:[%s360 + $0x6d8] sm:$0xff]
      %v593 = vld [vmem:[%s360 + $0x6e0] sm:$0xff]
      %v594 = vld [vmem:[%s360 + $0x6e8] sm:$0xff]
      %v595 = vld [vmem:[%s360 + $0x6f0] sm:$0xff]
      %v596 = vld [vmem:[%s360 + $0x6f8] sm:$0xff]
      %v597 = vld [vmem:[%s360 + $0x700] sm:$0xff]
      %v598 = vld [vmem:[%s360 + $0x708] sm:$0xff]
      %v599 = vld [vmem:[%s360 + $0x710] sm:$0xff]
      %v600 = vld [vmem:[%s360 + $0x718] sm:$0xff]
      %v601 = vld [vmem:[%s360 + $0x720] sm:$0xff]
      %v602 = vld [vmem:[%s360 + $0x728] sm:$0xff]
      %v603 = vld [vmem:[%s360 + $0x730] sm:$0xff]
      %v604 = vld [vmem:[%s360 + $0x738] sm:$0xff]
      %v605 = vld [vmem:[%s360 + $0x740] sm:$0xff]
      %v606 = vld [vmem:[%s360 + $0x748] sm:$0xff]
      %v607 = vld [vmem:[%s360 + $0x750] sm:$0xff]
      %v608 = vld [vmem:[%s360 + $0x758] sm:$0xff]
      %v609 = vld [vmem:[%s360 + $0x760] sm:$0xff]
      %v610 = vld [vmem:[%s360 + $0x768] sm:$0xff]
      %v611 = vld [vmem:[%s360 + $0x770] sm:$0xff]
      %v612 = vld [vmem:[%s360 + $0x778] sm:$0xff]
      %v613 = vld [vmem:[%s360 + $0x780] sm:$0xff]
      %v614 = vld [vmem:[%s360 + $0x788] sm:$0xff]
      %v615 = vld [vmem:[%s360 + $0x790] sm:$0xff]
      %v616 = vld [vmem:[%s360 + $0x798] sm:$0xff]
      %v617 = vld [vmem:[%s360 + $0x7a0] sm:$0xff]
      %v618 = vld [vmem:[%s360 + $0x7a8] sm:$0xff]
      %v619 = vld [vmem:[%s360 + $0x7b0] sm:$0xff]
      %v620 = vld [vmem:[%s360 + $0x7b8] sm:$0xff]
      %v621 = vld [vmem:[%s360 + $0x7c0] sm:$0xff]
      %v622 = vld [vmem:[%s360 + $0x7c8] sm:$0xff]
      %v623 = vld [vmem:[%s360 + $0x7d0] sm:$0xff]
      %v624 = vld [vmem:[%s360 + $0x7d8] sm:$0xff]
      %v625 = vld [vmem:[%s360 + $0x7e0] sm:$0xff]
      %v626 = vld [vmem:[%s360 + $0x7e8] sm:$0xff]
      %v627 = vld [vmem:[%s360 + $0x7f0] sm:$0xff]
      %v628 = vld [vmem:[%s360 + $0x7f8] sm:$0xff]
      %v629 = vld [vmem:[%s360 + $0x800] sm:$0xff]
      %v630 = vld [vmem:[%s360 + $0x808] sm:$0xff]
      %v631 = vld [vmem:[%s360 + $0x810] sm:$0xff]
      %v632 = vld [vmem:[%s360 + $0x818] sm:$0xff]
      %v633 = vld [vmem:[%s360 + $0x820] sm:$0xff]
      %v634 = vld [vmem:[%s360 + $0x828] sm:$0xff]
      %v635 = vld [vmem:[%s360 + $0x830] sm:$0xff]
      %v636 = vld [vmem:[%s360 + $0x838] sm:$0xff]
      %v637 = vld [vmem:[%s360 + $0x840] sm:$0xff]
      %v638 = vld [vmem:[%s360 + $0x848] sm:$0xff]
      %v639 = vld [vmem:[%s360 + $0x850] sm:$0xff]
      %v640 = vld [vmem:[%s360 + $0x858] sm:$0xff]
      %v641 = vld [vmem:[%s360 + $0x860] sm:$0xff]
      %v642 = vld [vmem:[%s360 + $0x868] sm:$0xff]
      %v643 = vld [vmem:[%s360 + $0x870] sm:$0xff]
      %v644 = vld [vmem:[%s360 + $0x878] sm:$0xff]
      %v645 = vld [vmem:[%s360 + $0x880] sm:$0xff]
      %v646 = vld [vmem:[%s360 + $0x888] sm:$0xff]
      %v647 = vld [vmem:[%s360 + $0x890] sm:$0xff]
      %v648 = vld [vmem:[%s360 + $0x898] sm:$0xff]
      %v649 = vld [vmem:[%s360 + $0x8a0] sm:$0xff]
      %v650 = vld [vmem:[%s360 + $0x8a8] sm:$0xff]
      %v651 = vld [vmem:[%s360 + $0x8b0] sm:$0xff]
      %v652 = vld [vmem:[%s360 + $0x8b8] sm:$0xff]
      %v653 = vld [vmem:[%s360 + $0x8c0] sm:$0xff]
      %v654 = vld [vmem:[%s360 + $0x8c8] sm:$0xff]
      %v655 = vld [vmem:[%s360 + $0x8d0] sm:$0xff]
      %v656 = vld [vmem:[%s360 + $0x8d8] sm:$0xff]
      %v657 = vld [vmem:[%s360 + $0x8e0] sm:$0xff]
      %v658 = vld [vmem:[%s360 + $0x8e8] sm:$0xff]
      %v659 = vld [vmem:[%s360 + $0x8f0] sm:$0xff]
      %v660 = vld [vmem:[%s360 + $0x8f8] sm:$0xff]
      %v661 = vld [vmem:[%s360 + $0x900] sm:$0xff]
      %v662 = vld [vmem:[%s360 + $0x908] sm:$0xff]
      %v663 = vld [vmem:[%s360 + $0x910] sm:$0xff]
      %v664 = vld [vmem:[%s360 + $0x918] sm:$0xff]
      %v665 = vld [vmem:[%s360 + $0x920] sm:$0xff]
      %v666 = vld [vmem:[%s360 + $0x928] sm:$0xff]
      %v667 = vld [vmem:[%s360 + $0x930] sm:$0xff]
      %v668 = vld [vmem:[%s360 + $0x938] sm:$0xff]
      %v669 = vld [vmem:[%s360 + $0x940] sm:$0xff]
      %v670 = vld [vmem:[%s360 + $0x948] sm:$0xff]
      %v671 = vld [vmem:[%s360 + $0x950] sm:$0xff]
      %v672 = vld [vmem:[%s360 + $0x958] sm:$0xff]
      %v673 = vld [vmem:[%s360 + $0x960] sm:$0xff]
      %v674 = vld [vmem:[%s360 + $0x968] sm:$0xff]
      %v675 = vld [vmem:[%s360 + $0x970] sm:$0xff]
      %v676 = vld [vmem:[%s360 + $0x978] sm:$0xff]
      %v677 = vld [vmem:[%s360 + $0x980] sm:$0xff]
      %v678 = vld [vmem:[%s360 + $0x988] sm:$0xff]
      %v679 = vld [vmem:[%s360 + $0x990] sm:$0xff]
      %v680 = vld [vmem:[%s360 + $0x998] sm:$0xff]
      %v681 = vld [vmem:[%s360 + $0x9a0] sm:$0xff]
      %v682 = vld [vmem:[%s360 + $0x9a8] sm:$0xff]
      %v683 = vld [vmem:[%s360 + $0x9b0] sm:$0xff]
      %v684 = vld [vmem:[%s360 + $0x9b8] sm:$0xff]
      %v685 = vld [vmem:[%s360 + $0x9c0] sm:$0xff]
      %v686 = vld [vmem:[%s360 + $0x9c8] sm:$0xff]
      %v687 = vld [vmem:[%s360 + $0x9d0] sm:$0xff]
      %v688 = vld [vmem:[%s360 + $0x9d8] sm:$0xff]
      %v689 = vld [vmem:[%s360 + $0x9e0] sm:$0xff]
      %v690 = vld [vmem:[%s360 + $0x9e8] sm:$0xff]
      %v691 = vld [vmem:[%s360 + $0x9f0] sm:$0xff]
      %v692 = vld [vmem:[%s360 + $0x9f8] sm:$0xff]
      %v693 = vld [vmem:[%s360 + $0xa00] sm:$0xff]
      %v694 = vld [vmem:[%s360 + $0xa08] sm:$0xff]
      %v695 = vld [vmem:[%s360 + $0xa10] sm:$0xff]
      %v696 = vld [vmem:[%s360 + $0xa18] sm:$0xff]
      %v697 = vld [vmem:[%s360 + $0xa20] sm:$0xff]
      %v698 = vld [vmem:[%s360 + $0xa28] sm:$0xff]
      %v699 = vld [vmem:[%s360 + $0xa30] sm:$0xff]
      %v700 = vld [vmem:[%s360 + $0xa38] sm:$0xff]
      %v701 = vld [vmem:[%s360 + $0xa40] sm:$0xff]
      %v702 = vld [vmem:[%s360 + $0xa48] sm:$0xff]
      %v703 = vld [vmem:[%s360 + $0xa50] sm:$0xff]
      %v704 = vld [vmem:[%s360 + $0xa58] sm:$0xff]
      %v705 = vld [vmem:[%s360 + $0xa60] sm:$0xff]
      %v706 = vld [vmem:[%s360 + $0xa68] sm:$0xff]
      %v707 = vld [vmem:[%s360 + $0xa70] sm:$0xff]
      %v708 = vld [vmem:[%s360 + $0xa78] sm:$0xff]
      %v709 = vld [vmem:[%s360 + $0xa80] sm:$0xff]
      %v710 = vld [vmem:[%s360 + $0xa88] sm:$0xff]
      %v711 = vld [vmem:[%s360 + $0xa90] sm:$0xff]
      %v712 = vld [vmem:[%s360 + $0xa98] sm:$0xff]
      %v713 = vld [vmem:[%s360 + $0xaa0] sm:$0xff]
      %v714 = vld [vmem:[%s360 + $0xaa8] sm:$0xff]
      %v715 = vld [vmem:[%s360 + $0xab0] sm:$0xff]
      %v716 = vld [vmem:[%s360 + $0xab8] sm:$0xff]
      %v717 = vld [vmem:[%s360 + $0xac0] sm:$0xff]
      %v718 = vld [vmem:[%s360 + $0xac8] sm:$0xff]
      %v719 = vld [vmem:[%s360 + $0xad0] sm:$0xff]
      %v720 = vld [vmem:[%s360 + $0xad8] sm:$0xff]
      %v721 = vld [vmem:[%s360 + $0xae0] sm:$0xff]
      %v722 = vld [vmem:[%s360 + $0xae8] sm:$0xff]
      %v723 = vld [vmem:[%s360 + $0xaf0] sm:$0xff]
      %v724 = vld [vmem:[%s360 + $0xaf8] sm:$0xff]
      %v725 = vld [vmem:[%s360 + $0xb00] sm:$0xff]
      %v726 = vld [vmem:[%s360 + $0xb08] sm:$0xff]
      %v727 = vld [vmem:[%s360 + $0xb10] sm:$0xff]
      %v728 = vld [vmem:[%s360 + $0xb18] sm:$0xff]
      %v729 = vld [vmem:[%s360 + $0xb20] sm:$0xff]
      %v730 = vld [vmem:[%s360 + $0xb28] sm:$0xff]
      %v731 = vld [vmem:[%s360 + $0xb30] sm:$0xff]
      %v732 = vld [vmem:[%s360 + $0xb38] sm:$0xff]
      %v733 = vld [vmem:[%s360 + $0xb40] sm:$0xff]
      %v734 = vld [vmem:[%s360 + $0xb48] sm:$0xff]
      %v735 = vld [vmem:[%s360 + $0xb50] sm:$0xff]
      %v736 = vld [vmem:[%s360 + $0xb58] sm:$0xff]
      %v737 = vld [vmem:[%s360 + $0xb60] sm:$0xff]
      %v738 = vld [vmem:[%s360 + $0xb68] sm:$0xff]
      %v739 = vld [vmem:[%s360 + $0xb70] sm:$0xff]
      %v740 = vld [vmem:[%s360 + $0xb78] sm:$0xff]
      %v741 = vld [vmem:[%s360 + $0xb80] sm:$0xff]
      %v742 = vld [vmem:[%s360 + $0xb88] sm:$0xff]
      %v743 = vld [vmem:[%s360 + $0xb90] sm:$0xff]
      %v744 = vld [vmem:[%s360 + $0xb98] sm:$0xff]
      %v745 = vld [vmem:[%s360 + $0xba0] sm:$0xff]
      %v746 = vld [vmem:[%s360 + $0xba8] sm:$0xff]
      %v747 = vld [vmem:[%s360 + $0xbb0] sm:$0xff]
      %v748 = vld [vmem:[%s360 + $0xbb8] sm:$0xff]
      %v749 = vld [vmem:[%s360 + $0xbc0] sm:$0xff]
      %v750 = vld [vmem:[%s360 + $0xbc8] sm:$0xff]
      %v751 = vld [vmem:[%s360 + $0xbd0] sm:$0xff]
      %v752 = vld [vmem:[%s360 + $0xbd8] sm:$0xff]
      %v753 = vld [vmem:[%s360 + $0xbe0] sm:$0xff]
      %v754 = vld [vmem:[%s360 + $0xbe8] sm:$0xff]
      %v755 = vld [vmem:[%s360 + $0xbf0] sm:$0xff]
      %v756 = vld [vmem:[%s360 + $0xbf8] sm:$0xff]
      %v757 = vld [vmem:[%s360 + $0xc00] sm:$0xff]
      %v758 = vld [vmem:[%s360 + $0xc08] sm:$0xff]
      %v759 = vld [vmem:[%s360 + $0xc10] sm:$0xff]
      %v760 = vld [vmem:[%s360 + $0xc18] sm:$0xff]
      %v761 = vld [vmem:[%s360 + $0xc20] sm:$0xff]
      %v762 = vld [vmem:[%s360 + $0xc28] sm:$0xff]
      %v763 = vld [vmem:[%s360 + $0xc30] sm:$0xff]
      %v764 = vld [vmem:[%s360 + $0xc38] sm:$0xff]
      %v765 = vld [vmem:[%s360 + $0xc40] sm:$0xff]
      %v766 = vld [vmem:[%s360 + $0xc48] sm:$0xff]
      %v767 = vld [vmem:[%s360 + $0xc50] sm:$0xff]
      %v768 = vld [vmem:[%s360 + $0xc58] sm:$0xff]
      %v769 = vld [vmem:[%s360 + $0xc60] sm:$0xff]
      %v770 = vld [vmem:[%s360 + $0xc68] sm:$0xff]
      %v771 = vld [vmem:[%s360 + $0xc70] sm:$0xff]
      %v772 = vld [vmem:[%s360 + $0xc78] sm:$0xff]
      %v773 = vld [vmem:[%s360 + $0xc80] sm:$0xff]
      %v774 = vld [vmem:[%s360 + $0xc88] sm:$0xff]
      %v775 = vld [vmem:[%s360 + $0xc90] sm:$0xff]
      %v776 = vld [vmem:[%s360 + $0xc98] sm:$0xff]
      %v777 = vld [vmem:[%s360 + $0xca0] sm:$0xff]
      %v778 = vld [vmem:[%s360 + $0xca8] sm:$0xff]
      %v779 = vld [vmem:[%s360 + $0xcb0] sm:$0xff]
      %v780 = vld [vmem:[%s360 + $0xcb8] sm:$0xff]
      %v781 = vld [vmem:[%s360 + $0xcc0] sm:$0xff]
      %v782 = vld [vmem:[%s360 + $0xcc8] sm:$0xff]
      %v783 = vld [vmem:[%s360 + $0xcd0] sm:$0xff]
      %v784 = vld [vmem:[%s360 + $0xcd8] sm:$0xff]
      %v785 = vld [vmem:[%s360 + $0xce0] sm:$0xff]
      %v786 = vld [vmem:[%s360 + $0xce8] sm:$0xff]
      %v787 = vld [vmem:[%s360 + $0xcf0] sm:$0xff]
      %v788 = vld [vmem:[%s360 + $0xcf8] sm:$0xff]
      %v789 = vld [vmem:[%s360 + $0xd00] sm:$0xff]
      %v790 = vld [vmem:[%s360 + $0xd08] sm:$0xff]
      %v791 = vld [vmem:[%s360 + $0xd10] sm:$0xff]
      %v792 = vld [vmem:[%s360 + $0xd18] sm:$0xff]
      %v793 = vld [vmem:[%s360 + $0xd20] sm:$0xff]
      %v794 = vld [vmem:[%s360 + $0xd28] sm:$0xff]
      %v795 = vld [vmem:[%s360 + $0xd30] sm:$0xff]
      %v796 = vld [vmem:[%s360 + $0xd38] sm:$0xff]
      %v797 = vld [vmem:[%s360 + $0xd40] sm:$0xff]
      %v798 = vld [vmem:[%s360 + $0xd48] sm:$0xff]
      %v799 = vld [vmem:[%s360 + $0xd50] sm:$0xff]
      %v800 = vld [vmem:[%s360 + $0xd58] sm:$0xff]
      %v801 = vld [vmem:[%s360 + $0xd60] sm:$0xff]
      %v802 = vld [vmem:[%s360 + $0xd68] sm:$0xff]
      %v803 = vld [vmem:[%s360 + $0xd70] sm:$0xff]
      %v804 = vld [vmem:[%s360 + $0xd78] sm:$0xff]
      %v805 = vld [vmem:[%s360 + $0xd80] sm:$0xff]
      %v806 = vld [vmem:[%s360 + $0xd88] sm:$0xff]
      %v807 = vld [vmem:[%s360 + $0xd90] sm:$0xff]
      %v808 = vld [vmem:[%s360 + $0xd98] sm:$0xff]
      %v809 = vld [vmem:[%s360 + $0xda0] sm:$0xff]
      %v810 = vld [vmem:[%s360 + $0xda8] sm:$0xff]
      %v811 = vld [vmem:[%s360 + $0xdb0] sm:$0xff]
      %v812 = vld [vmem:[%s360 + $0xdb8] sm:$0xff]
      %v813 = vld [vmem:[%s360 + $0xdc0] sm:$0xff]
      %v814 = vld [vmem:[%s360 + $0xdc8] sm:$0xff]
      %v815 = vld [vmem:[%s360 + $0xdd0] sm:$0xff]
      %v816 = vld [vmem:[%s360 + $0xdd8] sm:$0xff]
      %v817 = vld [vmem:[%s360 + $0xde0] sm:$0xff]
      %v818 = vld [vmem:[%s360 + $0xde8] sm:$0xff]
      %v819 = vld [vmem:[%s360 + $0xdf0] sm:$0xff]
      %v820 = vld [vmem:[%s360 + $0xdf8] sm:$0xff]
      %v821 = vld [vmem:[%s360 + $0xe00] sm:$0xff]
      %v822 = vld [vmem:[%s360 + $0xe08] sm:$0xff]
      %v823 = vld [vmem:[%s360 + $0xe10] sm:$0xff]
      %v824 = vld [vmem:[%s360 + $0xe18] sm:$0xff]
      %v825 = vld [vmem:[%s360 + $0xe20] sm:$0xff]
      %v826 = vld [vmem:[%s360 + $0xe28] sm:$0xff]
      %v827 = vld [vmem:[%s360 + $0xe30] sm:$0xff]
      %v828 = vld [vmem:[%s360 + $0xe38] sm:$0xff]
      %v829 = vld [vmem:[%s360 + $0xe40] sm:$0xff]
      %v830 = vld [vmem:[%s360 + $0xe48] sm:$0xff]
      %v831 = vld [vmem:[%s360 + $0xe50] sm:$0xff]
      %v832 = vld [vmem:[%s360 + $0xe58] sm:$0xff]
      %v833 = vld [vmem:[%s360 + $0xe60] sm:$0xff]
      %v834 = vld [vmem:[%s360 + $0xe68] sm:$0xff]
      %v835 = vld [vmem:[%s360 + $0xe70] sm:$0xff]
      %v836 = vld [vmem:[%s360 + $0xe78] sm:$0xff]
      %v837 = vld [vmem:[%s360 + $0xe80] sm:$0xff]
      %v838 = vld [vmem:[%s360 + $0xe88] sm:$0xff]
      %v839 = vld [vmem:[%s360 + $0xe90] sm:$0xff]
      %v840 = vld [vmem:[%s360 + $0xe98] sm:$0xff]
      %v841 = vld [vmem:[%s360 + $0xea0] sm:$0xff]
      %v842 = vld [vmem:[%s360 + $0xea8] sm:$0xff]
      %v843 = vld [vmem:[%s360 + $0xeb0] sm:$0xff]
      %v844 = vld [vmem:[%s360 + $0xeb8] sm:$0xff]
      %v845 = vld [vmem:[%s360 + $0xec0] sm:$0xff]
      %v846 = vld [vmem:[%s360 + $0xec8] sm:$0xff]
      %v847 = vld [vmem:[%s360 + $0xed0] sm:$0xff]
      %v848 = vld [vmem:[%s360 + $0xed8] sm:$0xff]
      %v849 = vld [vmem:[%s360 + $0xee0] sm:$0xff]
      %v850 = vld [vmem:[%s360 + $0xee8] sm:$0xff]
      %v851 = vld [vmem:[%s360 + $0xef0] sm:$0xff]
      %v852 = vld [vmem:[%s360 + $0xef8] sm:$0xff]
      %v853 = vld [vmem:[%s360 + $0xf00] sm:$0xff]
      %v854 = vld [vmem:[%s360 + $0xf08] sm:$0xff]
      %v855 = vld [vmem:[%s360 + $0xf10] sm:$0xff]
      %v856 = vld [vmem:[%s360 + $0xf18] sm:$0xff]
      %v857 = vld [vmem:[%s360 + $0xf20] sm:$0xff]
      %v858 = vld [vmem:[%s360 + $0xf28] sm:$0xff]
      %v859 = vld [vmem:[%s360 + $0xf30] sm:$0xff]
      %v860 = vld [vmem:[%s360 + $0xf38] sm:$0xff]
      %v861 = vld [vmem:[%s360 + $0xf40] sm:$0xff]
      %v862 = vld [vmem:[%s360 + $0xf48] sm:$0xff]
      %v863 = vld [vmem:[%s360 + $0xf50] sm:$0xff]
      %v864 = vld [vmem:[%s360 + $0xf58] sm:$0xff]
      %v865 = vld [vmem:[%s360 + $0xf60] sm:$0xff]
      %v866 = vld [vmem:[%s360 + $0xf68] sm:$0xff]
      %v867 = vld [vmem:[%s360 + $0xf70] sm:$0xff]
      %v868 = vld [vmem:[%s360 + $0xf78] sm:$0xff]
      %v869 = vld [vmem:[%s360 + $0xf80] sm:$0xff]
      %v870 = vld [vmem:[%s360 + $0xf88] sm:$0xff]
      %v871 = vld [vmem:[%s360 + $0xf90] sm:$0xff]
      %v872 = vld [vmem:[%s360 + $0xf98] sm:$0xff]
      %v873 = vld [vmem:[%s360 + $0xfa0] sm:$0xff]
      %v874 = vld [vmem:[%s360 + $0xfa8] sm:$0xff]
      %v875 = vld [vmem:[%s360 + $0xfb0] sm:$0xff]
      %v876 = vld [vmem:[%s360 + $0xfb8] sm:$0xff]
      %v877 = vld [vmem:[%s360 + $0xfc0] sm:$0xff]
      %v878 = vld [vmem:[%s360 + $0xfc8] sm:$0xff]
      %v879 = vld [vmem:[%s360 + $0xfd0] sm:$0xff]
      %v880 = vld [vmem:[%s360 + $0xfd8] sm:$0xff]
      %v881 = vld [vmem:[%s360 + $0xfe0] sm:$0xff]
      %v882 = vld [vmem:[%s360 + $0xfe8] sm:$0xff]
      %v883 = vld [vmem:[%s360 + $0xff0] sm:$0xff]
      %v884 = vld [vmem:[%s360 + $0xff8] sm:$0xff]
      %v885 = vld [vmem:[%s360 + $0x1000] sm:$0xff]
      %v886 = vld [vmem:[%s360 + $0x1008] sm:$0xff]
      %v887 = vld [vmem:[%s360 + $0x1010] sm:$0xff]
      %v888 = vld [vmem:[%s360 + $0x1018] sm:$0xff]
      %v889 = vld [vmem:[%s360 + $0x1020] sm:$0xff]
      %v890 = vld [vmem:[%s360 + $0x1028] sm:$0xff]
      %v891 = vld [vmem:[%s360 + $0x1030] sm:$0xff]
      %v892 = vld [vmem:[%s360 + $0x1038] sm:$0xff]
      %v893 = vld [vmem:[%s360 + $0x1040] sm:$0xff]
      %v894 = vld [vmem:[%s360 + $0x1048] sm:$0xff]
      %v895 = vld [vmem:[%s360 + $0x1050] sm:$0xff]
      %v896 = vld [vmem:[%s360 + $0x1058] sm:$0xff]
      %v897 = vld [vmem:[%s360 + $0x1060] sm:$0xff]
      %v898 = vld [vmem:[%s360 + $0x1068] sm:$0xff]
      %v899 = vld [vmem:[%s360 + $0x1070] sm:$0xff]
      %v900 = vld [vmem:[%s360 + $0x1078] sm:$0xff]
      %v901 = vld [vmem:[%s360 + $0x1080] sm:$0xff]
      %v902 = vld [vmem:[%s360 + $0x1088] sm:$0xff]
      %v903 = vld [vmem:[%s360 + $0x1090] sm:$0xff]
      %v904 = vld [vmem:[%s360 + $0x1098] sm:$0xff]
      %v905 = vld [vmem:[%s360 + $0x10a0] sm:$0xff]
      %v906 = vld [vmem:[%s360 + $0x10a8] sm:$0xff]
      %v907 = vld [vmem:[%s360 + $0x10b0] sm:$0xff]
      %v908 = vld [vmem:[%s360 + $0x10b8] sm:$0xff]
      %v909 = vld [vmem:[%s360 + $0x10c0] sm:$0xff]
      %v910 = vld [vmem:[%s360 + $0x10c8] sm:$0xff]
      %v911 = vld [vmem:[%s360 + $0x10d0] sm:$0xff]
      %v912 = vld [vmem:[%s360 + $0x10d8] sm:$0xff]
      %v913 = vld [vmem:[%s360 + $0x10e0] sm:$0xff]
      %v914 = vld [vmem:[%s360 + $0x10e8] sm:$0xff]
      %v915 = vld [vmem:[%s360 + $0x10f0] sm:$0xff]
      %v916 = vld [vmem:[%s360 + $0x10f8] sm:$0xff]
      %v917 = vld [vmem:[%s360 + $0x1100] sm:$0xff]
      %v918 = vld [vmem:[%s360 + $0x1108] sm:$0xff]
      %v919 = vld [vmem:[%s360 + $0x1110] sm:$0xff]
      %v920 = vld [vmem:[%s360 + $0x1118] sm:$0xff]
      %v921 = vld [vmem:[%s360 + $0x1120] sm:$0xff]
      %v922 = vld [vmem:[%s360 + $0x1128] sm:$0xff]
      %v923 = vld [vmem:[%s360 + $0x1130] sm:$0xff]
      %v924 = vld [vmem:[%s360 + $0x1138] sm:$0xff]
      %v925 = vld [vmem:[%s360 + $0x1140] sm:$0xff]
      %v926 = vld [vmem:[%s360 + $0x1148] sm:$0xff]
      %v927 = vld [vmem:[%s360 + $0x1150] sm:$0xff]
      %v928 = vld [vmem:[%s360 + $0x1158] sm:$0xff]
      %v929 = vld [vmem:[%s360 + $0x1160] sm:$0xff]
      %v930 = vld [vmem:[%s360 + $0x1168] sm:$0xff]
      %v931 = vld [vmem:[%s360 + $0x1170] sm:$0xff]
      %v932 = vld [vmem:[%s360 + $0x1178] sm:$0xff]
      %v933 = vld [vmem:[%s360 + $0x1180] sm:$0xff]
      %v934 = vld [vmem:[%s360 + $0x1188] sm:$0xff]
      %v935 = vld [vmem:[%s360 + $0x1190] sm:$0xff]
      %v936 = vld [vmem:[%s360 + $0x1198] sm:$0xff]
      %v937 = vld [vmem:[%s360 + $0x11a0] sm:$0xff]
      %v938 = vld [vmem:[%s360 + $0x11a8] sm:$0xff]
      %v939 = vld [vmem:[%s360 + $0x11b0] sm:$0xff]
      %v940 = vld [vmem:[%s360 + $0x11b8] sm:$0xff]
      %v941 = vld [vmem:[%s360 + $0x11c0] sm:$0xff]
      %v942 = vld [vmem:[%s360 + $0x11c8] sm:$0xff]
      %v943 = vld [vmem:[%s360 + $0x11d0] sm:$0xff]
      %v944 = vld [vmem:[%s360 + $0x11d8] sm:$0xff]
      %v945 = vld [vmem:[%s360 + $0x11e0] sm:$0xff]
      %v946 = vld [vmem:[%s360 + $0x11e8] sm:$0xff]
      %v947 = vld [vmem:[%s360 + $0x11f0] sm:$0xff]
      %v948 = vld [vmem:[%s360 + $0x11f8] sm:$0xff]
      %v949 = vld [vmem:[%s360 + $0x1200] sm:$0xff]
      %v950 = vld [vmem:[%s360 + $0x1208] sm:$0xff]
      %v951 = vld [vmem:[%s360 + $0x1210] sm:$0xff]
      %v952 = vld [vmem:[%s360 + $0x1218] sm:$0xff]
      %v953 = vld [vmem:[%s360 + $0x1220] sm:$0xff]
      %v954 = vld [vmem:[%s360 + $0x1228] sm:$0xff]
      %v955 = vld [vmem:[%s360 + $0x1230] sm:$0xff]
      %v956 = vld [vmem:[%s360 + $0x1238] sm:$0xff]
      %v957 = vld [vmem:[%s360 + $0x1240] sm:$0xff]
      %v958 = vld [vmem:[%s360 + $0x1248] sm:$0xff]
      %v959 = vld [vmem:[%s360 + $0x1250] sm:$0xff]
      %v960 = vld [vmem:[%s360 + $0x1258] sm:$0xff]
      %v961 = vld [vmem:[%s360 + $0x1260] sm:$0xff]
      %v962 = vld [vmem:[%s360 + $0x1268] sm:$0xff]
      %v963 = vld [vmem:[%s360 + $0x1270] sm:$0xff]
      %v964 = vld [vmem:[%s360 + $0x1278] sm:$0xff]
      %v965 = vld [vmem:[%s360 + $0x1280] sm:$0xff]
      %v966 = vld [vmem:[%s360 + $0x1288] sm:$0xff]
      %v967 = vld [vmem:[%s360 + $0x1290] sm:$0xff]
      %v968 = vld [vmem:[%s360 + $0x1298] sm:$0xff]
      %v969 = vld [vmem:[%s360 + $0x12a0] sm:$0xff]
      %v970 = vld [vmem:[%s360 + $0x12a8] sm:$0xff]
      %v971 = vld [vmem:[%s360 + $0x12b0] sm:$0xff]
      %v972 = vld [vmem:[%s360 + $0x12b8] sm:$0xff]
      %v973 = vld [vmem:[%s360 + $0x12c0] sm:$0xff]
      %v974 = vld [vmem:[%s360 + $0x12c8] sm:$0xff]
      %v975 = vld [vmem:[%s360 + $0x12d0] sm:$0xff]
      %v976 = vld [vmem:[%s360 + $0x12d8] sm:$0xff]
      %v977 = vld [vmem:[%s360 + $0x12e0] sm:$0xff]
      %v978 = vld [vmem:[%s360 + $0x12e8] sm:$0xff]
      %v979 = vld [vmem:[%s360 + $0x12f0] sm:$0xff]
      %v980 = vld [vmem:[%s360 + $0x12f8] sm:$0xff]
      %v981 = vld [vmem:[%s360 + $0x1300] sm:$0xff]
      %v982 = vld [vmem:[%s360 + $0x1308] sm:$0xff]
      %v983 = vld [vmem:[%s360 + $0x1310] sm:$0xff]
      %v984 = vld [vmem:[%s360 + $0x1318] sm:$0xff]
      %v985 = vld [vmem:[%s360 + $0x1320] sm:$0xff]
      %v986 = vld [vmem:[%s360 + $0x1328] sm:$0xff]
      %v987 = vld [vmem:[%s360 + $0x1330] sm:$0xff]
      %v988 = vld [vmem:[%s360 + $0x1338] sm:$0xff]
      %v989 = vld [vmem:[%s360 + $0x1340] sm:$0xff]
      %v990 = vld [vmem:[%s360 + $0x1348] sm:$0xff]
      %v991 = vld [vmem:[%s360 + $0x1350] sm:$0xff]
      %v992 = vld [vmem:[%s360 + $0x1358] sm:$0xff]
      %v993 = vld [vmem:[%s360 + $0x1360] sm:$0xff]
      %v994 = vld [vmem:[%s360 + $0x1368] sm:$0xff]
      %v995 = vld [vmem:[%s360 + $0x1370] sm:$0xff]
      %v996 = vld [vmem:[%s360 + $0x1378] sm:$0xff]
      %v997 = vld [vmem:[%s360 + $0x1380] sm:$0xff]
      %v998 = vld [vmem:[%s360 + $0x1388] sm:$0xff]
      %v999 = vld [vmem:[%s360 + $0x1390] sm:$0xff]
      %v1000 = vld [vmem:[%s360 + $0x1398] sm:$0xff]
      %v1001 = vld [vmem:[%s360 + $0x13a0] sm:$0xff]
      %v1002 = vld [vmem:[%s360 + $0x13a8] sm:$0xff]
      %v1003 = vld [vmem:[%s360 + $0x13b0] sm:$0xff]
      %v1004 = vld [vmem:[%s360 + $0x13b8] sm:$0xff]
      %v1005 = vld [vmem:[%s360 + $0x13c0] sm:$0xff]
      %v1006 = vld [vmem:[%s360 + $0x13c8] sm:$0xff]
      %v1007 = vld [vmem:[%s360 + $0x13d0] sm:$0xff]
      %v1008 = vld [vmem:[%s360 + $0x13d8] sm:$0xff]
      %v1009 = vld [vmem:[%s360 + $0x13e0] sm:$0xff]
      %v1010 = vld [vmem:[%s360 + $0x13e8] sm:$0xff]
      %v1011 = vld [vmem:[%s360 + $0x13f0] sm:$0xff]
      %v1012 = vld [vmem:[%s360 + $0x13f8] sm:$0xff]
      %v1013 = vpack.c.bf16 %v393, %v373
      %v1014 = vpack.c.bf16 %v394, %v374
      %v1015 = vpack.c.bf16 %v395, %v375
      %v1016 = vpack.c.bf16 %v396, %v376
      %v1017 = vpack.c.bf16 %v397, %v377
      %v1018 = vpack.c.bf16 %v398, %v378
      %v1019 = vpack.c.bf16 %v399, %v379
      %v1020 = vpack.c.bf16 %v400, %v380
      %v1021 = vpack.c.bf16 %v401, %v381
      %v1022 = vpack.c.bf16 %v402, %v382
      %v1023 = vpack.c.bf16 %v403, %v383
      %v1024 = vpack.c.bf16 %v404, %v384
      %v1025 = vpack.c.bf16 %v405, %v385
      %v1026 = vpack.c.bf16 %v406, %v386
      %v1027 = vpack.c.bf16 %v407, %v387
      %v1028 = vpack.c.bf16 %v408, %v388
      %v1029 = vpack.c.bf16 %v409, %v389
      %v1030 = vpack.c.bf16 %v410, %v390
      %v1031 = vpack.c.bf16 %v411, %v391
      %v1032 = vpack.c.bf16 %v412, %v392
      %v1033 = vpack.c.bf16 %v433, %v413
      %v1034 = vpack.c.bf16 %v434, %v414
      %v1035 = vpack.c.bf16 %v435, %v415
      %v1036 = vpack.c.bf16 %v436, %v416
      %v1037 = vpack.c.bf16 %v437, %v417
      %v1038 = vpack.c.bf16 %v438, %v418
      %v1039 = vpack.c.bf16 %v439, %v419
      %v1040 = vpack.c.bf16 %v440, %v420
      %v1041 = vpack.c.bf16 %v441, %v421
      %v1042 = vpack.c.bf16 %v442, %v422
      %v1043 = vpack.c.bf16 %v443, %v423
      %v1044 = vpack.c.bf16 %v444, %v424
      %v1045 = vpack.c.bf16 %v445, %v425
      %v1046 = vpack.c.bf16 %v446, %v426
      %v1047 = vpack.c.bf16 %v447, %v427
      %v1048 = vpack.c.bf16 %v448, %v428
      %v1049 = vpack.c.bf16 %v449, %v429
      %v1050 = vpack.c.bf16 %v450, %v430
      %v1051 = vpack.c.bf16 %v451, %v431
      %v1052 = vpack.c.bf16 %v452, %v432
      %v1053 = vpack.c.bf16 %v473, %v453
      %v1054 = vpack.c.bf16 %v474, %v454
      %v1055 = vpack.c.bf16 %v475, %v455
      %v1056 = vpack.c.bf16 %v476, %v456
      %v1057 = vpack.c.bf16 %v477, %v457
      %v1058 = vpack.c.bf16 %v478, %v458
      %v1059 = vpack.c.bf16 %v479, %v459
      %v1060 = vpack.c.bf16 %v480, %v460
      %v1061 = vpack.c.bf16 %v481, %v461
      %v1062 = vpack.c.bf16 %v482, %v462
      %v1063 = vpack.c.bf16 %v483, %v463
      %v1064 = vpack.c.bf16 %v484, %v464
      %v1065 = vpack.c.bf16 %v485, %v465
      %v1066 = vpack.c.bf16 %v486, %v466
      %v1067 = vpack.c.bf16 %v487, %v467
      %v1068 = vpack.c.bf16 %v488, %v468
      %v1069 = vpack.c.bf16 %v489, %v469
      %v1070 = vpack.c.bf16 %v490, %v470
      %v1071 = vpack.c.bf16 %v491, %v471
      %v1072 = vpack.c.bf16 %v492, %v472
      %v1073 = vpack.c.bf16 %v513, %v493
      %v1074 = vpack.c.bf16 %v514, %v494
      %v1075 = vpack.c.bf16 %v515, %v495
      %v1076 = vpack.c.bf16 %v516, %v496
      %v1077 = vpack.c.bf16 %v517, %v497
      %v1078 = vpack.c.bf16 %v518, %v498
      %v1079 = vpack.c.bf16 %v519, %v499
      %v1080 = vpack.c.bf16 %v520, %v500
      %v1081 = vpack.c.bf16 %v521, %v501
      %v1082 = vpack.c.bf16 %v522, %v502
      %v1083 = vpack.c.bf16 %v523, %v503
      %v1084 = vpack.c.bf16 %v524, %v504
      %v1085 = vpack.c.bf16 %v525, %v505
      %v1086 = vpack.c.bf16 %v526, %v506
      %v1087 = vpack.c.bf16 %v527, %v507
      %v1088 = vpack.c.bf16 %v528, %v508
      %v1089 = vpack.c.bf16 %v529, %v509
      %v1090 = vpack.c.bf16 %v530, %v510
      %v1091 = vpack.c.bf16 %v531, %v511
      %v1092 = vpack.c.bf16 %v532, %v512
      %v1093 = vpack.c.bf16 %v553, %v533
      %v1094 = vpack.c.bf16 %v554, %v534
      %v1095 = vpack.c.bf16 %v555, %v535
      %v1096 = vpack.c.bf16 %v556, %v536
      %v1097 = vpack.c.bf16 %v557, %v537
      %v1098 = vpack.c.bf16 %v558, %v538
      %v1099 = vpack.c.bf16 %v559, %v539
      %v1100 = vpack.c.bf16 %v560, %v540
      %v1101 = vpack.c.bf16 %v561, %v541
      %v1102 = vpack.c.bf16 %v562, %v542
      %v1103 = vpack.c.bf16 %v563, %v543
      %v1104 = vpack.c.bf16 %v564, %v544
      %v1105 = vpack.c.bf16 %v565, %v545
      %v1106 = vpack.c.bf16 %v566, %v546
      %v1107 = vpack.c.bf16 %v567, %v547
      %v1108 = vpack.c.bf16 %v568, %v548
      %v1109 = vpack.c.bf16 %v569, %v549
      %v1110 = vpack.c.bf16 %v570, %v550
      %v1111 = vpack.c.bf16 %v571, %v551
      %v1112 = vpack.c.bf16 %v572, %v552
      %v1113 = vpack.c.bf16 %v593, %v573
      %v1114 = vpack.c.bf16 %v594, %v574
      %v1115 = vpack.c.bf16 %v595, %v575
      %v1116 = vpack.c.bf16 %v596, %v576
      %v1117 = vpack.c.bf16 %v597, %v577
      %v1118 = vpack.c.bf16 %v598, %v578
      %v1119 = vpack.c.bf16 %v599, %v579
      %v1120 = vpack.c.bf16 %v600, %v580
      %v1121 = vpack.c.bf16 %v601, %v581
      %v1122 = vpack.c.bf16 %v602, %v582
      %v1123 = vpack.c.bf16 %v603, %v583
      %v1124 = vpack.c.bf16 %v604, %v584
      %v1125 = vpack.c.bf16 %v605, %v585
      %v1126 = vpack.c.bf16 %v606, %v586
      %v1127 = vpack.c.bf16 %v607, %v587
      %v1128 = vpack.c.bf16 %v608, %v588
      %v1129 = vpack.c.bf16 %v609, %v589
      %v1130 = vpack.c.bf16 %v610, %v590
      %v1131 = vpack.c.bf16 %v611, %v591
      %v1132 = vpack.c.bf16 %v612, %v592
      %v1133 = vpack.c.bf16 %v633, %v613
      %v1134 = vpack.c.bf16 %v634, %v614
      %v1135 = vpack.c.bf16 %v635, %v615
      %v1136 = vpack.c.bf16 %v636, %v616
      %v1137 = vpack.c.bf16 %v637, %v617
      %v1138 = vpack.c.bf16 %v638, %v618
      %v1139 = vpack.c.bf16 %v639, %v619
      %v1140 = vpack.c.bf16 %v640, %v620
      %v1141 = vpack.c.bf16 %v641, %v621
      %v1142 = vpack.c.bf16 %v642, %v622
      %v1143 = vpack.c.bf16 %v643, %v623
      %v1144 = vpack.c.bf16 %v644, %v624
      %v1145 = vpack.c.bf16 %v645, %v625
      %v1146 = vpack.c.bf16 %v646, %v626
      %v1147 = vpack.c.bf16 %v647, %v627
      %v1148 = vpack.c.bf16 %v648, %v628
      %v1149 = vpack.c.bf16 %v649, %v629
      %v1150 = vpack.c.bf16 %v650, %v630
      %v1151 = vpack.c.bf16 %v651, %v631
      %v1152 = vpack.c.bf16 %v652, %v632
      %v1153 = vpack.c.bf16 %v673, %v653
      %v1154 = vpack.c.bf16 %v674, %v654
      %v1155 = vpack.c.bf16 %v675, %v655
      %v1156 = vpack.c.bf16 %v676, %v656
      %v1157 = vpack.c.bf16 %v677, %v657
      %v1158 = vpack.c.bf16 %v678, %v658
      %v1159 = vpack.c.bf16 %v679, %v659
      %v1160 = vpack.c.bf16 %v680, %v660
      %v1161 = vpack.c.bf16 %v681, %v661
      %v1162 = vpack.c.bf16 %v682, %v662
      %v1163 = vpack.c.bf16 %v683, %v663
      %v1164 = vpack.c.bf16 %v684, %v664
      %v1165 = vpack.c.bf16 %v685, %v665
      %v1166 = vpack.c.bf16 %v686, %v666
      %v1167 = vpack.c.bf16 %v687, %v667
      %v1168 = vpack.c.bf16 %v688, %v668
      %v1169 = vpack.c.bf16 %v689, %v669
      %v1170 = vpack.c.bf16 %v690, %v670
      %v1171 = vpack.c.bf16 %v691, %v671
      %v1172 = vpack.c.bf16 %v692, %v672
      %v1173 = vpack.c.bf16 %v713, %v693
      %v1174 = vpack.c.bf16 %v714, %v694
      %v1175 = vpack.c.bf16 %v715, %v695
      %v1176 = vpack.c.bf16 %v716, %v696
      %v1177 = vpack.c.bf16 %v717, %v697
      %v1178 = vpack.c.bf16 %v718, %v698
      %v1179 = vpack.c.bf16 %v719, %v699
      %v1180 = vpack.c.bf16 %v720, %v700
      %v1181 = vpack.c.bf16 %v721, %v701
      %v1182 = vpack.c.bf16 %v722, %v702
      %v1183 = vpack.c.bf16 %v723, %v703
      %v1184 = vpack.c.bf16 %v724, %v704
      %v1185 = vpack.c.bf16 %v725, %v705
      %v1186 = vpack.c.bf16 %v726, %v706
      %v1187 = vpack.c.bf16 %v727, %v707
      %v1188 = vpack.c.bf16 %v728, %v708
      %v1189 = vpack.c.bf16 %v729, %v709
      %v1190 = vpack.c.bf16 %v730, %v710
      %v1191 = vpack.c.bf16 %v731, %v711
      %v1192 = vpack.c.bf16 %v732, %v712
      %v1193 = vpack.c.bf16 %v753, %v733
      %v1194 = vpack.c.bf16 %v754, %v734
      %v1195 = vpack.c.bf16 %v755, %v735
      %v1196 = vpack.c.bf16 %v756, %v736
      %v1197 = vpack.c.bf16 %v757, %v737
      %v1198 = vpack.c.bf16 %v758, %v738
      %v1199 = vpack.c.bf16 %v759, %v739
      %v1200 = vpack.c.bf16 %v760, %v740
      %v1201 = vpack.c.bf16 %v761, %v741
      %v1202 = vpack.c.bf16 %v762, %v742
      %v1203 = vpack.c.bf16 %v763, %v743
      %v1204 = vpack.c.bf16 %v764, %v744
      %v1205 = vpack.c.bf16 %v765, %v745
      %v1206 = vpack.c.bf16 %v766, %v746
      %v1207 = vpack.c.bf16 %v767, %v747
      %v1208 = vpack.c.bf16 %v768, %v748
      %v1209 = vpack.c.bf16 %v769, %v749
      %v1210 = vpack.c.bf16 %v770, %v750
      %v1211 = vpack.c.bf16 %v771, %v751
      %v1212 = vpack.c.bf16 %v772, %v752
      %v1213 = vpack.c.bf16 %v793, %v773
      %v1214 = vpack.c.bf16 %v794, %v774
      %v1215 = vpack.c.bf16 %v795, %v775
      %v1216 = vpack.c.bf16 %v796, %v776
      %v1217 = vpack.c.bf16 %v797, %v777
      %v1218 = vpack.c.bf16 %v798, %v778
      %v1219 = vpack.c.bf16 %v799, %v779
      %v1220 = vpack.c.bf16 %v800, %v780
      %v1221 = vpack.c.bf16 %v801, %v781
      %v1222 = vpack.c.bf16 %v802, %v782
      %v1223 = vpack.c.bf16 %v803, %v783
      %v1224 = vpack.c.bf16 %v804, %v784
      %v1225 = vpack.c.bf16 %v805, %v785
      %v1226 = vpack.c.bf16 %v806, %v786
      %v1227 = vpack.c.bf16 %v807, %v787
      %v1228 = vpack.c.bf16 %v808, %v788
      %v1229 = vpack.c.bf16 %v809, %v789
      %v1230 = vpack.c.bf16 %v810, %v790
      %v1231 = vpack.c.bf16 %v811, %v791
      %v1232 = vpack.c.bf16 %v812, %v792
      %v1233 = vpack.c.bf16 %v833, %v813
      %v1234 = vpack.c.bf16 %v834, %v814
      %v1235 = vpack.c.bf16 %v835, %v815
      %v1236 = vpack.c.bf16 %v836, %v816
      %v1237 = vpack.c.bf16 %v837, %v817
      %v1238 = vpack.c.bf16 %v838, %v818
      %v1239 = vpack.c.bf16 %v839, %v819
      %v1240 = vpack.c.bf16 %v840, %v820
      %v1241 = vpack.c.bf16 %v841, %v821
      %v1242 = vpack.c.bf16 %v842, %v822
      %v1243 = vpack.c.bf16 %v843, %v823
      %v1244 = vpack.c.bf16 %v844, %v824
      %v1245 = vpack.c.bf16 %v845, %v825
      %v1246 = vpack.c.bf16 %v846, %v826
      %v1247 = vpack.c.bf16 %v847, %v827
      %v1248 = vpack.c.bf16 %v848, %v828
      %v1249 = vpack.c.bf16 %v849, %v829
      %v1250 = vpack.c.bf16 %v850, %v830
      %v1251 = vpack.c.bf16 %v851, %v831
      %v1252 = vpack.c.bf16 %v852, %v832
      %v1253 = vpack.c.bf16 %v873, %v853
      %v1254 = vpack.c.bf16 %v874, %v854
      %v1255 = vpack.c.bf16 %v875, %v855
      %v1256 = vpack.c.bf16 %v876, %v856
      %v1257 = vpack.c.bf16 %v877, %v857
      %v1258 = vpack.c.bf16 %v878, %v858
      %v1259 = vpack.c.bf16 %v879, %v859
      %v1260 = vpack.c.bf16 %v880, %v860
      %v1261 = vpack.c.bf16 %v881, %v861
      %v1262 = vpack.c.bf16 %v882, %v862
      %v1263 = vpack.c.bf16 %v883, %v863
      %v1264 = vpack.c.bf16 %v884, %v864
      %v1265 = vpack.c.bf16 %v885, %v865
      %v1266 = vpack.c.bf16 %v886, %v866
      %v1267 = vpack.c.bf16 %v887, %v867
      %v1268 = vpack.c.bf16 %v888, %v868
      %v1269 = vpack.c.bf16 %v889, %v869
      %v1270 = vpack.c.bf16 %v890, %v870
      %v1271 = vpack.c.bf16 %v891, %v871
      %v1272 = vpack.c.bf16 %v892, %v872
      %v1273 = vpack.c.bf16 %v913, %v893
      %v1274 = vpack.c.bf16 %v914, %v894
      %v1275 = vpack.c.bf16 %v915, %v895
      %v1276 = vpack.c.bf16 %v916, %v896
      %v1277 = vpack.c.bf16 %v917, %v897
      %v1278 = vpack.c.bf16 %v918, %v898
      %v1279 = vpack.c.bf16 %v919, %v899
      %v1280 = vpack.c.bf16 %v920, %v900
      %v1281 = vpack.c.bf16 %v921, %v901
      %v1282 = vpack.c.bf16 %v922, %v902
      %v1283 = vpack.c.bf16 %v923, %v903
      %v1284 = vpack.c.bf16 %v924, %v904
      %v1285 = vpack.c.bf16 %v925, %v905
      %v1286 = vpack.c.bf16 %v926, %v906
      %v1287 = vpack.c.bf16 %v927, %v907
      %v1288 = vpack.c.bf16 %v928, %v908
      %v1289 = vpack.c.bf16 %v929, %v909
      %v1290 = vpack.c.bf16 %v930, %v910
      %v1291 = vpack.c.bf16 %v931, %v911
      %v1292 = vpack.c.bf16 %v932, %v912
      %v1293 = vpack.c.bf16 %v953, %v933
      %v1294 = vpack.c.bf16 %v954, %v934
      %v1295 = vpack.c.bf16 %v955, %v935
      %v1296 = vpack.c.bf16 %v956, %v936
      %v1297 = vpack.c.bf16 %v957, %v937
      %v1298 = vpack.c.bf16 %v958, %v938
      %v1299 = vpack.c.bf16 %v959, %v939
      %v1300 = vpack.c.bf16 %v960, %v940
      %v1301 = vpack.c.bf16 %v961, %v941
      %v1302 = vpack.c.bf16 %v962, %v942
      %v1303 = vpack.c.bf16 %v963, %v943
      %v1304 = vpack.c.bf16 %v964, %v944
      %v1305 = vpack.c.bf16 %v965, %v945
      %v1306 = vpack.c.bf16 %v966, %v946
      %v1307 = vpack.c.bf16 %v967, %v947
      %v1308 = vpack.c.bf16 %v968, %v948
      %v1309 = vpack.c.bf16 %v969, %v949
      %v1310 = vpack.c.bf16 %v970, %v950
      %v1311 = vpack.c.bf16 %v971, %v951
      %v1312 = vpack.c.bf16 %v972, %v952
      %v1313 = vpack.c.bf16 %v993, %v973
      %v1314 = vpack.c.bf16 %v994, %v974
      %v1315 = vpack.c.bf16 %v995, %v975
      %v1316 = vpack.c.bf16 %v996, %v976
      %v1317 = vpack.c.bf16 %v997, %v977
      %v1318 = vpack.c.bf16 %v998, %v978
      %v1319 = vpack.c.bf16 %v999, %v979
      %v1320 = vpack.c.bf16 %v1000, %v980
      %v1321 = vpack.c.bf16 %v1001, %v981
      %v1322 = vpack.c.bf16 %v1002, %v982
      %v1323 = vpack.c.bf16 %v1003, %v983
      %v1324 = vpack.c.bf16 %v1004, %v984
      %v1325 = vpack.c.bf16 %v1005, %v985
      %v1326 = vpack.c.bf16 %v1006, %v986
      %v1327 = vpack.c.bf16 %v1007, %v987
      %v1328 = vpack.c.bf16 %v1008, %v988
      %v1329 = vpack.c.bf16 %v1009, %v989
      %v1330 = vpack.c.bf16 %v1010, %v990
      %v1331 = vpack.c.bf16 %v1011, %v991
      %v1332 = vpack.c.bf16 %v1012, %v992
      %v1333 = vld [vmem:[%s1] sm:$0xff]
      %v1334 = vld [vmem:[%s1 + $0x8] sm:$0xff]
      %v1335 = vld [vmem:[%s1 + $0x10] sm:$0xff]
      %v1336 = vld [vmem:[%s1 + $0x18] sm:$0xff]
      %v1337 = vld [vmem:[%s1 + $0x20] sm:$0xff]
      %v1338 = vld [vmem:[%s1 + $0x28] sm:$0xff]
      %v1339 = vld [vmem:[%s1 + $0x30] sm:$0xff]
      %v1340 = vld [vmem:[%s1 + $0x38] sm:$0xff]
      %v1341 = vld [vmem:[%s1 + $0x40] sm:$0xff]
      %v1342 = vld [vmem:[%s1 + $0x48] sm:$0xff]
      %v1343 = vld [vmem:[%s1 + $0x50] sm:$0xff]
      %v1344 = vld [vmem:[%s1 + $0x58] sm:$0xff]
      %v1345 = vld [vmem:[%s1 + $0x60] sm:$0xff]
      %v1346 = vld [vmem:[%s1 + $0x68] sm:$0xff]
      %v1347 = vld [vmem:[%s1 + $0x70] sm:$0xff]
      %v1348 = vld [vmem:[%s1 + $0x78] sm:$0xff]
      %v1349 = vld [vmem:[%s1 + $0x80] sm:$0xff]
      %v1350 = vld [vmem:[%s1 + $0x88] sm:$0xff]
      %v1351 = vld [vmem:[%s1 + $0x90] sm:$0xff]
      %v1352 = vld [vmem:[%s1 + $0x98] sm:$0xff]
      %v1353 = vld [vmem:[%s1 + $0xa0] sm:$0xff]
      %v1354 = vld [vmem:[%s1 + $0xa8] sm:$0xff]
      %v1355 = vld [vmem:[%s1 + $0xb0] sm:$0xff]
      %v1356 = vld [vmem:[%s1 + $0xb8] sm:$0xff]
      %v1357 = vld [vmem:[%s1 + $0xc0] sm:$0xff]
      %v1358 = vld [vmem:[%s1 + $0xc8] sm:$0xff]
      %v1359 = vld [vmem:[%s1 + $0xd0] sm:$0xff]
      %v1360 = vld [vmem:[%s1 + $0xd8] sm:$0xff]
      %v1361 = vld [vmem:[%s1 + $0xe0] sm:$0xff]
      %v1362 = vld [vmem:[%s1 + $0xe8] sm:$0xff]
      %v1363 = vld [vmem:[%s1 + $0xf0] sm:$0xff]
      %v1364 = vld [vmem:[%s1 + $0xf8] sm:$0xff]
      %v1397 = vunpack.c.l.b16 %v1333
      %v1398 = vunpack.c.h.b16 %v1333
      %v1399 = vunpack.c.l.b16 %v1334
      %v1400 = vunpack.c.h.b16 %v1334
      %v1401 = vunpack.c.l.b16 %v1335
      %v1402 = vunpack.c.h.b16 %v1335
      %v1403 = vunpack.c.l.b16 %v1336
      %v1404 = vunpack.c.h.b16 %v1336
      %v1405 = vunpack.c.l.b16 %v1337
      %v1406 = vunpack.c.h.b16 %v1337
      %v1407 = vunpack.c.l.b16 %v1338
      %v1408 = vunpack.c.h.b16 %v1338
      %v1409 = vunpack.c.l.b16 %v1339
      %v1410 = vunpack.c.h.b16 %v1339
      %v1411 = vunpack.c.l.b16 %v1340
      %v1412 = vunpack.c.h.b16 %v1340
      %v1413 = vunpack.c.l.b16 %v1341
      %v1414 = vunpack.c.h.b16 %v1341
      %v1415 = vunpack.c.l.b16 %v1342
      %v1416 = vunpack.c.h.b16 %v1342
      %v1417 = vunpack.c.l.b16 %v1343
      %v1418 = vunpack.c.h.b16 %v1343
      %v1419 = vunpack.c.l.b16 %v1344
      %v1420 = vunpack.c.h.b16 %v1344
      %v1421 = vunpack.c.l.b16 %v1345
      %v1422 = vunpack.c.h.b16 %v1345
      %v1423 = vunpack.c.l.b16 %v1346
      %v1424 = vunpack.c.h.b16 %v1346
      %v1425 = vunpack.c.l.b16 %v1347
      %v1426 = vunpack.c.h.b16 %v1347
      %v1427 = vunpack.c.l.b16 %v1348
      %v1428 = vunpack.c.h.b16 %v1348
      %v1429 = vunpack.c.l.b16 %v1349
      %v1430 = vunpack.c.h.b16 %v1349
      %v1431 = vunpack.c.l.b16 %v1350
      %v1432 = vunpack.c.h.b16 %v1350
      %v1433 = vunpack.c.l.b16 %v1351
      %v1434 = vunpack.c.h.b16 %v1351
      %v1435 = vunpack.c.l.b16 %v1352
      %v1436 = vunpack.c.h.b16 %v1352
      %v1437 = vunpack.c.l.b16 %v1353
      %v1438 = vunpack.c.h.b16 %v1353
      %v1439 = vunpack.c.l.b16 %v1354
      %v1440 = vunpack.c.h.b16 %v1354
      %v1441 = vunpack.c.l.b16 %v1355
      %v1442 = vunpack.c.h.b16 %v1355
      %v1443 = vunpack.c.l.b16 %v1356
      %v1444 = vunpack.c.h.b16 %v1356
      %v1445 = vunpack.c.l.b16 %v1357
      %v1446 = vunpack.c.h.b16 %v1357
      %v1447 = vunpack.c.l.b16 %v1358
      %v1448 = vunpack.c.h.b16 %v1358
      %v1449 = vunpack.c.l.b16 %v1359
      %v1450 = vunpack.c.h.b16 %v1359
      %v1451 = vunpack.c.l.b16 %v1360
      %v1452 = vunpack.c.h.b16 %v1360
      %v1453 = vunpack.c.l.b16 %v1361
      %v1454 = vunpack.c.h.b16 %v1361
      %v1455 = vunpack.c.l.b16 %v1362
      %v1456 = vunpack.c.h.b16 %v1362
      %v1457 = vunpack.c.l.b16 %v1363
      %v1458 = vunpack.c.h.b16 %v1363
      %v1459 = vunpack.c.l.b16 %v1364
      %v1460 = vunpack.c.h.b16 %v1364
      %v1461 = vpack.c.b16 %v1399, %v1397
      %v1462 = vpack.c.b16 %v1400, %v1398
      %v1463 = vpack.c.b16 %v1403, %v1401
      %v1464 = vpack.c.b16 %v1404, %v1402
      %v1465 = vpack.c.b16 %v1407, %v1405
      %v1466 = vpack.c.b16 %v1408, %v1406
      %v1467 = vpack.c.b16 %v1411, %v1409
      %v1468 = vpack.c.b16 %v1412, %v1410
      %v1469 = vpack.c.b16 %v1415, %v1413
      %v1470 = vpack.c.b16 %v1416, %v1414
      %v1471 = vpack.c.b16 %v1419, %v1417
      %v1472 = vpack.c.b16 %v1420, %v1418
      %v1473 = vpack.c.b16 %v1423, %v1421
      %v1474 = vpack.c.b16 %v1424, %v1422
      %v1475 = vpack.c.b16 %v1427, %v1425
      %v1476 = vpack.c.b16 %v1428, %v1426
      %v1477 = vpack.c.b16 %v1431, %v1429
      %v1478 = vpack.c.b16 %v1432, %v1430
      %v1479 = vpack.c.b16 %v1435, %v1433
      %v1480 = vpack.c.b16 %v1436, %v1434
      %v1481 = vpack.c.b16 %v1439, %v1437
      %v1482 = vpack.c.b16 %v1440, %v1438
      %v1483 = vpack.c.b16 %v1443, %v1441
      %v1484 = vpack.c.b16 %v1444, %v1442
      %v1485 = vpack.c.b16 %v1447, %v1445
      %v1486 = vpack.c.b16 %v1448, %v1446
      %v1487 = vpack.c.b16 %v1451, %v1449
      %v1488 = vpack.c.b16 %v1452, %v1450
      %v1489 = vpack.c.b16 %v1455, %v1453
      %v1490 = vpack.c.b16 %v1456, %v1454
      %v1491 = vpack.c.b16 %v1459, %v1457
      %v1492 = vpack.c.b16 %v1460, %v1458
      %1525 = vmatprep.subr.bf16.mxu0 %v1154
      %1526 = vmatpush1.bf16.msra.mxu0 %v1153
      %1527 = vmatprep.subr.bf16.mxu0 %v1134
      %1528 = vmatpush1.bf16.msra.mxu0 %v1133
      %1529 = vmatprep.subr.bf16.mxu0 %v1114
      %1530 = vmatpush1.bf16.msra.mxu0 %v1113
      %1531 = vmatprep.subr.bf16.mxu0 %v1094
      %1532 = vmatpush1.bf16.msra.mxu0 %v1093
      %1533 = vmatprep.subr.bf16.mxu0 %v1074
      %1534 = vmatpush1.bf16.msra.mxu0 %v1073
      %1535 = vmatprep.subr.bf16.mxu0 %v1054
      %1536 = vmatpush1.bf16.msra.mxu0 %v1053
      %1537 = vmatprep.subr.bf16.mxu0 %v1034
      %1538 = vmatpush1.bf16.msra.mxu0 %v1033
      %1539 = vmatprep.subr.bf16.mxu0 %v1014
      %1540 = vmatpush1.bf16.msra.mxu0 %v1013
      %1541 = vmatprep.subr.bf16.mxu0 %v1314
      %1542 = vmatpush2.bf16.msra.mxu0 %v1313
      %1543 = vmatprep.subr.bf16.mxu0 %v1294
      %1544 = vmatpush2.bf16.msra.mxu0 %v1293
      %1545 = vmatprep.subr.bf16.mxu0 %v1274
      %1546 = vmatpush2.bf16.msra.mxu0 %v1273
      %1547 = vmatprep.subr.bf16.mxu0 %v1254
      %1548 = vmatpush2.bf16.msra.mxu0 %v1253
      %1549 = vmatprep.subr.bf16.mxu0 %v1234
      %1550 = vmatpush2.bf16.msra.mxu0 %v1233
      %1551 = vmatprep.subr.bf16.mxu0 %v1214
      %1552 = vmatpush2.bf16.msra.mxu0 %v1213
      %1553 = vmatprep.subr.bf16.mxu0 %v1194
      %1554 = vmatpush2.bf16.msra.mxu0 %v1193
      %1555 = vmatprep.subr.bf16.mxu0 %v1174
      %1556 = vmatpush2.bf16.msra.mxu0 %v1173
      %1557 = vmatprep.mubr.bf16.mxu0 %v1462
      %1558 = vmatmul.mubr.bf16.gmra.mxu0 %v1461
      %v1559 = vpop.f32.mrf.mxu0
      %v1560 = vadd.f32 0.0, %v1559
      %v1561 = vpop.f32.mrf.mxu0
      %v1562 = vadd.f32 0.0, %v1561
      %v1563 = vpop.f32.mrf.mxu0
      %v1564 = vadd.f32 0.0, %v1563
      %v1565 = vpop.f32.mrf.mxu0
      %v1566 = vadd.f32 0.0, %v1565
      %1567 = vmatprep.mubr.bf16.mxu0 %v1464
      %1568 = vmatmul.mubr.bf16.gmra.mxu0 %v1463
      %v1569 = vpop.f32.mrf.mxu0
      %v1570 = vadd.f32 0.0, %v1569
      %v1571 = vpop.f32.mrf.mxu0
      %v1572 = vadd.f32 0.0, %v1571
      %v1573 = vpop.f32.mrf.mxu0
      %v1574 = vadd.f32 0.0, %v1573
      %v1575 = vpop.f32.mrf.mxu0
      %v1576 = vadd.f32 0.0, %v1575
      %1577 = vmatprep.mubr.bf16.mxu0 %v1466
      %1578 = vmatmul.mubr.bf16.gmra.mxu0 %v1465
      %v1579 = vpop.f32.mrf.mxu0
      %v1580 = vadd.f32 0.0, %v1579
      %v1581 = vpop.f32.mrf.mxu0
      %v1582 = vadd.f32 0.0, %v1581
      %v1583 = vpop.f32.mrf.mxu0
      %v1584 = vadd.f32 0.0, %v1583
      %v1585 = vpop.f32.mrf.mxu0
      %v1586 = vadd.f32 0.0, %v1585
      %1587 = vmatprep.mubr.bf16.mxu0 %v1468
      %1588 = vmatmul.mubr.bf16.gmra.mxu0 %v1467
      %v1589 = vpop.f32.mrf.mxu0
      %v1590 = vadd.f32 0.0, %v1589
      %v1591 = vpop.f32.mrf.mxu0
      %v1592 = vadd.f32 0.0, %v1591
      %v1593 = vpop.f32.mrf.mxu0
      %v1594 = vadd.f32 0.0, %v1593
      %v1595 = vpop.f32.mrf.mxu0
      %v1596 = vadd.f32 0.0, %v1595
      %1597 = vmatprep.mubr.bf16.mxu0 %v1470
      %1598 = vmatmul.mubr.bf16.gmra.mxu0 %v1469
      %v1599 = vpop.f32.mrf.mxu0
      %v1600 = vadd.f32 0.0, %v1599
      %v1601 = vpop.f32.mrf.mxu0
      %v1602 = vadd.f32 0.0, %v1601
      %v1603 = vpop.f32.mrf.mxu0
      %v1604 = vadd.f32 0.0, %v1603
      %v1605 = vpop.f32.mrf.mxu0
      %v1606 = vadd.f32 0.0, %v1605
      %1607 = vmatprep.mubr.bf16.mxu0 %v1472
      %1608 = vmatmul.mubr.bf16.gmra.mxu0 %v1471
      %v1609 = vpop.f32.mrf.mxu0
      %v1610 = vadd.f32 0.0, %v1609
      %v1611 = vpop.f32.mrf.mxu0
      %v1612 = vadd.f32 0.0, %v1611
      %v1613 = vpop.f32.mrf.mxu0
      %v1614 = vadd.f32 0.0, %v1613
      %v1615 = vpop.f32.mrf.mxu0
      %v1616 = vadd.f32 0.0, %v1615
      %1617 = vmatprep.mubr.bf16.mxu0 %v1474
      %1618 = vmatmul.mubr.bf16.gmra.mxu0 %v1473
      %v1619 = vpop.f32.mrf.mxu0
      %v1620 = vadd.f32 0.0, %v1619
      %v1621 = vpop.f32.mrf.mxu0
      %v1622 = vadd.f32 0.0, %v1621
      %v1623 = vpop.f32.mrf.mxu0
      %v1624 = vadd.f32 0.0, %v1623
      %v1625 = vpop.f32.mrf.mxu0
      %v1626 = vadd.f32 0.0, %v1625
      %1627 = vmatprep.mubr.bf16.mxu0 %v1476
      %1628 = vmatmul.mubr.bf16.gmra.mxu0 %v1475
      %v1629 = vpop.f32.mrf.mxu0
      %v1630 = vadd.f32 0.0, %v1629
      %v1631 = vpop.f32.mrf.mxu0
      %v1632 = vadd.f32 0.0, %v1631
      %v1633 = vpop.f32.mrf.mxu0
      %v1634 = vadd.f32 0.0, %v1633
      %v1635 = vpop.f32.mrf.mxu0
      %v1636 = vadd.f32 0.0, %v1635
      %1637 = vmatprep.mubr.bf16.mxu0 %v1478
      %1638 = vmatmul.mubr.bf16.gmra.mxu0 %v1477
      %v1639 = vpop.f32.mrf.mxu0
      %v1640 = vadd.f32 0.0, %v1639
      %v1641 = vpop.f32.mrf.mxu0
      %v1642 = vadd.f32 0.0, %v1641
      %v1643 = vpop.f32.mrf.mxu0
      %v1644 = vadd.f32 0.0, %v1643
      %v1645 = vpop.f32.mrf.mxu0
      %v1646 = vadd.f32 0.0, %v1645
      %1647 = vmatprep.mubr.bf16.mxu0 %v1480
      %1648 = vmatmul.mubr.bf16.gmra.mxu0 %v1479
      %v1649 = vpop.f32.mrf.mxu0
      %v1650 = vadd.f32 0.0, %v1649
      %v1651 = vpop.f32.mrf.mxu0
      %v1652 = vadd.f32 0.0, %v1651
      %v1653 = vpop.f32.mrf.mxu0
      %v1654 = vadd.f32 0.0, %v1653
      %v1655 = vpop.f32.mrf.mxu0
      %v1656 = vadd.f32 0.0, %v1655
      %1657 = vmatprep.mubr.bf16.mxu0 %v1482
      %1658 = vmatmul.mubr.bf16.gmra.mxu0 %v1481
      %v1659 = vpop.f32.mrf.mxu0
      %v1660 = vadd.f32 0.0, %v1659
      %v1661 = vpop.f32.mrf.mxu0
      %v1662 = vadd.f32 0.0, %v1661
      %v1663 = vpop.f32.mrf.mxu0
      %v1664 = vadd.f32 0.0, %v1663
      %v1665 = vpop.f32.mrf.mxu0
      %v1666 = vadd.f32 0.0, %v1665
      %1667 = vmatprep.mubr.bf16.mxu0 %v1484
      %1668 = vmatmul.mubr.bf16.gmra.mxu0 %v1483
      %v1669 = vpop.f32.mrf.mxu0
      %v1670 = vadd.f32 0.0, %v1669
      %v1671 = vpop.f32.mrf.mxu0
      %v1672 = vadd.f32 0.0, %v1671
      %v1673 = vpop.f32.mrf.mxu0
      %v1674 = vadd.f32 0.0, %v1673
      %v1675 = vpop.f32.mrf.mxu0
      %v1676 = vadd.f32 0.0, %v1675
      %1677 = vmatprep.mubr.bf16.mxu0 %v1486
      %1678 = vmatmul.mubr.bf16.gmra.mxu0 %v1485
      %v1679 = vpop.f32.mrf.mxu0
      %v1680 = vadd.f32 0.0, %v1679
      %v1681 = vpop.f32.mrf.mxu0
      %v1682 = vadd.f32 0.0, %v1681
      %v1683 = vpop.f32.mrf.mxu0
      %v1684 = vadd.f32 0.0, %v1683
      %v1685 = vpop.f32.mrf.mxu0
      %v1686 = vadd.f32 0.0, %v1685
      %1687 = vmatprep.mubr.bf16.mxu0 %v1488
      %1688 = vmatmul.mubr.bf16.gmra.mxu0 %v1487
      %v1689 = vpop.f32.mrf.mxu0
      %v1690 = vadd.f32 0.0, %v1689
      %v1691 = vpop.f32.mrf.mxu0
      %v1692 = vadd.f32 0.0, %v1691
      %v1693 = vpop.f32.mrf.mxu0
      %v1694 = vadd.f32 0.0, %v1693
      %v1695 = vpop.f32.mrf.mxu0
      %v1696 = vadd.f32 0.0, %v1695
      %1697 = vmatprep.mubr.bf16.mxu0 %v1490
      %1698 = vmatmul.mubr.bf16.gmra.mxu0 %v1489
      %v1699 = vpop.f32.mrf.mxu0
      %v1700 = vadd.f32 0.0, %v1699
      %v1701 = vpop.f32.mrf.mxu0
      %v1702 = vadd.f32 0.0, %v1701
      %v1703 = vpop.f32.mrf.mxu0
      %v1704 = vadd.f32 0.0, %v1703
      %v1705 = vpop.f32.mrf.mxu0
      %v1706 = vadd.f32 0.0, %v1705
      %1707 = vmatprep.mubr.bf16.mxu0 %v1492
      %1708 = vmatmul.mubr.bf16.gmra.mxu0 %v1491
      %v1709 = vpop.f32.mrf.mxu0
      %v1710 = vadd.f32 0.0, %v1709
      %v1711 = vpop.f32.mrf.mxu0
      %v1712 = vadd.f32 0.0, %v1711
      %v1713 = vpop.f32.mrf.mxu0
      %v1714 = vadd.f32 0.0, %v1713
      %v1715 = vpop.f32.mrf.mxu0
      %v1716 = vadd.f32 0.0, %v1715
      %1717 = vdwg.mxu0
      %1718 = vmatprep.subr.bf16.mxu0 %v1156
      %1719 = vmatpush1.bf16.msra.mxu0 %v1155
      %1720 = vmatprep.subr.bf16.mxu0 %v1136
      %1721 = vmatpush1.bf16.msra.mxu0 %v1135
      %1722 = vmatprep.subr.bf16.mxu0 %v1116
      %1723 = vmatpush1.bf16.msra.mxu0 %v1115
      %1724 = vmatprep.subr.bf16.mxu0 %v1096
      %1725 = vmatpush1.bf16.msra.mxu0 %v1095
      %1726 = vmatprep.subr.bf16.mxu0 %v1076
      %1727 = vmatpush1.bf16.msra.mxu0 %v1075
      %1728 = vmatprep.subr.bf16.mxu0 %v1056
      %1729 = vmatpush1.bf16.msra.mxu0 %v1055
      %1730 = vmatprep.subr.bf16.mxu0 %v1036
      %1731 = vmatpush1.bf16.msra.mxu0 %v1035
      %1732 = vmatprep.subr.bf16.mxu0 %v1016
      %1733 = vmatpush1.bf16.msra.mxu0 %v1015
      %1734 = vmatprep.subr.bf16.mxu0 %v1316
      %1735 = vmatpush2.bf16.msra.mxu0 %v1315
      %1736 = vmatprep.subr.bf16.mxu0 %v1296
      %1737 = vmatpush2.bf16.msra.mxu0 %v1295
      %1738 = vmatprep.subr.bf16.mxu0 %v1276
      %1739 = vmatpush2.bf16.msra.mxu0 %v1275
      %1740 = vmatprep.subr.bf16.mxu0 %v1256
      %1741 = vmatpush2.bf16.msra.mxu0 %v1255
      %1742 = vmatprep.subr.bf16.mxu0 %v1236
      %1743 = vmatpush2.bf16.msra.mxu0 %v1235
      %1744 = vmatprep.subr.bf16.mxu0 %v1216
      %1745 = vmatpush2.bf16.msra.mxu0 %v1215
      %1746 = vmatprep.subr.bf16.mxu0 %v1196
      %1747 = vmatpush2.bf16.msra.mxu0 %v1195
      %1748 = vmatprep.subr.bf16.mxu0 %v1176
      %1749 = vmatpush2.bf16.msra.mxu0 %v1175
      %1750 = vmatprep.mubr.bf16.mxu0 %v1462
      %1751 = vmatmul.mubr.bf16.gmra.mxu0 %v1461
      %v1752 = vpop.f32.mrf.mxu0
      %v1753 = vadd.f32 0.0, %v1752
      %v1754 = vpop.f32.mrf.mxu0
      %v1755 = vadd.f32 0.0, %v1754
      %v1756 = vpop.f32.mrf.mxu0
      %v1757 = vadd.f32 0.0, %v1756
      %v1758 = vpop.f32.mrf.mxu0
      %v1759 = vadd.f32 0.0, %v1758
      %1760 = vmatprep.mubr.bf16.mxu0 %v1464
      %1761 = vmatmul.mubr.bf16.gmra.mxu0 %v1463
      %v1762 = vpop.f32.mrf.mxu0
      %v1763 = vadd.f32 0.0, %v1762
      %v1764 = vpop.f32.mrf.mxu0
      %v1765 = vadd.f32 0.0, %v1764
      %v1766 = vpop.f32.mrf.mxu0
      %v1767 = vadd.f32 0.0, %v1766
      %v1768 = vpop.f32.mrf.mxu0
      %v1769 = vadd.f32 0.0, %v1768
      %1770 = vmatprep.mubr.bf16.mxu0 %v1466
      %1771 = vmatmul.mubr.bf16.gmra.mxu0 %v1465
      %v1772 = vpop.f32.mrf.mxu0
      %v1773 = vadd.f32 0.0, %v1772
      %v1774 = vpop.f32.mrf.mxu0
      %v1775 = vadd.f32 0.0, %v1774
      %v1776 = vpop.f32.mrf.mxu0
      %v1777 = vadd.f32 0.0, %v1776
      %v1778 = vpop.f32.mrf.mxu0
      %v1779 = vadd.f32 0.0, %v1778
      %1780 = vmatprep.mubr.bf16.mxu0 %v1468
      %1781 = vmatmul.mubr.bf16.gmra.mxu0 %v1467
      %v1782 = vpop.f32.mrf.mxu0
      %v1783 = vadd.f32 0.0, %v1782
      %v1784 = vpop.f32.mrf.mxu0
      %v1785 = vadd.f32 0.0, %v1784
      %v1786 = vpop.f32.mrf.mxu0
      %v1787 = vadd.f32 0.0, %v1786
      %v1788 = vpop.f32.mrf.mxu0
      %v1789 = vadd.f32 0.0, %v1788
      %1790 = vmatprep.mubr.bf16.mxu0 %v1470
      %1791 = vmatmul.mubr.bf16.gmra.mxu0 %v1469
      %v1792 = vpop.f32.mrf.mxu0
      %v1793 = vadd.f32 0.0, %v1792
      %v1794 = vpop.f32.mrf.mxu0
      %v1795 = vadd.f32 0.0, %v1794
      %v1796 = vpop.f32.mrf.mxu0
      %v1797 = vadd.f32 0.0, %v1796
      %v1798 = vpop.f32.mrf.mxu0
      %v1799 = vadd.f32 0.0, %v1798
      %1800 = vmatprep.mubr.bf16.mxu0 %v1472
      %1801 = vmatmul.mubr.bf16.gmra.mxu0 %v1471
      %v1802 = vpop.f32.mrf.mxu0
      %v1803 = vadd.f32 0.0, %v1802
      %v1804 = vpop.f32.mrf.mxu0
      %v1805 = vadd.f32 0.0, %v1804
      %v1806 = vpop.f32.mrf.mxu0
      %v1807 = vadd.f32 0.0, %v1806
      %v1808 = vpop.f32.mrf.mxu0
      %v1809 = vadd.f32 0.0, %v1808
      %1810 = vmatprep.mubr.bf16.mxu0 %v1474
      %1811 = vmatmul.mubr.bf16.gmra.mxu0 %v1473
      %v1812 = vpop.f32.mrf.mxu0
      %v1813 = vadd.f32 0.0, %v1812
      %v1814 = vpop.f32.mrf.mxu0
      %v1815 = vadd.f32 0.0, %v1814
      %v1816 = vpop.f32.mrf.mxu0
      %v1817 = vadd.f32 0.0, %v1816
      %v1818 = vpop.f32.mrf.mxu0
      %v1819 = vadd.f32 0.0, %v1818
      %1820 = vmatprep.mubr.bf16.mxu0 %v1476
      %1821 = vmatmul.mubr.bf16.gmra.mxu0 %v1475
      %v1822 = vpop.f32.mrf.mxu0
      %v1823 = vadd.f32 0.0, %v1822
      %v1824 = vpop.f32.mrf.mxu0
      %v1825 = vadd.f32 0.0, %v1824
      %v1826 = vpop.f32.mrf.mxu0
      %v1827 = vadd.f32 0.0, %v1826
      %v1828 = vpop.f32.mrf.mxu0
      %v1829 = vadd.f32 0.0, %v1828
      %1830 = vmatprep.mubr.bf16.mxu0 %v1478
      %1831 = vmatmul.mubr.bf16.gmra.mxu0 %v1477
      %v1832 = vpop.f32.mrf.mxu0
      %v1833 = vadd.f32 0.0, %v1832
      %v1834 = vpop.f32.mrf.mxu0
      %v1835 = vadd.f32 0.0, %v1834
      %v1836 = vpop.f32.mrf.mxu0
      %v1837 = vadd.f32 0.0, %v1836
      %v1838 = vpop.f32.mrf.mxu0
      %v1839 = vadd.f32 0.0, %v1838
      %1840 = vmatprep.mubr.bf16.mxu0 %v1480
      %1841 = vmatmul.mubr.bf16.gmra.mxu0 %v1479
      %v1842 = vpop.f32.mrf.mxu0
      %v1843 = vadd.f32 0.0, %v1842
      %v1844 = vpop.f32.mrf.mxu0
      %v1845 = vadd.f32 0.0, %v1844
      %v1846 = vpop.f32.mrf.mxu0
      %v1847 = vadd.f32 0.0, %v1846
      %v1848 = vpop.f32.mrf.mxu0
      %v1849 = vadd.f32 0.0, %v1848
      %1850 = vmatprep.mubr.bf16.mxu0 %v1482
      %1851 = vmatmul.mubr.bf16.gmra.mxu0 %v1481
      %v1852 = vpop.f32.mrf.mxu0
      %v1853 = vadd.f32 0.0, %v1852
      %v1854 = vpop.f32.mrf.mxu0
      %v1855 = vadd.f32 0.0, %v1854
      %v1856 = vpop.f32.mrf.mxu0
      %v1857 = vadd.f32 0.0, %v1856
      %v1858 = vpop.f32.mrf.mxu0
      %v1859 = vadd.f32 0.0, %v1858
      %1860 = vmatprep.mubr.bf16.mxu0 %v1484
      %1861 = vmatmul.mubr.bf16.gmra.mxu0 %v1483
      %v1862 = vpop.f32.mrf.mxu0
      %v1863 = vadd.f32 0.0, %v1862
      %v1864 = vpop.f32.mrf.mxu0
      %v1865 = vadd.f32 0.0, %v1864
      %v1866 = vpop.f32.mrf.mxu0
      %v1867 = vadd.f32 0.0, %v1866
      %v1868 = vpop.f32.mrf.mxu0
      %v1869 = vadd.f32 0.0, %v1868
      %1870 = vmatprep.mubr.bf16.mxu0 %v1486
      %1871 = vmatmul.mubr.bf16.gmra.mxu0 %v1485
      %v1872 = vpop.f32.mrf.mxu0
      %v1873 = vadd.f32 0.0, %v1872
      %v1874 = vpop.f32.mrf.mxu0
      %v1875 = vadd.f32 0.0, %v1874
      %v1876 = vpop.f32.mrf.mxu0
      %v1877 = vadd.f32 0.0, %v1876
      %v1878 = vpop.f32.mrf.mxu0
      %v1879 = vadd.f32 0.0, %v1878
      %1880 = vmatprep.mubr.bf16.mxu0 %v1488
      %1881 = vmatmul.mubr.bf16.gmra.mxu0 %v1487
      %v1882 = vpop.f32.mrf.mxu0
      %v1883 = vadd.f32 0.0, %v1882
      %v1884 = vpop.f32.mrf.mxu0
      %v1885 = vadd.f32 0.0, %v1884
      %v1886 = vpop.f32.mrf.mxu0
      %v1887 = vadd.f32 0.0, %v1886
      %v1888 = vpop.f32.mrf.mxu0
      %v1889 = vadd.f32 0.0, %v1888
      %1890 = vmatprep.mubr.bf16.mxu0 %v1490
      %1891 = vmatmul.mubr.bf16.gmra.mxu0 %v1489
      %v1892 = vpop.f32.mrf.mxu0
      %v1893 = vadd.f32 0.0, %v1892
      %v1894 = vpop.f32.mrf.mxu0
      %v1895 = vadd.f32 0.0, %v1894
      %v1896 = vpop.f32.mrf.mxu0
      %v1897 = vadd.f32 0.0, %v1896
      %v1898 = vpop.f32.mrf.mxu0
      %v1899 = vadd.f32 0.0, %v1898
      %1900 = vmatprep.mubr.bf16.mxu0 %v1492
      %1901 = vmatmul.mubr.bf16.gmra.mxu0 %v1491
      %v1902 = vpop.f32.mrf.mxu0
      %v1903 = vadd.f32 0.0, %v1902
      %v1904 = vpop.f32.mrf.mxu0
      %v1905 = vadd.f32 0.0, %v1904
      %v1906 = vpop.f32.mrf.mxu0
      %v1907 = vadd.f32 0.0, %v1906
      %v1908 = vpop.f32.mrf.mxu0
      %v1909 = vadd.f32 0.0, %v1908
      %1910 = vdwg.mxu0
      %1911 = vmatprep.subr.bf16.mxu0 %v1158
      %1912 = vmatpush1.bf16.msra.mxu0 %v1157
      %1913 = vmatprep.subr.bf16.mxu0 %v1138
      %1914 = vmatpush1.bf16.msra.mxu0 %v1137
      %1915 = vmatprep.subr.bf16.mxu0 %v1118
      %1916 = vmatpush1.bf16.msra.mxu0 %v1117
      %1917 = vmatprep.subr.bf16.mxu0 %v1098
      %1918 = vmatpush1.bf16.msra.mxu0 %v1097
      %1919 = vmatprep.subr.bf16.mxu0 %v1078
      %1920 = vmatpush1.bf16.msra.mxu0 %v1077
      %1921 = vmatprep.subr.bf16.mxu0 %v1058
      %1922 = vmatpush1.bf16.msra.mxu0 %v1057
      %1923 = vmatprep.subr.bf16.mxu0 %v1038
      %1924 = vmatpush1.bf16.msra.mxu0 %v1037
      %1925 = vmatprep.subr.bf16.mxu0 %v1018
      %1926 = vmatpush1.bf16.msra.mxu0 %v1017
      %1927 = vmatprep.subr.bf16.mxu0 %v1318
      %1928 = vmatpush2.bf16.msra.mxu0 %v1317
      %1929 = vmatprep.subr.bf16.mxu0 %v1298
      %1930 = vmatpush2.bf16.msra.mxu0 %v1297
      %1931 = vmatprep.subr.bf16.mxu0 %v1278
      %1932 = vmatpush2.bf16.msra.mxu0 %v1277
      %1933 = vmatprep.subr.bf16.mxu0 %v1258
      %1934 = vmatpush2.bf16.msra.mxu0 %v1257
      %1935 = vmatprep.subr.bf16.mxu0 %v1238
      %1936 = vmatpush2.bf16.msra.mxu0 %v1237
      %1937 = vmatprep.subr.bf16.mxu0 %v1218
      %1938 = vmatpush2.bf16.msra.mxu0 %v1217
      %1939 = vmatprep.subr.bf16.mxu0 %v1198
      %1940 = vmatpush2.bf16.msra.mxu0 %v1197
      %1941 = vmatprep.subr.bf16.mxu0 %v1178
      %1942 = vmatpush2.bf16.msra.mxu0 %v1177
      %1943 = vmatprep.mubr.bf16.mxu0 %v1462
      %1944 = vmatmul.mubr.bf16.gmra.mxu0 %v1461
      %v1945 = vpop.f32.mrf.mxu0
      %v1946 = vadd.f32 0.0, %v1945
      %v1947 = vpop.f32.mrf.mxu0
      %v1948 = vadd.f32 0.0, %v1947
      %v1949 = vpop.f32.mrf.mxu0
      %v1950 = vadd.f32 0.0, %v1949
      %v1951 = vpop.f32.mrf.mxu0
      %v1952 = vadd.f32 0.0, %v1951
      %1953 = vmatprep.mubr.bf16.mxu0 %v1464
      %1954 = vmatmul.mubr.bf16.gmra.mxu0 %v1463
      %v1955 = vpop.f32.mrf.mxu0
      %v1956 = vadd.f32 0.0, %v1955
      %v1957 = vpop.f32.mrf.mxu0
      %v1958 = vadd.f32 0.0, %v1957
      %v1959 = vpop.f32.mrf.mxu0
      %v1960 = vadd.f32 0.0, %v1959
      %v1961 = vpop.f32.mrf.mxu0
      %v1962 = vadd.f32 0.0, %v1961
      %1963 = vmatprep.mubr.bf16.mxu0 %v1466
      %1964 = vmatmul.mubr.bf16.gmra.mxu0 %v1465
      %v1965 = vpop.f32.mrf.mxu0
      %v1966 = vadd.f32 0.0, %v1965
      %v1967 = vpop.f32.mrf.mxu0
      %v1968 = vadd.f32 0.0, %v1967
      %v1969 = vpop.f32.mrf.mxu0
      %v1970 = vadd.f32 0.0, %v1969
      %v1971 = vpop.f32.mrf.mxu0
      %v1972 = vadd.f32 0.0, %v1971
      %1973 = vmatprep.mubr.bf16.mxu0 %v1468
      %1974 = vmatmul.mubr.bf16.gmra.mxu0 %v1467
      %v1975 = vpop.f32.mrf.mxu0
      %v1976 = vadd.f32 0.0, %v1975
      %v1977 = vpop.f32.mrf.mxu0
      %v1978 = vadd.f32 0.0, %v1977
      %v1979 = vpop.f32.mrf.mxu0
      %v1980 = vadd.f32 0.0, %v1979
      %v1981 = vpop.f32.mrf.mxu0
      %v1982 = vadd.f32 0.0, %v1981
      %1983 = vmatprep.mubr.bf16.mxu0 %v1470
      %1984 = vmatmul.mubr.bf16.gmra.mxu0 %v1469
      %v1985 = vpop.f32.mrf.mxu0
      %v1986 = vadd.f32 0.0, %v1985
      %v1987 = vpop.f32.mrf.mxu0
      %v1988 = vadd.f32 0.0, %v1987
      %v1989 = vpop.f32.mrf.mxu0
      %v1990 = vadd.f32 0.0, %v1989
      %v1991 = vpop.f32.mrf.mxu0
      %v1992 = vadd.f32 0.0, %v1991
      %1993 = vmatprep.mubr.bf16.mxu0 %v1472
      %1994 = vmatmul.mubr.bf16.gmra.mxu0 %v1471
      %v1995 = vpop.f32.mrf.mxu0
      %v1996 = vadd.f32 0.0, %v1995
      %v1997 = vpop.f32.mrf.mxu0
      %v1998 = vadd.f32 0.0, %v1997
      %v1999 = vpop.f32.mrf.mxu0
      %v2000 = vadd.f32 0.0, %v1999
      %v2001 = vpop.f32.mrf.mxu0
      %v2002 = vadd.f32 0.0, %v2001
      %2003 = vmatprep.mubr.bf16.mxu0 %v1474
      %2004 = vmatmul.mubr.bf16.gmra.mxu0 %v1473
      %v2005 = vpop.f32.mrf.mxu0
      %v2006 = vadd.f32 0.0, %v2005
      %v2007 = vpop.f32.mrf.mxu0
      %v2008 = vadd.f32 0.0, %v2007
      %v2009 = vpop.f32.mrf.mxu0
      %v2010 = vadd.f32 0.0, %v2009
      %v2011 = vpop.f32.mrf.mxu0
      %v2012 = vadd.f32 0.0, %v2011
      %2013 = vmatprep.mubr.bf16.mxu0 %v1476
      %2014 = vmatmul.mubr.bf16.gmra.mxu0 %v1475
      %v2015 = vpop.f32.mrf.mxu0
      %v2016 = vadd.f32 0.0, %v2015
      %v2017 = vpop.f32.mrf.mxu0
      %v2018 = vadd.f32 0.0, %v2017
      %v2019 = vpop.f32.mrf.mxu0
      %v2020 = vadd.f32 0.0, %v2019
      %v2021 = vpop.f32.mrf.mxu0
      %v2022 = vadd.f32 0.0, %v2021
      %2023 = vmatprep.mubr.bf16.mxu0 %v1478
      %2024 = vmatmul.mubr.bf16.gmra.mxu0 %v1477
      %v2025 = vpop.f32.mrf.mxu0
      %v2026 = vadd.f32 0.0, %v2025
      %v2027 = vpop.f32.mrf.mxu0
      %v2028 = vadd.f32 0.0, %v2027
      %v2029 = vpop.f32.mrf.mxu0
      %v2030 = vadd.f32 0.0, %v2029
      %v2031 = vpop.f32.mrf.mxu0
      %v2032 = vadd.f32 0.0, %v2031
      %2033 = vmatprep.mubr.bf16.mxu0 %v1480
      %2034 = vmatmul.mubr.bf16.gmra.mxu0 %v1479
      %v2035 = vpop.f32.mrf.mxu0
      %v2036 = vadd.f32 0.0, %v2035
      %v2037 = vpop.f32.mrf.mxu0
      %v2038 = vadd.f32 0.0, %v2037
      %v2039 = vpop.f32.mrf.mxu0
      %v2040 = vadd.f32 0.0, %v2039
      %v2041 = vpop.f32.mrf.mxu0
      %v2042 = vadd.f32 0.0, %v2041
      %2043 = vmatprep.mubr.bf16.mxu0 %v1482
      %2044 = vmatmul.mubr.bf16.gmra.mxu0 %v1481
      %v2045 = vpop.f32.mrf.mxu0
      %v2046 = vadd.f32 0.0, %v2045
      %v2047 = vpop.f32.mrf.mxu0
      %v2048 = vadd.f32 0.0, %v2047
      %v2049 = vpop.f32.mrf.mxu0
      %v2050 = vadd.f32 0.0, %v2049
      %v2051 = vpop.f32.mrf.mxu0
      %v2052 = vadd.f32 0.0, %v2051
      %2053 = vmatprep.mubr.bf16.mxu0 %v1484
      %2054 = vmatmul.mubr.bf16.gmra.mxu0 %v1483
      %v2055 = vpop.f32.mrf.mxu0
      %v2056 = vadd.f32 0.0, %v2055
      %v2057 = vpop.f32.mrf.mxu0
      %v2058 = vadd.f32 0.0, %v2057
      %v2059 = vpop.f32.mrf.mxu0
      %v2060 = vadd.f32 0.0, %v2059
      %v2061 = vpop.f32.mrf.mxu0
      %v2062 = vadd.f32 0.0, %v2061
      %2063 = vmatprep.mubr.bf16.mxu0 %v1486
      %2064 = vmatmul.mubr.bf16.gmra.mxu0 %v1485
      %v2065 = vpop.f32.mrf.mxu0
      %v2066 = vadd.f32 0.0, %v2065
      %v2067 = vpop.f32.mrf.mxu0
      %v2068 = vadd.f32 0.0, %v2067
      %v2069 = vpop.f32.mrf.mxu0
      %v2070 = vadd.f32 0.0, %v2069
      %v2071 = vpop.f32.mrf.mxu0
      %v2072 = vadd.f32 0.0, %v2071
      %2073 = vmatprep.mubr.bf16.mxu0 %v1488
      %2074 = vmatmul.mubr.bf16.gmra.mxu0 %v1487
      %v2075 = vpop.f32.mrf.mxu0
      %v2076 = vadd.f32 0.0, %v2075
      %v2077 = vpop.f32.mrf.mxu0
      %v2078 = vadd.f32 0.0, %v2077
      %v2079 = vpop.f32.mrf.mxu0
      %v2080 = vadd.f32 0.0, %v2079
      %v2081 = vpop.f32.mrf.mxu0
      %v2082 = vadd.f32 0.0, %v2081
      %2083 = vmatprep.mubr.bf16.mxu0 %v1490
      %2084 = vmatmul.mubr.bf16.gmra.mxu0 %v1489
      %v2085 = vpop.f32.mrf.mxu0
      %v2086 = vadd.f32 0.0, %v2085
      %v2087 = vpop.f32.mrf.mxu0
      %v2088 = vadd.f32 0.0, %v2087
      %v2089 = vpop.f32.mrf.mxu0
      %v2090 = vadd.f32 0.0, %v2089
      %v2091 = vpop.f32.mrf.mxu0
      %v2092 = vadd.f32 0.0, %v2091
      %2093 = vmatprep.mubr.bf16.mxu0 %v1492
      %2094 = vmatmul.mubr.bf16.gmra.mxu0 %v1491
      %v2095 = vpop.f32.mrf.mxu0
      %v2096 = vadd.f32 0.0, %v2095
      %v2097 = vpop.f32.mrf.mxu0
      %v2098 = vadd.f32 0.0, %v2097
      %v2099 = vpop.f32.mrf.mxu0
      %v2100 = vadd.f32 0.0, %v2099
      %v2101 = vpop.f32.mrf.mxu0
      %v2102 = vadd.f32 0.0, %v2101
      %2103 = vdwg.mxu0
      %2104 = vmatprep.subr.bf16.mxu0 %v1160
      %2105 = vmatpush1.bf16.msra.mxu0 %v1159
      %2106 = vmatprep.subr.bf16.mxu0 %v1140
      %2107 = vmatpush1.bf16.msra.mxu0 %v1139
      %2108 = vmatprep.subr.bf16.mxu0 %v1120
      %2109 = vmatpush1.bf16.msra.mxu0 %v1119
      %2110 = vmatprep.subr.bf16.mxu0 %v1100
      %2111 = vmatpush1.bf16.msra.mxu0 %v1099
      %2112 = vmatprep.subr.bf16.mxu0 %v1080
      %2113 = vmatpush1.bf16.msra.mxu0 %v1079
      %2114 = vmatprep.subr.bf16.mxu0 %v1060
      %2115 = vmatpush1.bf16.msra.mxu0 %v1059
      %2116 = vmatprep.subr.bf16.mxu0 %v1040
      %2117 = vmatpush1.bf16.msra.mxu0 %v1039
      %2118 = vmatprep.subr.bf16.mxu0 %v1020
      %2119 = vmatpush1.bf16.msra.mxu0 %v1019
      %2120 = vmatprep.subr.bf16.mxu0 %v1320
      %2121 = vmatpush2.bf16.msra.mxu0 %v1319
      %2122 = vmatprep.subr.bf16.mxu0 %v1300
      %2123 = vmatpush2.bf16.msra.mxu0 %v1299
      %2124 = vmatprep.subr.bf16.mxu0 %v1280
      %2125 = vmatpush2.bf16.msra.mxu0 %v1279
      %2126 = vmatprep.subr.bf16.mxu0 %v1260
      %2127 = vmatpush2.bf16.msra.mxu0 %v1259
      %2128 = vmatprep.subr.bf16.mxu0 %v1240
      %2129 = vmatpush2.bf16.msra.mxu0 %v1239
      %2130 = vmatprep.subr.bf16.mxu0 %v1220
      %2131 = vmatpush2.bf16.msra.mxu0 %v1219
      %2132 = vmatprep.subr.bf16.mxu0 %v1200
      %2133 = vmatpush2.bf16.msra.mxu0 %v1199
      %2134 = vmatprep.subr.bf16.mxu0 %v1180
      %2135 = vmatpush2.bf16.msra.mxu0 %v1179
      %2136 = vmatprep.mubr.bf16.mxu0 %v1462
      %2137 = vmatmul.mubr.bf16.gmra.mxu0 %v1461
      %v2138 = vpop.f32.mrf.mxu0
      %v2139 = vadd.f32 0.0, %v2138
      %v2140 = vpop.f32.mrf.mxu0
      %v2141 = vadd.f32 0.0, %v2140
      %v2142 = vpop.f32.mrf.mxu0
      %v2143 = vadd.f32 0.0, %v2142
      %v2144 = vpop.f32.mrf.mxu0
      %v2145 = vadd.f32 0.0, %v2144
      %2146 = vmatprep.mubr.bf16.mxu0 %v1464
      %2147 = vmatmul.mubr.bf16.gmra.mxu0 %v1463
      %v2148 = vpop.f32.mrf.mxu0
      %v2149 = vadd.f32 0.0, %v2148
      %v2150 = vpop.f32.mrf.mxu0
      %v2151 = vadd.f32 0.0, %v2150
      %v2152 = vpop.f32.mrf.mxu0
      %v2153 = vadd.f32 0.0, %v2152
      %v2154 = vpop.f32.mrf.mxu0
      %v2155 = vadd.f32 0.0, %v2154
      %2156 = vmatprep.mubr.bf16.mxu0 %v1466
      %2157 = vmatmul.mubr.bf16.gmra.mxu0 %v1465
      %v2158 = vpop.f32.mrf.mxu0
      %v2159 = vadd.f32 0.0, %v2158
      %v2160 = vpop.f32.mrf.mxu0
      %v2161 = vadd.f32 0.0, %v2160
      %v2162 = vpop.f32.mrf.mxu0
      %v2163 = vadd.f32 0.0, %v2162
      %v2164 = vpop.f32.mrf.mxu0
      %v2165 = vadd.f32 0.0, %v2164
      %2166 = vmatprep.mubr.bf16.mxu0 %v1468
      %2167 = vmatmul.mubr.bf16.gmra.mxu0 %v1467
      %v2168 = vpop.f32.mrf.mxu0
      %v2169 = vadd.f32 0.0, %v2168
      %v2170 = vpop.f32.mrf.mxu0
      %v2171 = vadd.f32 0.0, %v2170
      %v2172 = vpop.f32.mrf.mxu0
      %v2173 = vadd.f32 0.0, %v2172
      %v2174 = vpop.f32.mrf.mxu0
      %v2175 = vadd.f32 0.0, %v2174
      %2176 = vmatprep.mubr.bf16.mxu0 %v1470
      %2177 = vmatmul.mubr.bf16.gmra.mxu0 %v1469
      %v2178 = vpop.f32.mrf.mxu0
      %v2179 = vadd.f32 0.0, %v2178
      %v2180 = vpop.f32.mrf.mxu0
      %v2181 = vadd.f32 0.0, %v2180
      %v2182 = vpop.f32.mrf.mxu0
      %v2183 = vadd.f32 0.0, %v2182
      %v2184 = vpop.f32.mrf.mxu0
      %v2185 = vadd.f32 0.0, %v2184
      %2186 = vmatprep.mubr.bf16.mxu0 %v1472
      %2187 = vmatmul.mubr.bf16.gmra.mxu0 %v1471
      %v2188 = vpop.f32.mrf.mxu0
      %v2189 = vadd.f32 0.0, %v2188
      %v2190 = vpop.f32.mrf.mxu0
      %v2191 = vadd.f32 0.0, %v2190
      %v2192 = vpop.f32.mrf.mxu0
      %v2193 = vadd.f32 0.0, %v2192
      %v2194 = vpop.f32.mrf.mxu0
      %v2195 = vadd.f32 0.0, %v2194
      %2196 = vmatprep.mubr.bf16.mxu0 %v1474
      %2197 = vmatmul.mubr.bf16.gmra.mxu0 %v1473
      %v2198 = vpop.f32.mrf.mxu0
      %v2199 = vadd.f32 0.0, %v2198
      %v2200 = vpop.f32.mrf.mxu0
      %v2201 = vadd.f32 0.0, %v2200
      %v2202 = vpop.f32.mrf.mxu0
      %v2203 = vadd.f32 0.0, %v2202
      %v2204 = vpop.f32.mrf.mxu0
      %v2205 = vadd.f32 0.0, %v2204
      %2206 = vmatprep.mubr.bf16.mxu0 %v1476
      %2207 = vmatmul.mubr.bf16.gmra.mxu0 %v1475
      %v2208 = vpop.f32.mrf.mxu0
      %v2209 = vadd.f32 0.0, %v2208
      %v2210 = vpop.f32.mrf.mxu0
      %v2211 = vadd.f32 0.0, %v2210
      %v2212 = vpop.f32.mrf.mxu0
      %v2213 = vadd.f32 0.0, %v2212
      %v2214 = vpop.f32.mrf.mxu0
      %v2215 = vadd.f32 0.0, %v2214
      %2216 = vmatprep.mubr.bf16.mxu0 %v1478
      %2217 = vmatmul.mubr.bf16.gmra.mxu0 %v1477
      %v2218 = vpop.f32.mrf.mxu0
      %v2219 = vadd.f32 0.0, %v2218
      %v2220 = vpop.f32.mrf.mxu0
      %v2221 = vadd.f32 0.0, %v2220
      %v2222 = vpop.f32.mrf.mxu0
      %v2223 = vadd.f32 0.0, %v2222
      %v2224 = vpop.f32.mrf.mxu0
      %v2225 = vadd.f32 0.0, %v2224
      %2226 = vmatprep.mubr.bf16.mxu0 %v1480
      %2227 = vmatmul.mubr.bf16.gmra.mxu0 %v1479
      %v2228 = vpop.f32.mrf.mxu0
      %v2229 = vadd.f32 0.0, %v2228
      %v2230 = vpop.f32.mrf.mxu0
      %v2231 = vadd.f32 0.0, %v2230
      %v2232 = vpop.f32.mrf.mxu0
      %v2233 = vadd.f32 0.0, %v2232
      %v2234 = vpop.f32.mrf.mxu0
      %v2235 = vadd.f32 0.0, %v2234
      %2236 = vmatprep.mubr.bf16.mxu0 %v1482
      %2237 = vmatmul.mubr.bf16.gmra.mxu0 %v1481
      %v2238 = vpop.f32.mrf.mxu0
      %v2239 = vadd.f32 0.0, %v2238
      %v2240 = vpop.f32.mrf.mxu0
      %v2241 = vadd.f32 0.0, %v2240
      %v2242 = vpop.f32.mrf.mxu0
      %v2243 = vadd.f32 0.0, %v2242
      %v2244 = vpop.f32.mrf.mxu0
      %v2245 = vadd.f32 0.0, %v2244
      %2246 = vmatprep.mubr.bf16.mxu0 %v1484
      %2247 = vmatmul.mubr.bf16.gmra.mxu0 %v1483
      %v2248 = vpop.f32.mrf.mxu0
      %v2249 = vadd.f32 0.0, %v2248
      %v2250 = vpop.f32.mrf.mxu0
      %v2251 = vadd.f32 0.0, %v2250
      %v2252 = vpop.f32.mrf.mxu0
      %v2253 = vadd.f32 0.0, %v2252
      %v2254 = vpop.f32.mrf.mxu0
      %v2255 = vadd.f32 0.0, %v2254
      %2256 = vmatprep.mubr.bf16.mxu0 %v1486
      %2257 = vmatmul.mubr.bf16.gmra.mxu0 %v1485
      %v2258 = vpop.f32.mrf.mxu0
      %v2259 = vadd.f32 0.0, %v2258
      %v2260 = vpop.f32.mrf.mxu0
      %v2261 = vadd.f32 0.0, %v2260
      %v2262 = vpop.f32.mrf.mxu0
      %v2263 = vadd.f32 0.0, %v2262
      %v2264 = vpop.f32.mrf.mxu0
      %v2265 = vadd.f32 0.0, %v2264
      %2266 = vmatprep.mubr.bf16.mxu0 %v1488
      %2267 = vmatmul.mubr.bf16.gmra.mxu0 %v1487
      %v2268 = vpop.f32.mrf.mxu0
      %v2269 = vadd.f32 0.0, %v2268
      %v2270 = vpop.f32.mrf.mxu0
      %v2271 = vadd.f32 0.0, %v2270
      %v2272 = vpop.f32.mrf.mxu0
      %v2273 = vadd.f32 0.0, %v2272
      %v2274 = vpop.f32.mrf.mxu0
      %v2275 = vadd.f32 0.0, %v2274
      %2276 = vmatprep.mubr.bf16.mxu0 %v1490
      %2277 = vmatmul.mubr.bf16.gmra.mxu0 %v1489
      %v2278 = vpop.f32.mrf.mxu0
      %v2279 = vadd.f32 0.0, %v2278
      %v2280 = vpop.f32.mrf.mxu0
      %v2281 = vadd.f32 0.0, %v2280
      %v2282 = vpop.f32.mrf.mxu0
      %v2283 = vadd.f32 0.0, %v2282
      %v2284 = vpop.f32.mrf.mxu0
      %v2285 = vadd.f32 0.0, %v2284
      %2286 = vmatprep.mubr.bf16.mxu0 %v1492
      %2287 = vmatmul.mubr.bf16.gmra.mxu0 %v1491
      %v2288 = vpop.f32.mrf.mxu0
      %v2289 = vadd.f32 0.0, %v2288
      %v2290 = vpop.f32.mrf.mxu0
      %v2291 = vadd.f32 0.0, %v2290
      %v2292 = vpop.f32.mrf.mxu0
      %v2293 = vadd.f32 0.0, %v2292
      %v2294 = vpop.f32.mrf.mxu0
      %v2295 = vadd.f32 0.0, %v2294
      %2296 = vdwg.mxu0
      %2297 = vmatprep.subr.bf16.mxu0 %v1162
      %2298 = vmatpush1.bf16.msra.mxu0 %v1161
      %2299 = vmatprep.subr.bf16.mxu0 %v1142
      %2300 = vmatpush1.bf16.msra.mxu0 %v1141
      %2301 = vmatprep.subr.bf16.mxu0 %v1122
      %2302 = vmatpush1.bf16.msra.mxu0 %v1121
      %2303 = vmatprep.subr.bf16.mxu0 %v1102
      %2304 = vmatpush1.bf16.msra.mxu0 %v1101
      %2305 = vmatprep.subr.bf16.mxu0 %v1082
      %2306 = vmatpush1.bf16.msra.mxu0 %v1081
      %2307 = vmatprep.subr.bf16.mxu0 %v1062
      %2308 = vmatpush1.bf16.msra.mxu0 %v1061
      %2309 = vmatprep.subr.bf16.mxu0 %v1042
      %2310 = vmatpush1.bf16.msra.mxu0 %v1041
      %2311 = vmatprep.subr.bf16.mxu0 %v1022
      %2312 = vmatpush1.bf16.msra.mxu0 %v1021
      %2313 = vmatprep.subr.bf16.mxu0 %v1322
      %2314 = vmatpush2.bf16.msra.mxu0 %v1321
      %2315 = vmatprep.subr.bf16.mxu0 %v1302
      %2316 = vmatpush2.bf16.msra.mxu0 %v1301
      %2317 = vmatprep.subr.bf16.mxu0 %v1282
      %2318 = vmatpush2.bf16.msra.mxu0 %v1281
      %2319 = vmatprep.subr.bf16.mxu0 %v1262
      %2320 = vmatpush2.bf16.msra.mxu0 %v1261
      %2321 = vmatprep.subr.bf16.mxu0 %v1242
      %2322 = vmatpush2.bf16.msra.mxu0 %v1241
      %2323 = vmatprep.subr.bf16.mxu0 %v1222
      %2324 = vmatpush2.bf16.msra.mxu0 %v1221
      %2325 = vmatprep.subr.bf16.mxu0 %v1202
      %2326 = vmatpush2.bf16.msra.mxu0 %v1201
      %2327 = vmatprep.subr.bf16.mxu0 %v1182
      %2328 = vmatpush2.bf16.msra.mxu0 %v1181
      %2329 = vmatprep.mubr.bf16.mxu0 %v1462
      %2330 = vmatmul.mubr.bf16.gmra.mxu0 %v1461
      %v2331 = vpop.f32.mrf.mxu0
      %v2332 = vadd.f32 0.0, %v2331
      %v2333 = vpop.f32.mrf.mxu0
      %v2334 = vadd.f32 0.0, %v2333
      %v2335 = vpop.f32.mrf.mxu0
      %v2336 = vadd.f32 0.0, %v2335
      %v2337 = vpop.f32.mrf.mxu0
      %v2338 = vadd.f32 0.0, %v2337
      %2339 = vmatprep.mubr.bf16.mxu0 %v1464
      %2340 = vmatmul.mubr.bf16.gmra.mxu0 %v1463
      %v2341 = vpop.f32.mrf.mxu0
      %v2342 = vadd.f32 0.0, %v2341
      %v2343 = vpop.f32.mrf.mxu0
      %v2344 = vadd.f32 0.0, %v2343
      %v2345 = vpop.f32.mrf.mxu0
      %v2346 = vadd.f32 0.0, %v2345
      %v2347 = vpop.f32.mrf.mxu0
      %v2348 = vadd.f32 0.0, %v2347
      %2349 = vmatprep.mubr.bf16.mxu0 %v1466
      %2350 = vmatmul.mubr.bf16.gmra.mxu0 %v1465
      %v2351 = vpop.f32.mrf.mxu0
      %v2352 = vadd.f32 0.0, %v2351
      %v2353 = vpop.f32.mrf.mxu0
      %v2354 = vadd.f32 0.0, %v2353
      %v2355 = vpop.f32.mrf.mxu0
      %v2356 = vadd.f32 0.0, %v2355
      %v2357 = vpop.f32.mrf.mxu0
      %v2358 = vadd.f32 0.0, %v2357
      %2359 = vmatprep.mubr.bf16.mxu0 %v1468
      %2360 = vmatmul.mubr.bf16.gmra.mxu0 %v1467
      %v2361 = vpop.f32.mrf.mxu0
      %v2362 = vadd.f32 0.0, %v2361
      %v2363 = vpop.f32.mrf.mxu0
      %v2364 = vadd.f32 0.0, %v2363
      %v2365 = vpop.f32.mrf.mxu0
      %v2366 = vadd.f32 0.0, %v2365
      %v2367 = vpop.f32.mrf.mxu0
      %v2368 = vadd.f32 0.0, %v2367
      %2369 = vmatprep.mubr.bf16.mxu0 %v1470
      %2370 = vmatmul.mubr.bf16.gmra.mxu0 %v1469
      %v2371 = vpop.f32.mrf.mxu0
      %v2372 = vadd.f32 0.0, %v2371
      %v2373 = vpop.f32.mrf.mxu0
      %v2374 = vadd.f32 0.0, %v2373
      %v2375 = vpop.f32.mrf.mxu0
      %v2376 = vadd.f32 0.0, %v2375
      %v2377 = vpop.f32.mrf.mxu0
      %v2378 = vadd.f32 0.0, %v2377
      %2379 = vmatprep.mubr.bf16.mxu0 %v1472
      %2380 = vmatmul.mubr.bf16.gmra.mxu0 %v1471
      %v2381 = vpop.f32.mrf.mxu0
      %v2382 = vadd.f32 0.0, %v2381
      %v2383 = vpop.f32.mrf.mxu0
      %v2384 = vadd.f32 0.0, %v2383
      %v2385 = vpop.f32.mrf.mxu0
      %v2386 = vadd.f32 0.0, %v2385
      %v2387 = vpop.f32.mrf.mxu0
      %v2388 = vadd.f32 0.0, %v2387
      %2389 = vmatprep.mubr.bf16.mxu0 %v1474
      %2390 = vmatmul.mubr.bf16.gmra.mxu0 %v1473
      %v2391 = vpop.f32.mrf.mxu0
      %v2392 = vadd.f32 0.0, %v2391
      %v2393 = vpop.f32.mrf.mxu0
      %v2394 = vadd.f32 0.0, %v2393
      %v2395 = vpop.f32.mrf.mxu0
      %v2396 = vadd.f32 0.0, %v2395
      %v2397 = vpop.f32.mrf.mxu0
      %v2398 = vadd.f32 0.0, %v2397
      %2399 = vmatprep.mubr.bf16.mxu0 %v1476
      %2400 = vmatmul.mubr.bf16.gmra.mxu0 %v1475
      %v2401 = vpop.f32.mrf.mxu0
      %v2402 = vadd.f32 0.0, %v2401
      %v2403 = vpop.f32.mrf.mxu0
      %v2404 = vadd.f32 0.0, %v2403
      %v2405 = vpop.f32.mrf.mxu0
      %v2406 = vadd.f32 0.0, %v2405
      %v2407 = vpop.f32.mrf.mxu0
      %v2408 = vadd.f32 0.0, %v2407
      %2409 = vmatprep.mubr.bf16.mxu0 %v1478
      %2410 = vmatmul.mubr.bf16.gmra.mxu0 %v1477
      %v2411 = vpop.f32.mrf.mxu0
      %v2412 = vadd.f32 0.0, %v2411
      %v2413 = vpop.f32.mrf.mxu0
      %v2414 = vadd.f32 0.0, %v2413
      %v2415 = vpop.f32.mrf.mxu0
      %v2416 = vadd.f32 0.0, %v2415
      %v2417 = vpop.f32.mrf.mxu0
      %v2418 = vadd.f32 0.0, %v2417
      %2419 = vmatprep.mubr.bf16.mxu0 %v1480
      %2420 = vmatmul.mubr.bf16.gmra.mxu0 %v1479
      %v2421 = vpop.f32.mrf.mxu0
      %v2422 = vadd.f32 0.0, %v2421
      %v2423 = vpop.f32.mrf.mxu0
      %v2424 = vadd.f32 0.0, %v2423
      %v2425 = vpop.f32.mrf.mxu0
      %v2426 = vadd.f32 0.0, %v2425
      %v2427 = vpop.f32.mrf.mxu0
      %v2428 = vadd.f32 0.0, %v2427
      %2429 = vmatprep.mubr.bf16.mxu0 %v1482
      %2430 = vmatmul.mubr.bf16.gmra.mxu0 %v1481
      %v2431 = vpop.f32.mrf.mxu0
      %v2432 = vadd.f32 0.0, %v2431
      %v2433 = vpop.f32.mrf.mxu0
      %v2434 = vadd.f32 0.0, %v2433
      %v2435 = vpop.f32.mrf.mxu0
      %v2436 = vadd.f32 0.0, %v2435
      %v2437 = vpop.f32.mrf.mxu0
      %v2438 = vadd.f32 0.0, %v2437
      %2439 = vmatprep.mubr.bf16.mxu0 %v1484
      %2440 = vmatmul.mubr.bf16.gmra.mxu0 %v1483
      %v2441 = vpop.f32.mrf.mxu0
      %v2442 = vadd.f32 0.0, %v2441
      %v2443 = vpop.f32.mrf.mxu0
      %v2444 = vadd.f32 0.0, %v2443
      %v2445 = vpop.f32.mrf.mxu0
      %v2446 = vadd.f32 0.0, %v2445
      %v2447 = vpop.f32.mrf.mxu0
      %v2448 = vadd.f32 0.0, %v2447
      %2449 = vmatprep.mubr.bf16.mxu0 %v1486
      %2450 = vmatmul.mubr.bf16.gmra.mxu0 %v1485
      %v2451 = vpop.f32.mrf.mxu0
      %v2452 = vadd.f32 0.0, %v2451
      %v2453 = vpop.f32.mrf.mxu0
      %v2454 = vadd.f32 0.0, %v2453
      %v2455 = vpop.f32.mrf.mxu0
      %v2456 = vadd.f32 0.0, %v2455
      %v2457 = vpop.f32.mrf.mxu0
      %v2458 = vadd.f32 0.0, %v2457
      %2459 = vmatprep.mubr.bf16.mxu0 %v1488
      %2460 = vmatmul.mubr.bf16.gmra.mxu0 %v1487
      %v2461 = vpop.f32.mrf.mxu0
      %v2462 = vadd.f32 0.0, %v2461
      %v2463 = vpop.f32.mrf.mxu0
      %v2464 = vadd.f32 0.0, %v2463
      %v2465 = vpop.f32.mrf.mxu0
      %v2466 = vadd.f32 0.0, %v2465
      %v2467 = vpop.f32.mrf.mxu0
      %v2468 = vadd.f32 0.0, %v2467
      %2469 = vmatprep.mubr.bf16.mxu0 %v1490
      %2470 = vmatmul.mubr.bf16.gmra.mxu0 %v1489
      %v2471 = vpop.f32.mrf.mxu0
      %v2472 = vadd.f32 0.0, %v2471
      %v2473 = vpop.f32.mrf.mxu0
      %v2474 = vadd.f32 0.0, %v2473
      %v2475 = vpop.f32.mrf.mxu0
      %v2476 = vadd.f32 0.0, %v2475
      %v2477 = vpop.f32.mrf.mxu0
      %v2478 = vadd.f32 0.0, %v2477
      %2479 = vmatprep.mubr.bf16.mxu0 %v1492
      %2480 = vmatmul.mubr.bf16.gmra.mxu0 %v1491
      %v2481 = vpop.f32.mrf.mxu0
      %v2482 = vadd.f32 0.0, %v2481
      %v2483 = vpop.f32.mrf.mxu0
      %v2484 = vadd.f32 0.0, %v2483
      %v2485 = vpop.f32.mrf.mxu0
      %v2486 = vadd.f32 0.0, %v2485
      %v2487 = vpop.f32.mrf.mxu0
      %v2488 = vadd.f32 0.0, %v2487
      %2489 = vdwg.mxu0
      %2490 = vmatprep.subr.bf16.mxu0 %v1164
      %2491 = vmatpush1.bf16.msra.mxu0 %v1163
      %2492 = vmatprep.subr.bf16.mxu0 %v1144
      %2493 = vmatpush1.bf16.msra.mxu0 %v1143
      %2494 = vmatprep.subr.bf16.mxu0 %v1124
      %2495 = vmatpush1.bf16.msra.mxu0 %v1123
      %2496 = vmatprep.subr.bf16.mxu0 %v1104
      %2497 = vmatpush1.bf16.msra.mxu0 %v1103
      %2498 = vmatprep.subr.bf16.mxu0 %v1084
      %2499 = vmatpush1.bf16.msra.mxu0 %v1083
      %2500 = vmatprep.subr.bf16.mxu0 %v1064
      %2501 = vmatpush1.bf16.msra.mxu0 %v1063
      %2502 = vmatprep.subr.bf16.mxu0 %v1044
      %2503 = vmatpush1.bf16.msra.mxu0 %v1043
      %2504 = vmatprep.subr.bf16.mxu0 %v1024
      %2505 = vmatpush1.bf16.msra.mxu0 %v1023
      %2506 = vmatprep.subr.bf16.mxu0 %v1324
      %2507 = vmatpush2.bf16.msra.mxu0 %v1323
      %2508 = vmatprep.subr.bf16.mxu0 %v1304
      %2509 = vmatpush2.bf16.msra.mxu0 %v1303
      %2510 = vmatprep.subr.bf16.mxu0 %v1284
      %2511 = vmatpush2.bf16.msra.mxu0 %v1283
      %2512 = vmatprep.subr.bf16.mxu0 %v1264
      %2513 = vmatpush2.bf16.msra.mxu0 %v1263
      %2514 = vmatprep.subr.bf16.mxu0 %v1244
      %2515 = vmatpush2.bf16.msra.mxu0 %v1243
      %2516 = vmatprep.subr.bf16.mxu0 %v1224
      %2517 = vmatpush2.bf16.msra.mxu0 %v1223
      %2518 = vmatprep.subr.bf16.mxu0 %v1204
      %2519 = vmatpush2.bf16.msra.mxu0 %v1203
      %2520 = vmatprep.subr.bf16.mxu0 %v1184
      %2521 = vmatpush2.bf16.msra.mxu0 %v1183
      %2522 = vmatprep.mubr.bf16.mxu0 %v1462
      %2523 = vmatmul.mubr.bf16.gmra.mxu0 %v1461
      %v2524 = vpop.f32.mrf.mxu0
      %v2525 = vadd.f32 0.0, %v2524
      %v2526 = vpop.f32.mrf.mxu0
      %v2527 = vadd.f32 0.0, %v2526
      %v2528 = vpop.f32.mrf.mxu0
      %v2529 = vadd.f32 0.0, %v2528
      %v2530 = vpop.f32.mrf.mxu0
      %v2531 = vadd.f32 0.0, %v2530
      %2532 = vmatprep.mubr.bf16.mxu0 %v1464
      %2533 = vmatmul.mubr.bf16.gmra.mxu0 %v1463
      %v2534 = vpop.f32.mrf.mxu0
      %v2535 = vadd.f32 0.0, %v2534
      %v2536 = vpop.f32.mrf.mxu0
      %v2537 = vadd.f32 0.0, %v2536
      %v2538 = vpop.f32.mrf.mxu0
      %v2539 = vadd.f32 0.0, %v2538
      %v2540 = vpop.f32.mrf.mxu0
      %v2541 = vadd.f32 0.0, %v2540
      %2542 = vmatprep.mubr.bf16.mxu0 %v1466
      %2543 = vmatmul.mubr.bf16.gmra.mxu0 %v1465
      %v2544 = vpop.f32.mrf.mxu0
      %v2545 = vadd.f32 0.0, %v2544
      %v2546 = vpop.f32.mrf.mxu0
      %v2547 = vadd.f32 0.0, %v2546
      %v2548 = vpop.f32.mrf.mxu0
      %v2549 = vadd.f32 0.0, %v2548
      %v2550 = vpop.f32.mrf.mxu0
      %v2551 = vadd.f32 0.0, %v2550
      %2552 = vmatprep.mubr.bf16.mxu0 %v1468
      %2553 = vmatmul.mubr.bf16.gmra.mxu0 %v1467
      %v2554 = vpop.f32.mrf.mxu0
      %v2555 = vadd.f32 0.0, %v2554
      %v2556 = vpop.f32.mrf.mxu0
      %v2557 = vadd.f32 0.0, %v2556
      %v2558 = vpop.f32.mrf.mxu0
      %v2559 = vadd.f32 0.0, %v2558
      %v2560 = vpop.f32.mrf.mxu0
      %v2561 = vadd.f32 0.0, %v2560
      %2562 = vmatprep.mubr.bf16.mxu0 %v1470
      %2563 = vmatmul.mubr.bf16.gmra.mxu0 %v1469
      %v2564 = vpop.f32.mrf.mxu0
      %v2565 = vadd.f32 0.0, %v2564
      %v2566 = vpop.f32.mrf.mxu0
      %v2567 = vadd.f32 0.0, %v2566
      %v2568 = vpop.f32.mrf.mxu0
      %v2569 = vadd.f32 0.0, %v2568
      %v2570 = vpop.f32.mrf.mxu0
      %v2571 = vadd.f32 0.0, %v2570
      %2572 = vmatprep.mubr.bf16.mxu0 %v1472
      %2573 = vmatmul.mubr.bf16.gmra.mxu0 %v1471
      %v2574 = vpop.f32.mrf.mxu0
      %v2575 = vadd.f32 0.0, %v2574
      %v2576 = vpop.f32.mrf.mxu0
      %v2577 = vadd.f32 0.0, %v2576
      %v2578 = vpop.f32.mrf.mxu0
      %v2579 = vadd.f32 0.0, %v2578
      %v2580 = vpop.f32.mrf.mxu0
      %v2581 = vadd.f32 0.0, %v2580
      %2582 = vmatprep.mubr.bf16.mxu0 %v1474
      %2583 = vmatmul.mubr.bf16.gmra.mxu0 %v1473
      %v2584 = vpop.f32.mrf.mxu0
      %v2585 = vadd.f32 0.0, %v2584
      %v2586 = vpop.f32.mrf.mxu0
      %v2587 = vadd.f32 0.0, %v2586
      %v2588 = vpop.f32.mrf.mxu0
      %v2589 = vadd.f32 0.0, %v2588
      %v2590 = vpop.f32.mrf.mxu0
      %v2591 = vadd.f32 0.0, %v2590
      %2592 = vmatprep.mubr.bf16.mxu0 %v1476
      %2593 = vmatmul.mubr.bf16.gmra.mxu0 %v1475
      %v2594 = vpop.f32.mrf.mxu0
      %v2595 = vadd.f32 0.0, %v2594
      %v2596 = vpop.f32.mrf.mxu0
      %v2597 = vadd.f32 0.0, %v2596
      %v2598 = vpop.f32.mrf.mxu0
      %v2599 = vadd.f32 0.0, %v2598
      %v2600 = vpop.f32.mrf.mxu0
      %v2601 = vadd.f32 0.0, %v2600
      %2602 = vmatprep.mubr.bf16.mxu0 %v1478
      %2603 = vmatmul.mubr.bf16.gmra.mxu0 %v1477
      %v2604 = vpop.f32.mrf.mxu0
      %v2605 = vadd.f32 0.0, %v2604
      %v2606 = vpop.f32.mrf.mxu0
      %v2607 = vadd.f32 0.0, %v2606
      %v2608 = vpop.f32.mrf.mxu0
      %v2609 = vadd.f32 0.0, %v2608
      %v2610 = vpop.f32.mrf.mxu0
      %v2611 = vadd.f32 0.0, %v2610
      %2612 = vmatprep.mubr.bf16.mxu0 %v1480
      %2613 = vmatmul.mubr.bf16.gmra.mxu0 %v1479
      %v2614 = vpop.f32.mrf.mxu0
      %v2615 = vadd.f32 0.0, %v2614
      %v2616 = vpop.f32.mrf.mxu0
      %v2617 = vadd.f32 0.0, %v2616
      %v2618 = vpop.f32.mrf.mxu0
      %v2619 = vadd.f32 0.0, %v2618
      %v2620 = vpop.f32.mrf.mxu0
      %v2621 = vadd.f32 0.0, %v2620
      %2622 = vmatprep.mubr.bf16.mxu0 %v1482
      %2623 = vmatmul.mubr.bf16.gmra.mxu0 %v1481
      %v2624 = vpop.f32.mrf.mxu0
      %v2625 = vadd.f32 0.0, %v2624
      %v2626 = vpop.f32.mrf.mxu0
      %v2627 = vadd.f32 0.0, %v2626
      %v2628 = vpop.f32.mrf.mxu0
      %v2629 = vadd.f32 0.0, %v2628
      %v2630 = vpop.f32.mrf.mxu0
      %v2631 = vadd.f32 0.0, %v2630
      %2632 = vmatprep.mubr.bf16.mxu0 %v1484
      %2633 = vmatmul.mubr.bf16.gmra.mxu0 %v1483
      %v2634 = vpop.f32.mrf.mxu0
      %v2635 = vadd.f32 0.0, %v2634
      %v2636 = vpop.f32.mrf.mxu0
      %v2637 = vadd.f32 0.0, %v2636
      %v2638 = vpop.f32.mrf.mxu0
      %v2639 = vadd.f32 0.0, %v2638
      %v2640 = vpop.f32.mrf.mxu0
      %v2641 = vadd.f32 0.0, %v2640
      %2642 = vmatprep.mubr.bf16.mxu0 %v1486
      %2643 = vmatmul.mubr.bf16.gmra.mxu0 %v1485
      %v2644 = vpop.f32.mrf.mxu0
      %v2645 = vadd.f32 0.0, %v2644
      %v2646 = vpop.f32.mrf.mxu0
      %v2647 = vadd.f32 0.0, %v2646
      %v2648 = vpop.f32.mrf.mxu0
      %v2649 = vadd.f32 0.0, %v2648
      %v2650 = vpop.f32.mrf.mxu0
      %v2651 = vadd.f32 0.0, %v2650
      %2652 = vmatprep.mubr.bf16.mxu0 %v1488
      %2653 = vmatmul.mubr.bf16.gmra.mxu0 %v1487
      %v2654 = vpop.f32.mrf.mxu0
      %v2655 = vadd.f32 0.0, %v2654
      %v2656 = vpop.f32.mrf.mxu0
      %v2657 = vadd.f32 0.0, %v2656
      %v2658 = vpop.f32.mrf.mxu0
      %v2659 = vadd.f32 0.0, %v2658
      %v2660 = vpop.f32.mrf.mxu0
      %v2661 = vadd.f32 0.0, %v2660
      %2662 = vmatprep.mubr.bf16.mxu0 %v1490
      %2663 = vmatmul.mubr.bf16.gmra.mxu0 %v1489
      %v2664 = vpop.f32.mrf.mxu0
      %v2665 = vadd.f32 0.0, %v2664
      %v2666 = vpop.f32.mrf.mxu0
      %v2667 = vadd.f32 0.0, %v2666
      %v2668 = vpop.f32.mrf.mxu0
      %v2669 = vadd.f32 0.0, %v2668
      %v2670 = vpop.f32.mrf.mxu0
      %v2671 = vadd.f32 0.0, %v2670
      %2672 = vmatprep.mubr.bf16.mxu0 %v1492
      %2673 = vmatmul.mubr.bf16.gmra.mxu0 %v1491
      %v2674 = vpop.f32.mrf.mxu0
      %v2675 = vadd.f32 0.0, %v2674
      %v2676 = vpop.f32.mrf.mxu0
      %v2677 = vadd.f32 0.0, %v2676
      %v2678 = vpop.f32.mrf.mxu0
      %v2679 = vadd.f32 0.0, %v2678
      %v2680 = vpop.f32.mrf.mxu0
      %v2681 = vadd.f32 0.0, %v2680
      %2682 = vdwg.mxu0
      %2683 = vmatprep.subr.bf16.mxu0 %v1166
      %2684 = vmatpush1.bf16.msra.mxu0 %v1165
      %2685 = vmatprep.subr.bf16.mxu0 %v1146
      %2686 = vmatpush1.bf16.msra.mxu0 %v1145
      %2687 = vmatprep.subr.bf16.mxu0 %v1126
      %2688 = vmatpush1.bf16.msra.mxu0 %v1125
      %2689 = vmatprep.subr.bf16.mxu0 %v1106
      %2690 = vmatpush1.bf16.msra.mxu0 %v1105
      %2691 = vmatprep.subr.bf16.mxu0 %v1086
      %2692 = vmatpush1.bf16.msra.mxu0 %v1085
      %2693 = vmatprep.subr.bf16.mxu0 %v1066
      %2694 = vmatpush1.bf16.msra.mxu0 %v1065
      %2695 = vmatprep.subr.bf16.mxu0 %v1046
      %2696 = vmatpush1.bf16.msra.mxu0 %v1045
      %2697 = vmatprep.subr.bf16.mxu0 %v1026
      %2698 = vmatpush1.bf16.msra.mxu0 %v1025
      %2699 = vmatprep.subr.bf16.mxu0 %v1326
      %2700 = vmatpush2.bf16.msra.mxu0 %v1325
      %2701 = vmatprep.subr.bf16.mxu0 %v1306
      %2702 = vmatpush2.bf16.msra.mxu0 %v1305
      %2703 = vmatprep.subr.bf16.mxu0 %v1286
      %2704 = vmatpush2.bf16.msra.mxu0 %v1285
      %2705 = vmatprep.subr.bf16.mxu0 %v1266
      %2706 = vmatpush2.bf16.msra.mxu0 %v1265
      %2707 = vmatprep.subr.bf16.mxu0 %v1246
      %2708 = vmatpush2.bf16.msra.mxu0 %v1245
      %2709 = vmatprep.subr.bf16.mxu0 %v1226
      %2710 = vmatpush2.bf16.msra.mxu0 %v1225
      %2711 = vmatprep.subr.bf16.mxu0 %v1206
      %2712 = vmatpush2.bf16.msra.mxu0 %v1205
      %2713 = vmatprep.subr.bf16.mxu0 %v1186
      %2714 = vmatpush2.bf16.msra.mxu0 %v1185
      %2715 = vmatprep.mubr.bf16.mxu0 %v1462
      %2716 = vmatmul.mubr.bf16.gmra.mxu0 %v1461
      %v2717 = vpop.f32.mrf.mxu0
      %v2718 = vadd.f32 0.0, %v2717
      %v2719 = vpop.f32.mrf.mxu0
      %v2720 = vadd.f32 0.0, %v2719
      %v2721 = vpop.f32.mrf.mxu0
      %v2722 = vadd.f32 0.0, %v2721
      %v2723 = vpop.f32.mrf.mxu0
      %v2724 = vadd.f32 0.0, %v2723
      %2725 = vmatprep.mubr.bf16.mxu0 %v1464
      %2726 = vmatmul.mubr.bf16.gmra.mxu0 %v1463
      %v2727 = vpop.f32.mrf.mxu0
      %v2728 = vadd.f32 0.0, %v2727
      %v2729 = vpop.f32.mrf.mxu0
      %v2730 = vadd.f32 0.0, %v2729
      %v2731 = vpop.f32.mrf.mxu0
      %v2732 = vadd.f32 0.0, %v2731
      %v2733 = vpop.f32.mrf.mxu0
      %v2734 = vadd.f32 0.0, %v2733
      %2735 = vmatprep.mubr.bf16.mxu0 %v1466
      %2736 = vmatmul.mubr.bf16.gmra.mxu0 %v1465
      %v2737 = vpop.f32.mrf.mxu0
      %v2738 = vadd.f32 0.0, %v2737
      %v2739 = vpop.f32.mrf.mxu0
      %v2740 = vadd.f32 0.0, %v2739
      %v2741 = vpop.f32.mrf.mxu0
      %v2742 = vadd.f32 0.0, %v2741
      %v2743 = vpop.f32.mrf.mxu0
      %v2744 = vadd.f32 0.0, %v2743
      %2745 = vmatprep.mubr.bf16.mxu0 %v1468
      %2746 = vmatmul.mubr.bf16.gmra.mxu0 %v1467
      %v2747 = vpop.f32.mrf.mxu0
      %v2748 = vadd.f32 0.0, %v2747
      %v2749 = vpop.f32.mrf.mxu0
      %v2750 = vadd.f32 0.0, %v2749
      %v2751 = vpop.f32.mrf.mxu0
      %v2752 = vadd.f32 0.0, %v2751
      %v2753 = vpop.f32.mrf.mxu0
      %v2754 = vadd.f32 0.0, %v2753
      %2755 = vmatprep.mubr.bf16.mxu0 %v1470
      %2756 = vmatmul.mubr.bf16.gmra.mxu0 %v1469
      %v2757 = vpop.f32.mrf.mxu0
      %v2758 = vadd.f32 0.0, %v2757
      %v2759 = vpop.f32.mrf.mxu0
      %v2760 = vadd.f32 0.0, %v2759
      %v2761 = vpop.f32.mrf.mxu0
      %v2762 = vadd.f32 0.0, %v2761
      %v2763 = vpop.f32.mrf.mxu0
      %v2764 = vadd.f32 0.0, %v2763
      %2765 = vmatprep.mubr.bf16.mxu0 %v1472
      %2766 = vmatmul.mubr.bf16.gmra.mxu0 %v1471
      %v2767 = vpop.f32.mrf.mxu0
      %v2768 = vadd.f32 0.0, %v2767
      %v2769 = vpop.f32.mrf.mxu0
      %v2770 = vadd.f32 0.0, %v2769
      %v2771 = vpop.f32.mrf.mxu0
      %v2772 = vadd.f32 0.0, %v2771
      %v2773 = vpop.f32.mrf.mxu0
      %v2774 = vadd.f32 0.0, %v2773
      %2775 = vmatprep.mubr.bf16.mxu0 %v1474
      %2776 = vmatmul.mubr.bf16.gmra.mxu0 %v1473
      %v2777 = vpop.f32.mrf.mxu0
      %v2778 = vadd.f32 0.0, %v2777
      %v2779 = vpop.f32.mrf.mxu0
      %v2780 = vadd.f32 0.0, %v2779
      %v2781 = vpop.f32.mrf.mxu0
      %v2782 = vadd.f32 0.0, %v2781
      %v2783 = vpop.f32.mrf.mxu0
      %v2784 = vadd.f32 0.0, %v2783
      %2785 = vmatprep.mubr.bf16.mxu0 %v1476
      %2786 = vmatmul.mubr.bf16.gmra.mxu0 %v1475
      %v2787 = vpop.f32.mrf.mxu0
      %v2788 = vadd.f32 0.0, %v2787
      %v2789 = vpop.f32.mrf.mxu0
      %v2790 = vadd.f32 0.0, %v2789
      %v2791 = vpop.f32.mrf.mxu0
      %v2792 = vadd.f32 0.0, %v2791
      %v2793 = vpop.f32.mrf.mxu0
      %v2794 = vadd.f32 0.0, %v2793
      %2795 = vmatprep.mubr.bf16.mxu0 %v1478
      %2796 = vmatmul.mubr.bf16.gmra.mxu0 %v1477
      %v2797 = vpop.f32.mrf.mxu0
      %v2798 = vadd.f32 0.0, %v2797
      %v2799 = vpop.f32.mrf.mxu0
      %v2800 = vadd.f32 0.0, %v2799
      %v2801 = vpop.f32.mrf.mxu0
      %v2802 = vadd.f32 0.0, %v2801
      %v2803 = vpop.f32.mrf.mxu0
      %v2804 = vadd.f32 0.0, %v2803
      %2805 = vmatprep.mubr.bf16.mxu0 %v1480
      %2806 = vmatmul.mubr.bf16.gmra.mxu0 %v1479
      %v2807 = vpop.f32.mrf.mxu0
      %v2808 = vadd.f32 0.0, %v2807
      %v2809 = vpop.f32.mrf.mxu0
      %v2810 = vadd.f32 0.0, %v2809
      %v2811 = vpop.f32.mrf.mxu0
      %v2812 = vadd.f32 0.0, %v2811
      %v2813 = vpop.f32.mrf.mxu0
      %v2814 = vadd.f32 0.0, %v2813
      %2815 = vmatprep.mubr.bf16.mxu0 %v1482
      %2816 = vmatmul.mubr.bf16.gmra.mxu0 %v1481
      %v2817 = vpop.f32.mrf.mxu0
      %v2818 = vadd.f32 0.0, %v2817
      %v2819 = vpop.f32.mrf.mxu0
      %v2820 = vadd.f32 0.0, %v2819
      %v2821 = vpop.f32.mrf.mxu0
      %v2822 = vadd.f32 0.0, %v2821
      %v2823 = vpop.f32.mrf.mxu0
      %v2824 = vadd.f32 0.0, %v2823
      %2825 = vmatprep.mubr.bf16.mxu0 %v1484
      %2826 = vmatmul.mubr.bf16.gmra.mxu0 %v1483
      %v2827 = vpop.f32.mrf.mxu0
      %v2828 = vadd.f32 0.0, %v2827
      %v2829 = vpop.f32.mrf.mxu0
      %v2830 = vadd.f32 0.0, %v2829
      %v2831 = vpop.f32.mrf.mxu0
      %v2832 = vadd.f32 0.0, %v2831
      %v2833 = vpop.f32.mrf.mxu0
      %v2834 = vadd.f32 0.0, %v2833
      %2835 = vmatprep.mubr.bf16.mxu0 %v1486
      %2836 = vmatmul.mubr.bf16.gmra.mxu0 %v1485
      %v2837 = vpop.f32.mrf.mxu0
      %v2838 = vadd.f32 0.0, %v2837
      %v2839 = vpop.f32.mrf.mxu0
      %v2840 = vadd.f32 0.0, %v2839
      %v2841 = vpop.f32.mrf.mxu0
      %v2842 = vadd.f32 0.0, %v2841
      %v2843 = vpop.f32.mrf.mxu0
      %v2844 = vadd.f32 0.0, %v2843
      %2845 = vmatprep.mubr.bf16.mxu0 %v1488
      %2846 = vmatmul.mubr.bf16.gmra.mxu0 %v1487
      %v2847 = vpop.f32.mrf.mxu0
      %v2848 = vadd.f32 0.0, %v2847
      %v2849 = vpop.f32.mrf.mxu0
      %v2850 = vadd.f32 0.0, %v2849
      %v2851 = vpop.f32.mrf.mxu0
      %v2852 = vadd.f32 0.0, %v2851
      %v2853 = vpop.f32.mrf.mxu0
      %v2854 = vadd.f32 0.0, %v2853
      %2855 = vmatprep.mubr.bf16.mxu0 %v1490
      %2856 = vmatmul.mubr.bf16.gmra.mxu0 %v1489
      %v2857 = vpop.f32.mrf.mxu0
      %v2858 = vadd.f32 0.0, %v2857
      %v2859 = vpop.f32.mrf.mxu0
      %v2860 = vadd.f32 0.0, %v2859
      %v2861 = vpop.f32.mrf.mxu0
      %v2862 = vadd.f32 0.0, %v2861
      %v2863 = vpop.f32.mrf.mxu0
      %v2864 = vadd.f32 0.0, %v2863
      %2865 = vmatprep.mubr.bf16.mxu0 %v1492
      %2866 = vmatmul.mubr.bf16.gmra.mxu0 %v1491
      %v2867 = vpop.f32.mrf.mxu0
      %v2868 = vadd.f32 0.0, %v2867
      %v2869 = vpop.f32.mrf.mxu0
      %v2870 = vadd.f32 0.0, %v2869
      %v2871 = vpop.f32.mrf.mxu0
      %v2872 = vadd.f32 0.0, %v2871
      %v2873 = vpop.f32.mrf.mxu0
      %v2874 = vadd.f32 0.0, %v2873
      %2875 = vdwg.mxu0
      %2876 = vmatprep.subr.bf16.mxu0 %v1168
      %2877 = vmatpush1.bf16.msra.mxu0 %v1167
      %2878 = vmatprep.subr.bf16.mxu0 %v1148
      %2879 = vmatpush1.bf16.msra.mxu0 %v1147
      %2880 = vmatprep.subr.bf16.mxu0 %v1128
      %2881 = vmatpush1.bf16.msra.mxu0 %v1127
      %2882 = vmatprep.subr.bf16.mxu0 %v1108
      %2883 = vmatpush1.bf16.msra.mxu0 %v1107
      %2884 = vmatprep.subr.bf16.mxu0 %v1088
      %2885 = vmatpush1.bf16.msra.mxu0 %v1087
      %2886 = vmatprep.subr.bf16.mxu0 %v1068
      %2887 = vmatpush1.bf16.msra.mxu0 %v1067
      %2888 = vmatprep.subr.bf16.mxu0 %v1048
      %2889 = vmatpush1.bf16.msra.mxu0 %v1047
      %2890 = vmatprep.subr.bf16.mxu0 %v1028
      %2891 = vmatpush1.bf16.msra.mxu0 %v1027
      %2892 = vmatprep.subr.bf16.mxu0 %v1328
      %2893 = vmatpush2.bf16.msra.mxu0 %v1327
      %2894 = vmatprep.subr.bf16.mxu0 %v1308
      %2895 = vmatpush2.bf16.msra.mxu0 %v1307
      %2896 = vmatprep.subr.bf16.mxu0 %v1288
      %2897 = vmatpush2.bf16.msra.mxu0 %v1287
      %2898 = vmatprep.subr.bf16.mxu0 %v1268
      %2899 = vmatpush2.bf16.msra.mxu0 %v1267
      %2900 = vmatprep.subr.bf16.mxu0 %v1248
      %2901 = vmatpush2.bf16.msra.mxu0 %v1247
      %2902 = vmatprep.subr.bf16.mxu0 %v1228
      %2903 = vmatpush2.bf16.msra.mxu0 %v1227
      %2904 = vmatprep.subr.bf16.mxu0 %v1208
      %2905 = vmatpush2.bf16.msra.mxu0 %v1207
      %2906 = vmatprep.subr.bf16.mxu0 %v1188
      %2907 = vmatpush2.bf16.msra.mxu0 %v1187
      %2908 = vmatprep.mubr.bf16.mxu0 %v1462
      %2909 = vmatmul.mubr.bf16.gmra.mxu0 %v1461
      %v2910 = vpop.f32.mrf.mxu0
      %v2911 = vadd.f32 0.0, %v2910
      %v2912 = vpop.f32.mrf.mxu0
      %v2913 = vadd.f32 0.0, %v2912
      %v2914 = vpop.f32.mrf.mxu0
      %v2915 = vadd.f32 0.0, %v2914
      %v2916 = vpop.f32.mrf.mxu0
      %v2917 = vadd.f32 0.0, %v2916
      %2918 = vmatprep.mubr.bf16.mxu0 %v1464
      %2919 = vmatmul.mubr.bf16.gmra.mxu0 %v1463
      %v2920 = vpop.f32.mrf.mxu0
      %v2921 = vadd.f32 0.0, %v2920
      %v2922 = vpop.f32.mrf.mxu0
      %v2923 = vadd.f32 0.0, %v2922
      %v2924 = vpop.f32.mrf.mxu0
      %v2925 = vadd.f32 0.0, %v2924
      %v2926 = vpop.f32.mrf.mxu0
      %v2927 = vadd.f32 0.0, %v2926
      %2928 = vmatprep.mubr.bf16.mxu0 %v1466
      %2929 = vmatmul.mubr.bf16.gmra.mxu0 %v1465
      %v2930 = vpop.f32.mrf.mxu0
      %v2931 = vadd.f32 0.0, %v2930
      %v2932 = vpop.f32.mrf.mxu0
      %v2933 = vadd.f32 0.0, %v2932
      %v2934 = vpop.f32.mrf.mxu0
      %v2935 = vadd.f32 0.0, %v2934
      %v2936 = vpop.f32.mrf.mxu0
      %v2937 = vadd.f32 0.0, %v2936
      %2938 = vmatprep.mubr.bf16.mxu0 %v1468
      %2939 = vmatmul.mubr.bf16.gmra.mxu0 %v1467
      %v2940 = vpop.f32.mrf.mxu0
      %v2941 = vadd.f32 0.0, %v2940
      %v2942 = vpop.f32.mrf.mxu0
      %v2943 = vadd.f32 0.0, %v2942
      %v2944 = vpop.f32.mrf.mxu0
      %v2945 = vadd.f32 0.0, %v2944
      %v2946 = vpop.f32.mrf.mxu0
      %v2947 = vadd.f32 0.0, %v2946
      %2948 = vmatprep.mubr.bf16.mxu0 %v1470
      %2949 = vmatmul.mubr.bf16.gmra.mxu0 %v1469
      %v2950 = vpop.f32.mrf.mxu0
      %v2951 = vadd.f32 0.0, %v2950
      %v2952 = vpop.f32.mrf.mxu0
      %v2953 = vadd.f32 0.0, %v2952
      %v2954 = vpop.f32.mrf.mxu0
      %v2955 = vadd.f32 0.0, %v2954
      %v2956 = vpop.f32.mrf.mxu0
      %v2957 = vadd.f32 0.0, %v2956
      %2958 = vmatprep.mubr.bf16.mxu0 %v1472
      %2959 = vmatmul.mubr.bf16.gmra.mxu0 %v1471
      %v2960 = vpop.f32.mrf.mxu0
      %v2961 = vadd.f32 0.0, %v2960
      %v2962 = vpop.f32.mrf.mxu0
      %v2963 = vadd.f32 0.0, %v2962
      %v2964 = vpop.f32.mrf.mxu0
      %v2965 = vadd.f32 0.0, %v2964
      %v2966 = vpop.f32.mrf.mxu0
      %v2967 = vadd.f32 0.0, %v2966
      %2968 = vmatprep.mubr.bf16.mxu0 %v1474
      %2969 = vmatmul.mubr.bf16.gmra.mxu0 %v1473
      %v2970 = vpop.f32.mrf.mxu0
      %v2971 = vadd.f32 0.0, %v2970
      %v2972 = vpop.f32.mrf.mxu0
      %v2973 = vadd.f32 0.0, %v2972
      %v2974 = vpop.f32.mrf.mxu0
      %v2975 = vadd.f32 0.0, %v2974
      %v2976 = vpop.f32.mrf.mxu0
      %v2977 = vadd.f32 0.0, %v2976
      %2978 = vmatprep.mubr.bf16.mxu0 %v1476
      %2979 = vmatmul.mubr.bf16.gmra.mxu0 %v1475
      %v2980 = vpop.f32.mrf.mxu0
      %v2981 = vadd.f32 0.0, %v2980
      %v2982 = vpop.f32.mrf.mxu0
      %v2983 = vadd.f32 0.0, %v2982
      %v2984 = vpop.f32.mrf.mxu0
      %v2985 = vadd.f32 0.0, %v2984
      %v2986 = vpop.f32.mrf.mxu0
      %v2987 = vadd.f32 0.0, %v2986
      %2988 = vmatprep.mubr.bf16.mxu0 %v1478
      %2989 = vmatmul.mubr.bf16.gmra.mxu0 %v1477
      %v2990 = vpop.f32.mrf.mxu0
      %v2991 = vadd.f32 0.0, %v2990
      %v2992 = vpop.f32.mrf.mxu0
      %v2993 = vadd.f32 0.0, %v2992
      %v2994 = vpop.f32.mrf.mxu0
      %v2995 = vadd.f32 0.0, %v2994
      %v2996 = vpop.f32.mrf.mxu0
      %v2997 = vadd.f32 0.0, %v2996
      %2998 = vmatprep.mubr.bf16.mxu0 %v1480
      %2999 = vmatmul.mubr.bf16.gmra.mxu0 %v1479
      %v3000 = vpop.f32.mrf.mxu0
      %v3001 = vadd.f32 0.0, %v3000
      %v3002 = vpop.f32.mrf.mxu0
      %v3003 = vadd.f32 0.0, %v3002
      %v3004 = vpop.f32.mrf.mxu0
      %v3005 = vadd.f32 0.0, %v3004
      %v3006 = vpop.f32.mrf.mxu0
      %v3007 = vadd.f32 0.0, %v3006
      %3008 = vmatprep.mubr.bf16.mxu0 %v1482
      %3009 = vmatmul.mubr.bf16.gmra.mxu0 %v1481
      %v3010 = vpop.f32.mrf.mxu0
      %v3011 = vadd.f32 0.0, %v3010
      %v3012 = vpop.f32.mrf.mxu0
      %v3013 = vadd.f32 0.0, %v3012
      %v3014 = vpop.f32.mrf.mxu0
      %v3015 = vadd.f32 0.0, %v3014
      %v3016 = vpop.f32.mrf.mxu0
      %v3017 = vadd.f32 0.0, %v3016
      %3018 = vmatprep.mubr.bf16.mxu0 %v1484
      %3019 = vmatmul.mubr.bf16.gmra.mxu0 %v1483
      %v3020 = vpop.f32.mrf.mxu0
      %v3021 = vadd.f32 0.0, %v3020
      %v3022 = vpop.f32.mrf.mxu0
      %v3023 = vadd.f32 0.0, %v3022
      %v3024 = vpop.f32.mrf.mxu0
      %v3025 = vadd.f32 0.0, %v3024
      %v3026 = vpop.f32.mrf.mxu0
      %v3027 = vadd.f32 0.0, %v3026
      %3028 = vmatprep.mubr.bf16.mxu0 %v1486
      %3029 = vmatmul.mubr.bf16.gmra.mxu0 %v1485
      %v3030 = vpop.f32.mrf.mxu0
      %v3031 = vadd.f32 0.0, %v3030
      %v3032 = vpop.f32.mrf.mxu0
      %v3033 = vadd.f32 0.0, %v3032
      %v3034 = vpop.f32.mrf.mxu0
      %v3035 = vadd.f32 0.0, %v3034
      %v3036 = vpop.f32.mrf.mxu0
      %v3037 = vadd.f32 0.0, %v3036
      %3038 = vmatprep.mubr.bf16.mxu0 %v1488
      %3039 = vmatmul.mubr.bf16.gmra.mxu0 %v1487
      %v3040 = vpop.f32.mrf.mxu0
      %v3041 = vadd.f32 0.0, %v3040
      %v3042 = vpop.f32.mrf.mxu0
      %v3043 = vadd.f32 0.0, %v3042
      %v3044 = vpop.f32.mrf.mxu0
      %v3045 = vadd.f32 0.0, %v3044
      %v3046 = vpop.f32.mrf.mxu0
      %v3047 = vadd.f32 0.0, %v3046
      %3048 = vmatprep.mubr.bf16.mxu0 %v1490
      %3049 = vmatmul.mubr.bf16.gmra.mxu0 %v1489
      %v3050 = vpop.f32.mrf.mxu0
      %v3051 = vadd.f32 0.0, %v3050
      %v3052 = vpop.f32.mrf.mxu0
      %v3053 = vadd.f32 0.0, %v3052
      %v3054 = vpop.f32.mrf.mxu0
      %v3055 = vadd.f32 0.0, %v3054
      %v3056 = vpop.f32.mrf.mxu0
      %v3057 = vadd.f32 0.0, %v3056
      %3058 = vmatprep.mubr.bf16.mxu0 %v1492
      %3059 = vmatmul.mubr.bf16.gmra.mxu0 %v1491
      %v3060 = vpop.f32.mrf.mxu0
      %v3061 = vadd.f32 0.0, %v3060
      %v3062 = vpop.f32.mrf.mxu0
      %v3063 = vadd.f32 0.0, %v3062
      %v3064 = vpop.f32.mrf.mxu0
      %v3065 = vadd.f32 0.0, %v3064
      %v3066 = vpop.f32.mrf.mxu0
      %v3067 = vadd.f32 0.0, %v3066
      %3068 = vdwg.mxu0
      %3069 = vmatprep.subr.bf16.mxu0 %v1170
      %3070 = vmatpush1.bf16.msra.mxu0 %v1169
      %3071 = vmatprep.subr.bf16.mxu0 %v1150
      %3072 = vmatpush1.bf16.msra.mxu0 %v1149
      %3073 = vmatprep.subr.bf16.mxu0 %v1130
      %3074 = vmatpush1.bf16.msra.mxu0 %v1129
      %3075 = vmatprep.subr.bf16.mxu0 %v1110
      %3076 = vmatpush1.bf16.msra.mxu0 %v1109
      %3077 = vmatprep.subr.bf16.mxu0 %v1090
      %3078 = vmatpush1.bf16.msra.mxu0 %v1089
      %3079 = vmatprep.subr.bf16.mxu0 %v1070
      %3080 = vmatpush1.bf16.msra.mxu0 %v1069
      %3081 = vmatprep.subr.bf16.mxu0 %v1050
      %3082 = vmatpush1.bf16.msra.mxu0 %v1049
      %3083 = vmatprep.subr.bf16.mxu0 %v1030
      %3084 = vmatpush1.bf16.msra.mxu0 %v1029
      %3085 = vmatprep.subr.bf16.mxu0 %v1330
      %3086 = vmatpush2.bf16.msra.mxu0 %v1329
      %3087 = vmatprep.subr.bf16.mxu0 %v1310
      %3088 = vmatpush2.bf16.msra.mxu0 %v1309
      %3089 = vmatprep.subr.bf16.mxu0 %v1290
      %3090 = vmatpush2.bf16.msra.mxu0 %v1289
      %3091 = vmatprep.subr.bf16.mxu0 %v1270
      %3092 = vmatpush2.bf16.msra.mxu0 %v1269
      %3093 = vmatprep.subr.bf16.mxu0 %v1250
      %3094 = vmatpush2.bf16.msra.mxu0 %v1249
      %3095 = vmatprep.subr.bf16.mxu0 %v1230
      %3096 = vmatpush2.bf16.msra.mxu0 %v1229
      %3097 = vmatprep.subr.bf16.mxu0 %v1210
      %3098 = vmatpush2.bf16.msra.mxu0 %v1209
      %3099 = vmatprep.subr.bf16.mxu0 %v1190
      %3100 = vmatpush2.bf16.msra.mxu0 %v1189
      %3101 = vmatprep.mubr.bf16.mxu0 %v1462
      %3102 = vmatmul.mubr.bf16.gmra.mxu0 %v1461
      %v3103 = vpop.f32.mrf.mxu0
      %v3104 = vadd.f32 0.0, %v3103
      %v3105 = vpop.f32.mrf.mxu0
      %v3106 = vadd.f32 0.0, %v3105
      %v3107 = vpop.f32.mrf.mxu0
      %v3108 = vadd.f32 0.0, %v3107
      %v3109 = vpop.f32.mrf.mxu0
      %v3110 = vadd.f32 0.0, %v3109
      %3111 = vmatprep.mubr.bf16.mxu0 %v1464
      %3112 = vmatmul.mubr.bf16.gmra.mxu0 %v1463
      %v3113 = vpop.f32.mrf.mxu0
      %v3114 = vadd.f32 0.0, %v3113
      %v3115 = vpop.f32.mrf.mxu0
      %v3116 = vadd.f32 0.0, %v3115
      %v3117 = vpop.f32.mrf.mxu0
      %v3118 = vadd.f32 0.0, %v3117
      %v3119 = vpop.f32.mrf.mxu0
      %v3120 = vadd.f32 0.0, %v3119
      %3121 = vmatprep.mubr.bf16.mxu0 %v1466
      %3122 = vmatmul.mubr.bf16.gmra.mxu0 %v1465
      %v3123 = vpop.f32.mrf.mxu0
      %v3124 = vadd.f32 0.0, %v3123
      %v3125 = vpop.f32.mrf.mxu0
      %v3126 = vadd.f32 0.0, %v3125
      %v3127 = vpop.f32.mrf.mxu0
      %v3128 = vadd.f32 0.0, %v3127
      %v3129 = vpop.f32.mrf.mxu0
      %v3130 = vadd.f32 0.0, %v3129
      %3131 = vmatprep.mubr.bf16.mxu0 %v1468
      %3132 = vmatmul.mubr.bf16.gmra.mxu0 %v1467
      %v3133 = vpop.f32.mrf.mxu0
      %v3134 = vadd.f32 0.0, %v3133
      %v3135 = vpop.f32.mrf.mxu0
      %v3136 = vadd.f32 0.0, %v3135
      %v3137 = vpop.f32.mrf.mxu0
      %v3138 = vadd.f32 0.0, %v3137
      %v3139 = vpop.f32.mrf.mxu0
      %v3140 = vadd.f32 0.0, %v3139
      %3141 = vmatprep.mubr.bf16.mxu0 %v1470
      %3142 = vmatmul.mubr.bf16.gmra.mxu0 %v1469
      %v3143 = vpop.f32.mrf.mxu0
      %v3144 = vadd.f32 0.0, %v3143
      %v3145 = vpop.f32.mrf.mxu0
      %v3146 = vadd.f32 0.0, %v3145
      %v3147 = vpop.f32.mrf.mxu0
      %v3148 = vadd.f32 0.0, %v3147
      %v3149 = vpop.f32.mrf.mxu0
      %v3150 = vadd.f32 0.0, %v3149
      %3151 = vmatprep.mubr.bf16.mxu0 %v1472
      %3152 = vmatmul.mubr.bf16.gmra.mxu0 %v1471
      %v3153 = vpop.f32.mrf.mxu0
      %v3154 = vadd.f32 0.0, %v3153
      %v3155 = vpop.f32.mrf.mxu0
      %v3156 = vadd.f32 0.0, %v3155
      %v3157 = vpop.f32.mrf.mxu0
      %v3158 = vadd.f32 0.0, %v3157
      %v3159 = vpop.f32.mrf.mxu0
      %v3160 = vadd.f32 0.0, %v3159
      %3161 = vmatprep.mubr.bf16.mxu0 %v1474
      %3162 = vmatmul.mubr.bf16.gmra.mxu0 %v1473
      %v3163 = vpop.f32.mrf.mxu0
      %v3164 = vadd.f32 0.0, %v3163
      %v3165 = vpop.f32.mrf.mxu0
      %v3166 = vadd.f32 0.0, %v3165
      %v3167 = vpop.f32.mrf.mxu0
      %v3168 = vadd.f32 0.0, %v3167
      %v3169 = vpop.f32.mrf.mxu0
      %v3170 = vadd.f32 0.0, %v3169
      %3171 = vmatprep.mubr.bf16.mxu0 %v1476
      %3172 = vmatmul.mubr.bf16.gmra.mxu0 %v1475
      %v3173 = vpop.f32.mrf.mxu0
      %v3174 = vadd.f32 0.0, %v3173
      %v3175 = vpop.f32.mrf.mxu0
      %v3176 = vadd.f32 0.0, %v3175
      %v3177 = vpop.f32.mrf.mxu0
      %v3178 = vadd.f32 0.0, %v3177
      %v3179 = vpop.f32.mrf.mxu0
      %v3180 = vadd.f32 0.0, %v3179
      %3181 = vmatprep.mubr.bf16.mxu0 %v1478
      %3182 = vmatmul.mubr.bf16.gmra.mxu0 %v1477
      %v3183 = vpop.f32.mrf.mxu0
      %v3184 = vadd.f32 0.0, %v3183
      %v3185 = vpop.f32.mrf.mxu0
      %v3186 = vadd.f32 0.0, %v3185
      %v3187 = vpop.f32.mrf.mxu0
      %v3188 = vadd.f32 0.0, %v3187
      %v3189 = vpop.f32.mrf.mxu0
      %v3190 = vadd.f32 0.0, %v3189
      %3191 = vmatprep.mubr.bf16.mxu0 %v1480
      %3192 = vmatmul.mubr.bf16.gmra.mxu0 %v1479
      %v3193 = vpop.f32.mrf.mxu0
      %v3194 = vadd.f32 0.0, %v3193
      %v3195 = vpop.f32.mrf.mxu0
      %v3196 = vadd.f32 0.0, %v3195
      %v3197 = vpop.f32.mrf.mxu0
      %v3198 = vadd.f32 0.0, %v3197
      %v3199 = vpop.f32.mrf.mxu0
      %v3200 = vadd.f32 0.0, %v3199
      %3201 = vmatprep.mubr.bf16.mxu0 %v1482
      %3202 = vmatmul.mubr.bf16.gmra.mxu0 %v1481
      %v3203 = vpop.f32.mrf.mxu0
      %v3204 = vadd.f32 0.0, %v3203
      %v3205 = vpop.f32.mrf.mxu0
      %v3206 = vadd.f32 0.0, %v3205
      %v3207 = vpop.f32.mrf.mxu0
      %v3208 = vadd.f32 0.0, %v3207
      %v3209 = vpop.f32.mrf.mxu0
      %v3210 = vadd.f32 0.0, %v3209
      %3211 = vmatprep.mubr.bf16.mxu0 %v1484
      %3212 = vmatmul.mubr.bf16.gmra.mxu0 %v1483
      %v3213 = vpop.f32.mrf.mxu0
      %v3214 = vadd.f32 0.0, %v3213
      %v3215 = vpop.f32.mrf.mxu0
      %v3216 = vadd.f32 0.0, %v3215
      %v3217 = vpop.f32.mrf.mxu0
      %v3218 = vadd.f32 0.0, %v3217
      %v3219 = vpop.f32.mrf.mxu0
      %v3220 = vadd.f32 0.0, %v3219
      %3221 = vmatprep.mubr.bf16.mxu0 %v1486
      %3222 = vmatmul.mubr.bf16.gmra.mxu0 %v1485
      %v3223 = vpop.f32.mrf.mxu0
      %v3224 = vadd.f32 0.0, %v3223
      %v3225 = vpop.f32.mrf.mxu0
      %v3226 = vadd.f32 0.0, %v3225
      %v3227 = vpop.f32.mrf.mxu0
      %v3228 = vadd.f32 0.0, %v3227
      %v3229 = vpop.f32.mrf.mxu0
      %v3230 = vadd.f32 0.0, %v3229
      %3231 = vmatprep.mubr.bf16.mxu0 %v1488
      %3232 = vmatmul.mubr.bf16.gmra.mxu0 %v1487
      %v3233 = vpop.f32.mrf.mxu0
      %v3234 = vadd.f32 0.0, %v3233
      %v3235 = vpop.f32.mrf.mxu0
      %v3236 = vadd.f32 0.0, %v3235
      %v3237 = vpop.f32.mrf.mxu0
      %v3238 = vadd.f32 0.0, %v3237
      %v3239 = vpop.f32.mrf.mxu0
      %v3240 = vadd.f32 0.0, %v3239
      %3241 = vmatprep.mubr.bf16.mxu0 %v1490
      %3242 = vmatmul.mubr.bf16.gmra.mxu0 %v1489
      %v3243 = vpop.f32.mrf.mxu0
      %v3244 = vadd.f32 0.0, %v3243
      %v3245 = vpop.f32.mrf.mxu0
      %v3246 = vadd.f32 0.0, %v3245
      %v3247 = vpop.f32.mrf.mxu0
      %v3248 = vadd.f32 0.0, %v3247
      %v3249 = vpop.f32.mrf.mxu0
      %v3250 = vadd.f32 0.0, %v3249
      %3251 = vmatprep.mubr.bf16.mxu0 %v1492
      %3252 = vmatmul.mubr.bf16.gmra.mxu0 %v1491
      %v3253 = vpop.f32.mrf.mxu0
      %v3254 = vadd.f32 0.0, %v3253
      %v3255 = vpop.f32.mrf.mxu0
      %v3256 = vadd.f32 0.0, %v3255
      %v3257 = vpop.f32.mrf.mxu0
      %v3258 = vadd.f32 0.0, %v3257
      %v3259 = vpop.f32.mrf.mxu0
      %v3260 = vadd.f32 0.0, %v3259
      %3261 = vdwg.mxu0
      %3262 = vmatprep.subr.bf16.mxu0 %v1172
      %3263 = vmatpush1.bf16.msra.mxu0 %v1171
      %3264 = vmatprep.subr.bf16.mxu0 %v1152
      %3265 = vmatpush1.bf16.msra.mxu0 %v1151
      %3266 = vmatprep.subr.bf16.mxu0 %v1132
      %3267 = vmatpush1.bf16.msra.mxu0 %v1131
      %3268 = vmatprep.subr.bf16.mxu0 %v1112
      %3269 = vmatpush1.bf16.msra.mxu0 %v1111
      %3270 = vmatprep.subr.bf16.mxu0 %v1092
      %3271 = vmatpush1.bf16.msra.mxu0 %v1091
      %3272 = vmatprep.subr.bf16.mxu0 %v1072
      %3273 = vmatpush1.bf16.msra.mxu0 %v1071
      %3274 = vmatprep.subr.bf16.mxu0 %v1052
      %3275 = vmatpush1.bf16.msra.mxu0 %v1051
      %3276 = vmatprep.subr.bf16.mxu0 %v1032
      %3277 = vmatpush1.bf16.msra.mxu0 %v1031
      %3278 = vmatprep.subr.bf16.mxu0 %v1332
      %3279 = vmatpush2.bf16.msra.mxu0 %v1331
      %3280 = vmatprep.subr.bf16.mxu0 %v1312
      %3281 = vmatpush2.bf16.msra.mxu0 %v1311
      %3282 = vmatprep.subr.bf16.mxu0 %v1292
      %3283 = vmatpush2.bf16.msra.mxu0 %v1291
      %3284 = vmatprep.subr.bf16.mxu0 %v1272
      %3285 = vmatpush2.bf16.msra.mxu0 %v1271
      %3286 = vmatprep.subr.bf16.mxu0 %v1252
      %3287 = vmatpush2.bf16.msra.mxu0 %v1251
      %3288 = vmatprep.subr.bf16.mxu0 %v1232
      %3289 = vmatpush2.bf16.msra.mxu0 %v1231
      %3290 = vmatprep.subr.bf16.mxu0 %v1212
      %3291 = vmatpush2.bf16.msra.mxu0 %v1211
      %3292 = vmatprep.subr.bf16.mxu0 %v1192
      %3293 = vmatpush2.bf16.msra.mxu0 %v1191
      %3294 = vmatprep.mubr.bf16.mxu0 %v1462
      %3295 = vmatmul.mubr.bf16.gmra.mxu0 %v1461
      %v3296 = vpop.f32.mrf.mxu0
      %v3297 = vadd.f32 0.0, %v3296
      %v3298 = vpop.f32.mrf.mxu0
      %v3299 = vadd.f32 0.0, %v3298
      %v3300 = vpop.f32.mrf.mxu0
      %v3301 = vadd.f32 0.0, %v3300
      %v3302 = vpop.f32.mrf.mxu0
      %v3303 = vadd.f32 0.0, %v3302
      %3304 = vmatprep.mubr.bf16.mxu0 %v1464
      %3305 = vmatmul.mubr.bf16.gmra.mxu0 %v1463
      %v3306 = vpop.f32.mrf.mxu0
      %v3307 = vadd.f32 0.0, %v3306
      %v3308 = vpop.f32.mrf.mxu0
      %v3309 = vadd.f32 0.0, %v3308
      %v3310 = vpop.f32.mrf.mxu0
      %v3311 = vadd.f32 0.0, %v3310
      %v3312 = vpop.f32.mrf.mxu0
      %v3313 = vadd.f32 0.0, %v3312
      %3314 = vmatprep.mubr.bf16.mxu0 %v1466
      %3315 = vmatmul.mubr.bf16.gmra.mxu0 %v1465
      %v3316 = vpop.f32.mrf.mxu0
      %v3317 = vadd.f32 0.0, %v3316
      %v3318 = vpop.f32.mrf.mxu0
      %v3319 = vadd.f32 0.0, %v3318
      %v3320 = vpop.f32.mrf.mxu0
      %v3321 = vadd.f32 0.0, %v3320
      %v3322 = vpop.f32.mrf.mxu0
      %v3323 = vadd.f32 0.0, %v3322
      %3324 = vmatprep.mubr.bf16.mxu0 %v1468
      %3325 = vmatmul.mubr.bf16.gmra.mxu0 %v1467
      %v3326 = vpop.f32.mrf.mxu0
      %v3327 = vadd.f32 0.0, %v3326
      %v3328 = vpop.f32.mrf.mxu0
      %v3329 = vadd.f32 0.0, %v3328
      %v3330 = vpop.f32.mrf.mxu0
      %v3331 = vadd.f32 0.0, %v3330
      %v3332 = vpop.f32.mrf.mxu0
      %v3333 = vadd.f32 0.0, %v3332
      %3334 = vmatprep.mubr.bf16.mxu0 %v1470
      %3335 = vmatmul.mubr.bf16.gmra.mxu0 %v1469
      %v3336 = vpop.f32.mrf.mxu0
      %v3337 = vadd.f32 0.0, %v3336
      %v3338 = vpop.f32.mrf.mxu0
      %v3339 = vadd.f32 0.0, %v3338
      %v3340 = vpop.f32.mrf.mxu0
      %v3341 = vadd.f32 0.0, %v3340
      %v3342 = vpop.f32.mrf.mxu0
      %v3343 = vadd.f32 0.0, %v3342
      %3344 = vmatprep.mubr.bf16.mxu0 %v1472
      %3345 = vmatmul.mubr.bf16.gmra.mxu0 %v1471
      %v3346 = vpop.f32.mrf.mxu0
      %v3347 = vadd.f32 0.0, %v3346
      %v3348 = vpop.f32.mrf.mxu0
      %v3349 = vadd.f32 0.0, %v3348
      %v3350 = vpop.f32.mrf.mxu0
      %v3351 = vadd.f32 0.0, %v3350
      %v3352 = vpop.f32.mrf.mxu0
      %v3353 = vadd.f32 0.0, %v3352
      %3354 = vmatprep.mubr.bf16.mxu0 %v1474
      %3355 = vmatmul.mubr.bf16.gmra.mxu0 %v1473
      %v3356 = vpop.f32.mrf.mxu0
      %v3357 = vadd.f32 0.0, %v3356
      %v3358 = vpop.f32.mrf.mxu0
      %v3359 = vadd.f32 0.0, %v3358
      %v3360 = vpop.f32.mrf.mxu0
      %v3361 = vadd.f32 0.0, %v3360
      %v3362 = vpop.f32.mrf.mxu0
      %v3363 = vadd.f32 0.0, %v3362
      %3364 = vmatprep.mubr.bf16.mxu0 %v1476
      %3365 = vmatmul.mubr.bf16.gmra.mxu0 %v1475
      %v3366 = vpop.f32.mrf.mxu0
      %v3367 = vadd.f32 0.0, %v3366
      %v3368 = vpop.f32.mrf.mxu0
      %v3369 = vadd.f32 0.0, %v3368
      %v3370 = vpop.f32.mrf.mxu0
      %v3371 = vadd.f32 0.0, %v3370
      %v3372 = vpop.f32.mrf.mxu0
      %v3373 = vadd.f32 0.0, %v3372
      %3374 = vmatprep.mubr.bf16.mxu0 %v1478
      %3375 = vmatmul.mubr.bf16.gmra.mxu0 %v1477
      %v3376 = vpop.f32.mrf.mxu0
      %v3377 = vadd.f32 0.0, %v3376
      %v3378 = vpop.f32.mrf.mxu0
      %v3379 = vadd.f32 0.0, %v3378
      %v3380 = vpop.f32.mrf.mxu0
      %v3381 = vadd.f32 0.0, %v3380
      %v3382 = vpop.f32.mrf.mxu0
      %v3383 = vadd.f32 0.0, %v3382
      %3384 = vmatprep.mubr.bf16.mxu0 %v1480
      %3385 = vmatmul.mubr.bf16.gmra.mxu0 %v1479
      %v3386 = vpop.f32.mrf.mxu0
      %v3387 = vadd.f32 0.0, %v3386
      %v3388 = vpop.f32.mrf.mxu0
      %v3389 = vadd.f32 0.0, %v3388
      %v3390 = vpop.f32.mrf.mxu0
      %v3391 = vadd.f32 0.0, %v3390
      %v3392 = vpop.f32.mrf.mxu0
      %v3393 = vadd.f32 0.0, %v3392
      %3394 = vmatprep.mubr.bf16.mxu0 %v1482
      %3395 = vmatmul.mubr.bf16.gmra.mxu0 %v1481
      %v3396 = vpop.f32.mrf.mxu0
      %v3397 = vadd.f32 0.0, %v3396
      %v3398 = vpop.f32.mrf.mxu0
      %v3399 = vadd.f32 0.0, %v3398
      %v3400 = vpop.f32.mrf.mxu0
      %v3401 = vadd.f32 0.0, %v3400
      %v3402 = vpop.f32.mrf.mxu0
      %v3403 = vadd.f32 0.0, %v3402
      %3404 = vmatprep.mubr.bf16.mxu0 %v1484
      %3405 = vmatmul.mubr.bf16.gmra.mxu0 %v1483
      %v3406 = vpop.f32.mrf.mxu0
      %v3407 = vadd.f32 0.0, %v3406
      %v3408 = vpop.f32.mrf.mxu0
      %v3409 = vadd.f32 0.0, %v3408
      %v3410 = vpop.f32.mrf.mxu0
      %v3411 = vadd.f32 0.0, %v3410
      %v3412 = vpop.f32.mrf.mxu0
      %v3413 = vadd.f32 0.0, %v3412
      %3414 = vmatprep.mubr.bf16.mxu0 %v1486
      %3415 = vmatmul.mubr.bf16.gmra.mxu0 %v1485
      %v3416 = vpop.f32.mrf.mxu0
      %v3417 = vadd.f32 0.0, %v3416
      %v3418 = vpop.f32.mrf.mxu0
      %v3419 = vadd.f32 0.0, %v3418
      %v3420 = vpop.f32.mrf.mxu0
      %v3421 = vadd.f32 0.0, %v3420
      %v3422 = vpop.f32.mrf.mxu0
      %v3423 = vadd.f32 0.0, %v3422
      %3424 = vmatprep.mubr.bf16.mxu0 %v1488
      %3425 = vmatmul.mubr.bf16.gmra.mxu0 %v1487
      %v3426 = vpop.f32.mrf.mxu0
      %v3427 = vadd.f32 0.0, %v3426
      %v3428 = vpop.f32.mrf.mxu0
      %v3429 = vadd.f32 0.0, %v3428
      %v3430 = vpop.f32.mrf.mxu0
      %v3431 = vadd.f32 0.0, %v3430
      %v3432 = vpop.f32.mrf.mxu0
      %v3433 = vadd.f32 0.0, %v3432
      %3434 = vmatprep.mubr.bf16.mxu0 %v1490
      %3435 = vmatmul.mubr.bf16.gmra.mxu0 %v1489
      %v3436 = vpop.f32.mrf.mxu0
      %v3437 = vadd.f32 0.0, %v3436
      %v3438 = vpop.f32.mrf.mxu0
      %v3439 = vadd.f32 0.0, %v3438
      %v3440 = vpop.f32.mrf.mxu0
      %v3441 = vadd.f32 0.0, %v3440
      %v3442 = vpop.f32.mrf.mxu0
      %v3443 = vadd.f32 0.0, %v3442
      %3444 = vmatprep.mubr.bf16.mxu0 %v1492
      %3445 = vmatmul.mubr.bf16.gmra.mxu0 %v1491
      %v3446 = vpop.f32.mrf.mxu0
      %v3447 = vadd.f32 0.0, %v3446
      %v3448 = vpop.f32.mrf.mxu0
      %v3449 = vadd.f32 0.0, %v3448
      %v3450 = vpop.f32.mrf.mxu0
      %v3451 = vadd.f32 0.0, %v3450
      %v3452 = vpop.f32.mrf.mxu0
      %v3453 = vadd.f32 0.0, %v3452
      %3454 = vdwg.mxu0
      %v3455 = vld [vmem:[%s2] sm:$0xff]
      %v3456 = vld [vmem:[%s2 + $0x8] sm:$0xff]
      %v3457 = vld [vmem:[%s2 + $0x10] sm:$0xff]
      %v3458 = vld [vmem:[%s2 + $0x18] sm:$0xff]
      %v3459 = vld [vmem:[%s2 + $0x20] sm:$0xff]
      %v3460 = vld [vmem:[%s2 + $0x28] sm:$0xff]
      %v3461 = vld [vmem:[%s2 + $0x30] sm:$0xff]
      %v3462 = vld [vmem:[%s2 + $0x38] sm:$0xff]
      %v3463 = vld [vmem:[%s2 + $0x40] sm:$0xff]
      %v3464 = vld [vmem:[%s2 + $0x48] sm:$0xff]
      %v3465 = vld [vmem:[%s2 + $0x50] sm:$0xff]
      %v3466 = vld [vmem:[%s2 + $0x58] sm:$0xff]
      %v3467 = vld [vmem:[%s2 + $0x60] sm:$0xff]
      %v3468 = vld [vmem:[%s2 + $0x68] sm:$0xff]
      %v3469 = vld [vmem:[%s2 + $0x70] sm:$0xff]
      %v3470 = vld [vmem:[%s2 + $0x78] sm:$0xff]
      %v3471 = vld [vmem:[%s2 + $0x80] sm:$0xff]
      %v3472 = vld [vmem:[%s2 + $0x88] sm:$0xff]
      %v3473 = vld [vmem:[%s2 + $0x90] sm:$0xff]
      %v3474 = vld [vmem:[%s2 + $0x98] sm:$0xff]
      %v3475 = vld [vmem:[%s2 + $0xa0] sm:$0xff]
      %v3476 = vld [vmem:[%s2 + $0xa8] sm:$0xff]
      %v3477 = vld [vmem:[%s2 + $0xb0] sm:$0xff]
      %v3478 = vld [vmem:[%s2 + $0xb8] sm:$0xff]
      %v3479 = vld [vmem:[%s2 + $0xc0] sm:$0xff]
      %v3480 = vld [vmem:[%s2 + $0xc8] sm:$0xff]
      %v3481 = vld [vmem:[%s2 + $0xd0] sm:$0xff]
      %v3482 = vld [vmem:[%s2 + $0xd8] sm:$0xff]
      %v3483 = vld [vmem:[%s2 + $0xe0] sm:$0xff]
      %v3484 = vld [vmem:[%s2 + $0xe8] sm:$0xff]
      %v3485 = vld [vmem:[%s2 + $0xf0] sm:$0xff]
      %v3486 = vld [vmem:[%s2 + $0xf8] sm:$0xff]
      %v3487 = vpack.c.bf16 %v3456, %v3455
      %v3488 = vpack.c.bf16 %v3458, %v3457
      %v3489 = vpack.c.bf16 %v3460, %v3459
      %v3490 = vpack.c.bf16 %v3462, %v3461
      %v3491 = vpack.c.bf16 %v3464, %v3463
      %v3492 = vpack.c.bf16 %v3466, %v3465
      %v3493 = vpack.c.bf16 %v3468, %v3467
      %v3494 = vpack.c.bf16 %v3470, %v3469
      %v3495 = vpack.c.bf16 %v3472, %v3471
      %v3496 = vpack.c.bf16 %v3474, %v3473
      %v3497 = vpack.c.bf16 %v3476, %v3475
      %v3498 = vpack.c.bf16 %v3478, %v3477
      %v3499 = vpack.c.bf16 %v3480, %v3479
      %v3500 = vpack.c.bf16 %v3482, %v3481
      %v3501 = vpack.c.bf16 %v3484, %v3483
      %v3502 = vpack.c.bf16 %v3486, %v3485
      %v3503 = vpack.c.bf16 %v1564, %v1560
      %v3504 = vpack.c.bf16 %v1566, %v1562
      %v3505 = vpack.c.bf16 %v1757, %v1753
      %v3506 = vpack.c.bf16 %v1759, %v1755
      %v3507 = vpack.c.bf16 %v1950, %v1946
      %v3508 = vpack.c.bf16 %v1952, %v1948
      %v3509 = vpack.c.bf16 %v2143, %v2139
      %v3510 = vpack.c.bf16 %v2145, %v2141
      %v3511 = vpack.c.bf16 %v2336, %v2332
      %v3512 = vpack.c.bf16 %v2338, %v2334
      %v3513 = vpack.c.bf16 %v2529, %v2525
      %v3514 = vpack.c.bf16 %v2531, %v2527
      %v3515 = vpack.c.bf16 %v2722, %v2718
      %v3516 = vpack.c.bf16 %v2724, %v2720
      %v3517 = vpack.c.bf16 %v2915, %v2911
      %v3518 = vpack.c.bf16 %v2917, %v2913
      %v3519 = vpack.c.bf16 %v3108, %v3104
      %v3520 = vpack.c.bf16 %v3110, %v3106
      %v3521 = vpack.c.bf16 %v3301, %v3297
      %v3522 = vpack.c.bf16 %v3303, %v3299
      %v3523 = vpack.c.bf16 %v1574, %v1570
      %v3524 = vpack.c.bf16 %v1576, %v1572
      %v3525 = vpack.c.bf16 %v1767, %v1763
      %v3526 = vpack.c.bf16 %v1769, %v1765
      %v3527 = vpack.c.bf16 %v1960, %v1956
      %v3528 = vpack.c.bf16 %v1962, %v1958
      %v3529 = vpack.c.bf16 %v2153, %v2149
      %v3530 = vpack.c.bf16 %v2155, %v2151
      %v3531 = vpack.c.bf16 %v2346, %v2342
      %v3532 = vpack.c.bf16 %v2348, %v2344
      %v3533 = vpack.c.bf16 %v2539, %v2535
      %v3534 = vpack.c.bf16 %v2541, %v2537
      %v3535 = vpack.c.bf16 %v2732, %v2728
      %v3536 = vpack.c.bf16 %v2734, %v2730
      %v3537 = vpack.c.bf16 %v2925, %v2921
      %v3538 = vpack.c.bf16 %v2927, %v2923
      %v3539 = vpack.c.bf16 %v3118, %v3114
      %v3540 = vpack.c.bf16 %v3120, %v3116
      %v3541 = vpack.c.bf16 %v3311, %v3307
      %v3542 = vpack.c.bf16 %v3313, %v3309
      %v3543 = vpack.c.bf16 %v1584, %v1580
      %v3544 = vpack.c.bf16 %v1586, %v1582
      %v3545 = vpack.c.bf16 %v1777, %v1773
      %v3546 = vpack.c.bf16 %v1779, %v1775
      %v3547 = vpack.c.bf16 %v1970, %v1966
      %v3548 = vpack.c.bf16 %v1972, %v1968
      %v3549 = vpack.c.bf16 %v2163, %v2159
      %v3550 = vpack.c.bf16 %v2165, %v2161
      %v3551 = vpack.c.bf16 %v2356, %v2352
      %v3552 = vpack.c.bf16 %v2358, %v2354
      %v3553 = vpack.c.bf16 %v2549, %v2545
      %v3554 = vpack.c.bf16 %v2551, %v2547
      %v3555 = vpack.c.bf16 %v2742, %v2738
      %v3556 = vpack.c.bf16 %v2744, %v2740
      %v3557 = vpack.c.bf16 %v2935, %v2931
      %v3558 = vpack.c.bf16 %v2937, %v2933
      %v3559 = vpack.c.bf16 %v3128, %v3124
      %v3560 = vpack.c.bf16 %v3130, %v3126
      %v3561 = vpack.c.bf16 %v3321, %v3317
      %v3562 = vpack.c.bf16 %v3323, %v3319
      %v3563 = vpack.c.bf16 %v1594, %v1590
      %v3564 = vpack.c.bf16 %v1596, %v1592
      %v3565 = vpack.c.bf16 %v1787, %v1783
      %v3566 = vpack.c.bf16 %v1789, %v1785
      %v3567 = vpack.c.bf16 %v1980, %v1976
      %v3568 = vpack.c.bf16 %v1982, %v1978
      %v3569 = vpack.c.bf16 %v2173, %v2169
      %v3570 = vpack.c.bf16 %v2175, %v2171
      %v3571 = vpack.c.bf16 %v2366, %v2362
      %v3572 = vpack.c.bf16 %v2368, %v2364
      %v3573 = vpack.c.bf16 %v2559, %v2555
      %v3574 = vpack.c.bf16 %v2561, %v2557
      %v3575 = vpack.c.bf16 %v2752, %v2748
      %v3576 = vpack.c.bf16 %v2754, %v2750
      %v3577 = vpack.c.bf16 %v2945, %v2941
      %v3578 = vpack.c.bf16 %v2947, %v2943
      %v3579 = vpack.c.bf16 %v3138, %v3134
      %v3580 = vpack.c.bf16 %v3140, %v3136
      %v3581 = vpack.c.bf16 %v3331, %v3327
      %v3582 = vpack.c.bf16 %v3333, %v3329
      %v3583 = vpack.c.bf16 %v1604, %v1600
      %v3584 = vpack.c.bf16 %v1606, %v1602
      %v3585 = vpack.c.bf16 %v1797, %v1793
      %v3586 = vpack.c.bf16 %v1799, %v1795
      %v3587 = vpack.c.bf16 %v1990, %v1986
      %v3588 = vpack.c.bf16 %v1992, %v1988
      %v3589 = vpack.c.bf16 %v2183, %v2179
      %v3590 = vpack.c.bf16 %v2185, %v2181
      %v3591 = vpack.c.bf16 %v2376, %v2372
      %v3592 = vpack.c.bf16 %v2378, %v2374
      %v3593 = vpack.c.bf16 %v2569, %v2565
      %v3594 = vpack.c.bf16 %v2571, %v2567
      %v3595 = vpack.c.bf16 %v2762, %v2758
      %v3596 = vpack.c.bf16 %v2764, %v2760
      %v3597 = vpack.c.bf16 %v2955, %v2951
      %v3598 = vpack.c.bf16 %v2957, %v2953
      %v3599 = vpack.c.bf16 %v3148, %v3144
      %v3600 = vpack.c.bf16 %v3150, %v3146
      %v3601 = vpack.c.bf16 %v3341, %v3337
      %v3602 = vpack.c.bf16 %v3343, %v3339
      %v3603 = vpack.c.bf16 %v1614, %v1610
      %v3604 = vpack.c.bf16 %v1616, %v1612
      %v3605 = vpack.c.bf16 %v1807, %v1803
      %v3606 = vpack.c.bf16 %v1809, %v1805
      %v3607 = vpack.c.bf16 %v2000, %v1996
      %v3608 = vpack.c.bf16 %v2002, %v1998
      %v3609 = vpack.c.bf16 %v2193, %v2189
      %v3610 = vpack.c.bf16 %v2195, %v2191
      %v3611 = vpack.c.bf16 %v2386, %v2382
      %v3612 = vpack.c.bf16 %v2388, %v2384
      %v3613 = vpack.c.bf16 %v2579, %v2575
      %v3614 = vpack.c.bf16 %v2581, %v2577
      %v3615 = vpack.c.bf16 %v2772, %v2768
      %v3616 = vpack.c.bf16 %v2774, %v2770
      %v3617 = vpack.c.bf16 %v2965, %v2961
      %v3618 = vpack.c.bf16 %v2967, %v2963
      %v3619 = vpack.c.bf16 %v3158, %v3154
      %v3620 = vpack.c.bf16 %v3160, %v3156
      %v3621 = vpack.c.bf16 %v3351, %v3347
      %v3622 = vpack.c.bf16 %v3353, %v3349
      %v3623 = vpack.c.bf16 %v1624, %v1620
      %v3624 = vpack.c.bf16 %v1626, %v1622
      %v3625 = vpack.c.bf16 %v1817, %v1813
      %v3626 = vpack.c.bf16 %v1819, %v1815
      %v3627 = vpack.c.bf16 %v2010, %v2006
      %v3628 = vpack.c.bf16 %v2012, %v2008
      %v3629 = vpack.c.bf16 %v2203, %v2199
      %v3630 = vpack.c.bf16 %v2205, %v2201
      %v3631 = vpack.c.bf16 %v2396, %v2392
      %v3632 = vpack.c.bf16 %v2398, %v2394
      %v3633 = vpack.c.bf16 %v2589, %v2585
      %v3634 = vpack.c.bf16 %v2591, %v2587
      %v3635 = vpack.c.bf16 %v2782, %v2778
      %v3636 = vpack.c.bf16 %v2784, %v2780
      %v3637 = vpack.c.bf16 %v2975, %v2971
      %v3638 = vpack.c.bf16 %v2977, %v2973
      %v3639 = vpack.c.bf16 %v3168, %v3164
      %v3640 = vpack.c.bf16 %v3170, %v3166
      %v3641 = vpack.c.bf16 %v3361, %v3357
      %v3642 = vpack.c.bf16 %v3363, %v3359
      %v3643 = vpack.c.bf16 %v1634, %v1630
      %v3644 = vpack.c.bf16 %v1636, %v1632
      %v3645 = vpack.c.bf16 %v1827, %v1823
      %v3646 = vpack.c.bf16 %v1829, %v1825
      %v3647 = vpack.c.bf16 %v2020, %v2016
      %v3648 = vpack.c.bf16 %v2022, %v2018
      %v3649 = vpack.c.bf16 %v2213, %v2209
      %v3650 = vpack.c.bf16 %v2215, %v2211
      %v3651 = vpack.c.bf16 %v2406, %v2402
      %v3652 = vpack.c.bf16 %v2408, %v2404
      %v3653 = vpack.c.bf16 %v2599, %v2595
      %v3654 = vpack.c.bf16 %v2601, %v2597
      %v3655 = vpack.c.bf16 %v2792, %v2788
      %v3656 = vpack.c.bf16 %v2794, %v2790
      %v3657 = vpack.c.bf16 %v2985, %v2981
      %v3658 = vpack.c.bf16 %v2987, %v2983
      %v3659 = vpack.c.bf16 %v3178, %v3174
      %v3660 = vpack.c.bf16 %v3180, %v3176
      %v3661 = vpack.c.bf16 %v3371, %v3367
      %v3662 = vpack.c.bf16 %v3373, %v3369
      %v3663 = vpack.c.bf16 %v1644, %v1640
      %v3664 = vpack.c.bf16 %v1646, %v1642
      %v3665 = vpack.c.bf16 %v1837, %v1833
      %v3666 = vpack.c.bf16 %v1839, %v1835
      %v3667 = vpack.c.bf16 %v2030, %v2026
      %v3668 = vpack.c.bf16 %v2032, %v2028
      %v3669 = vpack.c.bf16 %v2223, %v2219
      %v3670 = vpack.c.bf16 %v2225, %v2221
      %v3671 = vpack.c.bf16 %v2416, %v2412
      %v3672 = vpack.c.bf16 %v2418, %v2414
      %v3673 = vpack.c.bf16 %v2609, %v2605
      %v3674 = vpack.c.bf16 %v2611, %v2607
      %v3675 = vpack.c.bf16 %v2802, %v2798
      %v3676 = vpack.c.bf16 %v2804, %v2800
      %v3677 = vpack.c.bf16 %v2995, %v2991
      %v3678 = vpack.c.bf16 %v2997, %v2993
      %v3679 = vpack.c.bf16 %v3188, %v3184
      %v3680 = vpack.c.bf16 %v3190, %v3186
      %v3681 = vpack.c.bf16 %v3381, %v3377
      %v3682 = vpack.c.bf16 %v3383, %v3379
      %v3683 = vpack.c.bf16 %v1654, %v1650
      %v3684 = vpack.c.bf16 %v1656, %v1652
      %v3685 = vpack.c.bf16 %v1847, %v1843
      %v3686 = vpack.c.bf16 %v1849, %v1845
      %v3687 = vpack.c.bf16 %v2040, %v2036
      %v3688 = vpack.c.bf16 %v2042, %v2038
      %v3689 = vpack.c.bf16 %v2233, %v2229
      %v3690 = vpack.c.bf16 %v2235, %v2231
      %v3691 = vpack.c.bf16 %v2426, %v2422
      %v3692 = vpack.c.bf16 %v2428, %v2424
      %v3693 = vpack.c.bf16 %v2619, %v2615
      %v3694 = vpack.c.bf16 %v2621, %v2617
      %v3695 = vpack.c.bf16 %v2812, %v2808
      %v3696 = vpack.c.bf16 %v2814, %v2810
      %v3697 = vpack.c.bf16 %v3005, %v3001
      %v3698 = vpack.c.bf16 %v3007, %v3003
      %v3699 = vpack.c.bf16 %v3198, %v3194
      %v3700 = vpack.c.bf16 %v3200, %v3196
      %v3701 = vpack.c.bf16 %v3391, %v3387
      %v3702 = vpack.c.bf16 %v3393, %v3389
      %v3703 = vpack.c.bf16 %v1664, %v1660
      %v3704 = vpack.c.bf16 %v1666, %v1662
      %v3705 = vpack.c.bf16 %v1857, %v1853
      %v3706 = vpack.c.bf16 %v1859, %v1855
      %v3707 = vpack.c.bf16 %v2050, %v2046
      %v3708 = vpack.c.bf16 %v2052, %v2048
      %v3709 = vpack.c.bf16 %v2243, %v2239
      %v3710 = vpack.c.bf16 %v2245, %v2241
      %v3711 = vpack.c.bf16 %v2436, %v2432
      %v3712 = vpack.c.bf16 %v2438, %v2434
      %v3713 = vpack.c.bf16 %v2629, %v2625
      %v3714 = vpack.c.bf16 %v2631, %v2627
      %v3715 = vpack.c.bf16 %v2822, %v2818
      %v3716 = vpack.c.bf16 %v2824, %v2820
      %v3717 = vpack.c.bf16 %v3015, %v3011
      %v3718 = vpack.c.bf16 %v3017, %v3013
      %v3719 = vpack.c.bf16 %v3208, %v3204
      %v3720 = vpack.c.bf16 %v3210, %v3206
      %v3721 = vpack.c.bf16 %v3401, %v3397
      %v3722 = vpack.c.bf16 %v3403, %v3399
      %v3723 = vpack.c.bf16 %v1674, %v1670
      %v3724 = vpack.c.bf16 %v1676, %v1672
      %v3725 = vpack.c.bf16 %v1867, %v1863
      %v3726 = vpack.c.bf16 %v1869, %v1865
      %v3727 = vpack.c.bf16 %v2060, %v2056
      %v3728 = vpack.c.bf16 %v2062, %v2058
      %v3729 = vpack.c.bf16 %v2253, %v2249
      %v3730 = vpack.c.bf16 %v2255, %v2251
      %v3731 = vpack.c.bf16 %v2446, %v2442
      %v3732 = vpack.c.bf16 %v2448, %v2444
      %v3733 = vpack.c.bf16 %v2639, %v2635
      %v3734 = vpack.c.bf16 %v2641, %v2637
      %v3735 = vpack.c.bf16 %v2832, %v2828
      %v3736 = vpack.c.bf16 %v2834, %v2830
      %v3737 = vpack.c.bf16 %v3025, %v3021
      %v3738 = vpack.c.bf16 %v3027, %v3023
      %v3739 = vpack.c.bf16 %v3218, %v3214
      %v3740 = vpack.c.bf16 %v3220, %v3216
      %v3741 = vpack.c.bf16 %v3411, %v3407
      %v3742 = vpack.c.bf16 %v3413, %v3409
      %v3743 = vpack.c.bf16 %v1684, %v1680
      %v3744 = vpack.c.bf16 %v1686, %v1682
      %v3745 = vpack.c.bf16 %v1877, %v1873
      %v3746 = vpack.c.bf16 %v1879, %v1875
      %v3747 = vpack.c.bf16 %v2070, %v2066
      %v3748 = vpack.c.bf16 %v2072, %v2068
      %v3749 = vpack.c.bf16 %v2263, %v2259
      %v3750 = vpack.c.bf16 %v2265, %v2261
      %v3751 = vpack.c.bf16 %v2456, %v2452
      %v3752 = vpack.c.bf16 %v2458, %v2454
      %v3753 = vpack.c.bf16 %v2649, %v2645
      %v3754 = vpack.c.bf16 %v2651, %v2647
      %v3755 = vpack.c.bf16 %v2842, %v2838
      %v3756 = vpack.c.bf16 %v2844, %v2840
      %v3757 = vpack.c.bf16 %v3035, %v3031
      %v3758 = vpack.c.bf16 %v3037, %v3033
      %v3759 = vpack.c.bf16 %v3228, %v3224
      %v3760 = vpack.c.bf16 %v3230, %v3226
      %v3761 = vpack.c.bf16 %v3421, %v3417
      %v3762 = vpack.c.bf16 %v3423, %v3419
      %v3763 = vpack.c.bf16 %v1694, %v1690
      %v3764 = vpack.c.bf16 %v1696, %v1692
      %v3765 = vpack.c.bf16 %v1887, %v1883
      %v3766 = vpack.c.bf16 %v1889, %v1885
      %v3767 = vpack.c.bf16 %v2080, %v2076
      %v3768 = vpack.c.bf16 %v2082, %v2078
      %v3769 = vpack.c.bf16 %v2273, %v2269
      %v3770 = vpack.c.bf16 %v2275, %v2271
      %v3771 = vpack.c.bf16 %v2466, %v2462
      %v3772 = vpack.c.bf16 %v2468, %v2464
      %v3773 = vpack.c.bf16 %v2659, %v2655
      %v3774 = vpack.c.bf16 %v2661, %v2657
      %v3775 = vpack.c.bf16 %v2852, %v2848
      %v3776 = vpack.c.bf16 %v2854, %v2850
      %v3777 = vpack.c.bf16 %v3045, %v3041
      %v3778 = vpack.c.bf16 %v3047, %v3043
      %v3779 = vpack.c.bf16 %v3238, %v3234
      %v3780 = vpack.c.bf16 %v3240, %v3236
      %v3781 = vpack.c.bf16 %v3431, %v3427
      %v3782 = vpack.c.bf16 %v3433, %v3429
      %v3783 = vpack.c.bf16 %v1704, %v1700
      %v3784 = vpack.c.bf16 %v1706, %v1702
      %v3785 = vpack.c.bf16 %v1897, %v1893
      %v3786 = vpack.c.bf16 %v1899, %v1895
      %v3787 = vpack.c.bf16 %v2090, %v2086
      %v3788 = vpack.c.bf16 %v2092, %v2088
      %v3789 = vpack.c.bf16 %v2283, %v2279
      %v3790 = vpack.c.bf16 %v2285, %v2281
      %v3791 = vpack.c.bf16 %v2476, %v2472
      %v3792 = vpack.c.bf16 %v2478, %v2474
      %v3793 = vpack.c.bf16 %v2669, %v2665
      %v3794 = vpack.c.bf16 %v2671, %v2667
      %v3795 = vpack.c.bf16 %v2862, %v2858
      %v3796 = vpack.c.bf16 %v2864, %v2860
      %v3797 = vpack.c.bf16 %v3055, %v3051
      %v3798 = vpack.c.bf16 %v3057, %v3053
      %v3799 = vpack.c.bf16 %v3248, %v3244
      %v3800 = vpack.c.bf16 %v3250, %v3246
      %v3801 = vpack.c.bf16 %v3441, %v3437
      %v3802 = vpack.c.bf16 %v3443, %v3439
      %v3803 = vpack.c.bf16 %v1714, %v1710
      %v3804 = vpack.c.bf16 %v1716, %v1712
      %v3805 = vpack.c.bf16 %v1907, %v1903
      %v3806 = vpack.c.bf16 %v1909, %v1905
      %v3807 = vpack.c.bf16 %v2100, %v2096
      %v3808 = vpack.c.bf16 %v2102, %v2098
      %v3809 = vpack.c.bf16 %v2293, %v2289
      %v3810 = vpack.c.bf16 %v2295, %v2291
      %v3811 = vpack.c.bf16 %v2486, %v2482
      %v3812 = vpack.c.bf16 %v2488, %v2484
      %v3813 = vpack.c.bf16 %v2679, %v2675
      %v3814 = vpack.c.bf16 %v2681, %v2677
      %v3815 = vpack.c.bf16 %v2872, %v2868
      %v3816 = vpack.c.bf16 %v2874, %v2870
      %v3817 = vpack.c.bf16 %v3065, %v3061
      %v3818 = vpack.c.bf16 %v3067, %v3063
      %v3819 = vpack.c.bf16 %v3258, %v3254
      %v3820 = vpack.c.bf16 %v3260, %v3256
      %v3821 = vpack.c.bf16 %v3451, %v3447
      %v3822 = vpack.c.bf16 %v3453, %v3449
      %3824 = vset.pattern.permute.xlu0 0
      %3825 = vperm.xlu0 %3824, %v3487
      %v3826 = vpop.permute.xlu0 %3825
      %3829 = vset.pattern.permute.xlu0 0
      %3830 = vperm.xlu0 %3829, %v3488
      %v3831 = vpop.permute.xlu0 %3830
      %3834 = vset.pattern.permute.xlu0 0
      %3835 = vperm.xlu0 %3834, %v3489
      %v3836 = vpop.permute.xlu0 %3835
      %3839 = vset.pattern.permute.xlu0 0
      %3840 = vperm.xlu0 %3839, %v3490
      %v3841 = vpop.permute.xlu0 %3840
      %3844 = vset.pattern.permute.xlu0 0
      %3845 = vperm.xlu0 %3844, %v3491
      %v3846 = vpop.permute.xlu0 %3845
      %3849 = vset.pattern.permute.xlu0 0
      %3850 = vperm.xlu0 %3849, %v3492
      %v3851 = vpop.permute.xlu0 %3850
      %3854 = vset.pattern.permute.xlu0 0
      %3855 = vperm.xlu0 %3854, %v3493
      %v3856 = vpop.permute.xlu0 %3855
      %3859 = vset.pattern.permute.xlu0 0
      %3860 = vperm.xlu0 %3859, %v3494
      %v3861 = vpop.permute.xlu0 %3860
      %3864 = vset.pattern.permute.xlu0 0
      %3865 = vperm.xlu0 %3864, %v3495
      %v3866 = vpop.permute.xlu0 %3865
      %3869 = vset.pattern.permute.xlu0 0
      %3870 = vperm.xlu0 %3869, %v3496
      %v3871 = vpop.permute.xlu0 %3870
      %3874 = vset.pattern.permute.xlu0 0
      %3875 = vperm.xlu0 %3874, %v3497
      %v3876 = vpop.permute.xlu0 %3875
      %3879 = vset.pattern.permute.xlu0 0
      %3880 = vperm.xlu0 %3879, %v3498
      %v3881 = vpop.permute.xlu0 %3880
      %3884 = vset.pattern.permute.xlu0 0
      %3885 = vperm.xlu0 %3884, %v3499
      %v3886 = vpop.permute.xlu0 %3885
      %3889 = vset.pattern.permute.xlu0 0
      %3890 = vperm.xlu0 %3889, %v3500
      %v3891 = vpop.permute.xlu0 %3890
      %3894 = vset.pattern.permute.xlu0 0
      %3895 = vperm.xlu0 %3894, %v3501
      %v3896 = vpop.permute.xlu0 %3895
      %3899 = vset.pattern.permute.xlu0 0
      %3900 = vperm.xlu0 %3899, %v3502
      %v3901 = vpop.permute.xlu0 %3900
      %v3903 = vadd.bf16 %v3503, %v3826
      %v3904 = vadd.bf16 %v3504, %v3826
      %v3905 = vadd.bf16 %v3505, %v3826
      %v3906 = vadd.bf16 %v3506, %v3826
      %v3907 = vadd.bf16 %v3507, %v3826
      %v3908 = vadd.bf16 %v3508, %v3826
      %v3909 = vadd.bf16 %v3509, %v3826
      %v3910 = vadd.bf16 %v3510, %v3826
      %v3911 = vadd.bf16 %v3511, %v3826
      %v3912 = vadd.bf16 %v3512, %v3826
      %v3913 = vadd.bf16 %v3513, %v3826
      %v3914 = vadd.bf16 %v3514, %v3826
      %v3915 = vadd.bf16 %v3515, %v3826
      %v3916 = vadd.bf16 %v3516, %v3826
      %v3917 = vadd.bf16 %v3517, %v3826
      %v3918 = vadd.bf16 %v3518, %v3826
      %v3919 = vadd.bf16 %v3519, %v3826
      %v3920 = vadd.bf16 %v3520, %v3826
      %v3921 = vadd.bf16 %v3521, %v3826
      %v3922 = vadd.bf16 %v3522, %v3826
      %v3923 = vadd.bf16 %v3523, %v3831
      %v3924 = vadd.bf16 %v3524, %v3831
      %v3925 = vadd.bf16 %v3525, %v3831
      %v3926 = vadd.bf16 %v3526, %v3831
      %v3927 = vadd.bf16 %v3527, %v3831
      %v3928 = vadd.bf16 %v3528, %v3831
      %v3929 = vadd.bf16 %v3529, %v3831
      %v3930 = vadd.bf16 %v3530, %v3831
      %v3931 = vadd.bf16 %v3531, %v3831
      %v3932 = vadd.bf16 %v3532, %v3831
      %v3933 = vadd.bf16 %v3533, %v3831
      %v3934 = vadd.bf16 %v3534, %v3831
      %v3935 = vadd.bf16 %v3535, %v3831
      %v3936 = vadd.bf16 %v3536, %v3831
      %v3937 = vadd.bf16 %v3537, %v3831
      %v3938 = vadd.bf16 %v3538, %v3831
      %v3939 = vadd.bf16 %v3539, %v3831
      %v3940 = vadd.bf16 %v3540, %v3831
      %v3941 = vadd.bf16 %v3541, %v3831
      %v3942 = vadd.bf16 %v3542, %v3831
      %v3943 = vadd.bf16 %v3543, %v3836
      %v3944 = vadd.bf16 %v3544, %v3836
      %v3945 = vadd.bf16 %v3545, %v3836
      %v3946 = vadd.bf16 %v3546, %v3836
      %v3947 = vadd.bf16 %v3547, %v3836
      %v3948 = vadd.bf16 %v3548, %v3836
      %v3949 = vadd.bf16 %v3549, %v3836
      %v3950 = vadd.bf16 %v3550, %v3836
      %v3951 = vadd.bf16 %v3551, %v3836
      %v3952 = vadd.bf16 %v3552, %v3836
      %v3953 = vadd.bf16 %v3553, %v3836
      %v3954 = vadd.bf16 %v3554, %v3836
      %v3955 = vadd.bf16 %v3555, %v3836
      %v3956 = vadd.bf16 %v3556, %v3836
      %v3957 = vadd.bf16 %v3557, %v3836
      %v3958 = vadd.bf16 %v3558, %v3836
      %v3959 = vadd.bf16 %v3559, %v3836
      %v3960 = vadd.bf16 %v3560, %v3836
      %v3961 = vadd.bf16 %v3561, %v3836
      %v3962 = vadd.bf16 %v3562, %v3836
      %v3963 = vadd.bf16 %v3563, %v3841
      %v3964 = vadd.bf16 %v3564, %v3841
      %v3965 = vadd.bf16 %v3565, %v3841
      %v3966 = vadd.bf16 %v3566, %v3841
      %v3967 = vadd.bf16 %v3567, %v3841
      %v3968 = vadd.bf16 %v3568, %v3841
      %v3969 = vadd.bf16 %v3569, %v3841
      %v3970 = vadd.bf16 %v3570, %v3841
      %v3971 = vadd.bf16 %v3571, %v3841
      %v3972 = vadd.bf16 %v3572, %v3841
      %v3973 = vadd.bf16 %v3573, %v3841
      %v3974 = vadd.bf16 %v3574, %v3841
      %v3975 = vadd.bf16 %v3575, %v3841
      %v3976 = vadd.bf16 %v3576, %v3841
      %v3977 = vadd.bf16 %v3577, %v3841
      %v3978 = vadd.bf16 %v3578, %v3841
      %v3979 = vadd.bf16 %v3579, %v3841
      %v3980 = vadd.bf16 %v3580, %v3841
      %v3981 = vadd.bf16 %v3581, %v3841
      %v3982 = vadd.bf16 %v3582, %v3841
      %v3983 = vadd.bf16 %v3583, %v3846
      %v3984 = vadd.bf16 %v3584, %v3846
      %v3985 = vadd.bf16 %v3585, %v3846
      %v3986 = vadd.bf16 %v3586, %v3846
      %v3987 = vadd.bf16 %v3587, %v3846
      %v3988 = vadd.bf16 %v3588, %v3846
      %v3989 = vadd.bf16 %v3589, %v3846
      %v3990 = vadd.bf16 %v3590, %v3846
      %v3991 = vadd.bf16 %v3591, %v3846
      %v3992 = vadd.bf16 %v3592, %v3846
      %v3993 = vadd.bf16 %v3593, %v3846
      %v3994 = vadd.bf16 %v3594, %v3846
      %v3995 = vadd.bf16 %v3595, %v3846
      %v3996 = vadd.bf16 %v3596, %v3846
      %v3997 = vadd.bf16 %v3597, %v3846
      %v3998 = vadd.bf16 %v3598, %v3846
      %v3999 = vadd.bf16 %v3599, %v3846
      %v4000 = vadd.bf16 %v3600, %v3846
      %v4001 = vadd.bf16 %v3601, %v3846
      %v4002 = vadd.bf16 %v3602, %v3846
      %v4003 = vadd.bf16 %v3603, %v3851
      %v4004 = vadd.bf16 %v3604, %v3851
      %v4005 = vadd.bf16 %v3605, %v3851
      %v4006 = vadd.bf16 %v3606, %v3851
      %v4007 = vadd.bf16 %v3607, %v3851
      %v4008 = vadd.bf16 %v3608, %v3851
      %v4009 = vadd.bf16 %v3609, %v3851
      %v4010 = vadd.bf16 %v3610, %v3851
      %v4011 = vadd.bf16 %v3611, %v3851
      %v4012 = vadd.bf16 %v3612, %v3851
      %v4013 = vadd.bf16 %v3613, %v3851
      %v4014 = vadd.bf16 %v3614, %v3851
      %v4015 = vadd.bf16 %v3615, %v3851
      %v4016 = vadd.bf16 %v3616, %v3851
      %v4017 = vadd.bf16 %v3617, %v3851
      %v4018 = vadd.bf16 %v3618, %v3851
      %v4019 = vadd.bf16 %v3619, %v3851
      %v4020 = vadd.bf16 %v3620, %v3851
      %v4021 = vadd.bf16 %v3621, %v3851
      %v4022 = vadd.bf16 %v3622, %v3851
      %v4023 = vadd.bf16 %v3623, %v3856
      %v4024 = vadd.bf16 %v3624, %v3856
      %v4025 = vadd.bf16 %v3625, %v3856
      %v4026 = vadd.bf16 %v3626, %v3856
      %v4027 = vadd.bf16 %v3627, %v3856
      %v4028 = vadd.bf16 %v3628, %v3856
      %v4029 = vadd.bf16 %v3629, %v3856
      %v4030 = vadd.bf16 %v3630, %v3856
      %v4031 = vadd.bf16 %v3631, %v3856
      %v4032 = vadd.bf16 %v3632, %v3856
      %v4033 = vadd.bf16 %v3633, %v3856
      %v4034 = vadd.bf16 %v3634, %v3856
      %v4035 = vadd.bf16 %v3635, %v3856
      %v4036 = vadd.bf16 %v3636, %v3856
      %v4037 = vadd.bf16 %v3637, %v3856
      %v4038 = vadd.bf16 %v3638, %v3856
      %v4039 = vadd.bf16 %v3639, %v3856
      %v4040 = vadd.bf16 %v3640, %v3856
      %v4041 = vadd.bf16 %v3641, %v3856
      %v4042 = vadd.bf16 %v3642, %v3856
      %v4043 = vadd.bf16 %v3643, %v3861
      %v4044 = vadd.bf16 %v3644, %v3861
      %v4045 = vadd.bf16 %v3645, %v3861
      %v4046 = vadd.bf16 %v3646, %v3861
      %v4047 = vadd.bf16 %v3647, %v3861
      %v4048 = vadd.bf16 %v3648, %v3861
      %v4049 = vadd.bf16 %v3649, %v3861
      %v4050 = vadd.bf16 %v3650, %v3861
      %v4051 = vadd.bf16 %v3651, %v3861
      %v4052 = vadd.bf16 %v3652, %v3861
      %v4053 = vadd.bf16 %v3653, %v3861
      %v4054 = vadd.bf16 %v3654, %v3861
      %v4055 = vadd.bf16 %v3655, %v3861
      %v4056 = vadd.bf16 %v3656, %v3861
      %v4057 = vadd.bf16 %v3657, %v3861
      %v4058 = vadd.bf16 %v3658, %v3861
      %v4059 = vadd.bf16 %v3659, %v3861
      %v4060 = vadd.bf16 %v3660, %v3861
      %v4061 = vadd.bf16 %v3661, %v3861
      %v4062 = vadd.bf16 %v3662, %v3861
      %v4063 = vadd.bf16 %v3663, %v3866
      %v4064 = vadd.bf16 %v3664, %v3866
      %v4065 = vadd.bf16 %v3665, %v3866
      %v4066 = vadd.bf16 %v3666, %v3866
      %v4067 = vadd.bf16 %v3667, %v3866
      %v4068 = vadd.bf16 %v3668, %v3866
      %v4069 = vadd.bf16 %v3669, %v3866
      %v4070 = vadd.bf16 %v3670, %v3866
      %v4071 = vadd.bf16 %v3671, %v3866
      %v4072 = vadd.bf16 %v3672, %v3866
      %v4073 = vadd.bf16 %v3673, %v3866
      %v4074 = vadd.bf16 %v3674, %v3866
      %v4075 = vadd.bf16 %v3675, %v3866
      %v4076 = vadd.bf16 %v3676, %v3866
      %v4077 = vadd.bf16 %v3677, %v3866
      %v4078 = vadd.bf16 %v3678, %v3866
      %v4079 = vadd.bf16 %v3679, %v3866
      %v4080 = vadd.bf16 %v3680, %v3866
      %v4081 = vadd.bf16 %v3681, %v3866
      %v4082 = vadd.bf16 %v3682, %v3866
      %v4083 = vadd.bf16 %v3683, %v3871
      %v4084 = vadd.bf16 %v3684, %v3871
      %v4085 = vadd.bf16 %v3685, %v3871
      %v4086 = vadd.bf16 %v3686, %v3871
      %v4087 = vadd.bf16 %v3687, %v3871
      %v4088 = vadd.bf16 %v3688, %v3871
      %v4089 = vadd.bf16 %v3689, %v3871
      %v4090 = vadd.bf16 %v3690, %v3871
      %v4091 = vadd.bf16 %v3691, %v3871
      %v4092 = vadd.bf16 %v3692, %v3871
      %v4093 = vadd.bf16 %v3693, %v3871
      %v4094 = vadd.bf16 %v3694, %v3871
      %v4095 = vadd.bf16 %v3695, %v3871
      %v4096 = vadd.bf16 %v3696, %v3871
      %v4097 = vadd.bf16 %v3697, %v3871
      %v4098 = vadd.bf16 %v3698, %v3871
      %v4099 = vadd.bf16 %v3699, %v3871
      %v4100 = vadd.bf16 %v3700, %v3871
      %v4101 = vadd.bf16 %v3701, %v3871
      %v4102 = vadd.bf16 %v3702, %v3871
      %v4103 = vadd.bf16 %v3703, %v3876
      %v4104 = vadd.bf16 %v3704, %v3876
      %v4105 = vadd.bf16 %v3705, %v3876
      %v4106 = vadd.bf16 %v3706, %v3876
      %v4107 = vadd.bf16 %v3707, %v3876
      %v4108 = vadd.bf16 %v3708, %v3876
      %v4109 = vadd.bf16 %v3709, %v3876
      %v4110 = vadd.bf16 %v3710, %v3876
      %v4111 = vadd.bf16 %v3711, %v3876
      %v4112 = vadd.bf16 %v3712, %v3876
      %v4113 = vadd.bf16 %v3713, %v3876
      %v4114 = vadd.bf16 %v3714, %v3876
      %v4115 = vadd.bf16 %v3715, %v3876
      %v4116 = vadd.bf16 %v3716, %v3876
      %v4117 = vadd.bf16 %v3717, %v3876
      %v4118 = vadd.bf16 %v3718, %v3876
      %v4119 = vadd.bf16 %v3719, %v3876
      %v4120 = vadd.bf16 %v3720, %v3876
      %v4121 = vadd.bf16 %v3721, %v3876
      %v4122 = vadd.bf16 %v3722, %v3876
      %v4123 = vadd.bf16 %v3723, %v3881
      %v4124 = vadd.bf16 %v3724, %v3881
      %v4125 = vadd.bf16 %v3725, %v3881
      %v4126 = vadd.bf16 %v3726, %v3881
      %v4127 = vadd.bf16 %v3727, %v3881
      %v4128 = vadd.bf16 %v3728, %v3881
      %v4129 = vadd.bf16 %v3729, %v3881
      %v4130 = vadd.bf16 %v3730, %v3881
      %v4131 = vadd.bf16 %v3731, %v3881
      %v4132 = vadd.bf16 %v3732, %v3881
      %v4133 = vadd.bf16 %v3733, %v3881
      %v4134 = vadd.bf16 %v3734, %v3881
      %v4135 = vadd.bf16 %v3735, %v3881
      %v4136 = vadd.bf16 %v3736, %v3881
      %v4137 = vadd.bf16 %v3737, %v3881
      %v4138 = vadd.bf16 %v3738, %v3881
      %v4139 = vadd.bf16 %v3739, %v3881
      %v4140 = vadd.bf16 %v3740, %v3881
      %v4141 = vadd.bf16 %v3741, %v3881
      %v4142 = vadd.bf16 %v3742, %v3881
      %v4143 = vadd.bf16 %v3743, %v3886
      %v4144 = vadd.bf16 %v3744, %v3886
      %v4145 = vadd.bf16 %v3745, %v3886
      %v4146 = vadd.bf16 %v3746, %v3886
      %v4147 = vadd.bf16 %v3747, %v3886
      %v4148 = vadd.bf16 %v3748, %v3886
      %v4149 = vadd.bf16 %v3749, %v3886
      %v4150 = vadd.bf16 %v3750, %v3886
      %v4151 = vadd.bf16 %v3751, %v3886
      %v4152 = vadd.bf16 %v3752, %v3886
      %v4153 = vadd.bf16 %v3753, %v3886
      %v4154 = vadd.bf16 %v3754, %v3886
      %v4155 = vadd.bf16 %v3755, %v3886
      %v4156 = vadd.bf16 %v3756, %v3886
      %v4157 = vadd.bf16 %v3757, %v3886
      %v4158 = vadd.bf16 %v3758, %v3886
      %v4159 = vadd.bf16 %v3759, %v3886
      %v4160 = vadd.bf16 %v3760, %v3886
      %v4161 = vadd.bf16 %v3761, %v3886
      %v4162 = vadd.bf16 %v3762, %v3886
      %v4163 = vadd.bf16 %v3763, %v3891
      %v4164 = vadd.bf16 %v3764, %v3891
      %v4165 = vadd.bf16 %v3765, %v3891
      %v4166 = vadd.bf16 %v3766, %v3891
      %v4167 = vadd.bf16 %v3767, %v3891
      %v4168 = vadd.bf16 %v3768, %v3891
      %v4169 = vadd.bf16 %v3769, %v3891
      %v4170 = vadd.bf16 %v3770, %v3891
      %v4171 = vadd.bf16 %v3771, %v3891
      %v4172 = vadd.bf16 %v3772, %v3891
      %v4173 = vadd.bf16 %v3773, %v3891
      %v4174 = vadd.bf16 %v3774, %v3891
      %v4175 = vadd.bf16 %v3775, %v3891
      %v4176 = vadd.bf16 %v3776, %v3891
      %v4177 = vadd.bf16 %v3777, %v3891
      %v4178 = vadd.bf16 %v3778, %v3891
      %v4179 = vadd.bf16 %v3779, %v3891
      %v4180 = vadd.bf16 %v3780, %v3891
      %v4181 = vadd.bf16 %v3781, %v3891
      %v4182 = vadd.bf16 %v3782, %v3891
      %v4183 = vadd.bf16 %v3783, %v3896
      %v4184 = vadd.bf16 %v3784, %v3896
      %v4185 = vadd.bf16 %v3785, %v3896
      %v4186 = vadd.bf16 %v3786, %v3896
      %v4187 = vadd.bf16 %v3787, %v3896
      %v4188 = vadd.bf16 %v3788, %v3896
      %v4189 = vadd.bf16 %v3789, %v3896
      %v4190 = vadd.bf16 %v3790, %v3896
      %v4191 = vadd.bf16 %v3791, %v3896
      %v4192 = vadd.bf16 %v3792, %v3896
      %v4193 = vadd.bf16 %v3793, %v3896
      %v4194 = vadd.bf16 %v3794, %v3896
      %v4195 = vadd.bf16 %v3795, %v3896
      %v4196 = vadd.bf16 %v3796, %v3896
      %v4197 = vadd.bf16 %v3797, %v3896
      %v4198 = vadd.bf16 %v3798, %v3896
      %v4199 = vadd.bf16 %v3799, %v3896
      %v4200 = vadd.bf16 %v3800, %v3896
      %v4201 = vadd.bf16 %v3801, %v3896
      %v4202 = vadd.bf16 %v3802, %v3896
      %v4203 = vadd.bf16 %v3803, %v3901
      %v4204 = vadd.bf16 %v3804, %v3901
      %v4205 = vadd.bf16 %v3805, %v3901
      %v4206 = vadd.bf16 %v3806, %v3901
      %v4207 = vadd.bf16 %v3807, %v3901
      %v4208 = vadd.bf16 %v3808, %v3901
      %v4209 = vadd.bf16 %v3809, %v3901
      %v4210 = vadd.bf16 %v3810, %v3901
      %v4211 = vadd.bf16 %v3811, %v3901
      %v4212 = vadd.bf16 %v3812, %v3901
      %v4213 = vadd.bf16 %v3813, %v3901
      %v4214 = vadd.bf16 %v3814, %v3901
      %v4215 = vadd.bf16 %v3815, %v3901
      %v4216 = vadd.bf16 %v3816, %v3901
      %v4217 = vadd.bf16 %v3817, %v3901
      %v4218 = vadd.bf16 %v3818, %v3901
      %v4219 = vadd.bf16 %v3819, %v3901
      %v4220 = vadd.bf16 %v3820, %v3901
      %v4221 = vadd.bf16 %v3821, %v3901
      %v4222 = vadd.bf16 %v3822, %v3901
      %v4223 = vmax.bf16 %v3903, 0
      %v4224 = vmax.bf16 %v3904, 0
      %v4225 = vmax.bf16 %v3905, 0
      %v4226 = vmax.bf16 %v3906, 0
      %v4227 = vmax.bf16 %v3907, 0
      %v4228 = vmax.bf16 %v3908, 0
      %v4229 = vmax.bf16 %v3909, 0
      %v4230 = vmax.bf16 %v3910, 0
      %v4231 = vmax.bf16 %v3911, 0
      %v4232 = vmax.bf16 %v3912, 0
      %v4233 = vmax.bf16 %v3913, 0
      %v4234 = vmax.bf16 %v3914, 0
      %v4235 = vmax.bf16 %v3915, 0
      %v4236 = vmax.bf16 %v3916, 0
      %v4237 = vmax.bf16 %v3917, 0
      %v4238 = vmax.bf16 %v3918, 0
      %v4239 = vmax.bf16 %v3919, 0
      %v4240 = vmax.bf16 %v3920, 0
      %v4241 = vmax.bf16 %v3921, 0
      %v4242 = vmax.bf16 %v3922, 0
      %v4243 = vmax.bf16 %v3923, 0
      %v4244 = vmax.bf16 %v3924, 0
      %v4245 = vmax.bf16 %v3925, 0
      %v4246 = vmax.bf16 %v3926, 0
      %v4247 = vmax.bf16 %v3927, 0
      %v4248 = vmax.bf16 %v3928, 0
      %v4249 = vmax.bf16 %v3929, 0
      %v4250 = vmax.bf16 %v3930, 0
      %v4251 = vmax.bf16 %v3931, 0
      %v4252 = vmax.bf16 %v3932, 0
      %v4253 = vmax.bf16 %v3933, 0
      %v4254 = vmax.bf16 %v3934, 0
      %v4255 = vmax.bf16 %v3935, 0
      %v4256 = vmax.bf16 %v3936, 0
      %v4257 = vmax.bf16 %v3937, 0
      %v4258 = vmax.bf16 %v3938, 0
      %v4259 = vmax.bf16 %v3939, 0
      %v4260 = vmax.bf16 %v3940, 0
      %v4261 = vmax.bf16 %v3941, 0
      %v4262 = vmax.bf16 %v3942, 0
      %v4263 = vmax.bf16 %v3943, 0
      %v4264 = vmax.bf16 %v3944, 0
      %v4265 = vmax.bf16 %v3945, 0
      %v4266 = vmax.bf16 %v3946, 0
      %v4267 = vmax.bf16 %v3947, 0
      %v4268 = vmax.bf16 %v3948, 0
      %v4269 = vmax.bf16 %v3949, 0
      %v4270 = vmax.bf16 %v3950, 0
      %v4271 = vmax.bf16 %v3951, 0
      %v4272 = vmax.bf16 %v3952, 0
      %v4273 = vmax.bf16 %v3953, 0
      %v4274 = vmax.bf16 %v3954, 0
      %v4275 = vmax.bf16 %v3955, 0
      %v4276 = vmax.bf16 %v3956, 0
      %v4277 = vmax.bf16 %v3957, 0
      %v4278 = vmax.bf16 %v3958, 0
      %v4279 = vmax.bf16 %v3959, 0
      %v4280 = vmax.bf16 %v3960, 0
      %v4281 = vmax.bf16 %v3961, 0
      %v4282 = vmax.bf16 %v3962, 0
      %v4283 = vmax.bf16 %v3963, 0
      %v4284 = vmax.bf16 %v3964, 0
      %v4285 = vmax.bf16 %v3965, 0
      %v4286 = vmax.bf16 %v3966, 0
      %v4287 = vmax.bf16 %v3967, 0
      %v4288 = vmax.bf16 %v3968, 0
      %v4289 = vmax.bf16 %v3969, 0
      %v4290 = vmax.bf16 %v3970, 0
      %v4291 = vmax.bf16 %v3971, 0
      %v4292 = vmax.bf16 %v3972, 0
      %v4293 = vmax.bf16 %v3973, 0
      %v4294 = vmax.bf16 %v3974, 0
      %v4295 = vmax.bf16 %v3975, 0
      %v4296 = vmax.bf16 %v3976, 0
      %v4297 = vmax.bf16 %v3977, 0
      %v4298 = vmax.bf16 %v3978, 0
      %v4299 = vmax.bf16 %v3979, 0
      %v4300 = vmax.bf16 %v3980, 0
      %v4301 = vmax.bf16 %v3981, 0
      %v4302 = vmax.bf16 %v3982, 0
      %v4303 = vmax.bf16 %v3983, 0
      %v4304 = vmax.bf16 %v3984, 0
      %v4305 = vmax.bf16 %v3985, 0
      %v4306 = vmax.bf16 %v3986, 0
      %v4307 = vmax.bf16 %v3987, 0
      %v4308 = vmax.bf16 %v3988, 0
      %v4309 = vmax.bf16 %v3989, 0
      %v4310 = vmax.bf16 %v3990, 0
      %v4311 = vmax.bf16 %v3991, 0
      %v4312 = vmax.bf16 %v3992, 0
      %v4313 = vmax.bf16 %v3993, 0
      %v4314 = vmax.bf16 %v3994, 0
      %v4315 = vmax.bf16 %v3995, 0
      %v4316 = vmax.bf16 %v3996, 0
      %v4317 = vmax.bf16 %v3997, 0
      %v4318 = vmax.bf16 %v3998, 0
      %v4319 = vmax.bf16 %v3999, 0
      %v4320 = vmax.bf16 %v4000, 0
      %v4321 = vmax.bf16 %v4001, 0
      %v4322 = vmax.bf16 %v4002, 0
      %v4323 = vmax.bf16 %v4003, 0
      %v4324 = vmax.bf16 %v4004, 0
      %v4325 = vmax.bf16 %v4005, 0
      %v4326 = vmax.bf16 %v4006, 0
      %v4327 = vmax.bf16 %v4007, 0
      %v4328 = vmax.bf16 %v4008, 0
      %v4329 = vmax.bf16 %v4009, 0
      %v4330 = vmax.bf16 %v4010, 0
      %v4331 = vmax.bf16 %v4011, 0
      %v4332 = vmax.bf16 %v4012, 0
      %v4333 = vmax.bf16 %v4013, 0
      %v4334 = vmax.bf16 %v4014, 0
      %v4335 = vmax.bf16 %v4015, 0
      %v4336 = vmax.bf16 %v4016, 0
      %v4337 = vmax.bf16 %v4017, 0
      %v4338 = vmax.bf16 %v4018, 0
      %v4339 = vmax.bf16 %v4019, 0
      %v4340 = vmax.bf16 %v4020, 0
      %v4341 = vmax.bf16 %v4021, 0
      %v4342 = vmax.bf16 %v4022, 0
      %v4343 = vmax.bf16 %v4023, 0
      %v4344 = vmax.bf16 %v4024, 0
      %v4345 = vmax.bf16 %v4025, 0
      %v4346 = vmax.bf16 %v4026, 0
      %v4347 = vmax.bf16 %v4027, 0
      %v4348 = vmax.bf16 %v4028, 0
      %v4349 = vmax.bf16 %v4029, 0
      %v4350 = vmax.bf16 %v4030, 0
      %v4351 = vmax.bf16 %v4031, 0
      %v4352 = vmax.bf16 %v4032, 0
      %v4353 = vmax.bf16 %v4033, 0
      %v4354 = vmax.bf16 %v4034, 0
      %v4355 = vmax.bf16 %v4035, 0
      %v4356 = vmax.bf16 %v4036, 0
      %v4357 = vmax.bf16 %v4037, 0
      %v4358 = vmax.bf16 %v4038, 0
      %v4359 = vmax.bf16 %v4039, 0
      %v4360 = vmax.bf16 %v4040, 0
      %v4361 = vmax.bf16 %v4041, 0
      %v4362 = vmax.bf16 %v4042, 0
      %v4363 = vmax.bf16 %v4043, 0
      %v4364 = vmax.bf16 %v4044, 0
      %v4365 = vmax.bf16 %v4045, 0
      %v4366 = vmax.bf16 %v4046, 0
      %v4367 = vmax.bf16 %v4047, 0
      %v4368 = vmax.bf16 %v4048, 0
      %v4369 = vmax.bf16 %v4049, 0
      %v4370 = vmax.bf16 %v4050, 0
      %v4371 = vmax.bf16 %v4051, 0
      %v4372 = vmax.bf16 %v4052, 0
      %v4373 = vmax.bf16 %v4053, 0
      %v4374 = vmax.bf16 %v4054, 0
      %v4375 = vmax.bf16 %v4055, 0
      %v4376 = vmax.bf16 %v4056, 0
      %v4377 = vmax.bf16 %v4057, 0
      %v4378 = vmax.bf16 %v4058, 0
      %v4379 = vmax.bf16 %v4059, 0
      %v4380 = vmax.bf16 %v4060, 0
      %v4381 = vmax.bf16 %v4061, 0
      %v4382 = vmax.bf16 %v4062, 0
      %v4383 = vmax.bf16 %v4063, 0
      %v4384 = vmax.bf16 %v4064, 0
      %v4385 = vmax.bf16 %v4065, 0
      %v4386 = vmax.bf16 %v4066, 0
      %v4387 = vmax.bf16 %v4067, 0
      %v4388 = vmax.bf16 %v4068, 0
      %v4389 = vmax.bf16 %v4069, 0
      %v4390 = vmax.bf16 %v4070, 0
      %v4391 = vmax.bf16 %v4071, 0
      %v4392 = vmax.bf16 %v4072, 0
      %v4393 = vmax.bf16 %v4073, 0
      %v4394 = vmax.bf16 %v4074, 0
      %v4395 = vmax.bf16 %v4075, 0
      %v4396 = vmax.bf16 %v4076, 0
      %v4397 = vmax.bf16 %v4077, 0
      %v4398 = vmax.bf16 %v4078, 0
      %v4399 = vmax.bf16 %v4079, 0
      %v4400 = vmax.bf16 %v4080, 0
      %v4401 = vmax.bf16 %v4081, 0
      %v4402 = vmax.bf16 %v4082, 0
      %v4403 = vmax.bf16 %v4083, 0
      %v4404 = vmax.bf16 %v4084, 0
      %v4405 = vmax.bf16 %v4085, 0
      %v4406 = vmax.bf16 %v4086, 0
      %v4407 = vmax.bf16 %v4087, 0
      %v4408 = vmax.bf16 %v4088, 0
      %v4409 = vmax.bf16 %v4089, 0
      %v4410 = vmax.bf16 %v4090, 0
      %v4411 = vmax.bf16 %v4091, 0
      %v4412 = vmax.bf16 %v4092, 0
      %v4413 = vmax.bf16 %v4093, 0
      %v4414 = vmax.bf16 %v4094, 0
      %v4415 = vmax.bf16 %v4095, 0
      %v4416 = vmax.bf16 %v4096, 0
      %v4417 = vmax.bf16 %v4097, 0
      %v4418 = vmax.bf16 %v4098, 0
      %v4419 = vmax.bf16 %v4099, 0
      %v4420 = vmax.bf16 %v4100, 0
      %v4421 = vmax.bf16 %v4101, 0
      %v4422 = vmax.bf16 %v4102, 0
      %v4423 = vmax.bf16 %v4103, 0
      %v4424 = vmax.bf16 %v4104, 0
      %v4425 = vmax.bf16 %v4105, 0
      %v4426 = vmax.bf16 %v4106, 0
      %v4427 = vmax.bf16 %v4107, 0
      %v4428 = vmax.bf16 %v4108, 0
      %v4429 = vmax.bf16 %v4109, 0
      %v4430 = vmax.bf16 %v4110, 0
      %v4431 = vmax.bf16 %v4111, 0
      %v4432 = vmax.bf16 %v4112, 0
      %v4433 = vmax.bf16 %v4113, 0
      %v4434 = vmax.bf16 %v4114, 0
      %v4435 = vmax.bf16 %v4115, 0
      %v4436 = vmax.bf16 %v4116, 0
      %v4437 = vmax.bf16 %v4117, 0
      %v4438 = vmax.bf16 %v4118, 0
      %v4439 = vmax.bf16 %v4119, 0
      %v4440 = vmax.bf16 %v4120, 0
      %v4441 = vmax.bf16 %v4121, 0
      %v4442 = vmax.bf16 %v4122, 0
      %v4443 = vmax.bf16 %v4123, 0
      %v4444 = vmax.bf16 %v4124, 0
      %v4445 = vmax.bf16 %v4125, 0
      %v4446 = vmax.bf16 %v4126, 0
      %v4447 = vmax.bf16 %v4127, 0
      %v4448 = vmax.bf16 %v4128, 0
      %v4449 = vmax.bf16 %v4129, 0
      %v4450 = vmax.bf16 %v4130, 0
      %v4451 = vmax.bf16 %v4131, 0
      %v4452 = vmax.bf16 %v4132, 0
      %v4453 = vmax.bf16 %v4133, 0
      %v4454 = vmax.bf16 %v4134, 0
      %v4455 = vmax.bf16 %v4135, 0
      %v4456 = vmax.bf16 %v4136, 0
      %v4457 = vmax.bf16 %v4137, 0
      %v4458 = vmax.bf16 %v4138, 0
      %v4459 = vmax.bf16 %v4139, 0
      %v4460 = vmax.bf16 %v4140, 0
      %v4461 = vmax.bf16 %v4141, 0
      %v4462 = vmax.bf16 %v4142, 0
      %v4463 = vmax.bf16 %v4143, 0
      %v4464 = vmax.bf16 %v4144, 0
      %v4465 = vmax.bf16 %v4145, 0
      %v4466 = vmax.bf16 %v4146, 0
      %v4467 = vmax.bf16 %v4147, 0
      %v4468 = vmax.bf16 %v4148, 0
      %v4469 = vmax.bf16 %v4149, 0
      %v4470 = vmax.bf16 %v4150, 0
      %v4471 = vmax.bf16 %v4151, 0
      %v4472 = vmax.bf16 %v4152, 0
      %v4473 = vmax.bf16 %v4153, 0
      %v4474 = vmax.bf16 %v4154, 0
      %v4475 = vmax.bf16 %v4155, 0
      %v4476 = vmax.bf16 %v4156, 0
      %v4477 = vmax.bf16 %v4157, 0
      %v4478 = vmax.bf16 %v4158, 0
      %v4479 = vmax.bf16 %v4159, 0
      %v4480 = vmax.bf16 %v4160, 0
      %v4481 = vmax.bf16 %v4161, 0
      %v4482 = vmax.bf16 %v4162, 0
      %v4483 = vmax.bf16 %v4163, 0
      %v4484 = vmax.bf16 %v4164, 0
      %v4485 = vmax.bf16 %v4165, 0
      %v4486 = vmax.bf16 %v4166, 0
      %v4487 = vmax.bf16 %v4167, 0
      %v4488 = vmax.bf16 %v4168, 0
      %v4489 = vmax.bf16 %v4169, 0
      %v4490 = vmax.bf16 %v4170, 0
      %v4491 = vmax.bf16 %v4171, 0
      %v4492 = vmax.bf16 %v4172, 0
      %v4493 = vmax.bf16 %v4173, 0
      %v4494 = vmax.bf16 %v4174, 0
      %v4495 = vmax.bf16 %v4175, 0
      %v4496 = vmax.bf16 %v4176, 0
      %v4497 = vmax.bf16 %v4177, 0
      %v4498 = vmax.bf16 %v4178, 0
      %v4499 = vmax.bf16 %v4179, 0
      %v4500 = vmax.bf16 %v4180, 0
      %v4501 = vmax.bf16 %v4181, 0
      %v4502 = vmax.bf16 %v4182, 0
      %v4503 = vmax.bf16 %v4183, 0
      %v4504 = vmax.bf16 %v4184, 0
      %v4505 = vmax.bf16 %v4185, 0
      %v4506 = vmax.bf16 %v4186, 0
      %v4507 = vmax.bf16 %v4187, 0
      %v4508 = vmax.bf16 %v4188, 0
      %v4509 = vmax.bf16 %v4189, 0
      %v4510 = vmax.bf16 %v4190, 0
      %v4511 = vmax.bf16 %v4191, 0
      %v4512 = vmax.bf16 %v4192, 0
      %v4513 = vmax.bf16 %v4193, 0
      %v4514 = vmax.bf16 %v4194, 0
      %v4515 = vmax.bf16 %v4195, 0
      %v4516 = vmax.bf16 %v4196, 0
      %v4517 = vmax.bf16 %v4197, 0
      %v4518 = vmax.bf16 %v4198, 0
      %v4519 = vmax.bf16 %v4199, 0
      %v4520 = vmax.bf16 %v4200, 0
      %v4521 = vmax.bf16 %v4201, 0
      %v4522 = vmax.bf16 %v4202, 0
      %v4523 = vmax.bf16 %v4203, 0
      %v4524 = vmax.bf16 %v4204, 0
      %v4525 = vmax.bf16 %v4205, 0
      %v4526 = vmax.bf16 %v4206, 0
      %v4527 = vmax.bf16 %v4207, 0
      %v4528 = vmax.bf16 %v4208, 0
      %v4529 = vmax.bf16 %v4209, 0
      %v4530 = vmax.bf16 %v4210, 0
      %v4531 = vmax.bf16 %v4211, 0
      %v4532 = vmax.bf16 %v4212, 0
      %v4533 = vmax.bf16 %v4213, 0
      %v4534 = vmax.bf16 %v4214, 0
      %v4535 = vmax.bf16 %v4215, 0
      %v4536 = vmax.bf16 %v4216, 0
      %v4537 = vmax.bf16 %v4217, 0
      %v4538 = vmax.bf16 %v4218, 0
      %v4539 = vmax.bf16 %v4219, 0
      %v4540 = vmax.bf16 %v4220, 0
      %v4541 = vmax.bf16 %v4221, 0
      %v4542 = vmax.bf16 %v4222, 0
      %v4543 = vld [vmem:[%s3] sm:$0xff]
      %v4544 = vld [vmem:[%s3 + $0x8] sm:$0xff]
      %v4545 = vld [vmem:[%s3 + $0x10] sm:$0xff]
      %v4546 = vld [vmem:[%s3 + $0x18] sm:$0xff]
      %v4547 = vld [vmem:[%s3 + $0x20] sm:$0xff]
      %v4548 = vld [vmem:[%s3 + $0x28] sm:$0xff]
      %v4549 = vld [vmem:[%s3 + $0x30] sm:$0xff]
      %v4550 = vld [vmem:[%s3 + $0x38] sm:$0xff]
      %v4551 = vld [vmem:[%s3 + $0x40] sm:$0xff]
      %v4552 = vld [vmem:[%s3 + $0x48] sm:$0xff]
      %v4553 = vld [vmem:[%s3 + $0x50] sm:$0xff]
      %v4554 = vld [vmem:[%s3 + $0x58] sm:$0xff]
      %v4555 = vld [vmem:[%s3 + $0x60] sm:$0xff]
      %v4556 = vld [vmem:[%s3 + $0x68] sm:$0xff]
      %v4557 = vld [vmem:[%s3 + $0x70] sm:$0xff]
      %v4558 = vld [vmem:[%s3 + $0x78] sm:$0xff]
      %v4575 = vunpack.c.l.b16 %v4543
      %v4576 = vunpack.c.h.b16 %v4543
      %v4577 = vunpack.c.l.b16 %v4544
      %v4578 = vunpack.c.h.b16 %v4544
      %v4579 = vunpack.c.l.b16 %v4545
      %v4580 = vunpack.c.h.b16 %v4545
      %v4581 = vunpack.c.l.b16 %v4546
      %v4582 = vunpack.c.h.b16 %v4546
      %v4583 = vunpack.c.l.b16 %v4547
      %v4584 = vunpack.c.h.b16 %v4547
      %v4585 = vunpack.c.l.b16 %v4548
      %v4586 = vunpack.c.h.b16 %v4548
      %v4587 = vunpack.c.l.b16 %v4549
      %v4588 = vunpack.c.h.b16 %v4549
      %v4589 = vunpack.c.l.b16 %v4550
      %v4590 = vunpack.c.h.b16 %v4550
      %v4591 = vunpack.c.l.b16 %v4551
      %v4592 = vunpack.c.h.b16 %v4551
      %v4593 = vunpack.c.l.b16 %v4552
      %v4594 = vunpack.c.h.b16 %v4552
      %v4595 = vunpack.c.l.b16 %v4553
      %v4596 = vunpack.c.h.b16 %v4553
      %v4597 = vunpack.c.l.b16 %v4554
      %v4598 = vunpack.c.h.b16 %v4554
      %v4599 = vunpack.c.l.b16 %v4555
      %v4600 = vunpack.c.h.b16 %v4555
      %v4601 = vunpack.c.l.b16 %v4556
      %v4602 = vunpack.c.h.b16 %v4556
      %v4603 = vunpack.c.l.b16 %v4557
      %v4604 = vunpack.c.h.b16 %v4557
      %v4605 = vunpack.c.l.b16 %v4558
      %v4606 = vunpack.c.h.b16 %v4558
      %v4607 = vpack.c.b16 %v4577, %v4575
      %v4608 = vpack.c.b16 %v4578, %v4576
      %v4609 = vpack.c.b16 %v4581, %v4579
      %v4610 = vpack.c.b16 %v4582, %v4580
      %v4611 = vpack.c.b16 %v4585, %v4583
      %v4612 = vpack.c.b16 %v4586, %v4584
      %v4613 = vpack.c.b16 %v4589, %v4587
      %v4614 = vpack.c.b16 %v4590, %v4588
      %v4615 = vpack.c.b16 %v4593, %v4591
      %v4616 = vpack.c.b16 %v4594, %v4592
      %v4617 = vpack.c.b16 %v4597, %v4595
      %v4618 = vpack.c.b16 %v4598, %v4596
      %v4619 = vpack.c.b16 %v4601, %v4599
      %v4620 = vpack.c.b16 %v4602, %v4600
      %v4621 = vpack.c.b16 %v4605, %v4603
      %v4622 = vpack.c.b16 %v4606, %v4604
      %4639 = vmatprep.subr.bf16.mxu0 %v4364
      %4640 = vmatpush1.bf16.msra.mxu0 %v4363
      %4641 = vmatprep.subr.bf16.mxu0 %v4344
      %4642 = vmatpush1.bf16.msra.mxu0 %v4343
      %4643 = vmatprep.subr.bf16.mxu0 %v4324
      %4644 = vmatpush1.bf16.msra.mxu0 %v4323
      %4645 = vmatprep.subr.bf16.mxu0 %v4304
      %4646 = vmatpush1.bf16.msra.mxu0 %v4303
      %4647 = vmatprep.subr.bf16.mxu0 %v4284
      %4648 = vmatpush1.bf16.msra.mxu0 %v4283
      %4649 = vmatprep.subr.bf16.mxu0 %v4264
      %4650 = vmatpush1.bf16.msra.mxu0 %v4263
      %4651 = vmatprep.subr.bf16.mxu0 %v4244
      %4652 = vmatpush1.bf16.msra.mxu0 %v4243
      %4653 = vmatprep.subr.bf16.mxu0 %v4224
      %4654 = vmatpush1.bf16.msra.mxu0 %v4223
      %4655 = vmatprep.subr.bf16.mxu0 %v4524
      %4656 = vmatpush2.bf16.msra.mxu0 %v4523
      %4657 = vmatprep.subr.bf16.mxu0 %v4504
      %4658 = vmatpush2.bf16.msra.mxu0 %v4503
      %4659 = vmatprep.subr.bf16.mxu0 %v4484
      %4660 = vmatpush2.bf16.msra.mxu0 %v4483
      %4661 = vmatprep.subr.bf16.mxu0 %v4464
      %4662 = vmatpush2.bf16.msra.mxu0 %v4463
      %4663 = vmatprep.subr.bf16.mxu0 %v4444
      %4664 = vmatpush2.bf16.msra.mxu0 %v4443
      %4665 = vmatprep.subr.bf16.mxu0 %v4424
      %4666 = vmatpush2.bf16.msra.mxu0 %v4423
      %4667 = vmatprep.subr.bf16.mxu0 %v4404
      %4668 = vmatpush2.bf16.msra.mxu0 %v4403
      %4669 = vmatprep.subr.bf16.mxu0 %v4384
      %4670 = vmatpush2.bf16.msra.mxu0 %v4383
      %4671 = vmatprep.mubr.bf16.mxu0 %v4608
      %4672 = vmatmul.mubr.bf16.gmra.mxu0 %v4607
      %v4673 = vpop.f32.mrf.mxu0
      %v4674 = vadd.f32 0.0, %v4673
      %v4675 = vpop.f32.mrf.mxu0
      %v4676 = vadd.f32 0.0, %v4675
      %v4677 = vpop.f32.mrf.mxu0
      %v4678 = vadd.f32 0.0, %v4677
      %v4679 = vpop.f32.mrf.mxu0
      %v4680 = vadd.f32 0.0, %v4679
      %4681 = vmatprep.mubr.bf16.mxu0 %v4610
      %4682 = vmatmul.mubr.bf16.gmra.mxu0 %v4609
      %v4683 = vpop.f32.mrf.mxu0
      %v4684 = vadd.f32 0.0, %v4683
      %v4685 = vpop.f32.mrf.mxu0
      %v4686 = vadd.f32 0.0, %v4685
      %v4687 = vpop.f32.mrf.mxu0
      %v4688 = vadd.f32 0.0, %v4687
      %v4689 = vpop.f32.mrf.mxu0
      %v4690 = vadd.f32 0.0, %v4689
      %4691 = vmatprep.mubr.bf16.mxu0 %v4612
      %4692 = vmatmul.mubr.bf16.gmra.mxu0 %v4611
      %v4693 = vpop.f32.mrf.mxu0
      %v4694 = vadd.f32 0.0, %v4693
      %v4695 = vpop.f32.mrf.mxu0
      %v4696 = vadd.f32 0.0, %v4695
      %v4697 = vpop.f32.mrf.mxu0
      %v4698 = vadd.f32 0.0, %v4697
      %v4699 = vpop.f32.mrf.mxu0
      %v4700 = vadd.f32 0.0, %v4699
      %4701 = vmatprep.mubr.bf16.mxu0 %v4614
      %4702 = vmatmul.mubr.bf16.gmra.mxu0 %v4613
      %v4703 = vpop.f32.mrf.mxu0
      %v4704 = vadd.f32 0.0, %v4703
      %v4705 = vpop.f32.mrf.mxu0
      %v4706 = vadd.f32 0.0, %v4705
      %v4707 = vpop.f32.mrf.mxu0
      %v4708 = vadd.f32 0.0, %v4707
      %v4709 = vpop.f32.mrf.mxu0
      %v4710 = vadd.f32 0.0, %v4709
      %4711 = vmatprep.mubr.bf16.mxu0 %v4616
      %4712 = vmatmul.mubr.bf16.gmra.mxu0 %v4615
      %v4713 = vpop.f32.mrf.mxu0
      %v4714 = vadd.f32 0.0, %v4713
      %v4715 = vpop.f32.mrf.mxu0
      %v4716 = vadd.f32 0.0, %v4715
      %v4717 = vpop.f32.mrf.mxu0
      %v4718 = vadd.f32 0.0, %v4717
      %v4719 = vpop.f32.mrf.mxu0
      %v4720 = vadd.f32 0.0, %v4719
      %4721 = vmatprep.mubr.bf16.mxu0 %v4618
      %4722 = vmatmul.mubr.bf16.gmra.mxu0 %v4617
      %v4723 = vpop.f32.mrf.mxu0
      %v4724 = vadd.f32 0.0, %v4723
      %v4725 = vpop.f32.mrf.mxu0
      %v4726 = vadd.f32 0.0, %v4725
      %v4727 = vpop.f32.mrf.mxu0
      %v4728 = vadd.f32 0.0, %v4727
      %v4729 = vpop.f32.mrf.mxu0
      %v4730 = vadd.f32 0.0, %v4729
      %4731 = vmatprep.mubr.bf16.mxu0 %v4620
      %4732 = vmatmul.mubr.bf16.gmra.mxu0 %v4619
      %v4733 = vpop.f32.mrf.mxu0
      %v4734 = vadd.f32 0.0, %v4733
      %v4735 = vpop.f32.mrf.mxu0
      %v4736 = vadd.f32 0.0, %v4735
      %v4737 = vpop.f32.mrf.mxu0
      %v4738 = vadd.f32 0.0, %v4737
      %v4739 = vpop.f32.mrf.mxu0
      %v4740 = vadd.f32 0.0, %v4739
      %4741 = vmatprep.mubr.bf16.mxu0 %v4622
      %4742 = vmatmul.mubr.bf16.gmra.mxu0 %v4621
      %v4743 = vpop.f32.mrf.mxu0
      %v4744 = vadd.f32 0.0, %v4743
      %v4745 = vpop.f32.mrf.mxu0
      %v4746 = vadd.f32 0.0, %v4745
      %v4747 = vpop.f32.mrf.mxu0
      %v4748 = vadd.f32 0.0, %v4747
      %v4749 = vpop.f32.mrf.mxu0
      %v4750 = vadd.f32 0.0, %v4749
      %4751 = vdwg.mxu0
      %4752 = vmatprep.subr.bf16.mxu0 %v4366
      %4753 = vmatpush1.bf16.msra.mxu0 %v4365
      %4754 = vmatprep.subr.bf16.mxu0 %v4346
      %4755 = vmatpush1.bf16.msra.mxu0 %v4345
      %4756 = vmatprep.subr.bf16.mxu0 %v4326
      %4757 = vmatpush1.bf16.msra.mxu0 %v4325
      %4758 = vmatprep.subr.bf16.mxu0 %v4306
      %4759 = vmatpush1.bf16.msra.mxu0 %v4305
      %4760 = vmatprep.subr.bf16.mxu0 %v4286
      %4761 = vmatpush1.bf16.msra.mxu0 %v4285
      %4762 = vmatprep.subr.bf16.mxu0 %v4266
      %4763 = vmatpush1.bf16.msra.mxu0 %v4265
      %4764 = vmatprep.subr.bf16.mxu0 %v4246
      %4765 = vmatpush1.bf16.msra.mxu0 %v4245
      %4766 = vmatprep.subr.bf16.mxu0 %v4226
      %4767 = vmatpush1.bf16.msra.mxu0 %v4225
      %4768 = vmatprep.subr.bf16.mxu0 %v4526
      %4769 = vmatpush2.bf16.msra.mxu0 %v4525
      %4770 = vmatprep.subr.bf16.mxu0 %v4506
      %4771 = vmatpush2.bf16.msra.mxu0 %v4505
      %4772 = vmatprep.subr.bf16.mxu0 %v4486
      %4773 = vmatpush2.bf16.msra.mxu0 %v4485
      %4774 = vmatprep.subr.bf16.mxu0 %v4466
      %4775 = vmatpush2.bf16.msra.mxu0 %v4465
      %4776 = vmatprep.subr.bf16.mxu0 %v4446
      %4777 = vmatpush2.bf16.msra.mxu0 %v4445
      %4778 = vmatprep.subr.bf16.mxu0 %v4426
      %4779 = vmatpush2.bf16.msra.mxu0 %v4425
      %4780 = vmatprep.subr.bf16.mxu0 %v4406
      %4781 = vmatpush2.bf16.msra.mxu0 %v4405
      %4782 = vmatprep.subr.bf16.mxu0 %v4386
      %4783 = vmatpush2.bf16.msra.mxu0 %v4385
      %4784 = vmatprep.mubr.bf16.mxu0 %v4608
      %4785 = vmatmul.mubr.bf16.gmra.mxu0 %v4607
      %v4786 = vpop.f32.mrf.mxu0
      %v4787 = vadd.f32 0.0, %v4786
      %v4788 = vpop.f32.mrf.mxu0
      %v4789 = vadd.f32 0.0, %v4788
      %v4790 = vpop.f32.mrf.mxu0
      %v4791 = vadd.f32 0.0, %v4790
      %v4792 = vpop.f32.mrf.mxu0
      %v4793 = vadd.f32 0.0, %v4792
      %4794 = vmatprep.mubr.bf16.mxu0 %v4610
      %4795 = vmatmul.mubr.bf16.gmra.mxu0 %v4609
      %v4796 = vpop.f32.mrf.mxu0
      %v4797 = vadd.f32 0.0, %v4796
      %v4798 = vpop.f32.mrf.mxu0
      %v4799 = vadd.f32 0.0, %v4798
      %v4800 = vpop.f32.mrf.mxu0
      %v4801 = vadd.f32 0.0, %v4800
      %v4802 = vpop.f32.mrf.mxu0
      %v4803 = vadd.f32 0.0, %v4802
      %4804 = vmatprep.mubr.bf16.mxu0 %v4612
      %4805 = vmatmul.mubr.bf16.gmra.mxu0 %v4611
      %v4806 = vpop.f32.mrf.mxu0
      %v4807 = vadd.f32 0.0, %v4806
      %v4808 = vpop.f32.mrf.mxu0
      %v4809 = vadd.f32 0.0, %v4808
      %v4810 = vpop.f32.mrf.mxu0
      %v4811 = vadd.f32 0.0, %v4810
      %v4812 = vpop.f32.mrf.mxu0
      %v4813 = vadd.f32 0.0, %v4812
      %4814 = vmatprep.mubr.bf16.mxu0 %v4614
      %4815 = vmatmul.mubr.bf16.gmra.mxu0 %v4613
      %v4816 = vpop.f32.mrf.mxu0
      %v4817 = vadd.f32 0.0, %v4816
      %v4818 = vpop.f32.mrf.mxu0
      %v4819 = vadd.f32 0.0, %v4818
      %v4820 = vpop.f32.mrf.mxu0
      %v4821 = vadd.f32 0.0, %v4820
      %v4822 = vpop.f32.mrf.mxu0
      %v4823 = vadd.f32 0.0, %v4822
      %4824 = vmatprep.mubr.bf16.mxu0 %v4616
      %4825 = vmatmul.mubr.bf16.gmra.mxu0 %v4615
      %v4826 = vpop.f32.mrf.mxu0
      %v4827 = vadd.f32 0.0, %v4826
      %v4828 = vpop.f32.mrf.mxu0
      %v4829 = vadd.f32 0.0, %v4828
      %v4830 = vpop.f32.mrf.mxu0
      %v4831 = vadd.f32 0.0, %v4830
      %v4832 = vpop.f32.mrf.mxu0
      %v4833 = vadd.f32 0.0, %v4832
      %4834 = vmatprep.mubr.bf16.mxu0 %v4618
      %4835 = vmatmul.mubr.bf16.gmra.mxu0 %v4617
      %v4836 = vpop.f32.mrf.mxu0
      %v4837 = vadd.f32 0.0, %v4836
      %v4838 = vpop.f32.mrf.mxu0
      %v4839 = vadd.f32 0.0, %v4838
      %v4840 = vpop.f32.mrf.mxu0
      %v4841 = vadd.f32 0.0, %v4840
      %v4842 = vpop.f32.mrf.mxu0
      %v4843 = vadd.f32 0.0, %v4842
      %4844 = vmatprep.mubr.bf16.mxu0 %v4620
      %4845 = vmatmul.mubr.bf16.gmra.mxu0 %v4619
      %v4846 = vpop.f32.mrf.mxu0
      %v4847 = vadd.f32 0.0, %v4846
      %v4848 = vpop.f32.mrf.mxu0
      %v4849 = vadd.f32 0.0, %v4848
      %v4850 = vpop.f32.mrf.mxu0
      %v4851 = vadd.f32 0.0, %v4850
      %v4852 = vpop.f32.mrf.mxu0
      %v4853 = vadd.f32 0.0, %v4852
      %4854 = vmatprep.mubr.bf16.mxu0 %v4622
      %4855 = vmatmul.mubr.bf16.gmra.mxu0 %v4621
      %v4856 = vpop.f32.mrf.mxu0
      %v4857 = vadd.f32 0.0, %v4856
      %v4858 = vpop.f32.mrf.mxu0
      %v4859 = vadd.f32 0.0, %v4858
      %v4860 = vpop.f32.mrf.mxu0
      %v4861 = vadd.f32 0.0, %v4860
      %v4862 = vpop.f32.mrf.mxu0
      %v4863 = vadd.f32 0.0, %v4862
      %4864 = vdwg.mxu0
      %4865 = vmatprep.subr.bf16.mxu0 %v4368
      %4866 = vmatpush1.bf16.msra.mxu0 %v4367
      %4867 = vmatprep.subr.bf16.mxu0 %v4348
      %4868 = vmatpush1.bf16.msra.mxu0 %v4347
      %4869 = vmatprep.subr.bf16.mxu0 %v4328
      %4870 = vmatpush1.bf16.msra.mxu0 %v4327
      %4871 = vmatprep.subr.bf16.mxu0 %v4308
      %4872 = vmatpush1.bf16.msra.mxu0 %v4307
      %4873 = vmatprep.subr.bf16.mxu0 %v4288
      %4874 = vmatpush1.bf16.msra.mxu0 %v4287
      %4875 = vmatprep.subr.bf16.mxu0 %v4268
      %4876 = vmatpush1.bf16.msra.mxu0 %v4267
      %4877 = vmatprep.subr.bf16.mxu0 %v4248
      %4878 = vmatpush1.bf16.msra.mxu0 %v4247
      %4879 = vmatprep.subr.bf16.mxu0 %v4228
      %4880 = vmatpush1.bf16.msra.mxu0 %v4227
      %4881 = vmatprep.subr.bf16.mxu0 %v4528
      %4882 = vmatpush2.bf16.msra.mxu0 %v4527
      %4883 = vmatprep.subr.bf16.mxu0 %v4508
      %4884 = vmatpush2.bf16.msra.mxu0 %v4507
      %4885 = vmatprep.subr.bf16.mxu0 %v4488
      %4886 = vmatpush2.bf16.msra.mxu0 %v4487
      %4887 = vmatprep.subr.bf16.mxu0 %v4468
      %4888 = vmatpush2.bf16.msra.mxu0 %v4467
      %4889 = vmatprep.subr.bf16.mxu0 %v4448
      %4890 = vmatpush2.bf16.msra.mxu0 %v4447
      %4891 = vmatprep.subr.bf16.mxu0 %v4428
      %4892 = vmatpush2.bf16.msra.mxu0 %v4427
      %4893 = vmatprep.subr.bf16.mxu0 %v4408
      %4894 = vmatpush2.bf16.msra.mxu0 %v4407
      %4895 = vmatprep.subr.bf16.mxu0 %v4388
      %4896 = vmatpush2.bf16.msra.mxu0 %v4387
      %4897 = vmatprep.mubr.bf16.mxu0 %v4608
      %4898 = vmatmul.mubr.bf16.gmra.mxu0 %v4607
      %v4899 = vpop.f32.mrf.mxu0
      %v4900 = vadd.f32 0.0, %v4899
      %v4901 = vpop.f32.mrf.mxu0
      %v4902 = vadd.f32 0.0, %v4901
      %v4903 = vpop.f32.mrf.mxu0
      %v4904 = vadd.f32 0.0, %v4903
      %v4905 = vpop.f32.mrf.mxu0
      %v4906 = vadd.f32 0.0, %v4905
      %4907 = vmatprep.mubr.bf16.mxu0 %v4610
      %4908 = vmatmul.mubr.bf16.gmra.mxu0 %v4609
      %v4909 = vpop.f32.mrf.mxu0
      %v4910 = vadd.f32 0.0, %v4909
      %v4911 = vpop.f32.mrf.mxu0
      %v4912 = vadd.f32 0.0, %v4911
      %v4913 = vpop.f32.mrf.mxu0
      %v4914 = vadd.f32 0.0, %v4913
      %v4915 = vpop.f32.mrf.mxu0
      %v4916 = vadd.f32 0.0, %v4915
      %4917 = vmatprep.mubr.bf16.mxu0 %v4612
      %4918 = vmatmul.mubr.bf16.gmra.mxu0 %v4611
      %v4919 = vpop.f32.mrf.mxu0
      %v4920 = vadd.f32 0.0, %v4919
      %v4921 = vpop.f32.mrf.mxu0
      %v4922 = vadd.f32 0.0, %v4921
      %v4923 = vpop.f32.mrf.mxu0
      %v4924 = vadd.f32 0.0, %v4923
      %v4925 = vpop.f32.mrf.mxu0
      %v4926 = vadd.f32 0.0, %v4925
      %4927 = vmatprep.mubr.bf16.mxu0 %v4614
      %4928 = vmatmul.mubr.bf16.gmra.mxu0 %v4613
      %v4929 = vpop.f32.mrf.mxu0
      %v4930 = vadd.f32 0.0, %v4929
      %v4931 = vpop.f32.mrf.mxu0
      %v4932 = vadd.f32 0.0, %v4931
      %v4933 = vpop.f32.mrf.mxu0
      %v4934 = vadd.f32 0.0, %v4933
      %v4935 = vpop.f32.mrf.mxu0
      %v4936 = vadd.f32 0.0, %v4935
      %4937 = vmatprep.mubr.bf16.mxu0 %v4616
      %4938 = vmatmul.mubr.bf16.gmra.mxu0 %v4615
      %v4939 = vpop.f32.mrf.mxu0
      %v4940 = vadd.f32 0.0, %v4939
      %v4941 = vpop.f32.mrf.mxu0
      %v4942 = vadd.f32 0.0, %v4941
      %v4943 = vpop.f32.mrf.mxu0
      %v4944 = vadd.f32 0.0, %v4943
      %v4945 = vpop.f32.mrf.mxu0
      %v4946 = vadd.f32 0.0, %v4945
      %4947 = vmatprep.mubr.bf16.mxu0 %v4618
      %4948 = vmatmul.mubr.bf16.gmra.mxu0 %v4617
      %v4949 = vpop.f32.mrf.mxu0
      %v4950 = vadd.f32 0.0, %v4949
      %v4951 = vpop.f32.mrf.mxu0
      %v4952 = vadd.f32 0.0, %v4951
      %v4953 = vpop.f32.mrf.mxu0
      %v4954 = vadd.f32 0.0, %v4953
      %v4955 = vpop.f32.mrf.mxu0
      %v4956 = vadd.f32 0.0, %v4955
      %4957 = vmatprep.mubr.bf16.mxu0 %v4620
      %4958 = vmatmul.mubr.bf16.gmra.mxu0 %v4619
      %v4959 = vpop.f32.mrf.mxu0
      %v4960 = vadd.f32 0.0, %v4959
      %v4961 = vpop.f32.mrf.mxu0
      %v4962 = vadd.f32 0.0, %v4961
      %v4963 = vpop.f32.mrf.mxu0
      %v4964 = vadd.f32 0.0, %v4963
      %v4965 = vpop.f32.mrf.mxu0
      %v4966 = vadd.f32 0.0, %v4965
      %4967 = vmatprep.mubr.bf16.mxu0 %v4622
      %4968 = vmatmul.mubr.bf16.gmra.mxu0 %v4621
      %v4969 = vpop.f32.mrf.mxu0
      %v4970 = vadd.f32 0.0, %v4969
      %v4971 = vpop.f32.mrf.mxu0
      %v4972 = vadd.f32 0.0, %v4971
      %v4973 = vpop.f32.mrf.mxu0
      %v4974 = vadd.f32 0.0, %v4973
      %v4975 = vpop.f32.mrf.mxu0
      %v4976 = vadd.f32 0.0, %v4975
      %4977 = vdwg.mxu0
      %4978 = vmatprep.subr.bf16.mxu0 %v4370
      %4979 = vmatpush1.bf16.msra.mxu0 %v4369
      %4980 = vmatprep.subr.bf16.mxu0 %v4350
      %4981 = vmatpush1.bf16.msra.mxu0 %v4349
      %4982 = vmatprep.subr.bf16.mxu0 %v4330
      %4983 = vmatpush1.bf16.msra.mxu0 %v4329
      %4984 = vmatprep.subr.bf16.mxu0 %v4310
      %4985 = vmatpush1.bf16.msra.mxu0 %v4309
      %4986 = vmatprep.subr.bf16.mxu0 %v4290
      %4987 = vmatpush1.bf16.msra.mxu0 %v4289
      %4988 = vmatprep.subr.bf16.mxu0 %v4270
      %4989 = vmatpush1.bf16.msra.mxu0 %v4269
      %4990 = vmatprep.subr.bf16.mxu0 %v4250
      %4991 = vmatpush1.bf16.msra.mxu0 %v4249
      %4992 = vmatprep.subr.bf16.mxu0 %v4230
      %4993 = vmatpush1.bf16.msra.mxu0 %v4229
      %4994 = vmatprep.subr.bf16.mxu0 %v4530
      %4995 = vmatpush2.bf16.msra.mxu0 %v4529
      %4996 = vmatprep.subr.bf16.mxu0 %v4510
      %4997 = vmatpush2.bf16.msra.mxu0 %v4509
      %4998 = vmatprep.subr.bf16.mxu0 %v4490
      %4999 = vmatpush2.bf16.msra.mxu0 %v4489
      %5000 = vmatprep.subr.bf16.mxu0 %v4470
      %5001 = vmatpush2.bf16.msra.mxu0 %v4469
      %5002 = vmatprep.subr.bf16.mxu0 %v4450
      %5003 = vmatpush2.bf16.msra.mxu0 %v4449
      %5004 = vmatprep.subr.bf16.mxu0 %v4430
      %5005 = vmatpush2.bf16.msra.mxu0 %v4429
      %5006 = vmatprep.subr.bf16.mxu0 %v4410
      %5007 = vmatpush2.bf16.msra.mxu0 %v4409
      %5008 = vmatprep.subr.bf16.mxu0 %v4390
      %5009 = vmatpush2.bf16.msra.mxu0 %v4389
      %5010 = vmatprep.mubr.bf16.mxu0 %v4608
      %5011 = vmatmul.mubr.bf16.gmra.mxu0 %v4607
      %v5012 = vpop.f32.mrf.mxu0
      %v5013 = vadd.f32 0.0, %v5012
      %v5014 = vpop.f32.mrf.mxu0
      %v5015 = vadd.f32 0.0, %v5014
      %v5016 = vpop.f32.mrf.mxu0
      %v5017 = vadd.f32 0.0, %v5016
      %v5018 = vpop.f32.mrf.mxu0
      %v5019 = vadd.f32 0.0, %v5018
      %5020 = vmatprep.mubr.bf16.mxu0 %v4610
      %5021 = vmatmul.mubr.bf16.gmra.mxu0 %v4609
      %v5022 = vpop.f32.mrf.mxu0
      %v5023 = vadd.f32 0.0, %v5022
      %v5024 = vpop.f32.mrf.mxu0
      %v5025 = vadd.f32 0.0, %v5024
      %v5026 = vpop.f32.mrf.mxu0
      %v5027 = vadd.f32 0.0, %v5026
      %v5028 = vpop.f32.mrf.mxu0
      %v5029 = vadd.f32 0.0, %v5028
      %5030 = vmatprep.mubr.bf16.mxu0 %v4612
      %5031 = vmatmul.mubr.bf16.gmra.mxu0 %v4611
      %v5032 = vpop.f32.mrf.mxu0
      %v5033 = vadd.f32 0.0, %v5032
      %v5034 = vpop.f32.mrf.mxu0
      %v5035 = vadd.f32 0.0, %v5034
      %v5036 = vpop.f32.mrf.mxu0
      %v5037 = vadd.f32 0.0, %v5036
      %v5038 = vpop.f32.mrf.mxu0
      %v5039 = vadd.f32 0.0, %v5038
      %5040 = vmatprep.mubr.bf16.mxu0 %v4614
      %5041 = vmatmul.mubr.bf16.gmra.mxu0 %v4613
      %v5042 = vpop.f32.mrf.mxu0
      %v5043 = vadd.f32 0.0, %v5042
      %v5044 = vpop.f32.mrf.mxu0
      %v5045 = vadd.f32 0.0, %v5044
      %v5046 = vpop.f32.mrf.mxu0
      %v5047 = vadd.f32 0.0, %v5046
      %v5048 = vpop.f32.mrf.mxu0
      %v5049 = vadd.f32 0.0, %v5048
      %5050 = vmatprep.mubr.bf16.mxu0 %v4616
      %5051 = vmatmul.mubr.bf16.gmra.mxu0 %v4615
      %v5052 = vpop.f32.mrf.mxu0
      %v5053 = vadd.f32 0.0, %v5052
      %v5054 = vpop.f32.mrf.mxu0
      %v5055 = vadd.f32 0.0, %v5054
      %v5056 = vpop.f32.mrf.mxu0
      %v5057 = vadd.f32 0.0, %v5056
      %v5058 = vpop.f32.mrf.mxu0
      %v5059 = vadd.f32 0.0, %v5058
      %5060 = vmatprep.mubr.bf16.mxu0 %v4618
      %5061 = vmatmul.mubr.bf16.gmra.mxu0 %v4617
      %v5062 = vpop.f32.mrf.mxu0
      %v5063 = vadd.f32 0.0, %v5062
      %v5064 = vpop.f32.mrf.mxu0
      %v5065 = vadd.f32 0.0, %v5064
      %v5066 = vpop.f32.mrf.mxu0
      %v5067 = vadd.f32 0.0, %v5066
      %v5068 = vpop.f32.mrf.mxu0
      %v5069 = vadd.f32 0.0, %v5068
      %5070 = vmatprep.mubr.bf16.mxu0 %v4620
      %5071 = vmatmul.mubr.bf16.gmra.mxu0 %v4619
      %v5072 = vpop.f32.mrf.mxu0
      %v5073 = vadd.f32 0.0, %v5072
      %v5074 = vpop.f32.mrf.mxu0
      %v5075 = vadd.f32 0.0, %v5074
      %v5076 = vpop.f32.mrf.mxu0
      %v5077 = vadd.f32 0.0, %v5076
      %v5078 = vpop.f32.mrf.mxu0
      %v5079 = vadd.f32 0.0, %v5078
      %5080 = vmatprep.mubr.bf16.mxu0 %v4622
      %5081 = vmatmul.mubr.bf16.gmra.mxu0 %v4621
      %v5082 = vpop.f32.mrf.mxu0
      %v5083 = vadd.f32 0.0, %v5082
      %v5084 = vpop.f32.mrf.mxu0
      %v5085 = vadd.f32 0.0, %v5084
      %v5086 = vpop.f32.mrf.mxu0
      %v5087 = vadd.f32 0.0, %v5086
      %v5088 = vpop.f32.mrf.mxu0
      %v5089 = vadd.f32 0.0, %v5088
      %5090 = vdwg.mxu0
      %5091 = vmatprep.subr.bf16.mxu0 %v4372
      %5092 = vmatpush1.bf16.msra.mxu0 %v4371
      %5093 = vmatprep.subr.bf16.mxu0 %v4352
      %5094 = vmatpush1.bf16.msra.mxu0 %v4351
      %5095 = vmatprep.subr.bf16.mxu0 %v4332
      %5096 = vmatpush1.bf16.msra.mxu0 %v4331
      %5097 = vmatprep.subr.bf16.mxu0 %v4312
      %5098 = vmatpush1.bf16.msra.mxu0 %v4311
      %5099 = vmatprep.subr.bf16.mxu0 %v4292
      %5100 = vmatpush1.bf16.msra.mxu0 %v4291
      %5101 = vmatprep.subr.bf16.mxu0 %v4272
      %5102 = vmatpush1.bf16.msra.mxu0 %v4271
      %5103 = vmatprep.subr.bf16.mxu0 %v4252
      %5104 = vmatpush1.bf16.msra.mxu0 %v4251
      %5105 = vmatprep.subr.bf16.mxu0 %v4232
      %5106 = vmatpush1.bf16.msra.mxu0 %v4231
      %5107 = vmatprep.subr.bf16.mxu0 %v4532
      %5108 = vmatpush2.bf16.msra.mxu0 %v4531
      %5109 = vmatprep.subr.bf16.mxu0 %v4512
      %5110 = vmatpush2.bf16.msra.mxu0 %v4511
      %5111 = vmatprep.subr.bf16.mxu0 %v4492
      %5112 = vmatpush2.bf16.msra.mxu0 %v4491
      %5113 = vmatprep.subr.bf16.mxu0 %v4472
      %5114 = vmatpush2.bf16.msra.mxu0 %v4471
      %5115 = vmatprep.subr.bf16.mxu0 %v4452
      %5116 = vmatpush2.bf16.msra.mxu0 %v4451
      %5117 = vmatprep.subr.bf16.mxu0 %v4432
      %5118 = vmatpush2.bf16.msra.mxu0 %v4431
      %5119 = vmatprep.subr.bf16.mxu0 %v4412
      %5120 = vmatpush2.bf16.msra.mxu0 %v4411
      %5121 = vmatprep.subr.bf16.mxu0 %v4392
      %5122 = vmatpush2.bf16.msra.mxu0 %v4391
      %5123 = vmatprep.mubr.bf16.mxu0 %v4608
      %5124 = vmatmul.mubr.bf16.gmra.mxu0 %v4607
      %v5125 = vpop.f32.mrf.mxu0
      %v5126 = vadd.f32 0.0, %v5125
      %v5127 = vpop.f32.mrf.mxu0
      %v5128 = vadd.f32 0.0, %v5127
      %v5129 = vpop.f32.mrf.mxu0
      %v5130 = vadd.f32 0.0, %v5129
      %v5131 = vpop.f32.mrf.mxu0
      %v5132 = vadd.f32 0.0, %v5131
      %5133 = vmatprep.mubr.bf16.mxu0 %v4610
      %5134 = vmatmul.mubr.bf16.gmra.mxu0 %v4609
      %v5135 = vpop.f32.mrf.mxu0
      %v5136 = vadd.f32 0.0, %v5135
      %v5137 = vpop.f32.mrf.mxu0
      %v5138 = vadd.f32 0.0, %v5137
      %v5139 = vpop.f32.mrf.mxu0
      %v5140 = vadd.f32 0.0, %v5139
      %v5141 = vpop.f32.mrf.mxu0
      %v5142 = vadd.f32 0.0, %v5141
      %5143 = vmatprep.mubr.bf16.mxu0 %v4612
      %5144 = vmatmul.mubr.bf16.gmra.mxu0 %v4611
      %v5145 = vpop.f32.mrf.mxu0
      %v5146 = vadd.f32 0.0, %v5145
      %v5147 = vpop.f32.mrf.mxu0
      %v5148 = vadd.f32 0.0, %v5147
      %v5149 = vpop.f32.mrf.mxu0
      %v5150 = vadd.f32 0.0, %v5149
      %v5151 = vpop.f32.mrf.mxu0
      %v5152 = vadd.f32 0.0, %v5151
      %5153 = vmatprep.mubr.bf16.mxu0 %v4614
      %5154 = vmatmul.mubr.bf16.gmra.mxu0 %v4613
      %v5155 = vpop.f32.mrf.mxu0
      %v5156 = vadd.f32 0.0, %v5155
      %v5157 = vpop.f32.mrf.mxu0
      %v5158 = vadd.f32 0.0, %v5157
      %v5159 = vpop.f32.mrf.mxu0
      %v5160 = vadd.f32 0.0, %v5159
      %v5161 = vpop.f32.mrf.mxu0
      %v5162 = vadd.f32 0.0, %v5161
      %5163 = vmatprep.mubr.bf16.mxu0 %v4616
      %5164 = vmatmul.mubr.bf16.gmra.mxu0 %v4615
      %v5165 = vpop.f32.mrf.mxu0
      %v5166 = vadd.f32 0.0, %v5165
      %v5167 = vpop.f32.mrf.mxu0
      %v5168 = vadd.f32 0.0, %v5167
      %v5169 = vpop.f32.mrf.mxu0
      %v5170 = vadd.f32 0.0, %v5169
      %v5171 = vpop.f32.mrf.mxu0
      %v5172 = vadd.f32 0.0, %v5171
      %5173 = vmatprep.mubr.bf16.mxu0 %v4618
      %5174 = vmatmul.mubr.bf16.gmra.mxu0 %v4617
      %v5175 = vpop.f32.mrf.mxu0
      %v5176 = vadd.f32 0.0, %v5175
      %v5177 = vpop.f32.mrf.mxu0
      %v5178 = vadd.f32 0.0, %v5177
      %v5179 = vpop.f32.mrf.mxu0
      %v5180 = vadd.f32 0.0, %v5179
      %v5181 = vpop.f32.mrf.mxu0
      %v5182 = vadd.f32 0.0, %v5181
      %5183 = vmatprep.mubr.bf16.mxu0 %v4620
      %5184 = vmatmul.mubr.bf16.gmra.mxu0 %v4619
      %v5185 = vpop.f32.mrf.mxu0
      %v5186 = vadd.f32 0.0, %v5185
      %v5187 = vpop.f32.mrf.mxu0
      %v5188 = vadd.f32 0.0, %v5187
      %v5189 = vpop.f32.mrf.mxu0
      %v5190 = vadd.f32 0.0, %v5189
      %v5191 = vpop.f32.mrf.mxu0
      %v5192 = vadd.f32 0.0, %v5191
      %5193 = vmatprep.mubr.bf16.mxu0 %v4622
      %5194 = vmatmul.mubr.bf16.gmra.mxu0 %v4621
      %v5195 = vpop.f32.mrf.mxu0
      %v5196 = vadd.f32 0.0, %v5195
      %v5197 = vpop.f32.mrf.mxu0
      %v5198 = vadd.f32 0.0, %v5197
      %v5199 = vpop.f32.mrf.mxu0
      %v5200 = vadd.f32 0.0, %v5199
      %v5201 = vpop.f32.mrf.mxu0
      %v5202 = vadd.f32 0.0, %v5201
      %5203 = vdwg.mxu0
      %5204 = vmatprep.subr.bf16.mxu0 %v4374
      %5205 = vmatpush1.bf16.msra.mxu0 %v4373
      %5206 = vmatprep.subr.bf16.mxu0 %v4354
      %5207 = vmatpush1.bf16.msra.mxu0 %v4353
      %5208 = vmatprep.subr.bf16.mxu0 %v4334
      %5209 = vmatpush1.bf16.msra.mxu0 %v4333
      %5210 = vmatprep.subr.bf16.mxu0 %v4314
      %5211 = vmatpush1.bf16.msra.mxu0 %v4313
      %5212 = vmatprep.subr.bf16.mxu0 %v4294
      %5213 = vmatpush1.bf16.msra.mxu0 %v4293
      %5214 = vmatprep.subr.bf16.mxu0 %v4274
      %5215 = vmatpush1.bf16.msra.mxu0 %v4273
      %5216 = vmatprep.subr.bf16.mxu0 %v4254
      %5217 = vmatpush1.bf16.msra.mxu0 %v4253
      %5218 = vmatprep.subr.bf16.mxu0 %v4234
      %5219 = vmatpush1.bf16.msra.mxu0 %v4233
      %5220 = vmatprep.subr.bf16.mxu0 %v4534
      %5221 = vmatpush2.bf16.msra.mxu0 %v4533
      %5222 = vmatprep.subr.bf16.mxu0 %v4514
      %5223 = vmatpush2.bf16.msra.mxu0 %v4513
      %5224 = vmatprep.subr.bf16.mxu0 %v4494
      %5225 = vmatpush2.bf16.msra.mxu0 %v4493
      %5226 = vmatprep.subr.bf16.mxu0 %v4474
      %5227 = vmatpush2.bf16.msra.mxu0 %v4473
      %5228 = vmatprep.subr.bf16.mxu0 %v4454
      %5229 = vmatpush2.bf16.msra.mxu0 %v4453
      %5230 = vmatprep.subr.bf16.mxu0 %v4434
      %5231 = vmatpush2.bf16.msra.mxu0 %v4433
      %5232 = vmatprep.subr.bf16.mxu0 %v4414
      %5233 = vmatpush2.bf16.msra.mxu0 %v4413
      %5234 = vmatprep.subr.bf16.mxu0 %v4394
      %5235 = vmatpush2.bf16.msra.mxu0 %v4393
      %5236 = vmatprep.mubr.bf16.mxu0 %v4608
      %5237 = vmatmul.mubr.bf16.gmra.mxu0 %v4607
      %v5238 = vpop.f32.mrf.mxu0
      %v5239 = vadd.f32 0.0, %v5238
      %v5240 = vpop.f32.mrf.mxu0
      %v5241 = vadd.f32 0.0, %v5240
      %v5242 = vpop.f32.mrf.mxu0
      %v5243 = vadd.f32 0.0, %v5242
      %v5244 = vpop.f32.mrf.mxu0
      %v5245 = vadd.f32 0.0, %v5244
      %5246 = vmatprep.mubr.bf16.mxu0 %v4610
      %5247 = vmatmul.mubr.bf16.gmra.mxu0 %v4609
      %v5248 = vpop.f32.mrf.mxu0
      %v5249 = vadd.f32 0.0, %v5248
      %v5250 = vpop.f32.mrf.mxu0
      %v5251 = vadd.f32 0.0, %v5250
      %v5252 = vpop.f32.mrf.mxu0
      %v5253 = vadd.f32 0.0, %v5252
      %v5254 = vpop.f32.mrf.mxu0
      %v5255 = vadd.f32 0.0, %v5254
      %5256 = vmatprep.mubr.bf16.mxu0 %v4612
      %5257 = vmatmul.mubr.bf16.gmra.mxu0 %v4611
      %v5258 = vpop.f32.mrf.mxu0
      %v5259 = vadd.f32 0.0, %v5258
      %v5260 = vpop.f32.mrf.mxu0
      %v5261 = vadd.f32 0.0, %v5260
      %v5262 = vpop.f32.mrf.mxu0
      %v5263 = vadd.f32 0.0, %v5262
      %v5264 = vpop.f32.mrf.mxu0
      %v5265 = vadd.f32 0.0, %v5264
      %5266 = vmatprep.mubr.bf16.mxu0 %v4614
      %5267 = vmatmul.mubr.bf16.gmra.mxu0 %v4613
      %v5268 = vpop.f32.mrf.mxu0
      %v5269 = vadd.f32 0.0, %v5268
      %v5270 = vpop.f32.mrf.mxu0
      %v5271 = vadd.f32 0.0, %v5270
      %v5272 = vpop.f32.mrf.mxu0
      %v5273 = vadd.f32 0.0, %v5272
      %v5274 = vpop.f32.mrf.mxu0
      %v5275 = vadd.f32 0.0, %v5274
      %5276 = vmatprep.mubr.bf16.mxu0 %v4616
      %5277 = vmatmul.mubr.bf16.gmra.mxu0 %v4615
      %v5278 = vpop.f32.mrf.mxu0
      %v5279 = vadd.f32 0.0, %v5278
      %v5280 = vpop.f32.mrf.mxu0
      %v5281 = vadd.f32 0.0, %v5280
      %v5282 = vpop.f32.mrf.mxu0
      %v5283 = vadd.f32 0.0, %v5282
      %v5284 = vpop.f32.mrf.mxu0
      %v5285 = vadd.f32 0.0, %v5284
      %5286 = vmatprep.mubr.bf16.mxu0 %v4618
      %5287 = vmatmul.mubr.bf16.gmra.mxu0 %v4617
      %v5288 = vpop.f32.mrf.mxu0
      %v5289 = vadd.f32 0.0, %v5288
      %v5290 = vpop.f32.mrf.mxu0
      %v5291 = vadd.f32 0.0, %v5290
      %v5292 = vpop.f32.mrf.mxu0
      %v5293 = vadd.f32 0.0, %v5292
      %v5294 = vpop.f32.mrf.mxu0
      %v5295 = vadd.f32 0.0, %v5294
      %5296 = vmatprep.mubr.bf16.mxu0 %v4620
      %5297 = vmatmul.mubr.bf16.gmra.mxu0 %v4619
      %v5298 = vpop.f32.mrf.mxu0
      %v5299 = vadd.f32 0.0, %v5298
      %v5300 = vpop.f32.mrf.mxu0
      %v5301 = vadd.f32 0.0, %v5300
      %v5302 = vpop.f32.mrf.mxu0
      %v5303 = vadd.f32 0.0, %v5302
      %v5304 = vpop.f32.mrf.mxu0
      %v5305 = vadd.f32 0.0, %v5304
      %5306 = vmatprep.mubr.bf16.mxu0 %v4622
      %5307 = vmatmul.mubr.bf16.gmra.mxu0 %v4621
      %v5308 = vpop.f32.mrf.mxu0
      %v5309 = vadd.f32 0.0, %v5308
      %v5310 = vpop.f32.mrf.mxu0
      %v5311 = vadd.f32 0.0, %v5310
      %v5312 = vpop.f32.mrf.mxu0
      %v5313 = vadd.f32 0.0, %v5312
      %v5314 = vpop.f32.mrf.mxu0
      %v5315 = vadd.f32 0.0, %v5314
      %5316 = vdwg.mxu0
      %5317 = vmatprep.subr.bf16.mxu0 %v4376
      %5318 = vmatpush1.bf16.msra.mxu0 %v4375
      %5319 = vmatprep.subr.bf16.mxu0 %v4356
      %5320 = vmatpush1.bf16.msra.mxu0 %v4355
      %5321 = vmatprep.subr.bf16.mxu0 %v4336
      %5322 = vmatpush1.bf16.msra.mxu0 %v4335
      %5323 = vmatprep.subr.bf16.mxu0 %v4316
      %5324 = vmatpush1.bf16.msra.mxu0 %v4315
      %5325 = vmatprep.subr.bf16.mxu0 %v4296
      %5326 = vmatpush1.bf16.msra.mxu0 %v4295
      %5327 = vmatprep.subr.bf16.mxu0 %v4276
      %5328 = vmatpush1.bf16.msra.mxu0 %v4275
      %5329 = vmatprep.subr.bf16.mxu0 %v4256
      %5330 = vmatpush1.bf16.msra.mxu0 %v4255
      %5331 = vmatprep.subr.bf16.mxu0 %v4236
      %5332 = vmatpush1.bf16.msra.mxu0 %v4235
      %5333 = vmatprep.subr.bf16.mxu0 %v4536
      %5334 = vmatpush2.bf16.msra.mxu0 %v4535
      %5335 = vmatprep.subr.bf16.mxu0 %v4516
      %5336 = vmatpush2.bf16.msra.mxu0 %v4515
      %5337 = vmatprep.subr.bf16.mxu0 %v4496
      %5338 = vmatpush2.bf16.msra.mxu0 %v4495
      %5339 = vmatprep.subr.bf16.mxu0 %v4476
      %5340 = vmatpush2.bf16.msra.mxu0 %v4475
      %5341 = vmatprep.subr.bf16.mxu0 %v4456
      %5342 = vmatpush2.bf16.msra.mxu0 %v4455
      %5343 = vmatprep.subr.bf16.mxu0 %v4436
      %5344 = vmatpush2.bf16.msra.mxu0 %v4435
      %5345 = vmatprep.subr.bf16.mxu0 %v4416
      %5346 = vmatpush2.bf16.msra.mxu0 %v4415
      %5347 = vmatprep.subr.bf16.mxu0 %v4396
      %5348 = vmatpush2.bf16.msra.mxu0 %v4395
      %5349 = vmatprep.mubr.bf16.mxu0 %v4608
      %5350 = vmatmul.mubr.bf16.gmra.mxu0 %v4607
      %v5351 = vpop.f32.mrf.mxu0
      %v5352 = vadd.f32 0.0, %v5351
      %v5353 = vpop.f32.mrf.mxu0
      %v5354 = vadd.f32 0.0, %v5353
      %v5355 = vpop.f32.mrf.mxu0
      %v5356 = vadd.f32 0.0, %v5355
      %v5357 = vpop.f32.mrf.mxu0
      %v5358 = vadd.f32 0.0, %v5357
      %5359 = vmatprep.mubr.bf16.mxu0 %v4610
      %5360 = vmatmul.mubr.bf16.gmra.mxu0 %v4609
      %v5361 = vpop.f32.mrf.mxu0
      %v5362 = vadd.f32 0.0, %v5361
      %v5363 = vpop.f32.mrf.mxu0
      %v5364 = vadd.f32 0.0, %v5363
      %v5365 = vpop.f32.mrf.mxu0
      %v5366 = vadd.f32 0.0, %v5365
      %v5367 = vpop.f32.mrf.mxu0
      %v5368 = vadd.f32 0.0, %v5367
      %5369 = vmatprep.mubr.bf16.mxu0 %v4612
      %5370 = vmatmul.mubr.bf16.gmra.mxu0 %v4611
      %v5371 = vpop.f32.mrf.mxu0
      %v5372 = vadd.f32 0.0, %v5371
      %v5373 = vpop.f32.mrf.mxu0
      %v5374 = vadd.f32 0.0, %v5373
      %v5375 = vpop.f32.mrf.mxu0
      %v5376 = vadd.f32 0.0, %v5375
      %v5377 = vpop.f32.mrf.mxu0
      %v5378 = vadd.f32 0.0, %v5377
      %5379 = vmatprep.mubr.bf16.mxu0 %v4614
      %5380 = vmatmul.mubr.bf16.gmra.mxu0 %v4613
      %v5381 = vpop.f32.mrf.mxu0
      %v5382 = vadd.f32 0.0, %v5381
      %v5383 = vpop.f32.mrf.mxu0
      %v5384 = vadd.f32 0.0, %v5383
      %v5385 = vpop.f32.mrf.mxu0
      %v5386 = vadd.f32 0.0, %v5385
      %v5387 = vpop.f32.mrf.mxu0
      %v5388 = vadd.f32 0.0, %v5387
      %5389 = vmatprep.mubr.bf16.mxu0 %v4616
      %5390 = vmatmul.mubr.bf16.gmra.mxu0 %v4615
      %v5391 = vpop.f32.mrf.mxu0
      %v5392 = vadd.f32 0.0, %v5391
      %v5393 = vpop.f32.mrf.mxu0
      %v5394 = vadd.f32 0.0, %v5393
      %v5395 = vpop.f32.mrf.mxu0
      %v5396 = vadd.f32 0.0, %v5395
      %v5397 = vpop.f32.mrf.mxu0
      %v5398 = vadd.f32 0.0, %v5397
      %5399 = vmatprep.mubr.bf16.mxu0 %v4618
      %5400 = vmatmul.mubr.bf16.gmra.mxu0 %v4617
      %v5401 = vpop.f32.mrf.mxu0
      %v5402 = vadd.f32 0.0, %v5401
      %v5403 = vpop.f32.mrf.mxu0
      %v5404 = vadd.f32 0.0, %v5403
      %v5405 = vpop.f32.mrf.mxu0
      %v5406 = vadd.f32 0.0, %v5405
      %v5407 = vpop.f32.mrf.mxu0
      %v5408 = vadd.f32 0.0, %v5407
      %5409 = vmatprep.mubr.bf16.mxu0 %v4620
      %5410 = vmatmul.mubr.bf16.gmra.mxu0 %v4619
      %v5411 = vpop.f32.mrf.mxu0
      %v5412 = vadd.f32 0.0, %v5411
      %v5413 = vpop.f32.mrf.mxu0
      %v5414 = vadd.f32 0.0, %v5413
      %v5415 = vpop.f32.mrf.mxu0
      %v5416 = vadd.f32 0.0, %v5415
      %v5417 = vpop.f32.mrf.mxu0
      %v5418 = vadd.f32 0.0, %v5417
      %5419 = vmatprep.mubr.bf16.mxu0 %v4622
      %5420 = vmatmul.mubr.bf16.gmra.mxu0 %v4621
      %v5421 = vpop.f32.mrf.mxu0
      %v5422 = vadd.f32 0.0, %v5421
      %v5423 = vpop.f32.mrf.mxu0
      %v5424 = vadd.f32 0.0, %v5423
      %v5425 = vpop.f32.mrf.mxu0
      %v5426 = vadd.f32 0.0, %v5425
      %v5427 = vpop.f32.mrf.mxu0
      %v5428 = vadd.f32 0.0, %v5427
      %5429 = vdwg.mxu0
      %5430 = vmatprep.subr.bf16.mxu0 %v4378
      %5431 = vmatpush1.bf16.msra.mxu0 %v4377
      %5432 = vmatprep.subr.bf16.mxu0 %v4358
      %5433 = vmatpush1.bf16.msra.mxu0 %v4357
      %5434 = vmatprep.subr.bf16.mxu0 %v4338
      %5435 = vmatpush1.bf16.msra.mxu0 %v4337
      %5436 = vmatprep.subr.bf16.mxu0 %v4318
      %5437 = vmatpush1.bf16.msra.mxu0 %v4317
      %5438 = vmatprep.subr.bf16.mxu0 %v4298
      %5439 = vmatpush1.bf16.msra.mxu0 %v4297
      %5440 = vmatprep.subr.bf16.mxu0 %v4278
      %5441 = vmatpush1.bf16.msra.mxu0 %v4277
      %5442 = vmatprep.subr.bf16.mxu0 %v4258
      %5443 = vmatpush1.bf16.msra.mxu0 %v4257
      %5444 = vmatprep.subr.bf16.mxu0 %v4238
      %5445 = vmatpush1.bf16.msra.mxu0 %v4237
      %5446 = vmatprep.subr.bf16.mxu0 %v4538
      %5447 = vmatpush2.bf16.msra.mxu0 %v4537
      %5448 = vmatprep.subr.bf16.mxu0 %v4518
      %5449 = vmatpush2.bf16.msra.mxu0 %v4517
      %5450 = vmatprep.subr.bf16.mxu0 %v4498
      %5451 = vmatpush2.bf16.msra.mxu0 %v4497
      %5452 = vmatprep.subr.bf16.mxu0 %v4478
      %5453 = vmatpush2.bf16.msra.mxu0 %v4477
      %5454 = vmatprep.subr.bf16.mxu0 %v4458
      %5455 = vmatpush2.bf16.msra.mxu0 %v4457
      %5456 = vmatprep.subr.bf16.mxu0 %v4438
      %5457 = vmatpush2.bf16.msra.mxu0 %v4437
      %5458 = vmatprep.subr.bf16.mxu0 %v4418
      %5459 = vmatpush2.bf16.msra.mxu0 %v4417
      %5460 = vmatprep.subr.bf16.mxu0 %v4398
      %5461 = vmatpush2.bf16.msra.mxu0 %v4397
      %5462 = vmatprep.mubr.bf16.mxu0 %v4608
      %5463 = vmatmul.mubr.bf16.gmra.mxu0 %v4607
      %v5464 = vpop.f32.mrf.mxu0
      %v5465 = vadd.f32 0.0, %v5464
      %v5466 = vpop.f32.mrf.mxu0
      %v5467 = vadd.f32 0.0, %v5466
      %v5468 = vpop.f32.mrf.mxu0
      %v5469 = vadd.f32 0.0, %v5468
      %v5470 = vpop.f32.mrf.mxu0
      %v5471 = vadd.f32 0.0, %v5470
      %5472 = vmatprep.mubr.bf16.mxu0 %v4610
      %5473 = vmatmul.mubr.bf16.gmra.mxu0 %v4609
      %v5474 = vpop.f32.mrf.mxu0
      %v5475 = vadd.f32 0.0, %v5474
      %v5476 = vpop.f32.mrf.mxu0
      %v5477 = vadd.f32 0.0, %v5476
      %v5478 = vpop.f32.mrf.mxu0
      %v5479 = vadd.f32 0.0, %v5478
      %v5480 = vpop.f32.mrf.mxu0
      %v5481 = vadd.f32 0.0, %v5480
      %5482 = vmatprep.mubr.bf16.mxu0 %v4612
      %5483 = vmatmul.mubr.bf16.gmra.mxu0 %v4611
      %v5484 = vpop.f32.mrf.mxu0
      %v5485 = vadd.f32 0.0, %v5484
      %v5486 = vpop.f32.mrf.mxu0
      %v5487 = vadd.f32 0.0, %v5486
      %v5488 = vpop.f32.mrf.mxu0
      %v5489 = vadd.f32 0.0, %v5488
      %v5490 = vpop.f32.mrf.mxu0
      %v5491 = vadd.f32 0.0, %v5490
      %5492 = vmatprep.mubr.bf16.mxu0 %v4614
      %5493 = vmatmul.mubr.bf16.gmra.mxu0 %v4613
      %v5494 = vpop.f32.mrf.mxu0
      %v5495 = vadd.f32 0.0, %v5494
      %v5496 = vpop.f32.mrf.mxu0
      %v5497 = vadd.f32 0.0, %v5496
      %v5498 = vpop.f32.mrf.mxu0
      %v5499 = vadd.f32 0.0, %v5498
      %v5500 = vpop.f32.mrf.mxu0
      %v5501 = vadd.f32 0.0, %v5500
      %5502 = vmatprep.mubr.bf16.mxu0 %v4616
      %5503 = vmatmul.mubr.bf16.gmra.mxu0 %v4615
      %v5504 = vpop.f32.mrf.mxu0
      %v5505 = vadd.f32 0.0, %v5504
      %v5506 = vpop.f32.mrf.mxu0
      %v5507 = vadd.f32 0.0, %v5506
      %v5508 = vpop.f32.mrf.mxu0
      %v5509 = vadd.f32 0.0, %v5508
      %v5510 = vpop.f32.mrf.mxu0
      %v5511 = vadd.f32 0.0, %v5510
      %5512 = vmatprep.mubr.bf16.mxu0 %v4618
      %5513 = vmatmul.mubr.bf16.gmra.mxu0 %v4617
      %v5514 = vpop.f32.mrf.mxu0
      %v5515 = vadd.f32 0.0, %v5514
      %v5516 = vpop.f32.mrf.mxu0
      %v5517 = vadd.f32 0.0, %v5516
      %v5518 = vpop.f32.mrf.mxu0
      %v5519 = vadd.f32 0.0, %v5518
      %v5520 = vpop.f32.mrf.mxu0
      %v5521 = vadd.f32 0.0, %v5520
      %5522 = vmatprep.mubr.bf16.mxu0 %v4620
      %5523 = vmatmul.mubr.bf16.gmra.mxu0 %v4619
      %v5524 = vpop.f32.mrf.mxu0
      %v5525 = vadd.f32 0.0, %v5524
      %v5526 = vpop.f32.mrf.mxu0
      %v5527 = vadd.f32 0.0, %v5526
      %v5528 = vpop.f32.mrf.mxu0
      %v5529 = vadd.f32 0.0, %v5528
      %v5530 = vpop.f32.mrf.mxu0
      %v5531 = vadd.f32 0.0, %v5530
      %5532 = vmatprep.mubr.bf16.mxu0 %v4622
      %5533 = vmatmul.mubr.bf16.gmra.mxu0 %v4621
      %v5534 = vpop.f32.mrf.mxu0
      %v5535 = vadd.f32 0.0, %v5534
      %v5536 = vpop.f32.mrf.mxu0
      %v5537 = vadd.f32 0.0, %v5536
      %v5538 = vpop.f32.mrf.mxu0
      %v5539 = vadd.f32 0.0, %v5538
      %v5540 = vpop.f32.mrf.mxu0
      %v5541 = vadd.f32 0.0, %v5540
      %5542 = vdwg.mxu0
      %5543 = vmatprep.subr.bf16.mxu0 %v4380
      %5544 = vmatpush1.bf16.msra.mxu0 %v4379
      %5545 = vmatprep.subr.bf16.mxu0 %v4360
      %5546 = vmatpush1.bf16.msra.mxu0 %v4359
      %5547 = vmatprep.subr.bf16.mxu0 %v4340
      %5548 = vmatpush1.bf16.msra.mxu0 %v4339
      %5549 = vmatprep.subr.bf16.mxu0 %v4320
      %5550 = vmatpush1.bf16.msra.mxu0 %v4319
      %5551 = vmatprep.subr.bf16.mxu0 %v4300
      %5552 = vmatpush1.bf16.msra.mxu0 %v4299
      %5553 = vmatprep.subr.bf16.mxu0 %v4280
      %5554 = vmatpush1.bf16.msra.mxu0 %v4279
      %5555 = vmatprep.subr.bf16.mxu0 %v4260
      %5556 = vmatpush1.bf16.msra.mxu0 %v4259
      %5557 = vmatprep.subr.bf16.mxu0 %v4240
      %5558 = vmatpush1.bf16.msra.mxu0 %v4239
      %5559 = vmatprep.subr.bf16.mxu0 %v4540
      %5560 = vmatpush2.bf16.msra.mxu0 %v4539
      %5561 = vmatprep.subr.bf16.mxu0 %v4520
      %5562 = vmatpush2.bf16.msra.mxu0 %v4519
      %5563 = vmatprep.subr.bf16.mxu0 %v4500
      %5564 = vmatpush2.bf16.msra.mxu0 %v4499
      %5565 = vmatprep.subr.bf16.mxu0 %v4480
      %5566 = vmatpush2.bf16.msra.mxu0 %v4479
      %5567 = vmatprep.subr.bf16.mxu0 %v4460
      %5568 = vmatpush2.bf16.msra.mxu0 %v4459
      %5569 = vmatprep.subr.bf16.mxu0 %v4440
      %5570 = vmatpush2.bf16.msra.mxu0 %v4439
      %5571 = vmatprep.subr.bf16.mxu0 %v4420
      %5572 = vmatpush2.bf16.msra.mxu0 %v4419
      %5573 = vmatprep.subr.bf16.mxu0 %v4400
      %5574 = vmatpush2.bf16.msra.mxu0 %v4399
      %5575 = vmatprep.mubr.bf16.mxu0 %v4608
      %5576 = vmatmul.mubr.bf16.gmra.mxu0 %v4607
      %v5577 = vpop.f32.mrf.mxu0
      %v5578 = vadd.f32 0.0, %v5577
      %v5579 = vpop.f32.mrf.mxu0
      %v5580 = vadd.f32 0.0, %v5579
      %v5581 = vpop.f32.mrf.mxu0
      %v5582 = vadd.f32 0.0, %v5581
      %v5583 = vpop.f32.mrf.mxu0
      %v5584 = vadd.f32 0.0, %v5583
      %5585 = vmatprep.mubr.bf16.mxu0 %v4610
      %5586 = vmatmul.mubr.bf16.gmra.mxu0 %v4609
      %v5587 = vpop.f32.mrf.mxu0
      %v5588 = vadd.f32 0.0, %v5587
      %v5589 = vpop.f32.mrf.mxu0
      %v5590 = vadd.f32 0.0, %v5589
      %v5591 = vpop.f32.mrf.mxu0
      %v5592 = vadd.f32 0.0, %v5591
      %v5593 = vpop.f32.mrf.mxu0
      %v5594 = vadd.f32 0.0, %v5593
      %5595 = vmatprep.mubr.bf16.mxu0 %v4612
      %5596 = vmatmul.mubr.bf16.gmra.mxu0 %v4611
      %v5597 = vpop.f32.mrf.mxu0
      %v5598 = vadd.f32 0.0, %v5597
      %v5599 = vpop.f32.mrf.mxu0
      %v5600 = vadd.f32 0.0, %v5599
      %v5601 = vpop.f32.mrf.mxu0
      %v5602 = vadd.f32 0.0, %v5601
      %v5603 = vpop.f32.mrf.mxu0
      %v5604 = vadd.f32 0.0, %v5603
      %5605 = vmatprep.mubr.bf16.mxu0 %v4614
      %5606 = vmatmul.mubr.bf16.gmra.mxu0 %v4613
      %v5607 = vpop.f32.mrf.mxu0
      %v5608 = vadd.f32 0.0, %v5607
      %v5609 = vpop.f32.mrf.mxu0
      %v5610 = vadd.f32 0.0, %v5609
      %v5611 = vpop.f32.mrf.mxu0
      %v5612 = vadd.f32 0.0, %v5611
      %v5613 = vpop.f32.mrf.mxu0
      %v5614 = vadd.f32 0.0, %v5613
      %5615 = vmatprep.mubr.bf16.mxu0 %v4616
      %5616 = vmatmul.mubr.bf16.gmra.mxu0 %v4615
      %v5617 = vpop.f32.mrf.mxu0
      %v5618 = vadd.f32 0.0, %v5617
      %v5619 = vpop.f32.mrf.mxu0
      %v5620 = vadd.f32 0.0, %v5619
      %v5621 = vpop.f32.mrf.mxu0
      %v5622 = vadd.f32 0.0, %v5621
      %v5623 = vpop.f32.mrf.mxu0
      %v5624 = vadd.f32 0.0, %v5623
      %5625 = vmatprep.mubr.bf16.mxu0 %v4618
      %5626 = vmatmul.mubr.bf16.gmra.mxu0 %v4617
      %v5627 = vpop.f32.mrf.mxu0
      %v5628 = vadd.f32 0.0, %v5627
      %v5629 = vpop.f32.mrf.mxu0
      %v5630 = vadd.f32 0.0, %v5629
      %v5631 = vpop.f32.mrf.mxu0
      %v5632 = vadd.f32 0.0, %v5631
      %v5633 = vpop.f32.mrf.mxu0
      %v5634 = vadd.f32 0.0, %v5633
      %5635 = vmatprep.mubr.bf16.mxu0 %v4620
      %5636 = vmatmul.mubr.bf16.gmra.mxu0 %v4619
      %v5637 = vpop.f32.mrf.mxu0
      %v5638 = vadd.f32 0.0, %v5637
      %v5639 = vpop.f32.mrf.mxu0
      %v5640 = vadd.f32 0.0, %v5639
      %v5641 = vpop.f32.mrf.mxu0
      %v5642 = vadd.f32 0.0, %v5641
      %v5643 = vpop.f32.mrf.mxu0
      %v5644 = vadd.f32 0.0, %v5643
      %5645 = vmatprep.mubr.bf16.mxu0 %v4622
      %5646 = vmatmul.mubr.bf16.gmra.mxu0 %v4621
      %v5647 = vpop.f32.mrf.mxu0
      %v5648 = vadd.f32 0.0, %v5647
      %v5649 = vpop.f32.mrf.mxu0
      %v5650 = vadd.f32 0.0, %v5649
      %v5651 = vpop.f32.mrf.mxu0
      %v5652 = vadd.f32 0.0, %v5651
      %v5653 = vpop.f32.mrf.mxu0
      %v5654 = vadd.f32 0.0, %v5653
      %5655 = vdwg.mxu0
      %5656 = vmatprep.subr.bf16.mxu0 %v4382
      %5657 = vmatpush1.bf16.msra.mxu0 %v4381
      %5658 = vmatprep.subr.bf16.mxu0 %v4362
      %5659 = vmatpush1.bf16.msra.mxu0 %v4361
      %5660 = vmatprep.subr.bf16.mxu0 %v4342
      %5661 = vmatpush1.bf16.msra.mxu0 %v4341
      %5662 = vmatprep.subr.bf16.mxu0 %v4322
      %5663 = vmatpush1.bf16.msra.mxu0 %v4321
      %5664 = vmatprep.subr.bf16.mxu0 %v4302
      %5665 = vmatpush1.bf16.msra.mxu0 %v4301
      %5666 = vmatprep.subr.bf16.mxu0 %v4282
      %5667 = vmatpush1.bf16.msra.mxu0 %v4281
      %5668 = vmatprep.subr.bf16.mxu0 %v4262
      %5669 = vmatpush1.bf16.msra.mxu0 %v4261
      %5670 = vmatprep.subr.bf16.mxu0 %v4242
      %5671 = vmatpush1.bf16.msra.mxu0 %v4241
      %5672 = vmatprep.subr.bf16.mxu0 %v4542
      %5673 = vmatpush2.bf16.msra.mxu0 %v4541
      %5674 = vmatprep.subr.bf16.mxu0 %v4522
      %5675 = vmatpush2.bf16.msra.mxu0 %v4521
      %5676 = vmatprep.subr.bf16.mxu0 %v4502
      %5677 = vmatpush2.bf16.msra.mxu0 %v4501
      %5678 = vmatprep.subr.bf16.mxu0 %v4482
      %5679 = vmatpush2.bf16.msra.mxu0 %v4481
      %5680 = vmatprep.subr.bf16.mxu0 %v4462
      %5681 = vmatpush2.bf16.msra.mxu0 %v4461
      %5682 = vmatprep.subr.bf16.mxu0 %v4442
      %5683 = vmatpush2.bf16.msra.mxu0 %v4441
      %5684 = vmatprep.subr.bf16.mxu0 %v4422
      %5685 = vmatpush2.bf16.msra.mxu0 %v4421
      %5686 = vmatprep.subr.bf16.mxu0 %v4402
      %5687 = vmatpush2.bf16.msra.mxu0 %v4401
      %5688 = vmatprep.mubr.bf16.mxu0 %v4608
      %5689 = vmatmul.mubr.bf16.gmra.mxu0 %v4607
      %v5690 = vpop.f32.mrf.mxu0
      %v5691 = vadd.f32 0.0, %v5690
      %v5692 = vpop.f32.mrf.mxu0
      %v5693 = vadd.f32 0.0, %v5692
      %v5694 = vpop.f32.mrf.mxu0
      %v5695 = vadd.f32 0.0, %v5694
      %v5696 = vpop.f32.mrf.mxu0
      %v5697 = vadd.f32 0.0, %v5696
      %5698 = vmatprep.mubr.bf16.mxu0 %v4610
      %5699 = vmatmul.mubr.bf16.gmra.mxu0 %v4609
      %v5700 = vpop.f32.mrf.mxu0
      %v5701 = vadd.f32 0.0, %v5700
      %v5702 = vpop.f32.mrf.mxu0
      %v5703 = vadd.f32 0.0, %v5702
      %v5704 = vpop.f32.mrf.mxu0
      %v5705 = vadd.f32 0.0, %v5704
      %v5706 = vpop.f32.mrf.mxu0
      %v5707 = vadd.f32 0.0, %v5706
      %5708 = vmatprep.mubr.bf16.mxu0 %v4612
      %5709 = vmatmul.mubr.bf16.gmra.mxu0 %v4611
      %v5710 = vpop.f32.mrf.mxu0
      %v5711 = vadd.f32 0.0, %v5710
      %v5712 = vpop.f32.mrf.mxu0
      %v5713 = vadd.f32 0.0, %v5712
      %v5714 = vpop.f32.mrf.mxu0
      %v5715 = vadd.f32 0.0, %v5714
      %v5716 = vpop.f32.mrf.mxu0
      %v5717 = vadd.f32 0.0, %v5716
      %5718 = vmatprep.mubr.bf16.mxu0 %v4614
      %5719 = vmatmul.mubr.bf16.gmra.mxu0 %v4613
      %v5720 = vpop.f32.mrf.mxu0
      %v5721 = vadd.f32 0.0, %v5720
      %v5722 = vpop.f32.mrf.mxu0
      %v5723 = vadd.f32 0.0, %v5722
      %v5724 = vpop.f32.mrf.mxu0
      %v5725 = vadd.f32 0.0, %v5724
      %v5726 = vpop.f32.mrf.mxu0
      %v5727 = vadd.f32 0.0, %v5726
      %5728 = vmatprep.mubr.bf16.mxu0 %v4616
      %5729 = vmatmul.mubr.bf16.gmra.mxu0 %v4615
      %v5730 = vpop.f32.mrf.mxu0
      %v5731 = vadd.f32 0.0, %v5730
      %v5732 = vpop.f32.mrf.mxu0
      %v5733 = vadd.f32 0.0, %v5732
      %v5734 = vpop.f32.mrf.mxu0
      %v5735 = vadd.f32 0.0, %v5734
      %v5736 = vpop.f32.mrf.mxu0
      %v5737 = vadd.f32 0.0, %v5736
      %5738 = vmatprep.mubr.bf16.mxu0 %v4618
      %5739 = vmatmul.mubr.bf16.gmra.mxu0 %v4617
      %v5740 = vpop.f32.mrf.mxu0
      %v5741 = vadd.f32 0.0, %v5740
      %v5742 = vpop.f32.mrf.mxu0
      %v5743 = vadd.f32 0.0, %v5742
      %v5744 = vpop.f32.mrf.mxu0
      %v5745 = vadd.f32 0.0, %v5744
      %v5746 = vpop.f32.mrf.mxu0
      %v5747 = vadd.f32 0.0, %v5746
      %5748 = vmatprep.mubr.bf16.mxu0 %v4620
      %5749 = vmatmul.mubr.bf16.gmra.mxu0 %v4619
      %v5750 = vpop.f32.mrf.mxu0
      %v5751 = vadd.f32 0.0, %v5750
      %v5752 = vpop.f32.mrf.mxu0
      %v5753 = vadd.f32 0.0, %v5752
      %v5754 = vpop.f32.mrf.mxu0
      %v5755 = vadd.f32 0.0, %v5754
      %v5756 = vpop.f32.mrf.mxu0
      %v5757 = vadd.f32 0.0, %v5756
      %5758 = vmatprep.mubr.bf16.mxu0 %v4622
      %5759 = vmatmul.mubr.bf16.gmra.mxu0 %v4621
      %v5760 = vpop.f32.mrf.mxu0
      %v5761 = vadd.f32 0.0, %v5760
      %v5762 = vpop.f32.mrf.mxu0
      %v5763 = vadd.f32 0.0, %v5762
      %v5764 = vpop.f32.mrf.mxu0
      %v5765 = vadd.f32 0.0, %v5764
      %v5766 = vpop.f32.mrf.mxu0
      %v5767 = vadd.f32 0.0, %v5766
      %5768 = vdwg.mxu0
      %v5769 = vld [vmem:[%s4] sm:$0xff]
      %v5770 = vld [vmem:[%s4 + $0x8] sm:$0xff]
      %v5771 = vld [vmem:[%s4 + $0x10] sm:$0xff]
      %v5772 = vld [vmem:[%s4 + $0x18] sm:$0xff]
      %v5773 = vld [vmem:[%s4 + $0x20] sm:$0xff]
      %v5774 = vld [vmem:[%s4 + $0x28] sm:$0xff]
      %v5775 = vld [vmem:[%s4 + $0x30] sm:$0xff]
      %v5776 = vld [vmem:[%s4 + $0x38] sm:$0xff]
      %v5777 = vld [vmem:[%s4 + $0x40] sm:$0xff]
      %v5778 = vld [vmem:[%s4 + $0x48] sm:$0xff]
      %v5779 = vld [vmem:[%s4 + $0x50] sm:$0xff]
      %v5780 = vld [vmem:[%s4 + $0x58] sm:$0xff]
      %v5781 = vld [vmem:[%s4 + $0x60] sm:$0xff]
      %v5782 = vld [vmem:[%s4 + $0x68] sm:$0xff]
      %v5783 = vld [vmem:[%s4 + $0x70] sm:$0xff]
      %v5784 = vld [vmem:[%s4 + $0x78] sm:$0xff]
      %v5785 = vpack.c.bf16 %v5770, %v5769
      %v5786 = vpack.c.bf16 %v5772, %v5771
      %v5787 = vpack.c.bf16 %v5774, %v5773
      %v5788 = vpack.c.bf16 %v5776, %v5775
      %v5789 = vpack.c.bf16 %v5778, %v5777
      %v5790 = vpack.c.bf16 %v5780, %v5779
      %v5791 = vpack.c.bf16 %v5782, %v5781
      %v5792 = vpack.c.bf16 %v5784, %v5783
      %v5793 = vpack.c.bf16 %v4678, %v4674
      %v5794 = vpack.c.bf16 %v4680, %v4676
      %v5795 = vpack.c.bf16 %v4791, %v4787
      %v5796 = vpack.c.bf16 %v4793, %v4789
      %v5797 = vpack.c.bf16 %v4904, %v4900
      %v5798 = vpack.c.bf16 %v4906, %v4902
      %v5799 = vpack.c.bf16 %v5017, %v5013
      %v5800 = vpack.c.bf16 %v5019, %v5015
      %v5801 = vpack.c.bf16 %v5130, %v5126
      %v5802 = vpack.c.bf16 %v5132, %v5128
      %v5803 = vpack.c.bf16 %v5243, %v5239
      %v5804 = vpack.c.bf16 %v5245, %v5241
      %v5805 = vpack.c.bf16 %v5356, %v5352
      %v5806 = vpack.c.bf16 %v5358, %v5354
      %v5807 = vpack.c.bf16 %v5469, %v5465
      %v5808 = vpack.c.bf16 %v5471, %v5467
      %v5809 = vpack.c.bf16 %v5582, %v5578
      %v5810 = vpack.c.bf16 %v5584, %v5580
      %v5811 = vpack.c.bf16 %v5695, %v5691
      %v5812 = vpack.c.bf16 %v5697, %v5693
      %v5813 = vpack.c.bf16 %v4688, %v4684
      %v5814 = vpack.c.bf16 %v4690, %v4686
      %v5815 = vpack.c.bf16 %v4801, %v4797
      %v5816 = vpack.c.bf16 %v4803, %v4799
      %v5817 = vpack.c.bf16 %v4914, %v4910
      %v5818 = vpack.c.bf16 %v4916, %v4912
      %v5819 = vpack.c.bf16 %v5027, %v5023
      %v5820 = vpack.c.bf16 %v5029, %v5025
      %v5821 = vpack.c.bf16 %v5140, %v5136
      %v5822 = vpack.c.bf16 %v5142, %v5138
      %v5823 = vpack.c.bf16 %v5253, %v5249
      %v5824 = vpack.c.bf16 %v5255, %v5251
      %v5825 = vpack.c.bf16 %v5366, %v5362
      %v5826 = vpack.c.bf16 %v5368, %v5364
      %v5827 = vpack.c.bf16 %v5479, %v5475
      %v5828 = vpack.c.bf16 %v5481, %v5477
      %v5829 = vpack.c.bf16 %v5592, %v5588
      %v5830 = vpack.c.bf16 %v5594, %v5590
      %v5831 = vpack.c.bf16 %v5705, %v5701
      %v5832 = vpack.c.bf16 %v5707, %v5703
      %v5833 = vpack.c.bf16 %v4698, %v4694
      %v5834 = vpack.c.bf16 %v4700, %v4696
      %v5835 = vpack.c.bf16 %v4811, %v4807
      %v5836 = vpack.c.bf16 %v4813, %v4809
      %v5837 = vpack.c.bf16 %v4924, %v4920
      %v5838 = vpack.c.bf16 %v4926, %v4922
      %v5839 = vpack.c.bf16 %v5037, %v5033
      %v5840 = vpack.c.bf16 %v5039, %v5035
      %v5841 = vpack.c.bf16 %v5150, %v5146
      %v5842 = vpack.c.bf16 %v5152, %v5148
      %v5843 = vpack.c.bf16 %v5263, %v5259
      %v5844 = vpack.c.bf16 %v5265, %v5261
      %v5845 = vpack.c.bf16 %v5376, %v5372
      %v5846 = vpack.c.bf16 %v5378, %v5374
      %v5847 = vpack.c.bf16 %v5489, %v5485
      %v5848 = vpack.c.bf16 %v5491, %v5487
      %v5849 = vpack.c.bf16 %v5602, %v5598
      %v5850 = vpack.c.bf16 %v5604, %v5600
      %v5851 = vpack.c.bf16 %v5715, %v5711
      %v5852 = vpack.c.bf16 %v5717, %v5713
      %v5853 = vpack.c.bf16 %v4708, %v4704
      %v5854 = vpack.c.bf16 %v4710, %v4706
      %v5855 = vpack.c.bf16 %v4821, %v4817
      %v5856 = vpack.c.bf16 %v4823, %v4819
      %v5857 = vpack.c.bf16 %v4934, %v4930
      %v5858 = vpack.c.bf16 %v4936, %v4932
      %v5859 = vpack.c.bf16 %v5047, %v5043
      %v5860 = vpack.c.bf16 %v5049, %v5045
      %v5861 = vpack.c.bf16 %v5160, %v5156
      %v5862 = vpack.c.bf16 %v5162, %v5158
      %v5863 = vpack.c.bf16 %v5273, %v5269
      %v5864 = vpack.c.bf16 %v5275, %v5271
      %v5865 = vpack.c.bf16 %v5386, %v5382
      %v5866 = vpack.c.bf16 %v5388, %v5384
      %v5867 = vpack.c.bf16 %v5499, %v5495
      %v5868 = vpack.c.bf16 %v5501, %v5497
      %v5869 = vpack.c.bf16 %v5612, %v5608
      %v5870 = vpack.c.bf16 %v5614, %v5610
      %v5871 = vpack.c.bf16 %v5725, %v5721
      %v5872 = vpack.c.bf16 %v5727, %v5723
      %v5873 = vpack.c.bf16 %v4718, %v4714
      %v5874 = vpack.c.bf16 %v4720, %v4716
      %v5875 = vpack.c.bf16 %v4831, %v4827
      %v5876 = vpack.c.bf16 %v4833, %v4829
      %v5877 = vpack.c.bf16 %v4944, %v4940
      %v5878 = vpack.c.bf16 %v4946, %v4942
      %v5879 = vpack.c.bf16 %v5057, %v5053
      %v5880 = vpack.c.bf16 %v5059, %v5055
      %v5881 = vpack.c.bf16 %v5170, %v5166
      %v5882 = vpack.c.bf16 %v5172, %v5168
      %v5883 = vpack.c.bf16 %v5283, %v5279
      %v5884 = vpack.c.bf16 %v5285, %v5281
      %v5885 = vpack.c.bf16 %v5396, %v5392
      %v5886 = vpack.c.bf16 %v5398, %v5394
      %v5887 = vpack.c.bf16 %v5509, %v5505
      %v5888 = vpack.c.bf16 %v5511, %v5507
      %v5889 = vpack.c.bf16 %v5622, %v5618
      %v5890 = vpack.c.bf16 %v5624, %v5620
      %v5891 = vpack.c.bf16 %v5735, %v5731
      %v5892 = vpack.c.bf16 %v5737, %v5733
      %v5893 = vpack.c.bf16 %v4728, %v4724
      %v5894 = vpack.c.bf16 %v4730, %v4726
      %v5895 = vpack.c.bf16 %v4841, %v4837
      %v5896 = vpack.c.bf16 %v4843, %v4839
      %v5897 = vpack.c.bf16 %v4954, %v4950
      %v5898 = vpack.c.bf16 %v4956, %v4952
      %v5899 = vpack.c.bf16 %v5067, %v5063
      %v5900 = vpack.c.bf16 %v5069, %v5065
      %v5901 = vpack.c.bf16 %v5180, %v5176
      %v5902 = vpack.c.bf16 %v5182, %v5178
      %v5903 = vpack.c.bf16 %v5293, %v5289
      %v5904 = vpack.c.bf16 %v5295, %v5291
      %v5905 = vpack.c.bf16 %v5406, %v5402
      %v5906 = vpack.c.bf16 %v5408, %v5404
      %v5907 = vpack.c.bf16 %v5519, %v5515
      %v5908 = vpack.c.bf16 %v5521, %v5517
      %v5909 = vpack.c.bf16 %v5632, %v5628
      %v5910 = vpack.c.bf16 %v5634, %v5630
      %v5911 = vpack.c.bf16 %v5745, %v5741
      %v5912 = vpack.c.bf16 %v5747, %v5743
      %v5913 = vpack.c.bf16 %v4738, %v4734
      %v5914 = vpack.c.bf16 %v4740, %v4736
      %v5915 = vpack.c.bf16 %v4851, %v4847
      %v5916 = vpack.c.bf16 %v4853, %v4849
      %v5917 = vpack.c.bf16 %v4964, %v4960
      %v5918 = vpack.c.bf16 %v4966, %v4962
      %v5919 = vpack.c.bf16 %v5077, %v5073
      %v5920 = vpack.c.bf16 %v5079, %v5075
      %v5921 = vpack.c.bf16 %v5190, %v5186
      %v5922 = vpack.c.bf16 %v5192, %v5188
      %v5923 = vpack.c.bf16 %v5303, %v5299
      %v5924 = vpack.c.bf16 %v5305, %v5301
      %v5925 = vpack.c.bf16 %v5416, %v5412
      %v5926 = vpack.c.bf16 %v5418, %v5414
      %v5927 = vpack.c.bf16 %v5529, %v5525
      %v5928 = vpack.c.bf16 %v5531, %v5527
      %v5929 = vpack.c.bf16 %v5642, %v5638
      %v5930 = vpack.c.bf16 %v5644, %v5640
      %v5931 = vpack.c.bf16 %v5755, %v5751
      %v5932 = vpack.c.bf16 %v5757, %v5753
      %v5933 = vpack.c.bf16 %v4748, %v4744
      %v5934 = vpack.c.bf16 %v4750, %v4746
      %v5935 = vpack.c.bf16 %v4861, %v4857
      %v5936 = vpack.c.bf16 %v4863, %v4859
      %v5937 = vpack.c.bf16 %v4974, %v4970
      %v5938 = vpack.c.bf16 %v4976, %v4972
      %v5939 = vpack.c.bf16 %v5087, %v5083
      %v5940 = vpack.c.bf16 %v5089, %v5085
      %v5941 = vpack.c.bf16 %v5200, %v5196
      %v5942 = vpack.c.bf16 %v5202, %v5198
      %v5943 = vpack.c.bf16 %v5313, %v5309
      %v5944 = vpack.c.bf16 %v5315, %v5311
      %v5945 = vpack.c.bf16 %v5426, %v5422
      %v5946 = vpack.c.bf16 %v5428, %v5424
      %v5947 = vpack.c.bf16 %v5539, %v5535
      %v5948 = vpack.c.bf16 %v5541, %v5537
      %v5949 = vpack.c.bf16 %v5652, %v5648
      %v5950 = vpack.c.bf16 %v5654, %v5650
      %v5951 = vpack.c.bf16 %v5765, %v5761
      %v5952 = vpack.c.bf16 %v5767, %v5763
      %5954 = vset.pattern.permute.xlu0 0
      %5955 = vperm.xlu0 %5954, %v5785
      %v5956 = vpop.permute.xlu0 %5955
      %5959 = vset.pattern.permute.xlu0 0
      %5960 = vperm.xlu0 %5959, %v5786
      %v5961 = vpop.permute.xlu0 %5960
      %5964 = vset.pattern.permute.xlu0 0
      %5965 = vperm.xlu0 %5964, %v5787
      %v5966 = vpop.permute.xlu0 %5965
      %5969 = vset.pattern.permute.xlu0 0
      %5970 = vperm.xlu0 %5969, %v5788
      %v5971 = vpop.permute.xlu0 %5970
      %5974 = vset.pattern.permute.xlu0 0
      %5975 = vperm.xlu0 %5974, %v5789
      %v5976 = vpop.permute.xlu0 %5975
      %5979 = vset.pattern.permute.xlu0 0
      %5980 = vperm.xlu0 %5979, %v5790
      %v5981 = vpop.permute.xlu0 %5980
      %5984 = vset.pattern.permute.xlu0 0
      %5985 = vperm.xlu0 %5984, %v5791
      %v5986 = vpop.permute.xlu0 %5985
      %5989 = vset.pattern.permute.xlu0 0
      %5990 = vperm.xlu0 %5989, %v5792
      %v5991 = vpop.permute.xlu0 %5990
      %v5993 = vadd.bf16 %v5793, %v5956
      %v5994 = vadd.bf16 %v5794, %v5956
      %v5995 = vadd.bf16 %v5795, %v5956
      %v5996 = vadd.bf16 %v5796, %v5956
      %v5997 = vadd.bf16 %v5797, %v5956
      %v5998 = vadd.bf16 %v5798, %v5956
      %v5999 = vadd.bf16 %v5799, %v5956
      %v6000 = vadd.bf16 %v5800, %v5956
      %v6001 = vadd.bf16 %v5801, %v5956
      %v6002 = vadd.bf16 %v5802, %v5956
      %v6003 = vadd.bf16 %v5803, %v5956
      %v6004 = vadd.bf16 %v5804, %v5956
      %v6005 = vadd.bf16 %v5805, %v5956
      %v6006 = vadd.bf16 %v5806, %v5956
      %v6007 = vadd.bf16 %v5807, %v5956
      %v6008 = vadd.bf16 %v5808, %v5956
      %v6009 = vadd.bf16 %v5809, %v5956
      %v6010 = vadd.bf16 %v5810, %v5956
      %v6011 = vadd.bf16 %v5811, %v5956
      %v6012 = vadd.bf16 %v5812, %v5956
      %v6013 = vadd.bf16 %v5813, %v5961
      %v6014 = vadd.bf16 %v5814, %v5961
      %v6015 = vadd.bf16 %v5815, %v5961
      %v6016 = vadd.bf16 %v5816, %v5961
      %v6017 = vadd.bf16 %v5817, %v5961
      %v6018 = vadd.bf16 %v5818, %v5961
      %v6019 = vadd.bf16 %v5819, %v5961
      %v6020 = vadd.bf16 %v5820, %v5961
      %v6021 = vadd.bf16 %v5821, %v5961
      %v6022 = vadd.bf16 %v5822, %v5961
      %v6023 = vadd.bf16 %v5823, %v5961
      %v6024 = vadd.bf16 %v5824, %v5961
      %v6025 = vadd.bf16 %v5825, %v5961
      %v6026 = vadd.bf16 %v5826, %v5961
      %v6027 = vadd.bf16 %v5827, %v5961
      %v6028 = vadd.bf16 %v5828, %v5961
      %v6029 = vadd.bf16 %v5829, %v5961
      %v6030 = vadd.bf16 %v5830, %v5961
      %v6031 = vadd.bf16 %v5831, %v5961
      %v6032 = vadd.bf16 %v5832, %v5961
      %v6033 = vadd.bf16 %v5833, %v5966
      %v6034 = vadd.bf16 %v5834, %v5966
      %v6035 = vadd.bf16 %v5835, %v5966
      %v6036 = vadd.bf16 %v5836, %v5966
      %v6037 = vadd.bf16 %v5837, %v5966
      %v6038 = vadd.bf16 %v5838, %v5966
      %v6039 = vadd.bf16 %v5839, %v5966
      %v6040 = vadd.bf16 %v5840, %v5966
      %v6041 = vadd.bf16 %v5841, %v5966
      %v6042 = vadd.bf16 %v5842, %v5966
      %v6043 = vadd.bf16 %v5843, %v5966
      %v6044 = vadd.bf16 %v5844, %v5966
      %v6045 = vadd.bf16 %v5845, %v5966
      %v6046 = vadd.bf16 %v5846, %v5966
      %v6047 = vadd.bf16 %v5847, %v5966
      %v6048 = vadd.bf16 %v5848, %v5966
      %v6049 = vadd.bf16 %v5849, %v5966
      %v6050 = vadd.bf16 %v5850, %v5966
      %v6051 = vadd.bf16 %v5851, %v5966
      %v6052 = vadd.bf16 %v5852, %v5966
      %v6053 = vadd.bf16 %v5853, %v5971
      %v6054 = vadd.bf16 %v5854, %v5971
      %v6055 = vadd.bf16 %v5855, %v5971
      %v6056 = vadd.bf16 %v5856, %v5971
      %v6057 = vadd.bf16 %v5857, %v5971
      %v6058 = vadd.bf16 %v5858, %v5971
      %v6059 = vadd.bf16 %v5859, %v5971
      %v6060 = vadd.bf16 %v5860, %v5971
      %v6061 = vadd.bf16 %v5861, %v5971
      %v6062 = vadd.bf16 %v5862, %v5971
      %v6063 = vadd.bf16 %v5863, %v5971
      %v6064 = vadd.bf16 %v5864, %v5971
      %v6065 = vadd.bf16 %v5865, %v5971
      %v6066 = vadd.bf16 %v5866, %v5971
      %v6067 = vadd.bf16 %v5867, %v5971
      %v6068 = vadd.bf16 %v5868, %v5971
      %v6069 = vadd.bf16 %v5869, %v5971
      %v6070 = vadd.bf16 %v5870, %v5971
      %v6071 = vadd.bf16 %v5871, %v5971
      %v6072 = vadd.bf16 %v5872, %v5971
      %v6073 = vadd.bf16 %v5873, %v5976
      %v6074 = vadd.bf16 %v5874, %v5976
      %v6075 = vadd.bf16 %v5875, %v5976
      %v6076 = vadd.bf16 %v5876, %v5976
      %v6077 = vadd.bf16 %v5877, %v5976
      %v6078 = vadd.bf16 %v5878, %v5976
      %v6079 = vadd.bf16 %v5879, %v5976
      %v6080 = vadd.bf16 %v5880, %v5976
      %v6081 = vadd.bf16 %v5881, %v5976
      %v6082 = vadd.bf16 %v5882, %v5976
      %v6083 = vadd.bf16 %v5883, %v5976
      %v6084 = vadd.bf16 %v5884, %v5976
      %v6085 = vadd.bf16 %v5885, %v5976
      %v6086 = vadd.bf16 %v5886, %v5976
      %v6087 = vadd.bf16 %v5887, %v5976
      %v6088 = vadd.bf16 %v5888, %v5976
      %v6089 = vadd.bf16 %v5889, %v5976
      %v6090 = vadd.bf16 %v5890, %v5976
      %v6091 = vadd.bf16 %v5891, %v5976
      %v6092 = vadd.bf16 %v5892, %v5976
      %v6093 = vadd.bf16 %v5893, %v5981
      %v6094 = vadd.bf16 %v5894, %v5981
      %v6095 = vadd.bf16 %v5895, %v5981
      %v6096 = vadd.bf16 %v5896, %v5981
      %v6097 = vadd.bf16 %v5897, %v5981
      %v6098 = vadd.bf16 %v5898, %v5981
      %v6099 = vadd.bf16 %v5899, %v5981
      %v6100 = vadd.bf16 %v5900, %v5981
      %v6101 = vadd.bf16 %v5901, %v5981
      %v6102 = vadd.bf16 %v5902, %v5981
      %v6103 = vadd.bf16 %v5903, %v5981
      %v6104 = vadd.bf16 %v5904, %v5981
      %v6105 = vadd.bf16 %v5905, %v5981
      %v6106 = vadd.bf16 %v5906, %v5981
      %v6107 = vadd.bf16 %v5907, %v5981
      %v6108 = vadd.bf16 %v5908, %v5981
      %v6109 = vadd.bf16 %v5909, %v5981
      %v6110 = vadd.bf16 %v5910, %v5981
      %v6111 = vadd.bf16 %v5911, %v5981
      %v6112 = vadd.bf16 %v5912, %v5981
      %v6113 = vadd.bf16 %v5913, %v5986
      %v6114 = vadd.bf16 %v5914, %v5986
      %v6115 = vadd.bf16 %v5915, %v5986
      %v6116 = vadd.bf16 %v5916, %v5986
      %v6117 = vadd.bf16 %v5917, %v5986
      %v6118 = vadd.bf16 %v5918, %v5986
      %v6119 = vadd.bf16 %v5919, %v5986
      %v6120 = vadd.bf16 %v5920, %v5986
      %v6121 = vadd.bf16 %v5921, %v5986
      %v6122 = vadd.bf16 %v5922, %v5986
      %v6123 = vadd.bf16 %v5923, %v5986
      %v6124 = vadd.bf16 %v5924, %v5986
      %v6125 = vadd.bf16 %v5925, %v5986
      %v6126 = vadd.bf16 %v5926, %v5986
      %v6127 = vadd.bf16 %v5927, %v5986
      %v6128 = vadd.bf16 %v5928, %v5986
      %v6129 = vadd.bf16 %v5929, %v5986
      %v6130 = vadd.bf16 %v5930, %v5986
      %v6131 = vadd.bf16 %v5931, %v5986
      %v6132 = vadd.bf16 %v5932, %v5986
      %v6133 = vadd.bf16 %v5933, %v5991
      %v6134 = vadd.bf16 %v5934, %v5991
      %v6135 = vadd.bf16 %v5935, %v5991
      %v6136 = vadd.bf16 %v5936, %v5991
      %v6137 = vadd.bf16 %v5937, %v5991
      %v6138 = vadd.bf16 %v5938, %v5991
      %v6139 = vadd.bf16 %v5939, %v5991
      %v6140 = vadd.bf16 %v5940, %v5991
      %v6141 = vadd.bf16 %v5941, %v5991
      %v6142 = vadd.bf16 %v5942, %v5991
      %v6143 = vadd.bf16 %v5943, %v5991
      %v6144 = vadd.bf16 %v5944, %v5991
      %v6145 = vadd.bf16 %v5945, %v5991
      %v6146 = vadd.bf16 %v5946, %v5991
      %v6147 = vadd.bf16 %v5947, %v5991
      %v6148 = vadd.bf16 %v5948, %v5991
      %v6149 = vadd.bf16 %v5949, %v5991
      %v6150 = vadd.bf16 %v5950, %v5991
      %v6151 = vadd.bf16 %v5951, %v5991
      %v6152 = vadd.bf16 %v5952, %v5991
      %v6153 = vmax.bf16 %v5993, 0
      %v6154 = vmax.bf16 %v5994, 0
      %v6155 = vmax.bf16 %v5995, 0
      %v6156 = vmax.bf16 %v5996, 0
      %v6157 = vmax.bf16 %v5997, 0
      %v6158 = vmax.bf16 %v5998, 0
      %v6159 = vmax.bf16 %v5999, 0
      %v6160 = vmax.bf16 %v6000, 0
      %v6161 = vmax.bf16 %v6001, 0
      %v6162 = vmax.bf16 %v6002, 0
      %v6163 = vmax.bf16 %v6003, 0
      %v6164 = vmax.bf16 %v6004, 0
      %v6165 = vmax.bf16 %v6005, 0
      %v6166 = vmax.bf16 %v6006, 0
      %v6167 = vmax.bf16 %v6007, 0
      %v6168 = vmax.bf16 %v6008, 0
      %v6169 = vmax.bf16 %v6009, 0
      %v6170 = vmax.bf16 %v6010, 0
      %v6171 = vmax.bf16 %v6011, 0
      %v6172 = vmax.bf16 %v6012, 0
      %v6173 = vmax.bf16 %v6013, 0
      %v6174 = vmax.bf16 %v6014, 0
      %v6175 = vmax.bf16 %v6015, 0
      %v6176 = vmax.bf16 %v6016, 0
      %v6177 = vmax.bf16 %v6017, 0
      %v6178 = vmax.bf16 %v6018, 0
      %v6179 = vmax.bf16 %v6019, 0
      %v6180 = vmax.bf16 %v6020, 0
      %v6181 = vmax.bf16 %v6021, 0
      %v6182 = vmax.bf16 %v6022, 0
      %v6183 = vmax.bf16 %v6023, 0
      %v6184 = vmax.bf16 %v6024, 0
      %v6185 = vmax.bf16 %v6025, 0
      %v6186 = vmax.bf16 %v6026, 0
      %v6187 = vmax.bf16 %v6027, 0
      %v6188 = vmax.bf16 %v6028, 0
      %v6189 = vmax.bf16 %v6029, 0
      %v6190 = vmax.bf16 %v6030, 0
      %v6191 = vmax.bf16 %v6031, 0
      %v6192 = vmax.bf16 %v6032, 0
      %v6193 = vmax.bf16 %v6033, 0
      %v6194 = vmax.bf16 %v6034, 0
      %v6195 = vmax.bf16 %v6035, 0
      %v6196 = vmax.bf16 %v6036, 0
      %v6197 = vmax.bf16 %v6037, 0
      %v6198 = vmax.bf16 %v6038, 0
      %v6199 = vmax.bf16 %v6039, 0
      %v6200 = vmax.bf16 %v6040, 0
      %v6201 = vmax.bf16 %v6041, 0
      %v6202 = vmax.bf16 %v6042, 0
      %v6203 = vmax.bf16 %v6043, 0
      %v6204 = vmax.bf16 %v6044, 0
      %v6205 = vmax.bf16 %v6045, 0
      %v6206 = vmax.bf16 %v6046, 0
      %v6207 = vmax.bf16 %v6047, 0
      %v6208 = vmax.bf16 %v6048, 0
      %v6209 = vmax.bf16 %v6049, 0
      %v6210 = vmax.bf16 %v6050, 0
      %v6211 = vmax.bf16 %v6051, 0
      %v6212 = vmax.bf16 %v6052, 0
      %v6213 = vmax.bf16 %v6053, 0
      %v6214 = vmax.bf16 %v6054, 0
      %v6215 = vmax.bf16 %v6055, 0
      %v6216 = vmax.bf16 %v6056, 0
      %v6217 = vmax.bf16 %v6057, 0
      %v6218 = vmax.bf16 %v6058, 0
      %v6219 = vmax.bf16 %v6059, 0
      %v6220 = vmax.bf16 %v6060, 0
      %v6221 = vmax.bf16 %v6061, 0
      %v6222 = vmax.bf16 %v6062, 0
      %v6223 = vmax.bf16 %v6063, 0
      %v6224 = vmax.bf16 %v6064, 0
      %v6225 = vmax.bf16 %v6065, 0
      %v6226 = vmax.bf16 %v6066, 0
      %v6227 = vmax.bf16 %v6067, 0
      %v6228 = vmax.bf16 %v6068, 0
      %v6229 = vmax.bf16 %v6069, 0
      %v6230 = vmax.bf16 %v6070, 0
      %v6231 = vmax.bf16 %v6071, 0
      %v6232 = vmax.bf16 %v6072, 0
      %v6233 = vmax.bf16 %v6073, 0
      %v6234 = vmax.bf16 %v6074, 0
      %v6235 = vmax.bf16 %v6075, 0
      %v6236 = vmax.bf16 %v6076, 0
      %v6237 = vmax.bf16 %v6077, 0
      %v6238 = vmax.bf16 %v6078, 0
      %v6239 = vmax.bf16 %v6079, 0
      %v6240 = vmax.bf16 %v6080, 0
      %v6241 = vmax.bf16 %v6081, 0
      %v6242 = vmax.bf16 %v6082, 0
      %v6243 = vmax.bf16 %v6083, 0
      %v6244 = vmax.bf16 %v6084, 0
      %v6245 = vmax.bf16 %v6085, 0
      %v6246 = vmax.bf16 %v6086, 0
      %v6247 = vmax.bf16 %v6087, 0
      %v6248 = vmax.bf16 %v6088, 0
      %v6249 = vmax.bf16 %v6089, 0
      %v6250 = vmax.bf16 %v6090, 0
      %v6251 = vmax.bf16 %v6091, 0
      %v6252 = vmax.bf16 %v6092, 0
      %v6253 = vmax.bf16 %v6093, 0
      %v6254 = vmax.bf16 %v6094, 0
      %v6255 = vmax.bf16 %v6095, 0
      %v6256 = vmax.bf16 %v6096, 0
      %v6257 = vmax.bf16 %v6097, 0
      %v6258 = vmax.bf16 %v6098, 0
      %v6259 = vmax.bf16 %v6099, 0
      %v6260 = vmax.bf16 %v6100, 0
      %v6261 = vmax.bf16 %v6101, 0
      %v6262 = vmax.bf16 %v6102, 0
      %v6263 = vmax.bf16 %v6103, 0
      %v6264 = vmax.bf16 %v6104, 0
      %v6265 = vmax.bf16 %v6105, 0
      %v6266 = vmax.bf16 %v6106, 0
      %v6267 = vmax.bf16 %v6107, 0
      %v6268 = vmax.bf16 %v6108, 0
      %v6269 = vmax.bf16 %v6109, 0
      %v6270 = vmax.bf16 %v6110, 0
      %v6271 = vmax.bf16 %v6111, 0
      %v6272 = vmax.bf16 %v6112, 0
      %v6273 = vmax.bf16 %v6113, 0
      %v6274 = vmax.bf16 %v6114, 0
      %v6275 = vmax.bf16 %v6115, 0
      %v6276 = vmax.bf16 %v6116, 0
      %v6277 = vmax.bf16 %v6117, 0
      %v6278 = vmax.bf16 %v6118, 0
      %v6279 = vmax.bf16 %v6119, 0
      %v6280 = vmax.bf16 %v6120, 0
      %v6281 = vmax.bf16 %v6121, 0
      %v6282 = vmax.bf16 %v6122, 0
      %v6283 = vmax.bf16 %v6123, 0
      %v6284 = vmax.bf16 %v6124, 0
      %v6285 = vmax.bf16 %v6125, 0
      %v6286 = vmax.bf16 %v6126, 0
      %v6287 = vmax.bf16 %v6127, 0
      %v6288 = vmax.bf16 %v6128, 0
      %v6289 = vmax.bf16 %v6129, 0
      %v6290 = vmax.bf16 %v6130, 0
      %v6291 = vmax.bf16 %v6131, 0
      %v6292 = vmax.bf16 %v6132, 0
      %v6293 = vmax.bf16 %v6133, 0
      %v6294 = vmax.bf16 %v6134, 0
      %v6295 = vmax.bf16 %v6135, 0
      %v6296 = vmax.bf16 %v6136, 0
      %v6297 = vmax.bf16 %v6137, 0
      %v6298 = vmax.bf16 %v6138, 0
      %v6299 = vmax.bf16 %v6139, 0
      %v6300 = vmax.bf16 %v6140, 0
      %v6301 = vmax.bf16 %v6141, 0
      %v6302 = vmax.bf16 %v6142, 0
      %v6303 = vmax.bf16 %v6143, 0
      %v6304 = vmax.bf16 %v6144, 0
      %v6305 = vmax.bf16 %v6145, 0
      %v6306 = vmax.bf16 %v6146, 0
      %v6307 = vmax.bf16 %v6147, 0
      %v6308 = vmax.bf16 %v6148, 0
      %v6309 = vmax.bf16 %v6149, 0
      %v6310 = vmax.bf16 %v6150, 0
      %v6311 = vmax.bf16 %v6151, 0
      %v6312 = vmax.bf16 %v6152, 0
      %v6313 = vld [vmem:[%s5] sm:$0xf]
      %v6314 = vld [vmem:[%s5 + $0x4] sm:$0xf]
      %v6315 = vld [vmem:[%s5 + $0x8] sm:$0xf]
      %v6316 = vld [vmem:[%s5 + $0xc] sm:$0xf]
      %v6317 = vld [vmem:[%s5 + $0x10] sm:$0xf]
      %v6318 = vld [vmem:[%s5 + $0x14] sm:$0xf]
      %v6319 = vld [vmem:[%s5 + $0x18] sm:$0xf]
      %v6320 = vld [vmem:[%s5 + $0x1c] sm:$0xf]
      %v6329 = vunpack.c.l.b16 %v6313
      %v6330 = vunpack.c.l.b16 %v6314
      %v6331 = vunpack.c.l.b16 %v6315
      %v6332 = vunpack.c.l.b16 %v6316
      %v6333 = vunpack.c.l.b16 %v6317
      %v6334 = vunpack.c.l.b16 %v6318
      %v6335 = vunpack.c.l.b16 %v6319
      %v6336 = vunpack.c.l.b16 %v6320
      %v6337 = vpack.c.b16 %v6330, %v6329
      %v6338 = vpack.c.b16 %v6332, %v6331
      %v6339 = vpack.c.b16 %v6334, %v6333
      %v6340 = vpack.c.b16 %v6336, %v6335
      %6345 = vmatprep.subr.bf16.mxu0 %v6294
      %6346 = vmatpush1.bf16.msra.mxu0 %v6293
      %6347 = vmatprep.subr.bf16.mxu0 %v6274
      %6348 = vmatpush1.bf16.msra.mxu0 %v6273
      %6349 = vmatprep.subr.bf16.mxu0 %v6254
      %6350 = vmatpush1.bf16.msra.mxu0 %v6253
      %6351 = vmatprep.subr.bf16.mxu0 %v6234
      %6352 = vmatpush1.bf16.msra.mxu0 %v6233
      %6353 = vmatprep.subr.bf16.mxu0 %v6214
      %6354 = vmatpush1.bf16.msra.mxu0 %v6213
      %6355 = vmatprep.subr.bf16.mxu0 %v6194
      %6356 = vmatpush1.bf16.msra.mxu0 %v6193
      %6357 = vmatprep.subr.bf16.mxu0 %v6174
      %6358 = vmatpush1.bf16.msra.mxu0 %v6173
      %6359 = vmatprep.subr.bf16.mxu0 %v6154
      %6360 = vmatpush1.bf16.msra.mxu0 %v6153
      %6361 = vmatprep.subr.bf16.mxu0 0
      %6362 = vmatpush2.bf16.msra.mxu0 0
      %6363 = vmatprep.subr.bf16.mxu0 0
      %6364 = vmatpush2.bf16.msra.mxu0 0
      %6365 = vmatprep.subr.bf16.mxu0 0
      %6366 = vmatpush2.bf16.msra.mxu0 0
      %6367 = vmatprep.subr.bf16.mxu0 0
      %6368 = vmatpush2.bf16.msra.mxu0 0
      %6369 = vmatprep.subr.bf16.mxu0 0
      %6370 = vmatpush2.bf16.msra.mxu0 0
      %6371 = vmatprep.subr.bf16.mxu0 0
      %6372 = vmatpush2.bf16.msra.mxu0 0
      %6373 = vmatprep.subr.bf16.mxu0 0
      %6374 = vmatpush2.bf16.msra.mxu0 0
      %6375 = vmatprep.subr.bf16.mxu0 0
      %6376 = vmatpush2.bf16.msra.mxu0 0
      %6377 = vmatprep.mubr.bf16.mxu0 0
      %6378 = vmatmul.mubr.bf16.gmra.mxu0 %v6337
      %v6379 = vpop.f32.mrf.mxu0
      %v6380 = vadd.f32 0.0, %v6379
      %v6381 = vpop.f32.mrf.mxu0
      %v6382 = vadd.f32 0.0, %v6381
      %v6383 = vpop.f32.mrf.mxu0
      %v6384 = vadd.f32 0.0, %v6383
      %v6385 = vpop.f32.mrf.mxu0
      %v6386 = vadd.f32 0.0, %v6385
      %6387 = vmatprep.mubr.bf16.mxu0 0
      %6388 = vmatmul.mubr.bf16.gmra.mxu0 %v6338
      %v6389 = vpop.f32.mrf.mxu0
      %v6390 = vadd.f32 0.0, %v6389
      %v6391 = vpop.f32.mrf.mxu0
      %v6392 = vadd.f32 0.0, %v6391
      %v6393 = vpop.f32.mrf.mxu0
      %v6394 = vadd.f32 0.0, %v6393
      %v6395 = vpop.f32.mrf.mxu0
      %v6396 = vadd.f32 0.0, %v6395
      %6397 = vmatprep.mubr.bf16.mxu0 0
      %6398 = vmatmul.mubr.bf16.gmra.mxu0 %v6339
      %v6399 = vpop.f32.mrf.mxu0
      %v6400 = vadd.f32 0.0, %v6399
      %v6401 = vpop.f32.mrf.mxu0
      %v6402 = vadd.f32 0.0, %v6401
      %v6403 = vpop.f32.mrf.mxu0
      %v6404 = vadd.f32 0.0, %v6403
      %v6405 = vpop.f32.mrf.mxu0
      %v6406 = vadd.f32 0.0, %v6405
      %6407 = vmatprep.mubr.bf16.mxu0 0
      %6408 = vmatmul.mubr.bf16.gmra.mxu0 %v6340
      %v6409 = vpop.f32.mrf.mxu0
      %v6410 = vadd.f32 0.0, %v6409
      %v6411 = vpop.f32.mrf.mxu0
      %v6412 = vadd.f32 0.0, %v6411
      %v6413 = vpop.f32.mrf.mxu0
      %v6414 = vadd.f32 0.0, %v6413
      %v6415 = vpop.f32.mrf.mxu0
      %v6416 = vadd.f32 0.0, %v6415
      %6417 = vdwg.mxu0
      %6418 = vmatprep.subr.bf16.mxu0 %v6296
      %6419 = vmatpush1.bf16.msra.mxu0 %v6295
      %6420 = vmatprep.subr.bf16.mxu0 %v6276
      %6421 = vmatpush1.bf16.msra.mxu0 %v6275
      %6422 = vmatprep.subr.bf16.mxu0 %v6256
      %6423 = vmatpush1.bf16.msra.mxu0 %v6255
      %6424 = vmatprep.subr.bf16.mxu0 %v6236
      %6425 = vmatpush1.bf16.msra.mxu0 %v6235
      %6426 = vmatprep.subr.bf16.mxu0 %v6216
      %6427 = vmatpush1.bf16.msra.mxu0 %v6215
      %6428 = vmatprep.subr.bf16.mxu0 %v6196
      %6429 = vmatpush1.bf16.msra.mxu0 %v6195
      %6430 = vmatprep.subr.bf16.mxu0 %v6176
      %6431 = vmatpush1.bf16.msra.mxu0 %v6175
      %6432 = vmatprep.subr.bf16.mxu0 %v6156
      %6433 = vmatpush1.bf16.msra.mxu0 %v6155
      %6434 = vmatprep.subr.bf16.mxu0 0
      %6435 = vmatpush2.bf16.msra.mxu0 0
      %6436 = vmatprep.subr.bf16.mxu0 0
      %6437 = vmatpush2.bf16.msra.mxu0 0
      %6438 = vmatprep.subr.bf16.mxu0 0
      %6439 = vmatpush2.bf16.msra.mxu0 0
      %6440 = vmatprep.subr.bf16.mxu0 0
      %6441 = vmatpush2.bf16.msra.mxu0 0
      %6442 = vmatprep.subr.bf16.mxu0 0
      %6443 = vmatpush2.bf16.msra.mxu0 0
      %6444 = vmatprep.subr.bf16.mxu0 0
      %6445 = vmatpush2.bf16.msra.mxu0 0
      %6446 = vmatprep.subr.bf16.mxu0 0
      %6447 = vmatpush2.bf16.msra.mxu0 0
      %6448 = vmatprep.subr.bf16.mxu0 0
      %6449 = vmatpush2.bf16.msra.mxu0 0
      %6450 = vmatprep.mubr.bf16.mxu0 0
      %6451 = vmatmul.mubr.bf16.gmra.mxu0 %v6337
      %v6452 = vpop.f32.mrf.mxu0
      %v6453 = vadd.f32 0.0, %v6452
      %v6454 = vpop.f32.mrf.mxu0
      %v6455 = vadd.f32 0.0, %v6454
      %v6456 = vpop.f32.mrf.mxu0
      %v6457 = vadd.f32 0.0, %v6456
      %v6458 = vpop.f32.mrf.mxu0
      %v6459 = vadd.f32 0.0, %v6458
      %6460 = vmatprep.mubr.bf16.mxu0 0
      %6461 = vmatmul.mubr.bf16.gmra.mxu0 %v6338
      %v6462 = vpop.f32.mrf.mxu0
      %v6463 = vadd.f32 0.0, %v6462
      %v6464 = vpop.f32.mrf.mxu0
      %v6465 = vadd.f32 0.0, %v6464
      %v6466 = vpop.f32.mrf.mxu0
      %v6467 = vadd.f32 0.0, %v6466
      %v6468 = vpop.f32.mrf.mxu0
      %v6469 = vadd.f32 0.0, %v6468
      %6470 = vmatprep.mubr.bf16.mxu0 0
      %6471 = vmatmul.mubr.bf16.gmra.mxu0 %v6339
      %v6472 = vpop.f32.mrf.mxu0
      %v6473 = vadd.f32 0.0, %v6472
      %v6474 = vpop.f32.mrf.mxu0
      %v6475 = vadd.f32 0.0, %v6474
      %v6476 = vpop.f32.mrf.mxu0
      %v6477 = vadd.f32 0.0, %v6476
      %v6478 = vpop.f32.mrf.mxu0
      %v6479 = vadd.f32 0.0, %v6478
      %6480 = vmatprep.mubr.bf16.mxu0 0
      %6481 = vmatmul.mubr.bf16.gmra.mxu0 %v6340
      %v6482 = vpop.f32.mrf.mxu0
      %v6483 = vadd.f32 0.0, %v6482
      %v6484 = vpop.f32.mrf.mxu0
      %v6485 = vadd.f32 0.0, %v6484
      %v6486 = vpop.f32.mrf.mxu0
      %v6487 = vadd.f32 0.0, %v6486
      %v6488 = vpop.f32.mrf.mxu0
      %v6489 = vadd.f32 0.0, %v6488
      %6490 = vdwg.mxu0
      %6491 = vmatprep.subr.bf16.mxu0 %v6298
      %6492 = vmatpush1.bf16.msra.mxu0 %v6297
      %6493 = vmatprep.subr.bf16.mxu0 %v6278
      %6494 = vmatpush1.bf16.msra.mxu0 %v6277
      %6495 = vmatprep.subr.bf16.mxu0 %v6258
      %6496 = vmatpush1.bf16.msra.mxu0 %v6257
      %6497 = vmatprep.subr.bf16.mxu0 %v6238
      %6498 = vmatpush1.bf16.msra.mxu0 %v6237
      %6499 = vmatprep.subr.bf16.mxu0 %v6218
      %6500 = vmatpush1.bf16.msra.mxu0 %v6217
      %6501 = vmatprep.subr.bf16.mxu0 %v6198
      %6502 = vmatpush1.bf16.msra.mxu0 %v6197
      %6503 = vmatprep.subr.bf16.mxu0 %v6178
      %6504 = vmatpush1.bf16.msra.mxu0 %v6177
      %6505 = vmatprep.subr.bf16.mxu0 %v6158
      %6506 = vmatpush1.bf16.msra.mxu0 %v6157
      %6507 = vmatprep.subr.bf16.mxu0 0
      %6508 = vmatpush2.bf16.msra.mxu0 0
      %6509 = vmatprep.subr.bf16.mxu0 0
      %6510 = vmatpush2.bf16.msra.mxu0 0
      %6511 = vmatprep.subr.bf16.mxu0 0
      %6512 = vmatpush2.bf16.msra.mxu0 0
      %6513 = vmatprep.subr.bf16.mxu0 0
      %6514 = vmatpush2.bf16.msra.mxu0 0
      %6515 = vmatprep.subr.bf16.mxu0 0
      %6516 = vmatpush2.bf16.msra.mxu0 0
      %6517 = vmatprep.subr.bf16.mxu0 0
      %6518 = vmatpush2.bf16.msra.mxu0 0
      %6519 = vmatprep.subr.bf16.mxu0 0
      %6520 = vmatpush2.bf16.msra.mxu0 0
      %6521 = vmatprep.subr.bf16.mxu0 0
      %6522 = vmatpush2.bf16.msra.mxu0 0
      %6523 = vmatprep.mubr.bf16.mxu0 0
      %6524 = vmatmul.mubr.bf16.gmra.mxu0 %v6337
      %v6525 = vpop.f32.mrf.mxu0
      %v6526 = vadd.f32 0.0, %v6525
      %v6527 = vpop.f32.mrf.mxu0
      %v6528 = vadd.f32 0.0, %v6527
      %v6529 = vpop.f32.mrf.mxu0
      %v6530 = vadd.f32 0.0, %v6529
      %v6531 = vpop.f32.mrf.mxu0
      %v6532 = vadd.f32 0.0, %v6531
      %6533 = vmatprep.mubr.bf16.mxu0 0
      %6534 = vmatmul.mubr.bf16.gmra.mxu0 %v6338
      %v6535 = vpop.f32.mrf.mxu0
      %v6536 = vadd.f32 0.0, %v6535
      %v6537 = vpop.f32.mrf.mxu0
      %v6538 = vadd.f32 0.0, %v6537
      %v6539 = vpop.f32.mrf.mxu0
      %v6540 = vadd.f32 0.0, %v6539
      %v6541 = vpop.f32.mrf.mxu0
      %v6542 = vadd.f32 0.0, %v6541
      %6543 = vmatprep.mubr.bf16.mxu0 0
      %6544 = vmatmul.mubr.bf16.gmra.mxu0 %v6339
      %v6545 = vpop.f32.mrf.mxu0
      %v6546 = vadd.f32 0.0, %v6545
      %v6547 = vpop.f32.mrf.mxu0
      %v6548 = vadd.f32 0.0, %v6547
      %v6549 = vpop.f32.mrf.mxu0
      %v6550 = vadd.f32 0.0, %v6549
      %v6551 = vpop.f32.mrf.mxu0
      %v6552 = vadd.f32 0.0, %v6551
      %6553 = vmatprep.mubr.bf16.mxu0 0
      %6554 = vmatmul.mubr.bf16.gmra.mxu0 %v6340
      %v6555 = vpop.f32.mrf.mxu0
      %v6556 = vadd.f32 0.0, %v6555
      %v6557 = vpop.f32.mrf.mxu0
      %v6558 = vadd.f32 0.0, %v6557
      %v6559 = vpop.f32.mrf.mxu0
      %v6560 = vadd.f32 0.0, %v6559
      %v6561 = vpop.f32.mrf.mxu0
      %v6562 = vadd.f32 0.0, %v6561
      %6563 = vdwg.mxu0
      %6564 = vmatprep.subr.bf16.mxu0 %v6300
      %6565 = vmatpush1.bf16.msra.mxu0 %v6299
      %6566 = vmatprep.subr.bf16.mxu0 %v6280
      %6567 = vmatpush1.bf16.msra.mxu0 %v6279
      %6568 = vmatprep.subr.bf16.mxu0 %v6260
      %6569 = vmatpush1.bf16.msra.mxu0 %v6259
      %6570 = vmatprep.subr.bf16.mxu0 %v6240
      %6571 = vmatpush1.bf16.msra.mxu0 %v6239
      %6572 = vmatprep.subr.bf16.mxu0 %v6220
      %6573 = vmatpush1.bf16.msra.mxu0 %v6219
      %6574 = vmatprep.subr.bf16.mxu0 %v6200
      %6575 = vmatpush1.bf16.msra.mxu0 %v6199
      %6576 = vmatprep.subr.bf16.mxu0 %v6180
      %6577 = vmatpush1.bf16.msra.mxu0 %v6179
      %6578 = vmatprep.subr.bf16.mxu0 %v6160
      %6579 = vmatpush1.bf16.msra.mxu0 %v6159
      %6580 = vmatprep.subr.bf16.mxu0 0
      %6581 = vmatpush2.bf16.msra.mxu0 0
      %6582 = vmatprep.subr.bf16.mxu0 0
      %6583 = vmatpush2.bf16.msra.mxu0 0
      %6584 = vmatprep.subr.bf16.mxu0 0
      %6585 = vmatpush2.bf16.msra.mxu0 0
      %6586 = vmatprep.subr.bf16.mxu0 0
      %6587 = vmatpush2.bf16.msra.mxu0 0
      %6588 = vmatprep.subr.bf16.mxu0 0
      %6589 = vmatpush2.bf16.msra.mxu0 0
      %6590 = vmatprep.subr.bf16.mxu0 0
      %6591 = vmatpush2.bf16.msra.mxu0 0
      %6592 = vmatprep.subr.bf16.mxu0 0
      %6593 = vmatpush2.bf16.msra.mxu0 0
      %6594 = vmatprep.subr.bf16.mxu0 0
      %6595 = vmatpush2.bf16.msra.mxu0 0
      %6596 = vmatprep.mubr.bf16.mxu0 0
      %6597 = vmatmul.mubr.bf16.gmra.mxu0 %v6337
      %v6598 = vpop.f32.mrf.mxu0
      %v6599 = vadd.f32 0.0, %v6598
      %v6600 = vpop.f32.mrf.mxu0
      %v6601 = vadd.f32 0.0, %v6600
      %v6602 = vpop.f32.mrf.mxu0
      %v6603 = vadd.f32 0.0, %v6602
      %v6604 = vpop.f32.mrf.mxu0
      %v6605 = vadd.f32 0.0, %v6604
      %6606 = vmatprep.mubr.bf16.mxu0 0
      %6607 = vmatmul.mubr.bf16.gmra.mxu0 %v6338
      %v6608 = vpop.f32.mrf.mxu0
      %v6609 = vadd.f32 0.0, %v6608
      %v6610 = vpop.f32.mrf.mxu0
      %v6611 = vadd.f32 0.0, %v6610
      %v6612 = vpop.f32.mrf.mxu0
      %v6613 = vadd.f32 0.0, %v6612
      %v6614 = vpop.f32.mrf.mxu0
      %v6615 = vadd.f32 0.0, %v6614
      %6616 = vmatprep.mubr.bf16.mxu0 0
      %6617 = vmatmul.mubr.bf16.gmra.mxu0 %v6339
      %v6618 = vpop.f32.mrf.mxu0
      %v6619 = vadd.f32 0.0, %v6618
      %v6620 = vpop.f32.mrf.mxu0
      %v6621 = vadd.f32 0.0, %v6620
      %v6622 = vpop.f32.mrf.mxu0
      %v6623 = vadd.f32 0.0, %v6622
      %v6624 = vpop.f32.mrf.mxu0
      %v6625 = vadd.f32 0.0, %v6624
      %6626 = vmatprep.mubr.bf16.mxu0 0
      %6627 = vmatmul.mubr.bf16.gmra.mxu0 %v6340
      %v6628 = vpop.f32.mrf.mxu0
      %v6629 = vadd.f32 0.0, %v6628
      %v6630 = vpop.f32.mrf.mxu0
      %v6631 = vadd.f32 0.0, %v6630
      %v6632 = vpop.f32.mrf.mxu0
      %v6633 = vadd.f32 0.0, %v6632
      %v6634 = vpop.f32.mrf.mxu0
      %v6635 = vadd.f32 0.0, %v6634
      %6636 = vdwg.mxu0
      %6637 = vmatprep.subr.bf16.mxu0 %v6302
      %6638 = vmatpush1.bf16.msra.mxu0 %v6301
      %6639 = vmatprep.subr.bf16.mxu0 %v6282
      %6640 = vmatpush1.bf16.msra.mxu0 %v6281
      %6641 = vmatprep.subr.bf16.mxu0 %v6262
      %6642 = vmatpush1.bf16.msra.mxu0 %v6261
      %6643 = vmatprep.subr.bf16.mxu0 %v6242
      %6644 = vmatpush1.bf16.msra.mxu0 %v6241
      %6645 = vmatprep.subr.bf16.mxu0 %v6222
      %6646 = vmatpush1.bf16.msra.mxu0 %v6221
      %6647 = vmatprep.subr.bf16.mxu0 %v6202
      %6648 = vmatpush1.bf16.msra.mxu0 %v6201
      %6649 = vmatprep.subr.bf16.mxu0 %v6182
      %6650 = vmatpush1.bf16.msra.mxu0 %v6181
      %6651 = vmatprep.subr.bf16.mxu0 %v6162
      %6652 = vmatpush1.bf16.msra.mxu0 %v6161
      %6653 = vmatprep.subr.bf16.mxu0 0
      %6654 = vmatpush2.bf16.msra.mxu0 0
      %6655 = vmatprep.subr.bf16.mxu0 0
      %6656 = vmatpush2.bf16.msra.mxu0 0
      %6657 = vmatprep.subr.bf16.mxu0 0
      %6658 = vmatpush2.bf16.msra.mxu0 0
      %6659 = vmatprep.subr.bf16.mxu0 0
      %6660 = vmatpush2.bf16.msra.mxu0 0
      %6661 = vmatprep.subr.bf16.mxu0 0
      %6662 = vmatpush2.bf16.msra.mxu0 0
      %6663 = vmatprep.subr.bf16.mxu0 0
      %6664 = vmatpush2.bf16.msra.mxu0 0
      %6665 = vmatprep.subr.bf16.mxu0 0
      %6666 = vmatpush2.bf16.msra.mxu0 0
      %6667 = vmatprep.subr.bf16.mxu0 0
      %6668 = vmatpush2.bf16.msra.mxu0 0
      %6669 = vmatprep.mubr.bf16.mxu0 0
      %6670 = vmatmul.mubr.bf16.gmra.mxu0 %v6337
      %v6671 = vpop.f32.mrf.mxu0
      %v6672 = vadd.f32 0.0, %v6671
      %v6673 = vpop.f32.mrf.mxu0
      %v6674 = vadd.f32 0.0, %v6673
      %v6675 = vpop.f32.mrf.mxu0
      %v6676 = vadd.f32 0.0, %v6675
      %v6677 = vpop.f32.mrf.mxu0
      %v6678 = vadd.f32 0.0, %v6677
      %6679 = vmatprep.mubr.bf16.mxu0 0
      %6680 = vmatmul.mubr.bf16.gmra.mxu0 %v6338
      %v6681 = vpop.f32.mrf.mxu0
      %v6682 = vadd.f32 0.0, %v6681
      %v6683 = vpop.f32.mrf.mxu0
      %v6684 = vadd.f32 0.0, %v6683
      %v6685 = vpop.f32.mrf.mxu0
      %v6686 = vadd.f32 0.0, %v6685
      %v6687 = vpop.f32.mrf.mxu0
      %v6688 = vadd.f32 0.0, %v6687
      %6689 = vmatprep.mubr.bf16.mxu0 0
      %6690 = vmatmul.mubr.bf16.gmra.mxu0 %v6339
      %v6691 = vpop.f32.mrf.mxu0
      %v6692 = vadd.f32 0.0, %v6691
      %v6693 = vpop.f32.mrf.mxu0
      %v6694 = vadd.f32 0.0, %v6693
      %v6695 = vpop.f32.mrf.mxu0
      %v6696 = vadd.f32 0.0, %v6695
      %v6697 = vpop.f32.mrf.mxu0
      %v6698 = vadd.f32 0.0, %v6697
      %6699 = vmatprep.mubr.bf16.mxu0 0
      %6700 = vmatmul.mubr.bf16.gmra.mxu0 %v6340
      %v6701 = vpop.f32.mrf.mxu0
      %v6702 = vadd.f32 0.0, %v6701
      %v6703 = vpop.f32.mrf.mxu0
      %v6704 = vadd.f32 0.0, %v6703
      %v6705 = vpop.f32.mrf.mxu0
      %v6706 = vadd.f32 0.0, %v6705
      %v6707 = vpop.f32.mrf.mxu0
      %v6708 = vadd.f32 0.0, %v6707
      %6709 = vdwg.mxu0
      %6710 = vmatprep.subr.bf16.mxu0 %v6304
      %6711 = vmatpush1.bf16.msra.mxu0 %v6303
      %6712 = vmatprep.subr.bf16.mxu0 %v6284
      %6713 = vmatpush1.bf16.msra.mxu0 %v6283
      %6714 = vmatprep.subr.bf16.mxu0 %v6264
      %6715 = vmatpush1.bf16.msra.mxu0 %v6263
      %6716 = vmatprep.subr.bf16.mxu0 %v6244
      %6717 = vmatpush1.bf16.msra.mxu0 %v6243
      %6718 = vmatprep.subr.bf16.mxu0 %v6224
      %6719 = vmatpush1.bf16.msra.mxu0 %v6223
      %6720 = vmatprep.subr.bf16.mxu0 %v6204
      %6721 = vmatpush1.bf16.msra.mxu0 %v6203
      %6722 = vmatprep.subr.bf16.mxu0 %v6184
      %6723 = vmatpush1.bf16.msra.mxu0 %v6183
      %6724 = vmatprep.subr.bf16.mxu0 %v6164
      %6725 = vmatpush1.bf16.msra.mxu0 %v6163
      %6726 = vmatprep.subr.bf16.mxu0 0
      %6727 = vmatpush2.bf16.msra.mxu0 0
      %6728 = vmatprep.subr.bf16.mxu0 0
      %6729 = vmatpush2.bf16.msra.mxu0 0
      %6730 = vmatprep.subr.bf16.mxu0 0
      %6731 = vmatpush2.bf16.msra.mxu0 0
      %6732 = vmatprep.subr.bf16.mxu0 0
      %6733 = vmatpush2.bf16.msra.mxu0 0
      %6734 = vmatprep.subr.bf16.mxu0 0
      %6735 = vmatpush2.bf16.msra.mxu0 0
      %6736 = vmatprep.subr.bf16.mxu0 0
      %6737 = vmatpush2.bf16.msra.mxu0 0
      %6738 = vmatprep.subr.bf16.mxu0 0
      %6739 = vmatpush2.bf16.msra.mxu0 0
      %6740 = vmatprep.subr.bf16.mxu0 0
      %6741 = vmatpush2.bf16.msra.mxu0 0
      %6742 = vmatprep.mubr.bf16.mxu0 0
      %6743 = vmatmul.mubr.bf16.gmra.mxu0 %v6337
      %v6744 = vpop.f32.mrf.mxu0
      %v6745 = vadd.f32 0.0, %v6744
      %v6746 = vpop.f32.mrf.mxu0
      %v6747 = vadd.f32 0.0, %v6746
      %v6748 = vpop.f32.mrf.mxu0
      %v6749 = vadd.f32 0.0, %v6748
      %v6750 = vpop.f32.mrf.mxu0
      %v6751 = vadd.f32 0.0, %v6750
      %6752 = vmatprep.mubr.bf16.mxu0 0
      %6753 = vmatmul.mubr.bf16.gmra.mxu0 %v6338
      %v6754 = vpop.f32.mrf.mxu0
      %v6755 = vadd.f32 0.0, %v6754
      %v6756 = vpop.f32.mrf.mxu0
      %v6757 = vadd.f32 0.0, %v6756
      %v6758 = vpop.f32.mrf.mxu0
      %v6759 = vadd.f32 0.0, %v6758
      %v6760 = vpop.f32.mrf.mxu0
      %v6761 = vadd.f32 0.0, %v6760
      %6762 = vmatprep.mubr.bf16.mxu0 0
      %6763 = vmatmul.mubr.bf16.gmra.mxu0 %v6339
      %v6764 = vpop.f32.mrf.mxu0
      %v6765 = vadd.f32 0.0, %v6764
      %v6766 = vpop.f32.mrf.mxu0
      %v6767 = vadd.f32 0.0, %v6766
      %v6768 = vpop.f32.mrf.mxu0
      %v6769 = vadd.f32 0.0, %v6768
      %v6770 = vpop.f32.mrf.mxu0
      %v6771 = vadd.f32 0.0, %v6770
      %6772 = vmatprep.mubr.bf16.mxu0 0
      %6773 = vmatmul.mubr.bf16.gmra.mxu0 %v6340
      %v6774 = vpop.f32.mrf.mxu0
      %v6775 = vadd.f32 0.0, %v6774
      %v6776 = vpop.f32.mrf.mxu0
      %v6777 = vadd.f32 0.0, %v6776
      %v6778 = vpop.f32.mrf.mxu0
      %v6779 = vadd.f32 0.0, %v6778
      %v6780 = vpop.f32.mrf.mxu0
      %v6781 = vadd.f32 0.0, %v6780
      %6782 = vdwg.mxu0
      %6783 = vmatprep.subr.bf16.mxu0 %v6306
      %6784 = vmatpush1.bf16.msra.mxu0 %v6305
      %6785 = vmatprep.subr.bf16.mxu0 %v6286
      %6786 = vmatpush1.bf16.msra.mxu0 %v6285
      %6787 = vmatprep.subr.bf16.mxu0 %v6266
      %6788 = vmatpush1.bf16.msra.mxu0 %v6265
      %6789 = vmatprep.subr.bf16.mxu0 %v6246
      %6790 = vmatpush1.bf16.msra.mxu0 %v6245
      %6791 = vmatprep.subr.bf16.mxu0 %v6226
      %6792 = vmatpush1.bf16.msra.mxu0 %v6225
      %6793 = vmatprep.subr.bf16.mxu0 %v6206
      %6794 = vmatpush1.bf16.msra.mxu0 %v6205
      %6795 = vmatprep.subr.bf16.mxu0 %v6186
      %6796 = vmatpush1.bf16.msra.mxu0 %v6185
      %6797 = vmatprep.subr.bf16.mxu0 %v6166
      %6798 = vmatpush1.bf16.msra.mxu0 %v6165
      %6799 = vmatprep.subr.bf16.mxu0 0
      %6800 = vmatpush2.bf16.msra.mxu0 0
      %6801 = vmatprep.subr.bf16.mxu0 0
      %6802 = vmatpush2.bf16.msra.mxu0 0
      %6803 = vmatprep.subr.bf16.mxu0 0
      %6804 = vmatpush2.bf16.msra.mxu0 0
      %6805 = vmatprep.subr.bf16.mxu0 0
      %6806 = vmatpush2.bf16.msra.mxu0 0
      %6807 = vmatprep.subr.bf16.mxu0 0
      %6808 = vmatpush2.bf16.msra.mxu0 0
      %6809 = vmatprep.subr.bf16.mxu0 0
      %6810 = vmatpush2.bf16.msra.mxu0 0
      %6811 = vmatprep.subr.bf16.mxu0 0
      %6812 = vmatpush2.bf16.msra.mxu0 0
      %6813 = vmatprep.subr.bf16.mxu0 0
      %6814 = vmatpush2.bf16.msra.mxu0 0
      %6815 = vmatprep.mubr.bf16.mxu0 0
      %6816 = vmatmul.mubr.bf16.gmra.mxu0 %v6337
      %v6817 = vpop.f32.mrf.mxu0
      %v6818 = vadd.f32 0.0, %v6817
      %v6819 = vpop.f32.mrf.mxu0
      %v6820 = vadd.f32 0.0, %v6819
      %v6821 = vpop.f32.mrf.mxu0
      %v6822 = vadd.f32 0.0, %v6821
      %v6823 = vpop.f32.mrf.mxu0
      %v6824 = vadd.f32 0.0, %v6823
      %6825 = vmatprep.mubr.bf16.mxu0 0
      %6826 = vmatmul.mubr.bf16.gmra.mxu0 %v6338
      %v6827 = vpop.f32.mrf.mxu0
      %v6828 = vadd.f32 0.0, %v6827
      %v6829 = vpop.f32.mrf.mxu0
      %v6830 = vadd.f32 0.0, %v6829
      %v6831 = vpop.f32.mrf.mxu0
      %v6832 = vadd.f32 0.0, %v6831
      %v6833 = vpop.f32.mrf.mxu0
      %v6834 = vadd.f32 0.0, %v6833
      %6835 = vmatprep.mubr.bf16.mxu0 0
      %6836 = vmatmul.mubr.bf16.gmra.mxu0 %v6339
      %v6837 = vpop.f32.mrf.mxu0
      %v6838 = vadd.f32 0.0, %v6837
      %v6839 = vpop.f32.mrf.mxu0
      %v6840 = vadd.f32 0.0, %v6839
      %v6841 = vpop.f32.mrf.mxu0
      %v6842 = vadd.f32 0.0, %v6841
      %v6843 = vpop.f32.mrf.mxu0
      %v6844 = vadd.f32 0.0, %v6843
      %6845 = vmatprep.mubr.bf16.mxu0 0
      %6846 = vmatmul.mubr.bf16.gmra.mxu0 %v6340
      %v6847 = vpop.f32.mrf.mxu0
      %v6848 = vadd.f32 0.0, %v6847
      %v6849 = vpop.f32.mrf.mxu0
      %v6850 = vadd.f32 0.0, %v6849
      %v6851 = vpop.f32.mrf.mxu0
      %v6852 = vadd.f32 0.0, %v6851
      %v6853 = vpop.f32.mrf.mxu0
      %v6854 = vadd.f32 0.0, %v6853
      %6855 = vdwg.mxu0
      %6856 = vmatprep.subr.bf16.mxu0 %v6308
      %6857 = vmatpush1.bf16.msra.mxu0 %v6307
      %6858 = vmatprep.subr.bf16.mxu0 %v6288
      %6859 = vmatpush1.bf16.msra.mxu0 %v6287
      %6860 = vmatprep.subr.bf16.mxu0 %v6268
      %6861 = vmatpush1.bf16.msra.mxu0 %v6267
      %6862 = vmatprep.subr.bf16.mxu0 %v6248
      %6863 = vmatpush1.bf16.msra.mxu0 %v6247
      %6864 = vmatprep.subr.bf16.mxu0 %v6228
      %6865 = vmatpush1.bf16.msra.mxu0 %v6227
      %6866 = vmatprep.subr.bf16.mxu0 %v6208
      %6867 = vmatpush1.bf16.msra.mxu0 %v6207
      %6868 = vmatprep.subr.bf16.mxu0 %v6188
      %6869 = vmatpush1.bf16.msra.mxu0 %v6187
      %6870 = vmatprep.subr.bf16.mxu0 %v6168
      %6871 = vmatpush1.bf16.msra.mxu0 %v6167
      %6872 = vmatprep.subr.bf16.mxu0 0
      %6873 = vmatpush2.bf16.msra.mxu0 0
      %6874 = vmatprep.subr.bf16.mxu0 0
      %6875 = vmatpush2.bf16.msra.mxu0 0
      %6876 = vmatprep.subr.bf16.mxu0 0
      %6877 = vmatpush2.bf16.msra.mxu0 0
      %6878 = vmatprep.subr.bf16.mxu0 0
      %6879 = vmatpush2.bf16.msra.mxu0 0
      %6880 = vmatprep.subr.bf16.mxu0 0
      %6881 = vmatpush2.bf16.msra.mxu0 0
      %6882 = vmatprep.subr.bf16.mxu0 0
      %6883 = vmatpush2.bf16.msra.mxu0 0
      %6884 = vmatprep.subr.bf16.mxu0 0
      %6885 = vmatpush2.bf16.msra.mxu0 0
      %6886 = vmatprep.subr.bf16.mxu0 0
      %6887 = vmatpush2.bf16.msra.mxu0 0
      %6888 = vmatprep.mubr.bf16.mxu0 0
      %6889 = vmatmul.mubr.bf16.gmra.mxu0 %v6337
      %v6890 = vpop.f32.mrf.mxu0
      %v6891 = vadd.f32 0.0, %v6890
      %v6892 = vpop.f32.mrf.mxu0
      %v6893 = vadd.f32 0.0, %v6892
      %v6894 = vpop.f32.mrf.mxu0
      %v6895 = vadd.f32 0.0, %v6894
      %v6896 = vpop.f32.mrf.mxu0
      %v6897 = vadd.f32 0.0, %v6896
      %6898 = vmatprep.mubr.bf16.mxu0 0
      %6899 = vmatmul.mubr.bf16.gmra.mxu0 %v6338
      %v6900 = vpop.f32.mrf.mxu0
      %v6901 = vadd.f32 0.0, %v6900
      %v6902 = vpop.f32.mrf.mxu0
      %v6903 = vadd.f32 0.0, %v6902
      %v6904 = vpop.f32.mrf.mxu0
      %v6905 = vadd.f32 0.0, %v6904
      %v6906 = vpop.f32.mrf.mxu0
      %v6907 = vadd.f32 0.0, %v6906
      %6908 = vmatprep.mubr.bf16.mxu0 0
      %6909 = vmatmul.mubr.bf16.gmra.mxu0 %v6339
      %v6910 = vpop.f32.mrf.mxu0
      %v6911 = vadd.f32 0.0, %v6910
      %v6912 = vpop.f32.mrf.mxu0
      %v6913 = vadd.f32 0.0, %v6912
      %v6914 = vpop.f32.mrf.mxu0
      %v6915 = vadd.f32 0.0, %v6914
      %v6916 = vpop.f32.mrf.mxu0
      %v6917 = vadd.f32 0.0, %v6916
      %6918 = vmatprep.mubr.bf16.mxu0 0
      %6919 = vmatmul.mubr.bf16.gmra.mxu0 %v6340
      %v6920 = vpop.f32.mrf.mxu0
      %v6921 = vadd.f32 0.0, %v6920
      %v6922 = vpop.f32.mrf.mxu0
      %v6923 = vadd.f32 0.0, %v6922
      %v6924 = vpop.f32.mrf.mxu0
      %v6925 = vadd.f32 0.0, %v6924
      %v6926 = vpop.f32.mrf.mxu0
      %v6927 = vadd.f32 0.0, %v6926
      %6928 = vdwg.mxu0
      %6929 = vmatprep.subr.bf16.mxu0 %v6310
      %6930 = vmatpush1.bf16.msra.mxu0 %v6309
      %6931 = vmatprep.subr.bf16.mxu0 %v6290
      %6932 = vmatpush1.bf16.msra.mxu0 %v6289
      %6933 = vmatprep.subr.bf16.mxu0 %v6270
      %6934 = vmatpush1.bf16.msra.mxu0 %v6269
      %6935 = vmatprep.subr.bf16.mxu0 %v6250
      %6936 = vmatpush1.bf16.msra.mxu0 %v6249
      %6937 = vmatprep.subr.bf16.mxu0 %v6230
      %6938 = vmatpush1.bf16.msra.mxu0 %v6229
      %6939 = vmatprep.subr.bf16.mxu0 %v6210
      %6940 = vmatpush1.bf16.msra.mxu0 %v6209
      %6941 = vmatprep.subr.bf16.mxu0 %v6190
      %6942 = vmatpush1.bf16.msra.mxu0 %v6189
      %6943 = vmatprep.subr.bf16.mxu0 %v6170
      %6944 = vmatpush1.bf16.msra.mxu0 %v6169
      %6945 = vmatprep.subr.bf16.mxu0 0
      %6946 = vmatpush2.bf16.msra.mxu0 0
      %6947 = vmatprep.subr.bf16.mxu0 0
      %6948 = vmatpush2.bf16.msra.mxu0 0
      %6949 = vmatprep.subr.bf16.mxu0 0
      %6950 = vmatpush2.bf16.msra.mxu0 0
      %6951 = vmatprep.subr.bf16.mxu0 0
      %6952 = vmatpush2.bf16.msra.mxu0 0
      %6953 = vmatprep.subr.bf16.mxu0 0
      %6954 = vmatpush2.bf16.msra.mxu0 0
      %6955 = vmatprep.subr.bf16.mxu0 0
      %6956 = vmatpush2.bf16.msra.mxu0 0
      %6957 = vmatprep.subr.bf16.mxu0 0
      %6958 = vmatpush2.bf16.msra.mxu0 0
      %6959 = vmatprep.subr.bf16.mxu0 0
      %6960 = vmatpush2.bf16.msra.mxu0 0
      %6961 = vmatprep.mubr.bf16.mxu0 0
      %6962 = vmatmul.mubr.bf16.gmra.mxu0 %v6337
      %v6963 = vpop.f32.mrf.mxu0
      %v6964 = vadd.f32 0.0, %v6963
      %v6965 = vpop.f32.mrf.mxu0
      %v6966 = vadd.f32 0.0, %v6965
      %v6967 = vpop.f32.mrf.mxu0
      %v6968 = vadd.f32 0.0, %v6967
      %v6969 = vpop.f32.mrf.mxu0
      %v6970 = vadd.f32 0.0, %v6969
      %6971 = vmatprep.mubr.bf16.mxu0 0
      %6972 = vmatmul.mubr.bf16.gmra.mxu0 %v6338
      %v6973 = vpop.f32.mrf.mxu0
      %v6974 = vadd.f32 0.0, %v6973
      %v6975 = vpop.f32.mrf.mxu0
      %v6976 = vadd.f32 0.0, %v6975
      %v6977 = vpop.f32.mrf.mxu0
      %v6978 = vadd.f32 0.0, %v6977
      %v6979 = vpop.f32.mrf.mxu0
      %v6980 = vadd.f32 0.0, %v6979
      %6981 = vmatprep.mubr.bf16.mxu0 0
      %6982 = vmatmul.mubr.bf16.gmra.mxu0 %v6339
      %v6983 = vpop.f32.mrf.mxu0
      %v6984 = vadd.f32 0.0, %v6983
      %v6985 = vpop.f32.mrf.mxu0
      %v6986 = vadd.f32 0.0, %v6985
      %v6987 = vpop.f32.mrf.mxu0
      %v6988 = vadd.f32 0.0, %v6987
      %v6989 = vpop.f32.mrf.mxu0
      %v6990 = vadd.f32 0.0, %v6989
      %6991 = vmatprep.mubr.bf16.mxu0 0
      %6992 = vmatmul.mubr.bf16.gmra.mxu0 %v6340
      %v6993 = vpop.f32.mrf.mxu0
      %v6994 = vadd.f32 0.0, %v6993
      %v6995 = vpop.f32.mrf.mxu0
      %v6996 = vadd.f32 0.0, %v6995
      %v6997 = vpop.f32.mrf.mxu0
      %v6998 = vadd.f32 0.0, %v6997
      %v6999 = vpop.f32.mrf.mxu0
      %v7000 = vadd.f32 0.0, %v6999
      %7001 = vdwg.mxu0
      %7002 = vmatprep.subr.bf16.mxu0 %v6312
      %7003 = vmatpush1.bf16.msra.mxu0 %v6311
      %7004 = vmatprep.subr.bf16.mxu0 %v6292
      %7005 = vmatpush1.bf16.msra.mxu0 %v6291
      %7006 = vmatprep.subr.bf16.mxu0 %v6272
      %7007 = vmatpush1.bf16.msra.mxu0 %v6271
      %7008 = vmatprep.subr.bf16.mxu0 %v6252
      %7009 = vmatpush1.bf16.msra.mxu0 %v6251
      %7010 = vmatprep.subr.bf16.mxu0 %v6232
      %7011 = vmatpush1.bf16.msra.mxu0 %v6231
      %7012 = vmatprep.subr.bf16.mxu0 %v6212
      %7013 = vmatpush1.bf16.msra.mxu0 %v6211
      %7014 = vmatprep.subr.bf16.mxu0 %v6192
      %7015 = vmatpush1.bf16.msra.mxu0 %v6191
      %7016 = vmatprep.subr.bf16.mxu0 %v6172
      %7017 = vmatpush1.bf16.msra.mxu0 %v6171
      %7018 = vmatprep.subr.bf16.mxu0 0
      %7019 = vmatpush2.bf16.msra.mxu0 0
      %7020 = vmatprep.subr.bf16.mxu0 0
      %7021 = vmatpush2.bf16.msra.mxu0 0
      %7022 = vmatprep.subr.bf16.mxu0 0
      %7023 = vmatpush2.bf16.msra.mxu0 0
      %7024 = vmatprep.subr.bf16.mxu0 0
      %7025 = vmatpush2.bf16.msra.mxu0 0
      %7026 = vmatprep.subr.bf16.mxu0 0
      %7027 = vmatpush2.bf16.msra.mxu0 0
      %7028 = vmatprep.subr.bf16.mxu0 0
      %7029 = vmatpush2.bf16.msra.mxu0 0
      %7030 = vmatprep.subr.bf16.mxu0 0
      %7031 = vmatpush2.bf16.msra.mxu0 0
      %7032 = vmatprep.subr.bf16.mxu0 0
      %7033 = vmatpush2.bf16.msra.mxu0 0
      %7034 = vmatprep.mubr.bf16.mxu0 0
      %7035 = vmatmul.mubr.bf16.gmra.mxu0 %v6337
      %v7036 = vpop.f32.mrf.mxu0
      %v7037 = vadd.f32 0.0, %v7036
      %v7038 = vpop.f32.mrf.mxu0
      %v7039 = vadd.f32 0.0, %v7038
      %v7040 = vpop.f32.mrf.mxu0
      %v7041 = vadd.f32 0.0, %v7040
      %v7042 = vpop.f32.mrf.mxu0
      %v7043 = vadd.f32 0.0, %v7042
      %7044 = vmatprep.mubr.bf16.mxu0 0
      %7045 = vmatmul.mubr.bf16.gmra.mxu0 %v6338
      %v7046 = vpop.f32.mrf.mxu0
      %v7047 = vadd.f32 0.0, %v7046
      %v7048 = vpop.f32.mrf.mxu0
      %v7049 = vadd.f32 0.0, %v7048
      %v7050 = vpop.f32.mrf.mxu0
      %v7051 = vadd.f32 0.0, %v7050
      %v7052 = vpop.f32.mrf.mxu0
      %v7053 = vadd.f32 0.0, %v7052
      %7054 = vmatprep.mubr.bf16.mxu0 0
      %7055 = vmatmul.mubr.bf16.gmra.mxu0 %v6339
      %v7056 = vpop.f32.mrf.mxu0
      %v7057 = vadd.f32 0.0, %v7056
      %v7058 = vpop.f32.mrf.mxu0
      %v7059 = vadd.f32 0.0, %v7058
      %v7060 = vpop.f32.mrf.mxu0
      %v7061 = vadd.f32 0.0, %v7060
      %v7062 = vpop.f32.mrf.mxu0
      %v7063 = vadd.f32 0.0, %v7062
      %7064 = vmatprep.mubr.bf16.mxu0 0
      %7065 = vmatmul.mubr.bf16.gmra.mxu0 %v6340
      %v7066 = vpop.f32.mrf.mxu0
      %v7067 = vadd.f32 0.0, %v7066
      %v7068 = vpop.f32.mrf.mxu0
      %v7069 = vadd.f32 0.0, %v7068
      %v7070 = vpop.f32.mrf.mxu0
      %v7071 = vadd.f32 0.0, %v7070
      %v7072 = vpop.f32.mrf.mxu0
      %v7073 = vadd.f32 0.0, %v7072
      %7074 = vdwg.mxu0
      %v7075 = vld [vmem:[%s6] sm:$0xff]
      %v7076 = vld [vmem:[%s6 + $0x8] sm:$0xff]
      %v7077 = vld [vmem:[%s6 + $0x10] sm:$0xff]
      %v7078 = vld [vmem:[%s6 + $0x18] sm:$0xff]
      %v7079 = vld [vmem:[%s6 + $0x20] sm:$0xff]
      %v7080 = vld [vmem:[%s6 + $0x28] sm:$0xff]
      %v7081 = vld [vmem:[%s6 + $0x30] sm:$0xff]
      %v7082 = vld [vmem:[%s6 + $0x38] sm:$0xff]
      %v7083 = vpack.c.bf16 %v7076, %v7075
      %v7084 = vpack.c.bf16 %v7078, %v7077
      %v7085 = vpack.c.bf16 %v7080, %v7079
      %v7086 = vpack.c.bf16 %v7082, %v7081
      %v7087 = vpack.c.bf16 %v6384, %v6380
      %v7088 = vpack.c.bf16 %v6386, %v6382
      %v7089 = vpack.c.bf16 %v6457, %v6453
      %v7090 = vpack.c.bf16 %v6459, %v6455
      %v7091 = vpack.c.bf16 %v6530, %v6526
      %v7092 = vpack.c.bf16 %v6532, %v6528
      %v7093 = vpack.c.bf16 %v6603, %v6599
      %v7094 = vpack.c.bf16 %v6605, %v6601
      %v7095 = vpack.c.bf16 %v6676, %v6672
      %v7096 = vpack.c.bf16 %v6678, %v6674
      %v7097 = vpack.c.bf16 %v6749, %v6745
      %v7098 = vpack.c.bf16 %v6751, %v6747
      %v7099 = vpack.c.bf16 %v6822, %v6818
      %v7100 = vpack.c.bf16 %v6824, %v6820
      %v7101 = vpack.c.bf16 %v6895, %v6891
      %v7102 = vpack.c.bf16 %v6897, %v6893
      %v7103 = vpack.c.bf16 %v6968, %v6964
      %v7104 = vpack.c.bf16 %v6970, %v6966
      %v7105 = vpack.c.bf16 %v7041, %v7037
      %v7106 = vpack.c.bf16 %v7043, %v7039
      %v7107 = vpack.c.bf16 %v6394, %v6390
      %v7108 = vpack.c.bf16 %v6396, %v6392
      %v7109 = vpack.c.bf16 %v6467, %v6463
      %v7110 = vpack.c.bf16 %v6469, %v6465
      %v7111 = vpack.c.bf16 %v6540, %v6536
      %v7112 = vpack.c.bf16 %v6542, %v6538
      %v7113 = vpack.c.bf16 %v6613, %v6609
      %v7114 = vpack.c.bf16 %v6615, %v6611
      %v7115 = vpack.c.bf16 %v6686, %v6682
      %v7116 = vpack.c.bf16 %v6688, %v6684
      %v7117 = vpack.c.bf16 %v6759, %v6755
      %v7118 = vpack.c.bf16 %v6761, %v6757
      %v7119 = vpack.c.bf16 %v6832, %v6828
      %v7120 = vpack.c.bf16 %v6834, %v6830
      %v7121 = vpack.c.bf16 %v6905, %v6901
      %v7122 = vpack.c.bf16 %v6907, %v6903
      %v7123 = vpack.c.bf16 %v6978, %v6974
      %v7124 = vpack.c.bf16 %v6980, %v6976
      %v7125 = vpack.c.bf16 %v7051, %v7047
      %v7126 = vpack.c.bf16 %v7053, %v7049
      %v7127 = vpack.c.bf16 %v6404, %v6400
      %v7128 = vpack.c.bf16 %v6406, %v6402
      %v7129 = vpack.c.bf16 %v6477, %v6473
      %v7130 = vpack.c.bf16 %v6479, %v6475
      %v7131 = vpack.c.bf16 %v6550, %v6546
      %v7132 = vpack.c.bf16 %v6552, %v6548
      %v7133 = vpack.c.bf16 %v6623, %v6619
      %v7134 = vpack.c.bf16 %v6625, %v6621
      %v7135 = vpack.c.bf16 %v6696, %v6692
      %v7136 = vpack.c.bf16 %v6698, %v6694
      %v7137 = vpack.c.bf16 %v6769, %v6765
      %v7138 = vpack.c.bf16 %v6771, %v6767
      %v7139 = vpack.c.bf16 %v6842, %v6838
      %v7140 = vpack.c.bf16 %v6844, %v6840
      %v7141 = vpack.c.bf16 %v6915, %v6911
      %v7142 = vpack.c.bf16 %v6917, %v6913
      %v7143 = vpack.c.bf16 %v6988, %v6984
      %v7144 = vpack.c.bf16 %v6990, %v6986
      %v7145 = vpack.c.bf16 %v7061, %v7057
      %v7146 = vpack.c.bf16 %v7063, %v7059
      %v7147 = vpack.c.bf16 %v6414, %v6410
      %v7148 = vpack.c.bf16 %v6416, %v6412
      %v7149 = vpack.c.bf16 %v6487, %v6483
      %v7150 = vpack.c.bf16 %v6489, %v6485
      %v7151 = vpack.c.bf16 %v6560, %v6556
      %v7152 = vpack.c.bf16 %v6562, %v6558
      %v7153 = vpack.c.bf16 %v6633, %v6629
      %v7154 = vpack.c.bf16 %v6635, %v6631
      %v7155 = vpack.c.bf16 %v6706, %v6702
      %v7156 = vpack.c.bf16 %v6708, %v6704
      %v7157 = vpack.c.bf16 %v6779, %v6775
      %v7158 = vpack.c.bf16 %v6781, %v6777
      %v7159 = vpack.c.bf16 %v6852, %v6848
      %v7160 = vpack.c.bf16 %v6854, %v6850
      %v7161 = vpack.c.bf16 %v6925, %v6921
      %v7162 = vpack.c.bf16 %v6927, %v6923
      %v7163 = vpack.c.bf16 %v6998, %v6994
      %v7164 = vpack.c.bf16 %v7000, %v6996
      %v7165 = vpack.c.bf16 %v7071, %v7067
      %v7166 = vpack.c.bf16 %v7073, %v7069
      %7168 = vset.pattern.permute.xlu0 0
      %7169 = vperm.xlu0 %7168, %v7083
      %v7170 = vpop.permute.xlu0 %7169
      %7173 = vset.pattern.permute.xlu0 0
      %7174 = vperm.xlu0 %7173, %v7084
      %v7175 = vpop.permute.xlu0 %7174
      %7178 = vset.pattern.permute.xlu0 0
      %7179 = vperm.xlu0 %7178, %v7085
      %v7180 = vpop.permute.xlu0 %7179
      %7183 = vset.pattern.permute.xlu0 0
      %7184 = vperm.xlu0 %7183, %v7086
      %v7185 = vpop.permute.xlu0 %7184
      %v7187 = vadd.bf16 %v7087, %v7170
      %v7188 = vadd.bf16 %v7088, %v7170
      %v7189 = vadd.bf16 %v7089, %v7170
      %v7190 = vadd.bf16 %v7090, %v7170
      %v7191 = vadd.bf16 %v7091, %v7170
      %v7192 = vadd.bf16 %v7092, %v7170
      %v7193 = vadd.bf16 %v7093, %v7170
      %v7194 = vadd.bf16 %v7094, %v7170
      %v7195 = vadd.bf16 %v7095, %v7170
      %v7196 = vadd.bf16 %v7096, %v7170
      %v7197 = vadd.bf16 %v7097, %v7170
      %v7198 = vadd.bf16 %v7098, %v7170
      %v7199 = vadd.bf16 %v7099, %v7170
      %v7200 = vadd.bf16 %v7100, %v7170
      %v7201 = vadd.bf16 %v7101, %v7170
      %v7202 = vadd.bf16 %v7102, %v7170
      %v7203 = vadd.bf16 %v7103, %v7170
      %v7204 = vadd.bf16 %v7104, %v7170
      %v7205 = vadd.bf16 %v7105, %v7170
      %v7206 = vadd.bf16 %v7106, %v7170
      %v7207 = vadd.bf16 %v7107, %v7175
      %v7208 = vadd.bf16 %v7108, %v7175
      %v7209 = vadd.bf16 %v7109, %v7175
      %v7210 = vadd.bf16 %v7110, %v7175
      %v7211 = vadd.bf16 %v7111, %v7175
      %v7212 = vadd.bf16 %v7112, %v7175
      %v7213 = vadd.bf16 %v7113, %v7175
      %v7214 = vadd.bf16 %v7114, %v7175
      %v7215 = vadd.bf16 %v7115, %v7175
      %v7216 = vadd.bf16 %v7116, %v7175
      %v7217 = vadd.bf16 %v7117, %v7175
      %v7218 = vadd.bf16 %v7118, %v7175
      %v7219 = vadd.bf16 %v7119, %v7175
      %v7220 = vadd.bf16 %v7120, %v7175
      %v7221 = vadd.bf16 %v7121, %v7175
      %v7222 = vadd.bf16 %v7122, %v7175
      %v7223 = vadd.bf16 %v7123, %v7175
      %v7224 = vadd.bf16 %v7124, %v7175
      %v7225 = vadd.bf16 %v7125, %v7175
      %v7226 = vadd.bf16 %v7126, %v7175
      %v7227 = vadd.bf16 %v7127, %v7180
      %v7228 = vadd.bf16 %v7128, %v7180
      %v7229 = vadd.bf16 %v7129, %v7180
      %v7230 = vadd.bf16 %v7130, %v7180
      %v7231 = vadd.bf16 %v7131, %v7180
      %v7232 = vadd.bf16 %v7132, %v7180
      %v7233 = vadd.bf16 %v7133, %v7180
      %v7234 = vadd.bf16 %v7134, %v7180
      %v7235 = vadd.bf16 %v7135, %v7180
      %v7236 = vadd.bf16 %v7136, %v7180
      %v7237 = vadd.bf16 %v7137, %v7180
      %v7238 = vadd.bf16 %v7138, %v7180
      %v7239 = vadd.bf16 %v7139, %v7180
      %v7240 = vadd.bf16 %v7140, %v7180
      %v7241 = vadd.bf16 %v7141, %v7180
      %v7242 = vadd.bf16 %v7142, %v7180
      %v7243 = vadd.bf16 %v7143, %v7180
      %v7244 = vadd.bf16 %v7144, %v7180
      %v7245 = vadd.bf16 %v7145, %v7180
      %v7246 = vadd.bf16 %v7146, %v7180
      %v7247 = vadd.bf16 %v7147, %v7185
      %v7248 = vadd.bf16 %v7148, %v7185
      %v7249 = vadd.bf16 %v7149, %v7185
      %v7250 = vadd.bf16 %v7150, %v7185
      %v7251 = vadd.bf16 %v7151, %v7185
      %v7252 = vadd.bf16 %v7152, %v7185
      %v7253 = vadd.bf16 %v7153, %v7185
      %v7254 = vadd.bf16 %v7154, %v7185
      %v7255 = vadd.bf16 %v7155, %v7185
      %v7256 = vadd.bf16 %v7156, %v7185
      %v7257 = vadd.bf16 %v7157, %v7185
      %v7258 = vadd.bf16 %v7158, %v7185
      %v7259 = vadd.bf16 %v7159, %v7185
      %v7260 = vadd.bf16 %v7160, %v7185
      %v7261 = vadd.bf16 %v7161, %v7185
      %v7262 = vadd.bf16 %v7162, %v7185
      %v7263 = vadd.bf16 %v7163, %v7185
      %v7264 = vadd.bf16 %v7164, %v7185
      %v7265 = vadd.bf16 %v7165, %v7185
      %v7266 = vadd.bf16 %v7166, %v7185
      %v7267 = vmax.bf16 %v7187, 0
      %v7268 = vmax.bf16 %v7188, 0
      %v7269 = vmax.bf16 %v7189, 0
      %v7270 = vmax.bf16 %v7190, 0
      %v7271 = vmax.bf16 %v7191, 0
      %v7272 = vmax.bf16 %v7192, 0
      %v7273 = vmax.bf16 %v7193, 0
      %v7274 = vmax.bf16 %v7194, 0
      %v7275 = vmax.bf16 %v7195, 0
      %v7276 = vmax.bf16 %v7196, 0
      %v7277 = vmax.bf16 %v7197, 0
      %v7278 = vmax.bf16 %v7198, 0
      %v7279 = vmax.bf16 %v7199, 0
      %v7280 = vmax.bf16 %v7200, 0
      %v7281 = vmax.bf16 %v7201, 0
      %v7282 = vmax.bf16 %v7202, 0
      %v7283 = vmax.bf16 %v7203, 0
      %v7284 = vmax.bf16 %v7204, 0
      %v7285 = vmax.bf16 %v7205, 0
      %v7286 = vmax.bf16 %v7206, 0
      %v7287 = vmax.bf16 %v7207, 0
      %v7288 = vmax.bf16 %v7208, 0
      %v7289 = vmax.bf16 %v7209, 0
      %v7290 = vmax.bf16 %v7210, 0
      %v7291 = vmax.bf16 %v7211, 0
      %v7292 = vmax.bf16 %v7212, 0
      %v7293 = vmax.bf16 %v7213, 0
      %v7294 = vmax.bf16 %v7214, 0
      %v7295 = vmax.bf16 %v7215, 0
      %v7296 = vmax.bf16 %v7216, 0
      %v7297 = vmax.bf16 %v7217, 0
      %v7298 = vmax.bf16 %v7218, 0
      %v7299 = vmax.bf16 %v7219, 0
      %v7300 = vmax.bf16 %v7220, 0
      %v7301 = vmax.bf16 %v7221, 0
      %v7302 = vmax.bf16 %v7222, 0
      %v7303 = vmax.bf16 %v7223, 0
      %v7304 = vmax.bf16 %v7224, 0
      %v7305 = vmax.bf16 %v7225, 0
      %v7306 = vmax.bf16 %v7226, 0
      %v7307 = vmax.bf16 %v7227, 0
      %v7308 = vmax.bf16 %v7228, 0
      %v7309 = vmax.bf16 %v7229, 0
      %v7310 = vmax.bf16 %v7230, 0
      %v7311 = vmax.bf16 %v7231, 0
      %v7312 = vmax.bf16 %v7232, 0
      %v7313 = vmax.bf16 %v7233, 0
      %v7314 = vmax.bf16 %v7234, 0
      %v7315 = vmax.bf16 %v7235, 0
      %v7316 = vmax.bf16 %v7236, 0
      %v7317 = vmax.bf16 %v7237, 0
      %v7318 = vmax.bf16 %v7238, 0
      %v7319 = vmax.bf16 %v7239, 0
      %v7320 = vmax.bf16 %v7240, 0
      %v7321 = vmax.bf16 %v7241, 0
      %v7322 = vmax.bf16 %v7242, 0
      %v7323 = vmax.bf16 %v7243, 0
      %v7324 = vmax.bf16 %v7244, 0
      %v7325 = vmax.bf16 %v7245, 0
      %v7326 = vmax.bf16 %v7246, 0
      %v7327 = vmax.bf16 %v7247, 0
      %v7328 = vmax.bf16 %v7248, 0
      %v7329 = vmax.bf16 %v7249, 0
      %v7330 = vmax.bf16 %v7250, 0
      %v7331 = vmax.bf16 %v7251, 0
      %v7332 = vmax.bf16 %v7252, 0
      %v7333 = vmax.bf16 %v7253, 0
      %v7334 = vmax.bf16 %v7254, 0
      %v7335 = vmax.bf16 %v7255, 0
      %v7336 = vmax.bf16 %v7256, 0
      %v7337 = vmax.bf16 %v7257, 0
      %v7338 = vmax.bf16 %v7258, 0
      %v7339 = vmax.bf16 %v7259, 0
      %v7340 = vmax.bf16 %v7260, 0
      %v7341 = vmax.bf16 %v7261, 0
      %v7342 = vmax.bf16 %v7262, 0
      %v7343 = vmax.bf16 %v7263, 0
      %v7344 = vmax.bf16 %v7264, 0
      %v7345 = vmax.bf16 %v7265, 0
      %v7346 = vmax.bf16 %v7266, 0
      %v7347 = vld [vmem:[%s7] sm:$0xf]
      %v7348 = vld [vmem:[%s8] sm:$0xff]
      %7350 = vset.pattern.permute.xlu0 0
      %7351 = vperm.xlu0 %7350, %v7348
      %v7352 = vpop.permute.xlu0 %7351
      %vm7354 = vcmask 523264
      %v7356 = vsel %vm7354, %v7347, 0
      %7358 = vmatprep.subr.bf16.mxu0 0
      %7359 = vmatpush1.bf16.msra.mxu0 0
      %7360 = vmatprep.subr.bf16.mxu0 0
      %7361 = vmatpush1.bf16.msra.mxu0 0
      %7362 = vmatprep.subr.bf16.mxu0 0
      %7363 = vmatpush1.bf16.msra.mxu0 0
      %7364 = vmatprep.subr.bf16.mxu0 0
      %7365 = vmatpush1.bf16.msra.mxu0 0
      %7366 = vmatprep.subr.bf16.mxu0 %v7328
      %7367 = vmatpush1.bf16.msra.mxu0 %v7327
      %7368 = vmatprep.subr.bf16.mxu0 %v7308
      %7369 = vmatpush1.bf16.msra.mxu0 %v7307
      %7370 = vmatprep.subr.bf16.mxu0 %v7288
      %7371 = vmatpush1.bf16.msra.mxu0 %v7287
      %7372 = vmatprep.subr.bf16.mxu0 %v7268
      %7373 = vmatpush1.bf16.msra.mxu0 %v7267
      %7374 = vmatprep.subr.bf16.mxu0 0
      %7375 = vmatpush2.bf16.msra.mxu0 0
      %7376 = vmatprep.subr.bf16.mxu0 0
      %7377 = vmatpush2.bf16.msra.mxu0 0
      %7378 = vmatprep.subr.bf16.mxu0 0
      %7379 = vmatpush2.bf16.msra.mxu0 0
      %7380 = vmatprep.subr.bf16.mxu0 0
      %7381 = vmatpush2.bf16.msra.mxu0 0
      %7382 = vmatprep.subr.bf16.mxu0 0
      %7383 = vmatpush2.bf16.msra.mxu0 0
      %7384 = vmatprep.subr.bf16.mxu0 0
      %7385 = vmatpush2.bf16.msra.mxu0 0
      %7386 = vmatprep.subr.bf16.mxu0 0
      %7387 = vmatpush2.bf16.msra.mxu0 0
      %7388 = vmatprep.subr.bf16.mxu0 0
      %7389 = vmatpush2.bf16.msra.mxu0 0
      %7390 = vmatprep.mubr.bf16.mxu0 0
      %7391 = vmatmul.mubr.bf16.gmra.mxu0 %v7356
      %v7392 = vpop.f32.mrf.mxu0
      %v7393 = vadd.f32 %v7352, %v7392
      %v7394 = vpop.f32.mrf.mxu0
      %v7395 = vadd.f32 %v7352, %v7394
      %v7396 = vpop.f32.mrf.mxu0
      %v7397 = vpop.f32.mrf.mxu0
      %7398 = vdwg.mxu0
      %7399 = vmatprep.subr.bf16.mxu0 0
      %7400 = vmatpush1.bf16.msra.mxu0 0
      %7401 = vmatprep.subr.bf16.mxu0 0
      %7402 = vmatpush1.bf16.msra.mxu0 0
      %7403 = vmatprep.subr.bf16.mxu0 0
      %7404 = vmatpush1.bf16.msra.mxu0 0
      %7405 = vmatprep.subr.bf16.mxu0 0
      %7406 = vmatpush1.bf16.msra.mxu0 0
      %7407 = vmatprep.subr.bf16.mxu0 %v7330
      %7408 = vmatpush1.bf16.msra.mxu0 %v7329
      %7409 = vmatprep.subr.bf16.mxu0 %v7310
      %7410 = vmatpush1.bf16.msra.mxu0 %v7309
      %7411 = vmatprep.subr.bf16.mxu0 %v7290
      %7412 = vmatpush1.bf16.msra.mxu0 %v7289
      %7413 = vmatprep.subr.bf16.mxu0 %v7270
      %7414 = vmatpush1.bf16.msra.mxu0 %v7269
      %7415 = vmatprep.subr.bf16.mxu0 0
      %7416 = vmatpush2.bf16.msra.mxu0 0
      %7417 = vmatprep.subr.bf16.mxu0 0
      %7418 = vmatpush2.bf16.msra.mxu0 0
      %7419 = vmatprep.subr.bf16.mxu0 0
      %7420 = vmatpush2.bf16.msra.mxu0 0
      %7421 = vmatprep.subr.bf16.mxu0 0
      %7422 = vmatpush2.bf16.msra.mxu0 0
      %7423 = vmatprep.subr.bf16.mxu0 0
      %7424 = vmatpush2.bf16.msra.mxu0 0
      %7425 = vmatprep.subr.bf16.mxu0 0
      %7426 = vmatpush2.bf16.msra.mxu0 0
      %7427 = vmatprep.subr.bf16.mxu0 0
      %7428 = vmatpush2.bf16.msra.mxu0 0
      %7429 = vmatprep.subr.bf16.mxu0 0
      %7430 = vmatpush2.bf16.msra.mxu0 0
      %7431 = vmatprep.mubr.bf16.mxu0 0
      %7432 = vmatmul.mubr.bf16.gmra.mxu0 %v7356
      %v7433 = vpop.f32.mrf.mxu0
      %v7434 = vadd.f32 %v7352, %v7433
      %v7435 = vpop.f32.mrf.mxu0
      %v7436 = vadd.f32 %v7352, %v7435
      %v7437 = vpop.f32.mrf.mxu0
      %v7438 = vpop.f32.mrf.mxu0
      %7439 = vdwg.mxu0
      %7440 = vmatprep.subr.bf16.mxu0 0
      %7441 = vmatpush1.bf16.msra.mxu0 0
      %7442 = vmatprep.subr.bf16.mxu0 0
      %7443 = vmatpush1.bf16.msra.mxu0 0
      %7444 = vmatprep.subr.bf16.mxu0 0
      %7445 = vmatpush1.bf16.msra.mxu0 0
      %7446 = vmatprep.subr.bf16.mxu0 0
      %7447 = vmatpush1.bf16.msra.mxu0 0
      %7448 = vmatprep.subr.bf16.mxu0 %v7332
      %7449 = vmatpush1.bf16.msra.mxu0 %v7331
      %7450 = vmatprep.subr.bf16.mxu0 %v7312
      %7451 = vmatpush1.bf16.msra.mxu0 %v7311
      %7452 = vmatprep.subr.bf16.mxu0 %v7292
      %7453 = vmatpush1.bf16.msra.mxu0 %v7291
      %7454 = vmatprep.subr.bf16.mxu0 %v7272
      %7455 = vmatpush1.bf16.msra.mxu0 %v7271
      %7456 = vmatprep.subr.bf16.mxu0 0
      %7457 = vmatpush2.bf16.msra.mxu0 0
      %7458 = vmatprep.subr.bf16.mxu0 0
      %7459 = vmatpush2.bf16.msra.mxu0 0
      %7460 = vmatprep.subr.bf16.mxu0 0
      %7461 = vmatpush2.bf16.msra.mxu0 0
      %7462 = vmatprep.subr.bf16.mxu0 0
      %7463 = vmatpush2.bf16.msra.mxu0 0
      %7464 = vmatprep.subr.bf16.mxu0 0
      %7465 = vmatpush2.bf16.msra.mxu0 0
      %7466 = vmatprep.subr.bf16.mxu0 0
      %7467 = vmatpush2.bf16.msra.mxu0 0
      %7468 = vmatprep.subr.bf16.mxu0 0
      %7469 = vmatpush2.bf16.msra.mxu0 0
      %7470 = vmatprep.subr.bf16.mxu0 0
      %7471 = vmatpush2.bf16.msra.mxu0 0
      %7472 = vmatprep.mubr.bf16.mxu0 0
      %7473 = vmatmul.mubr.bf16.gmra.mxu0 %v7356
      %v7474 = vpop.f32.mrf.mxu0
      %v7475 = vadd.f32 %v7352, %v7474
      %v7476 = vpop.f32.mrf.mxu0
      %v7477 = vadd.f32 %v7352, %v7476
      %v7478 = vpop.f32.mrf.mxu0
      %v7479 = vpop.f32.mrf.mxu0
      %7480 = vdwg.mxu0
      %7481 = vmatprep.subr.bf16.mxu0 0
      %7482 = vmatpush1.bf16.msra.mxu0 0
      %7483 = vmatprep.subr.bf16.mxu0 0
      %7484 = vmatpush1.bf16.msra.mxu0 0
      %7485 = vmatprep.subr.bf16.mxu0 0
      %7486 = vmatpush1.bf16.msra.mxu0 0
      %7487 = vmatprep.subr.bf16.mxu0 0
      %7488 = vmatpush1.bf16.msra.mxu0 0
      %7489 = vmatprep.subr.bf16.mxu0 %v7334
      %7490 = vmatpush1.bf16.msra.mxu0 %v7333
      %7491 = vmatprep.subr.bf16.mxu0 %v7314
      %7492 = vmatpush1.bf16.msra.mxu0 %v7313
      %7493 = vmatprep.subr.bf16.mxu0 %v7294
      %7494 = vmatpush1.bf16.msra.mxu0 %v7293
      %7495 = vmatprep.subr.bf16.mxu0 %v7274
      %7496 = vmatpush1.bf16.msra.mxu0 %v7273
      %7497 = vmatprep.subr.bf16.mxu0 0
      %7498 = vmatpush2.bf16.msra.mxu0 0
      %7499 = vmatprep.subr.bf16.mxu0 0
      %7500 = vmatpush2.bf16.msra.mxu0 0
      %7501 = vmatprep.subr.bf16.mxu0 0
      %7502 = vmatpush2.bf16.msra.mxu0 0
      %7503 = vmatprep.subr.bf16.mxu0 0
      %7504 = vmatpush2.bf16.msra.mxu0 0
      %7505 = vmatprep.subr.bf16.mxu0 0
      %7506 = vmatpush2.bf16.msra.mxu0 0
      %7507 = vmatprep.subr.bf16.mxu0 0
      %7508 = vmatpush2.bf16.msra.mxu0 0
      %7509 = vmatprep.subr.bf16.mxu0 0
      %7510 = vmatpush2.bf16.msra.mxu0 0
      %7511 = vmatprep.subr.bf16.mxu0 0
      %7512 = vmatpush2.bf16.msra.mxu0 0
      %7513 = vmatprep.mubr.bf16.mxu0 0
      %7514 = vmatmul.mubr.bf16.gmra.mxu0 %v7356
      %v7515 = vpop.f32.mrf.mxu0
      %v7516 = vadd.f32 %v7352, %v7515
      %v7517 = vpop.f32.mrf.mxu0
      %v7518 = vadd.f32 %v7352, %v7517
      %v7519 = vpop.f32.mrf.mxu0
      %v7520 = vpop.f32.mrf.mxu0
      %7521 = vdwg.mxu0
      %7522 = vmatprep.subr.bf16.mxu0 0
      %7523 = vmatpush1.bf16.msra.mxu0 0
      %7524 = vmatprep.subr.bf16.mxu0 0
      %7525 = vmatpush1.bf16.msra.mxu0 0
      %7526 = vmatprep.subr.bf16.mxu0 0
      %7527 = vmatpush1.bf16.msra.mxu0 0
      %7528 = vmatprep.subr.bf16.mxu0 0
      %7529 = vmatpush1.bf16.msra.mxu0 0
      %7530 = vmatprep.subr.bf16.mxu0 %v7336
      %7531 = vmatpush1.bf16.msra.mxu0 %v7335
      %7532 = vmatprep.subr.bf16.mxu0 %v7316
      %7533 = vmatpush1.bf16.msra.mxu0 %v7315
      %7534 = vmatprep.subr.bf16.mxu0 %v7296
      %7535 = vmatpush1.bf16.msra.mxu0 %v7295
      %7536 = vmatprep.subr.bf16.mxu0 %v7276
      %7537 = vmatpush1.bf16.msra.mxu0 %v7275
      %7538 = vmatprep.subr.bf16.mxu0 0
      %7539 = vmatpush2.bf16.msra.mxu0 0
      %7540 = vmatprep.subr.bf16.mxu0 0
      %7541 = vmatpush2.bf16.msra.mxu0 0
      %7542 = vmatprep.subr.bf16.mxu0 0
      %7543 = vmatpush2.bf16.msra.mxu0 0
      %7544 = vmatprep.subr.bf16.mxu0 0
      %7545 = vmatpush2.bf16.msra.mxu0 0
      %7546 = vmatprep.subr.bf16.mxu0 0
      %7547 = vmatpush2.bf16.msra.mxu0 0
      %7548 = vmatprep.subr.bf16.mxu0 0
      %7549 = vmatpush2.bf16.msra.mxu0 0
      %7550 = vmatprep.subr.bf16.mxu0 0
      %7551 = vmatpush2.bf16.msra.mxu0 0
      %7552 = vmatprep.subr.bf16.mxu0 0
      %7553 = vmatpush2.bf16.msra.mxu0 0
      %7554 = vmatprep.mubr.bf16.mxu0 0
      %7555 = vmatmul.mubr.bf16.gmra.mxu0 %v7356
      %v7556 = vpop.f32.mrf.mxu0
      %v7557 = vadd.f32 %v7352, %v7556
      %v7558 = vpop.f32.mrf.mxu0
      %v7559 = vadd.f32 %v7352, %v7558
      %v7560 = vpop.f32.mrf.mxu0
      %v7561 = vpop.f32.mrf.mxu0
      %7562 = vdwg.mxu0
      %7563 = vmatprep.subr.bf16.mxu0 0
      %7564 = vmatpush1.bf16.msra.mxu0 0
      %7565 = vmatprep.subr.bf16.mxu0 0
      %7566 = vmatpush1.bf16.msra.mxu0 0
      %7567 = vmatprep.subr.bf16.mxu0 0
      %7568 = vmatpush1.bf16.msra.mxu0 0
      %7569 = vmatprep.subr.bf16.mxu0 0
      %7570 = vmatpush1.bf16.msra.mxu0 0
      %7571 = vmatprep.subr.bf16.mxu0 %v7338
      %7572 = vmatpush1.bf16.msra.mxu0 %v7337
      %7573 = vmatprep.subr.bf16.mxu0 %v7318
      %7574 = vmatpush1.bf16.msra.mxu0 %v7317
      %7575 = vmatprep.subr.bf16.mxu0 %v7298
      %7576 = vmatpush1.bf16.msra.mxu0 %v7297
      %7577 = vmatprep.subr.bf16.mxu0 %v7278
      %7578 = vmatpush1.bf16.msra.mxu0 %v7277
      %7579 = vmatprep.subr.bf16.mxu0 0
      %7580 = vmatpush2.bf16.msra.mxu0 0
      %7581 = vmatprep.subr.bf16.mxu0 0
      %7582 = vmatpush2.bf16.msra.mxu0 0
      %7583 = vmatprep.subr.bf16.mxu0 0
      %7584 = vmatpush2.bf16.msra.mxu0 0
      %7585 = vmatprep.subr.bf16.mxu0 0
      %7586 = vmatpush2.bf16.msra.mxu0 0
      %7587 = vmatprep.subr.bf16.mxu0 0
      %7588 = vmatpush2.bf16.msra.mxu0 0
      %7589 = vmatprep.subr.bf16.mxu0 0
      %7590 = vmatpush2.bf16.msra.mxu0 0
      %7591 = vmatprep.subr.bf16.mxu0 0
      %7592 = vmatpush2.bf16.msra.mxu0 0
      %7593 = vmatprep.subr.bf16.mxu0 0
      %7594 = vmatpush2.bf16.msra.mxu0 0
      %7595 = vmatprep.mubr.bf16.mxu0 0
      %7596 = vmatmul.mubr.bf16.gmra.mxu0 %v7356
      %v7597 = vpop.f32.mrf.mxu0
      %v7598 = vadd.f32 %v7352, %v7597
      %v7599 = vpop.f32.mrf.mxu0
      %v7600 = vadd.f32 %v7352, %v7599
      %v7601 = vpop.f32.mrf.mxu0
      %v7602 = vpop.f32.mrf.mxu0
      %7603 = vdwg.mxu0
      %7604 = vmatprep.subr.bf16.mxu0 0
      %7605 = vmatpush1.bf16.msra.mxu0 0
      %7606 = vmatprep.subr.bf16.mxu0 0
      %7607 = vmatpush1.bf16.msra.mxu0 0
      %7608 = vmatprep.subr.bf16.mxu0 0
      %7609 = vmatpush1.bf16.msra.mxu0 0
      %7610 = vmatprep.subr.bf16.mxu0 0
      %7611 = vmatpush1.bf16.msra.mxu0 0
      %7612 = vmatprep.subr.bf16.mxu0 %v7340
      %7613 = vmatpush1.bf16.msra.mxu0 %v7339
      %7614 = vmatprep.subr.bf16.mxu0 %v7320
      %7615 = vmatpush1.bf16.msra.mxu0 %v7319
      %7616 = vmatprep.subr.bf16.mxu0 %v7300
      %7617 = vmatpush1.bf16.msra.mxu0 %v7299
      %7618 = vmatprep.subr.bf16.mxu0 %v7280
      %7619 = vmatpush1.bf16.msra.mxu0 %v7279
      %7620 = vmatprep.subr.bf16.mxu0 0
      %7621 = vmatpush2.bf16.msra.mxu0 0
      %7622 = vmatprep.subr.bf16.mxu0 0
      %7623 = vmatpush2.bf16.msra.mxu0 0
      %7624 = vmatprep.subr.bf16.mxu0 0
      %7625 = vmatpush2.bf16.msra.mxu0 0
      %7626 = vmatprep.subr.bf16.mxu0 0
      %7627 = vmatpush2.bf16.msra.mxu0 0
      %7628 = vmatprep.subr.bf16.mxu0 0
      %7629 = vmatpush2.bf16.msra.mxu0 0
      %7630 = vmatprep.subr.bf16.mxu0 0
      %7631 = vmatpush2.bf16.msra.mxu0 0
      %7632 = vmatprep.subr.bf16.mxu0 0
      %7633 = vmatpush2.bf16.msra.mxu0 0
      %7634 = vmatprep.subr.bf16.mxu0 0
      %7635 = vmatpush2.bf16.msra.mxu0 0
      %7636 = vmatprep.mubr.bf16.mxu0 0
      %7637 = vmatmul.mubr.bf16.gmra.mxu0 %v7356
      %v7638 = vpop.f32.mrf.mxu0
      %v7639 = vadd.f32 %v7352, %v7638
      %v7640 = vpop.f32.mrf.mxu0
      %v7641 = vadd.f32 %v7352, %v7640
      %v7642 = vpop.f32.mrf.mxu0
      %v7643 = vpop.f32.mrf.mxu0
      %7644 = vdwg.mxu0
      %7645 = vmatprep.subr.bf16.mxu0 0
      %7646 = vmatpush1.bf16.msra.mxu0 0
      %7647 = vmatprep.subr.bf16.mxu0 0
      %7648 = vmatpush1.bf16.msra.mxu0 0
      %7649 = vmatprep.subr.bf16.mxu0 0
      %7650 = vmatpush1.bf16.msra.mxu0 0
      %7651 = vmatprep.subr.bf16.mxu0 0
      %7652 = vmatpush1.bf16.msra.mxu0 0
      %7653 = vmatprep.subr.bf16.mxu0 %v7342
      %7654 = vmatpush1.bf16.msra.mxu0 %v7341
      %7655 = vmatprep.subr.bf16.mxu0 %v7322
      %7656 = vmatpush1.bf16.msra.mxu0 %v7321
      %7657 = vmatprep.subr.bf16.mxu0 %v7302
      %7658 = vmatpush1.bf16.msra.mxu0 %v7301
      %7659 = vmatprep.subr.bf16.mxu0 %v7282
      %7660 = vmatpush1.bf16.msra.mxu0 %v7281
      %7661 = vmatprep.subr.bf16.mxu0 0
      %7662 = vmatpush2.bf16.msra.mxu0 0
      %7663 = vmatprep.subr.bf16.mxu0 0
      %7664 = vmatpush2.bf16.msra.mxu0 0
      %7665 = vmatprep.subr.bf16.mxu0 0
      %7666 = vmatpush2.bf16.msra.mxu0 0
      %7667 = vmatprep.subr.bf16.mxu0 0
      %7668 = vmatpush2.bf16.msra.mxu0 0
      %7669 = vmatprep.subr.bf16.mxu0 0
      %7670 = vmatpush2.bf16.msra.mxu0 0
      %7671 = vmatprep.subr.bf16.mxu0 0
      %7672 = vmatpush2.bf16.msra.mxu0 0
      %7673 = vmatprep.subr.bf16.mxu0 0
      %7674 = vmatpush2.bf16.msra.mxu0 0
      %7675 = vmatprep.subr.bf16.mxu0 0
      %7676 = vmatpush2.bf16.msra.mxu0 0
      %7677 = vmatprep.mubr.bf16.mxu0 0
      %7678 = vmatmul.mubr.bf16.gmra.mxu0 %v7356
      %v7679 = vpop.f32.mrf.mxu0
      %v7680 = vadd.f32 %v7352, %v7679
      %v7681 = vpop.f32.mrf.mxu0
      %v7682 = vadd.f32 %v7352, %v7681
      %v7683 = vpop.f32.mrf.mxu0
      %v7684 = vpop.f32.mrf.mxu0
      %7685 = vdwg.mxu0
      %7686 = vmatprep.subr.bf16.mxu0 0
      %7687 = vmatpush1.bf16.msra.mxu0 0
      %7688 = vmatprep.subr.bf16.mxu0 0
      %7689 = vmatpush1.bf16.msra.mxu0 0
      %7690 = vmatprep.subr.bf16.mxu0 0
      %7691 = vmatpush1.bf16.msra.mxu0 0
      %7692 = vmatprep.subr.bf16.mxu0 0
      %7693 = vmatpush1.bf16.msra.mxu0 0
      %7694 = vmatprep.subr.bf16.mxu0 %v7344
      %7695 = vmatpush1.bf16.msra.mxu0 %v7343
      %7696 = vmatprep.subr.bf16.mxu0 %v7324
      %7697 = vmatpush1.bf16.msra.mxu0 %v7323
      %7698 = vmatprep.subr.bf16.mxu0 %v7304
      %7699 = vmatpush1.bf16.msra.mxu0 %v7303
      %7700 = vmatprep.subr.bf16.mxu0 %v7284
      %7701 = vmatpush1.bf16.msra.mxu0 %v7283
      %7702 = vmatprep.subr.bf16.mxu0 0
      %7703 = vmatpush2.bf16.msra.mxu0 0
      %7704 = vmatprep.subr.bf16.mxu0 0
      %7705 = vmatpush2.bf16.msra.mxu0 0
      %7706 = vmatprep.subr.bf16.mxu0 0
      %7707 = vmatpush2.bf16.msra.mxu0 0
      %7708 = vmatprep.subr.bf16.mxu0 0
      %7709 = vmatpush2.bf16.msra.mxu0 0
      %7710 = vmatprep.subr.bf16.mxu0 0
      %7711 = vmatpush2.bf16.msra.mxu0 0
      %7712 = vmatprep.subr.bf16.mxu0 0
      %7713 = vmatpush2.bf16.msra.mxu0 0
      %7714 = vmatprep.subr.bf16.mxu0 0
      %7715 = vmatpush2.bf16.msra.mxu0 0
      %7716 = vmatprep.subr.bf16.mxu0 0
      %7717 = vmatpush2.bf16.msra.mxu0 0
      %7718 = vmatprep.mubr.bf16.mxu0 0
      %7719 = vmatmul.mubr.bf16.gmra.mxu0 %v7356
      %v7720 = vpop.f32.mrf.mxu0
      %v7721 = vadd.f32 %v7352, %v7720
      %v7722 = vpop.f32.mrf.mxu0
      %v7723 = vadd.f32 %v7352, %v7722
      %v7724 = vpop.f32.mrf.mxu0
      %v7725 = vpop.f32.mrf.mxu0
      %7726 = vdwg.mxu0
      %7727 = vmatprep.subr.bf16.mxu0 0
      %7728 = vmatpush1.bf16.msra.mxu0 0
      %7729 = vmatprep.subr.bf16.mxu0 0
      %7730 = vmatpush1.bf16.msra.mxu0 0
      %7731 = vmatprep.subr.bf16.mxu0 0
      %7732 = vmatpush1.bf16.msra.mxu0 0
      %7733 = vmatprep.subr.bf16.mxu0 0
      %7734 = vmatpush1.bf16.msra.mxu0 0
      %7735 = vmatprep.subr.bf16.mxu0 %v7346
      %7736 = vmatpush1.bf16.msra.mxu0 %v7345
      %7737 = vmatprep.subr.bf16.mxu0 %v7326
      %7738 = vmatpush1.bf16.msra.mxu0 %v7325
      %7739 = vmatprep.subr.bf16.mxu0 %v7306
      %7740 = vmatpush1.bf16.msra.mxu0 %v7305
      %7741 = vmatprep.subr.bf16.mxu0 %v7286
      %7742 = vmatpush1.bf16.msra.mxu0 %v7285
      %7743 = vmatprep.subr.bf16.mxu0 0
      %7744 = vmatpush2.bf16.msra.mxu0 0
      %7745 = vmatprep.subr.bf16.mxu0 0
      %7746 = vmatpush2.bf16.msra.mxu0 0
      %7747 = vmatprep.subr.bf16.mxu0 0
      %7748 = vmatpush2.bf16.msra.mxu0 0
      %7749 = vmatprep.subr.bf16.mxu0 0
      %7750 = vmatpush2.bf16.msra.mxu0 0
      %7751 = vmatprep.subr.bf16.mxu0 0
      %7752 = vmatpush2.bf16.msra.mxu0 0
      %7753 = vmatprep.subr.bf16.mxu0 0
      %7754 = vmatpush2.bf16.msra.mxu0 0
      %7755 = vmatprep.subr.bf16.mxu0 0
      %7756 = vmatpush2.bf16.msra.mxu0 0
      %7757 = vmatprep.subr.bf16.mxu0 0
      %7758 = vmatpush2.bf16.msra.mxu0 0
      %7759 = vmatprep.mubr.bf16.mxu0 0
      %7760 = vmatmul.mubr.bf16.gmra.mxu0 %v7356
      %v7761 = vpop.f32.mrf.mxu0
      %v7762 = vadd.f32 %v7352, %v7761
      %v7763 = vpop.f32.mrf.mxu0
      %v7764 = vadd.f32 %v7352, %v7763
      %v7765 = vpop.f32.mrf.mxu0
      %v7766 = vpop.f32.mrf.mxu0
      %7767 = vdwg.mxu0
      %v7768 = vtanh.pop %v7393
      %v7769 = vtanh.pop %v7395
      %v7770 = vtanh.pop %v7434
      %v7771 = vtanh.pop %v7436
      %v7772 = vtanh.pop %v7475
      %v7773 = vtanh.pop %v7477
      %v7774 = vtanh.pop %v7516
      %v7775 = vtanh.pop %v7518
      %v7776 = vtanh.pop %v7557
      %v7777 = vtanh.pop %v7559
      %v7778 = vtanh.pop %v7598
      %v7779 = vtanh.pop %v7600
      %v7780 = vtanh.pop %v7639
      %v7781 = vtanh.pop %v7641
      %v7782 = vtanh.pop %v7680
      %v7783 = vtanh.pop %v7682
      %v7784 = vtanh.pop %v7721
      %v7785 = vtanh.pop %v7723
      %v7786 = vtanh.pop %v7762
      %v7787 = vtanh.pop %v7764
      %7788 = vst [vmem:[%s370] sm:$0xff] %v7768
      %7789 = vst [vmem:[%s370 + $0x8] sm:$0xff] %v7769
      %7790 = vst [vmem:[%s370 + $0x10] sm:$0xff] %v7770
      %7791 = vst [vmem:[%s370 + $0x18] sm:$0xff] %v7771
      %7792 = vst [vmem:[%s370 + $0x20] sm:$0xff] %v7772
      %7793 = vst [vmem:[%s370 + $0x28] sm:$0xff] %v7773
      %7794 = vst [vmem:[%s370 + $0x30] sm:$0xff] %v7774
      %7795 = vst [vmem:[%s370 + $0x38] sm:$0xff] %v7775
      %7796 = vst [vmem:[%s370 + $0x40] sm:$0xff] %v7776
      %7797 = vst [vmem:[%s370 + $0x48] sm:$0xff] %v7777
      %7798 = vst [vmem:[%s370 + $0x50] sm:$0xff] %v7778
      %7799 = vst [vmem:[%s370 + $0x58] sm:$0xff] %v7779
      %7800 = vst [vmem:[%s370 + $0x60] sm:$0xff] %v7780
      %7801 = vst [vmem:[%s370 + $0x68] sm:$0xff] %v7781
      %7802 = vst [vmem:[%s370 + $0x70] sm:$0xff] %v7782
      %7803 = vst [vmem:[%s370 + $0x78] sm:$0xff] %v7783
      %7804 = vst [vmem:[%s370 + $0x80] sm:$0xff] %v7784
      %7805 = vst [vmem:[%s370 + $0x88] sm:$0xff] %v7785
      %7806 = vst [vmem:[%s370 + $0x90] sm:$0xff] %v7786
      %7807 = vst [vmem:[%s370 + $0x98] sm:$0xff] %v7787
      %s7808 = smul.u32 20, %s25
      %p7809 = scmp.lt.s32.totalorder %s24, 1
      %s7810 = scalar_select %p7809, %s24, 1
      %p7811 = scmp.lt.s32.totalorder %s7808, 19
      %s7812 = scalar_select %p7811, %s7808, 19
      %s7813 = smul.addr %s7810, 20
      %s7814 = sadd.s32 %s7812, %s7813
      %s7815 = smul.addr %s7814, 8
      %s7816 = scalar_lea.vmem %s9, %s7815
      // Predicated region
      $region57: #{pointgencon_forward.1} parent=55 // pred_check
        %p7817 = pneg %p248
      $region58: #{pointgencon_forward.1} parent=55 // pred_check_branch
        %7819 = sbr.rel (%p7817) target = $region60
      $region59: #{pointgencon_forward.1} parent=55 // pred_region
        %s7820 = smul.u32 20, %s25
      $region60: #{pointgencon_forward.1} parent=55 // pred_fallthru
        _
    $region56: #{pointgencon_forward.1} parent=5 // pred_fallthru
      _
    %p7821 = scmp.le.s32.totalorder 2, %s15
    // Predicated region
    $region61: #{pointgencon_forward.1} parent=5 // pred_check
      %p7822 = pneg %p7821
    $region62: #{pointgencon_forward.1} parent=5 // pred_check_branch
      %7824 = sbr.rel (%p7822) target = $region64
    $region63: #{pointgencon_forward.1} parent=5 // pred_region
      %s7825 = ssub.s32 %s15, 2
      // Predicated region
      $region65: #{pointgencon_forward.1} parent=63 // pred_check
        %p7826 = pneg %p254
      $region66: #{pointgencon_forward.1} parent=63 // pred_check_branch
        %7828 = sbr.rel (%p7826) target = $region68
      $region67: #{pointgencon_forward.1} parent=63 // pred_region
        %s7829 = smul.u32 20, %s27
        %p7830 = scmp.lt.s32.totalorder %s26, 1
        %s7831 = scalar_select %p7830, %s26, 1
        %p7832 = scmp.lt.s32.totalorder %s7829, 19
        %s7833 = scalar_select %p7832, %s7829, 19
        %s7834 = smul.addr %s7831, 20
        %s7835 = sadd.s32 %s7833, %s7834
        %s7836 = smul.addr %s7835, 8
        %s7837 = scalar_lea.vmem %s9, %s7836
      $region68: #{pointgencon_forward.1} parent=63 // pred_fallthru
        _
    $region64: #{pointgencon_forward.1} parent=5 // pred_fallthru
      _
  $region6: #{pointgencon_forward.1} parent=0 // loop_footer
    %s19 = sadd.s32 1, %s15
  $region7: #{pointgencon_forward.1} parent=0 // loop_footer_branch
    %14 = sbr.rel target = $region3
  $region8: #{pointgencon_forward.1} parent=0 // loop_exit
    _

</llo_original>
